<compile_context>
chip_gen: v7x
topology: tpu7x:2x2x1
jax: 0.10.0
libtpu: 0.0.40
codegen_flags: <defaults>
</compile_context>

<pallas_src>
import jax
import jax.numpy as jnp
from jax.experimental import pallas as pl
from jax.experimental.pallas import tpu as pltpu

EPS = 1e-5


# --------------------------------- kernels -----------------------------------

def _fc_fused_kernel(z_ref, w1_ref, g1_ref, be1_ref, w2_ref, g2_ref, be2_ref, o_ref):
    """Linear(nz,1024)->BN1d->ReLU->Linear(1024,6272)[N tile]->BN1d->ReLU.

    fc1 (~65K MACs) is recomputed per N tile so each grid step is independent.
    BN stats are exact because tiling is only over N (full batch in M).
    """
    z = z_ref[...].astype(jnp.bfloat16)
    h = jnp.dot(z, w1_ref[...], preferred_element_type=jnp.float32)       # (B, 1024)
    mu1 = jnp.mean(h, axis=0, keepdims=True)
    d1 = h - mu1
    var1 = jnp.mean(d1 * d1, axis=0, keepdims=True)                       # biased var
    h = jnp.maximum(g1_ref[...] * d1 * jax.lax.rsqrt(var1 + EPS) + be1_ref[...], 0.0)

    y = jnp.dot(h.astype(jnp.bfloat16), w2_ref[...],
                preferred_element_type=jnp.float32)                       # (B, block_n)
    mu2 = jnp.mean(y, axis=0, keepdims=True)
    d2 = y - mu2
    var2 = jnp.mean(d2 * d2, axis=0, keepdims=True)
    y = jnp.maximum(g2_ref[...] * d2 * jax.lax.rsqrt(var2 + EPS) + be2_ref[...], 0.0)
    o_ref[...] = y.astype(o_ref.dtype)


def _deconv1_bn_relu_kernel(p_ref, w_ref, g_ref, be_ref, o_ref):
    """(B*7*7, 9*128) @ (9*128, 4*64) parity-combined GEMM + BatchNorm2d(64) + ReLU.

    Output columns are ordered (parity, channel); per-channel BN2d statistics
    pool the 4 parity column-blocks and all rows (== over all B*14*14 pixels).
    """
    y = jnp.dot(p_ref[...], w_ref[...], preferred_element_type=jnp.float32)   # (M, 4C)
    M = y.shape[0]
    C = g_ref.shape[1]
    cnt = 4.0 * M                                                             # B*Ho*Wo

    s = jnp.sum(y, axis=0, keepdims=True)                                     # (1, 4C)
    mean_c = (s[:, 0:C] + s[:, C:2 * C] + s[:, 2 * C:3 * C] + s[:, 3 * C:4 * C]) / cnt
    mean = jnp.concatenate([mean_c] * 4, axis=1)                              # (1, 4C)
    d = y - mean
    ss = jnp.sum(d * d, axis=0, keepdims=True)
    var_c = (ss[:, 0:C] + ss[:, C:2 * C] + ss[:, 2 * C:3 * C] + ss[:, 3 * C:4 * C]) / cnt
    scale_c = g_ref[...] * jax.lax.rsqrt(var_c + EPS)                         # (1, C)
    scale = jnp.concatenate([scale_c] * 4, axis=1)
    shift = jnp.concatenate([be_ref[...]] * 4, axis=1)
    o_ref[...] = jnp.maximum(d * scale + shift, 0.0).astype(o_ref.dtype)


def _deconv2_sigmoid_kernel(w_ref, p_ref, b_ref, o_ref):
    """Transposed parity-combined GEMM (4, 9*64) @ (9*64, B*14*14) + bias + sigmoid.

    Transposed so the output minor dim (B*196 = 392) is lane-dense instead of
    Cout = 1 (which would be a fully masked 1/128-lane store).
    """
    y = jnp.dot(w_ref[...], p_ref[...], preferred_element_type=jnp.float32)   # (4, M)
    y = y + b_ref[...]                                                        # (1,1) bcast
    e = jnp.exp(-y)                                                           # EUP
    s = pl.reciprocal(1.0 + e, approx=True)                                   # EUP
    o_ref[...] = jnp.clip(s, 0.0, 1.0)


# --------------------------- pallas_call wrappers -----------------------------

def fc_forward(z, w1, g1, be1, w2, g2, be2, block_n=896):
    B, nz = z.shape
    N1 = w1.shape[1]
    N2 = w2.shape[1]
    assert N2 % block_n == 0 and block_n % 128 == 0
    return pl.pallas_call(
        _fc_fused_kernel,
        out_shape=jax.ShapeDtypeStruct((B, N2), jnp.bfloat16),
        grid=(N2 // block_n,),
        in_specs=[
            pl.BlockSpec((B, nz), lambda j: (0, 0)),
            pl.BlockSpec((nz, N1), lambda j: (0, 0)),
            pl.BlockSpec((1, N1), lambda j: (0, 0)),
            pl.BlockSpec((1, N1), lambda j: (0, 0)),
            pl.BlockSpec((N1, block_n), lambda j: (0, j)),
            pl.BlockSpec((1, block_n), lambda j: (0, j)),
            pl.BlockSpec((1, block_n), lambda j: (0, j)),
        ],
        out_specs=pl.BlockSpec((B, block_n), lambda j: (0, j)),
        compiler_params=pltpu.CompilerParams(dimension_semantics=("parallel",)),
    )(z, w1, g1, be1, w2, g2, be2)


def deconv1_bn_relu(patches, w, g, be):
    M, K = patches.shape
    N = w.shape[1]
    return pl.pallas_call(
        _deconv1_bn_relu_kernel,
        out_shape=jax.ShapeDtypeStruct((M, N), jnp.bfloat16),
        grid=(1,),
        in_specs=[
            pl.BlockSpec((M, K), lambda i: (0, 0)),
            pl.BlockSpec((K, N), lambda i: (0, 0)),
            pl.BlockSpec((1, g.shape[1]), lambda i: (0, 0)),
            pl.BlockSpec((1, be.shape[1]), lambda i: (0, 0)),
        ],
        out_specs=pl.BlockSpec((M, N), lambda i: (0, 0)),
    )(patches, w, g, be)


def deconv2_sigmoid(wt, patches_t, b):
    P, K = wt.shape
    M = patches_t.shape[1]
    return pl.pallas_call(
        _deconv2_sigmoid_kernel,
        out_shape=jax.ShapeDtypeStruct((P, M), jnp.float32),
        grid=(1,),
        in_specs=[
            pl.BlockSpec((P, K), lambda i: (0, 0)),
            pl.BlockSpec((K, M), lambda i: (0, 0)),
            pl.BlockSpec((1, 1), lambda i: (0, 0)),
        ],
        out_specs=pl.BlockSpec((P, M), lambda i: (0, 0)),
    )(wt, patches_t, b)


# ----------------------------------- glue -------------------------------------

def _patches3x3(xp, Ho, Wo):
    # xp: (B, Ho+2, Wo+2, C) -> (B*Ho*Wo, 9*C); K order (dh, dw, c)
    # TODO(synk): patch gather left as XLA glue (reshape/slice/concat); an
    # in-kernel pl.ds gather would avoid this small HBM roundtrip.
    cols = [xp[:, dh:dh + Ho, dw:dw + Wo, :] for dh in range(3) for dw in range(3)]
    return jnp.concatenate(cols, axis=-1).reshape(-1, 9 * xp.shape[-1])


def _deconv_weight_combined(wt):
    """PyTorch ConvTranspose2d weight (Cin, Cout, 4, 4) -> (9*Cin, 4*Cout).

    Output parity (rh, rw) = (ho%2, wo%2) turns the k=4,s=2,p=1 transposed conv
    into four stride-1 2x2 convs over the 1-padded input; all four read the
    same 3x3 window, so they fuse into one GEMM with a 4/9-dense weight.
    Rows ordered (dh, dw, cin); columns ordered (rh, rw, cout).
    Per-parity tap weight: W[ci, co, 3-2*dh-rh, 3-2*dw-rw].
    """
    Cin, Cout = wt.shape[0], wt.shape[1]
    blocks = []
    for rh in range(2):
        for rw in range(2):
            wp = jnp.stack(
                [jnp.stack([wt[:, :, 3 - 2 * dh - rh, 3 - 2 * dw - rw]
                            for dw in range(2)], axis=0)
                 for dh in range(2)], axis=0)                         # (2,2,Cin,Cout)
            wp = jnp.pad(wp, ((rh, 1 - rh), (rw, 1 - rw), (0, 0), (0, 0)))
            blocks.append(wp)                                         # (3,3,Cin,Cout)
    wc = jnp.stack(blocks, axis=3)                                    # (3,3,Cin,4,Cout)
    return wc.reshape(9 * Cin, 4 * Cout)


# ------------------------------- parameters -----------------------------------

def init_params(key, nz):
    ks = jax.random.split(key, 8)

    def n(k, shape, scale=0.05):
        return (scale * jax.random.normal(k, shape)).astype(jnp.float32)

    p = {}
    # fc: Linear(nz,1024)+BN1d, Linear(1024,6272)+BN1d   (PyTorch layouts)
    p["w1"], p["b1"] = n(ks[0], (nz, 1024)), n(ks[1], (1024,))
    p["g1"], p["beta1"] = jnp.ones((1024,), jnp.float32), jnp.zeros((1024,), jnp.float32)
    p["w2"], p["b2"] = n(ks[2], (1024, 128 * 7 * 7)), n(ks[3], (128 * 7 * 7,))
    p["g2"], p["beta2"] = jnp.ones((128 * 7 * 7,), jnp.float32), jnp.zeros((128 * 7 * 7,), jnp.float32)
    # deconv: ConvTranspose2d weights in PyTorch layout (Cin, Cout, KH, KW)
    p["wd1"], p["bd1"] = n(ks[4], (128, 64, 4, 4)), n(ks[5], (64,))
    p["gd1"], p["betad1"] = jnp.ones((64,), jnp.float32), jnp.zeros((64,), jnp.float32)
    p["wd2"], p["bd2"] = n(ks[6], (64, 1, 4, 4)), n(ks[7], (1,))
    # TODO(synk): BatchNorm running-stat buffer updates (training bookkeeping)
    # are not modeled; they do not affect the training-mode forward output.
    return p


def prepare_params(p):
    """One-time conversion to kernel-ready layout (bf16 GEMM weights, combined
    parity deconv weights, row-vector BN affine params).  b1/b2/bd1 are
    dropped: a bias added right before a training-mode (batch-stat) BatchNorm
    cancels exactly, so the forward output is unchanged."""
    return {
        "w1": p["w1"].astype(jnp.bfloat16),
        "g1": p["g1"].reshape(1, -1),
        "beta1": p["beta1"].reshape(1, -1),
        "w2": p["w2"].astype(jnp.bfloat16),
        "g2": p["g2"].reshape(1, -1),
        "beta2": p["beta2"].reshape(1, -1),
        "wd1c": _deconv_weight_combined(p["wd1"]).astype(jnp.bfloat16),     # (1152, 256)
        "gd1": p["gd1"].reshape(1, -1),
        "betad1": p["betad1"].reshape(1, -1),
        "wd2ct": _deconv_weight_combined(p["wd2"]).T.astype(jnp.bfloat16),  # (4, 576)
        "bd2": p["bd2"].reshape(1, 1).astype(jnp.float32),
    }


# ------------------------------ model forward ---------------------------------

def generator_emnist_forward(z, q):
    B = z.shape[0]
    # fc block: one fused pallas_call -> (B, 6272) bf16
    h = fc_forward(z, q["w1"], q["g1"], q["beta1"], q["w2"], q["g2"], q["beta2"])
    # view(-1, 128, 7, 7) (NCHW) -> NHWC
    x = h.reshape(B, 128, 7, 7).transpose(0, 2, 3, 1)                  # (B,7,7,128)

    # deconv1: ConvTranspose2d(128,64,4,2,1)+BN2d+ReLU as one parity-combined GEMM
    xp = jnp.pad(x, ((0, 0), (1, 1), (1, 1), (0, 0)))                  # (B,9,9,128)
    pat = _patches3x3(xp, 7, 7)                                        # (B*49, 1152)
    y = deconv1_bn_relu(pat, q["wd1c"], q["gd1"], q["betad1"])         # (B*49, 256)
    x = (y.reshape(B, 7, 7, 2, 2, 64)                                  # (b,ph,pw,rh,rw,c)
          .transpose(0, 1, 3, 2, 4, 5)
          .reshape(B, 14, 14, 64))                                     # (B,14,14,64)

    # deconv2: ConvTranspose2d(64,1,4,2,1)+Sigmoid, transposed lane-dense GEMM
    xp = jnp.pad(x, ((0, 0), (1, 1), (1, 1), (0, 0)))                  # (B,16,16,64)
    pat_t = _patches3x3(xp, 14, 14).T                                  # (576, B*196)
    yt = deconv2_sigmoid(q["wd2ct"], pat_t, q["bd2"])                  # (4, B*196) f32
    img = (yt.reshape(2, 2, B, 14, 14)                                 # (rh,rw,b,ph,pw)
             .transpose(2, 3, 0, 4, 1)
             .reshape(B, 28, 28))
    return img[:, None, :, :]                                          # (B,1,28,28)


if __name__ == "__main__":
    nz = 32
    B = 2
    key = jax.random.PRNGKey(0)
    k_in, k_par = jax.random.split(key)
    z = jax.random.normal(k_in, (B, nz), dtype=jnp.float32)
    params = prepare_params(init_params(k_par, nz))

    out = jax.jit(generator_emnist_forward)(z, params)
    out = jax.block_until_ready(out)

    assert out.shape == (B, 1, 28, 28), out.shape
    assert bool(jnp.all(jnp.isfinite(out)))
    assert bool(jnp.all((out >= 0.0) & (out <= 1.0)))
    print("KERNEL_OK")
</pallas_src>

<mosaic_0001>
module attributes {stable_mosaic.version = 11 : i64} {
  func.func @_fc_fused_kernel(%arg0: i32, %arg1: memref<2x32xf32, #tpu.memory_space<vmem>>, %arg2: memref<32x1024xbf16, #tpu.memory_space<vmem>>, %arg3: memref<1x1024xf32, #tpu.memory_space<vmem>>, %arg4: memref<1x1024xf32, #tpu.memory_space<vmem>>, %arg5: memref<1024x896xbf16, #tpu.memory_space<vmem>>, %arg6: memref<1x896xf32, #tpu.memory_space<vmem>>, %arg7: memref<1x896xf32, #tpu.memory_space<vmem>>, %arg8: memref<2x896xbf16, #tpu.memory_space<vmem>>) attributes {dimension_semantics = [#tpu.dimension_semantics<parallel>], iteration_bounds = array<i64: 7>, scalar_prefetch = 0 : i64, scratch_operands = 0 : i64, tpu.core_type = #tpu.core_type<tc>, window_params = [{pipeline_mode = #tpu.pipeline_mode<synchronous>, transform_indices = @transform_0, window_bounds = array<i64: 2, 32>}, {pipeline_mode = #tpu.pipeline_mode<synchronous>, transform_indices = @transform_1, window_bounds = array<i64: 32, 1024>}, {pipeline_mode = #tpu.pipeline_mode<synchronous>, transform_indices = @transform_2, window_bounds = array<i64: 1, 1024>}, {pipeline_mode = #tpu.pipeline_mode<synchronous>, transform_indices = @transform_3, window_bounds = array<i64: 1, 1024>}, {transform_indices = @transform_4, window_bounds = array<i64: 1024, 896>}, {transform_indices = @transform_5, window_bounds = array<i64: 1, 896>}, {transform_indices = @transform_6, window_bounds = array<i64: 1, 896>}, {transform_indices = @transform_7, window_bounds = array<i64: 2, 896>}]} {
    %c0 = arith.constant 0 : index
    %c0_0 = arith.constant 0 : index
    %0 = vector.load %arg1[%c0, %c0_0] : memref<2x32xf32, #tpu.memory_space<vmem>>, vector<2x32xf32>
    %1 = arith.truncf %0 : vector<2x32xf32> to vector<2x32xbf16>
    %c0_1 = arith.constant 0 : index
    %c0_2 = arith.constant 0 : index
    %2 = vector.load %arg2[%c0_1, %c0_2] : memref<32x1024xbf16, #tpu.memory_space<vmem>>, vector<32x1024xbf16>
    %cst = arith.constant dense<0.000000e+00> : vector<2x1024xf32>
    %3 = tpu.matmul %1, %2, %cst {dimension_numbers = #tpu.dot_dimension_numbers<[1], [0], [0], [1], [0, 0, 1, 1], [], []>} : vector<2x32xbf16>, vector<32x1024xbf16>, vector<2x1024xf32> -> vector<2x1024xf32>
    %cst_3 = arith.constant dense<0.000000e+00> : vector<1024xf32>
    %4 = vector.multi_reduction <add>, %3, %cst_3 [0] : vector<2x1024xf32> to vector<1024xf32>
    %5 = vector.shape_cast %4 : vector<1024xf32> to vector<1x1024xf32>
    %cst_4 = arith.constant 2.000000e+00 : f32
    %6 = vector.broadcast %cst_4 : f32 to vector<1x1024xf32>
    %7 = arith.divf %5, %6 : vector<1x1024xf32>
    %8 = vector.broadcast %7 : vector<1x1024xf32> to vector<2x1024xf32>
    %9 = arith.subf %3, %8 : vector<2x1024xf32>
    %10 = arith.mulf %9, %9 : vector<2x1024xf32>
    %cst_5 = arith.constant dense<0.000000e+00> : vector<1024xf32>
    %11 = vector.multi_reduction <add>, %10, %cst_5 [0] : vector<2x1024xf32> to vector<1024xf32>
    %12 = vector.shape_cast %11 : vector<1024xf32> to vector<1x1024xf32>
    %cst_6 = arith.constant 2.000000e+00 : f32
    %13 = vector.broadcast %cst_6 : f32 to vector<1x1024xf32>
    %14 = arith.divf %12, %13 : vector<1x1024xf32>
    %c0_7 = arith.constant 0 : index
    %c0_8 = arith.constant 0 : index
    %15 = vector.load %arg3[%c0_7, %c0_8] : memref<1x1024xf32, #tpu.memory_space<vmem>>, vector<1x1024xf32>
    %16 = vector.broadcast %15 : vector<1x1024xf32> to vector<2x1024xf32>
    %17 = arith.mulf %16, %9 : vector<2x1024xf32>
    %cst_9 = arith.constant 9.99999974E-6 : f32
    %18 = vector.broadcast %cst_9 : f32 to vector<1x1024xf32>
    %19 = arith.addf %14, %18 : vector<1x1024xf32>
    %20 = math.rsqrt %19 : vector<1x1024xf32>
    %21 = vector.broadcast %20 : vector<1x1024xf32> to vector<2x1024xf32>
    %22 = arith.mulf %17, %21 : vector<2x1024xf32>
    %c0_10 = arith.constant 0 : index
    %c0_11 = arith.constant 0 : index
    %23 = vector.load %arg4[%c0_10, %c0_11] : memref<1x1024xf32, #tpu.memory_space<vmem>>, vector<1x1024xf32>
    %24 = vector.broadcast %23 : vector<1x1024xf32> to vector<2x1024xf32>
    %25 = arith.addf %22, %24 : vector<2x1024xf32>
    %cst_12 = arith.constant 0.000000e+00 : f32
    %26 = vector.broadcast %cst_12 : f32 to vector<2x1024xf32>
    %27 = arith.maximumf %25, %26 : vector<2x1024xf32>
    %28 = arith.truncf %27 : vector<2x1024xf32> to vector<2x1024xbf16>
    %c0_13 = arith.constant 0 : index
    %c0_14 = arith.constant 0 : index
    %29 = vector.load %arg5[%c0_13, %c0_14] : memref<1024x896xbf16, #tpu.memory_space<vmem>>, vector<1024x896xbf16>
    %cst_15 = arith.constant dense<0.000000e+00> : vector<2x896xf32>
    %30 = tpu.matmul %28, %29, %cst_15 {dimension_numbers = #tpu.dot_dimension_numbers<[1], [0], [0], [1], [0, 0, 1, 1], [], []>} : vector<2x1024xbf16>, vector<1024x896xbf16>, vector<2x896xf32> -> vector<2x896xf32>
    %cst_16 = arith.constant dense<0.000000e+00> : vector<896xf32>
    %31 = vector.multi_reduction <add>, %30, %cst_16 [0] : vector<2x896xf32> to vector<896xf32>
    %32 = vector.shape_cast %31 : vector<896xf32> to vector<1x896xf32>
    %cst_17 = arith.constant 2.000000e+00 : f32
    %33 = vector.broadcast %cst_17 : f32 to vector<1x896xf32>
    %34 = arith.divf %32, %33 : vector<1x896xf32>
    %35 = vector.broadcast %34 : vector<1x896xf32> to vector<2x896xf32>
    %36 = arith.subf %30, %35 : vector<2x896xf32>
    %37 = arith.mulf %36, %36 : vector<2x896xf32>
    %cst_18 = arith.constant dense<0.000000e+00> : vector<896xf32>
    %38 = vector.multi_reduction <add>, %37, %cst_18 [0] : vector<2x896xf32> to vector<896xf32>
    %39 = vector.shape_cast %38 : vector<896xf32> to vector<1x896xf32>
    %cst_19 = arith.constant 2.000000e+00 : f32
    %40 = vector.broadcast %cst_19 : f32 to vector<1x896xf32>
    %41 = arith.divf %39, %40 : vector<1x896xf32>
    %c0_20 = arith.constant 0 : index
    %c0_21 = arith.constant 0 : index
    %42 = vector.load %arg6[%c0_20, %c0_21] : memref<1x896xf32, #tpu.memory_space<vmem>>, vector<1x896xf32>
    %43 = vector.broadcast %42 : vector<1x896xf32> to vector<2x896xf32>
    %44 = arith.mulf %43, %36 : vector<2x896xf32>
    %cst_22 = arith.constant 9.99999974E-6 : f32
    %45 = vector.broadcast %cst_22 : f32 to vector<1x896xf32>
    %46 = arith.addf %41, %45 : vector<1x896xf32>
    %47 = math.rsqrt %46 : vector<1x896xf32>
    %48 = vector.broadcast %47 : vector<1x896xf32> to vector<2x896xf32>
    %49 = arith.mulf %44, %48 : vector<2x896xf32>
    %c0_23 = arith.constant 0 : index
    %c0_24 = arith.constant 0 : index
    %50 = vector.load %arg7[%c0_23, %c0_24] : memref<1x896xf32, #tpu.memory_space<vmem>>, vector<1x896xf32>
    %51 = vector.broadcast %50 : vector<1x896xf32> to vector<2x896xf32>
    %52 = arith.addf %49, %51 : vector<2x896xf32>
    %cst_25 = arith.constant 0.000000e+00 : f32
    %53 = vector.broadcast %cst_25 : f32 to vector<2x896xf32>
    %54 = arith.maximumf %52, %53 : vector<2x896xf32>
    %55 = arith.truncf %54 : vector<2x896xf32> to vector<2x896xbf16>
    %c0_26 = arith.constant 0 : index
    %c0_27 = arith.constant 0 : index
    %56 = vector.load %arg8[%c0_26, %c0_27] : memref<2x896xbf16, #tpu.memory_space<vmem>>, vector<2x896xbf16>
    tpu.vector_store %arg8[%c0_26, %c0_27], %55 {strides = array<i32>} : memref<2x896xbf16, #tpu.memory_space<vmem>>, vector<2x896xbf16>,
    return
  }
  func.func @transform_0(%arg0: i32) -> (i32, i32) {
    %c0_i32 = arith.constant 0 : i32
    %c0_i32_0 = arith.constant 0 : i32
    %c0_i32_1 = arith.constant 0 : i32
    return %c0_i32, %c0_i32_0 : i32, i32
  }
  func.func @transform_1(%arg0: i32) -> (i32, i32) {
    %c0_i32 = arith.constant 0 : i32
    %c0_i32_0 = arith.constant 0 : i32
    %c0_i32_1 = arith.constant 0 : i32
    return %c0_i32, %c0_i32_0 : i32, i32
  }
  func.func @transform_2(%arg0: i32) -> (i32, i32) {
    %c0_i32 = arith.constant 0 : i32
    %c0_i32_0 = arith.constant 0 : i32
    %c0_i32_1 = arith.constant 0 : i32
    return %c0_i32, %c0_i32_0 : i32, i32
  }
  func.func @transform_3(%arg0: i32) -> (i32, i32) {
    %c0_i32 = arith.constant 0 : i32
    %c0_i32_0 = arith.constant 0 : i32
    %c0_i32_1 = arith.constant 0 : i32
    return %c0_i32, %c0_i32_0 : i32, i32
  }
  func.func @transform_4(%arg0: i32) -> (i32, i32) {
    %c0_i32 = arith.constant 0 : i32
    %c0_i32_0 = arith.constant 0 : i32
    return %c0_i32, %arg0 : i32, i32
  }
  func.func @transform_5(%arg0: i32) -> (i32, i32) {
    %c0_i32 = arith.constant 0 : i32
    %c0_i32_0 = arith.constant 0 : i32
    return %c0_i32, %arg0 : i32, i32
  }
  func.func @transform_6(%arg0: i32) -> (i32, i32) {
    %c0_i32 = arith.constant 0 : i32
    %c0_i32_0 = arith.constant 0 : i32
    return %c0_i32, %arg0 : i32, i32
  }
  func.func @transform_7(%arg0: i32) -> (i32, i32) {
    %c0_i32 = arith.constant 0 : i32
    %c0_i32_0 = arith.constant 0 : i32
    return %c0_i32, %arg0 : i32, i32
  }
}

module attributes {stable_mosaic.version = 11 : i64} {
  func.func @_deconv1_bn_relu_kernel(%arg0: i32, %arg1: memref<98x1152xbf16, #tpu.memory_space<vmem>>, %arg2: memref<1152x256xbf16, #tpu.memory_space<vmem>>, %arg3: memref<1x64xf32, #tpu.memory_space<vmem>>, %arg4: memref<1x64xf32, #tpu.memory_space<vmem>>, %arg5: memref<98x256xbf16, #tpu.memory_space<vmem>>) attributes {dimension_semantics = [#tpu.dimension_semantics<arbitrary>], iteration_bounds = array<i64: 1>, scalar_prefetch = 0 : i64, scratch_operands = 0 : i64, tpu.core_type = #tpu.core_type<tc>, window_params = [{pipeline_mode = #tpu.pipeline_mode<synchronous>, transform_indices = @transform_0, window_bounds = array<i64: 98, 1152>}, {pipeline_mode = #tpu.pipeline_mode<synchronous>, transform_indices = @transform_1, window_bounds = array<i64: 1152, 256>}, {pipeline_mode = #tpu.pipeline_mode<synchronous>, transform_indices = @transform_2, window_bounds = array<i64: 1, 64>}, {pipeline_mode = #tpu.pipeline_mode<synchronous>, transform_indices = @transform_3, window_bounds = array<i64: 1, 64>}, {pipeline_mode = #tpu.pipeline_mode<synchronous>, transform_indices = @transform_4, window_bounds = array<i64: 98, 256>}]} {
    %c0 = arith.constant 0 : index
    %c0_0 = arith.constant 0 : index
    %0 = vector.load %arg1[%c0, %c0_0] : memref<98x1152xbf16, #tpu.memory_space<vmem>>, vector<98x1152xbf16>
    %c0_1 = arith.constant 0 : index
    %c0_2 = arith.constant 0 : index
    %1 = vector.load %arg2[%c0_1, %c0_2] : memref<1152x256xbf16, #tpu.memory_space<vmem>>, vector<1152x256xbf16>
    %cst = arith.constant dense<0.000000e+00> : vector<98x256xf32>
    %2 = tpu.matmul %0, %1, %cst {dimension_numbers = #tpu.dot_dimension_numbers<[1], [0], [0], [1], [0, 0, 1, 1], [], []>} : vector<98x1152xbf16>, vector<1152x256xbf16>, vector<98x256xf32> -> vector<98x256xf32>
    %cst_3 = arith.constant dense<0.000000e+00> : vector<256xf32>
    %3 = vector.multi_reduction <add>, %2, %cst_3 [0] : vector<98x256xf32> to vector<256xf32>
    %4 = vector.shape_cast %3 : vector<256xf32> to vector<1x256xf32>
    %5 = vector.extract_strided_slice %4 {offsets = [0, 0], sizes = [1, 64], strides = [1, 1]} : vector<1x256xf32> to vector<1x64xf32>
    %6 = vector.extract_strided_slice %4 {offsets = [0, 64], sizes = [1, 64], strides = [1, 1]} : vector<1x256xf32> to vector<1x64xf32>
    %7 = arith.addf %5, %6 : vector<1x64xf32>
    %8 = vector.extract_strided_slice %4 {offsets = [0, 128], sizes = [1, 64], strides = [1, 1]} : vector<1x256xf32> to vector<1x64xf32>
    %9 = arith.addf %7, %8 : vector<1x64xf32>
    %10 = vector.extract_strided_slice %4 {offsets = [0, 192], sizes = [1, 64], strides = [1, 1]} : vector<1x256xf32> to vector<1x64xf32>
    %11 = arith.addf %9, %10 : vector<1x64xf32>
    %cst_4 = arith.constant 3.920000e+02 : f32
    %12 = vector.broadcast %cst_4 : f32 to vector<1x64xf32>
    %13 = arith.divf %11, %12 : vector<1x64xf32>
    %14 = tpu.concatenate %13, %13, %13, %13 in 1 : vector<1x64xf32>, vector<1x64xf32>, vector<1x64xf32>, vector<1x64xf32> -> vector<1x256xf32>
    %15 = vector.broadcast %14 : vector<1x256xf32> to vector<98x256xf32>
    %16 = arith.subf %2, %15 : vector<98x256xf32>
    %17 = arith.mulf %16, %16 : vector<98x256xf32>
    %cst_5 = arith.constant dense<0.000000e+00> : vector<256xf32>
    %18 = vector.multi_reduction <add>, %17, %cst_5 [0] : vector<98x256xf32> to vector<256xf32>
    %19 = vector.shape_cast %18 : vector<256xf32> to vector<1x256xf32>
    %20 = vector.extract_strided_slice %19 {offsets = [0, 0], sizes = [1, 64], strides = [1, 1]} : vector<1x256xf32> to vector<1x64xf32>
    %21 = vector.extract_strided_slice %19 {offsets = [0, 64], sizes = [1, 64], strides = [1, 1]} : vector<1x256xf32> to vector<1x64xf32>
    %22 = arith.addf %20, %21 : vector<1x64xf32>
    %23 = vector.extract_strided_slice %19 {offsets = [0, 128], sizes = [1, 64], strides = [1, 1]} : vector<1x256xf32> to vector<1x64xf32>
    %24 = arith.addf %22, %23 : vector<1x64xf32>
    %25 = vector.extract_strided_slice %19 {offsets = [0, 192], sizes = [1, 64], strides = [1, 1]} : vector<1x256xf32> to vector<1x64xf32>
    %26 = arith.addf %24, %25 : vector<1x64xf32>
    %cst_6 = arith.constant 3.920000e+02 : f32
    %27 = vector.broadcast %cst_6 : f32 to vector<1x64xf32>
    %28 = arith.divf %26, %27 : vector<1x64xf32>
    %c0_7 = arith.constant 0 : index
    %c0_8 = arith.constant 0 : index
    %29 = vector.load %arg3[%c0_7, %c0_8] : memref<1x64xf32, #tpu.memory_space<vmem>>, vector<1x64xf32>
    %cst_9 = arith.constant 9.99999974E-6 : f32
    %30 = vector.broadcast %cst_9 : f32 to vector<1x64xf32>
    %31 = arith.addf %28, %30 : vector<1x64xf32>
    %32 = math.rsqrt %31 : vector<1x64xf32>
    %33 = arith.mulf %29, %32 : vector<1x64xf32>
    %34 = tpu.concatenate %33, %33, %33, %33 in 1 : vector<1x64xf32>, vector<1x64xf32>, vector<1x64xf32>, vector<1x64xf32> -> vector<1x256xf32>
    %c0_10 = arith.constant 0 : index
    %c0_11 = arith.constant 0 : index
    %35 = vector.load %arg4[%c0_10, %c0_11] : memref<1x64xf32, #tpu.memory_space<vmem>>, vector<1x64xf32>
    %36 = tpu.concatenate %35, %35, %35, %35 in 1 : vector<1x64xf32>, vector<1x64xf32>, vector<1x64xf32>, vector<1x64xf32> -> vector<1x256xf32>
    %37 = vector.broadcast %34 : vector<1x256xf32> to vector<98x256xf32>
    %38 = arith.mulf %16, %37 : vector<98x256xf32>
    %39 = vector.broadcast %36 : vector<1x256xf32> to vector<98x256xf32>
    %40 = arith.addf %38, %39 : vector<98x256xf32>
    %cst_12 = arith.constant 0.000000e+00 : f32
    %41 = vector.broadcast %cst_12 : f32 to vector<98x256xf32>
    %42 = arith.maximumf %40, %41 : vector<98x256xf32>
    %43 = arith.truncf %42 : vector<98x256xf32> to vector<98x256xbf16>
    %c0_13 = arith.constant 0 : index
    %c0_14 = arith.constant 0 : index
    %44 = vector.load %arg5[%c0_13, %c0_14] : memref<98x256xbf16, #tpu.memory_space<vmem>>, vector<98x256xbf16>
    tpu.vector_store %arg5[%c0_13, %c0_14], %43 {strides = array<i32>} : memref<98x256xbf16, #tpu.memory_space<vmem>>, vector<98x256xbf16>,
    return
  }
  func.func @transform_0(%arg0: i32) -> (i32, i32) {
    %c0_i32 = arith.constant 0 : i32
    %c0_i32_0 = arith.constant 0 : i32
    %c0_i32_1 = arith.constant 0 : i32
    return %c0_i32, %c0_i32_0 : i32, i32
  }
  func.func @transform_1(%arg0: i32) -> (i32, i32) {
    %c0_i32 = arith.constant 0 : i32
    %c0_i32_0 = arith.constant 0 : i32
    %c0_i32_1 = arith.constant 0 : i32
    return %c0_i32, %c0_i32_0 : i32, i32
  }
  func.func @transform_2(%arg0: i32) -> (i32, i32) {
    %c0_i32 = arith.constant 0 : i32
    %c0_i32_0 = arith.constant 0 : i32
    %c0_i32_1 = arith.constant 0 : i32
    return %c0_i32, %c0_i32_0 : i32, i32
  }
  func.func @transform_3(%arg0: i32) -> (i32, i32) {
    %c0_i32 = arith.constant 0 : i32
    %c0_i32_0 = arith.constant 0 : i32
    %c0_i32_1 = arith.constant 0 : i32
    return %c0_i32, %c0_i32_0 : i32, i32
  }
  func.func @transform_4(%arg0: i32) -> (i32, i32) {
    %c0_i32 = arith.constant 0 : i32
    %c0_i32_0 = arith.constant 0 : i32
    %c0_i32_1 = arith.constant 0 : i32
    return %c0_i32, %c0_i32_0 : i32, i32
  }
}

module attributes {stable_mosaic.version = 11 : i64} {
  func.func @_deconv2_sigmoid_kernel(%arg0: i32, %arg1: memref<4x576xbf16, #tpu.memory_space<vmem>>, %arg2: memref<576x392xbf16, #tpu.memory_space<vmem>>, %arg3: memref<1x1xf32, #tpu.memory_space<vmem>>, %arg4: memref<4x392xf32, #tpu.memory_space<vmem>>) attributes {dimension_semantics = [#tpu.dimension_semantics<arbitrary>], iteration_bounds = array<i64: 1>, scalar_prefetch = 0 : i64, scratch_operands = 0 : i64, tpu.core_type = #tpu.core_type<tc>, window_params = [{pipeline_mode = #tpu.pipeline_mode<synchronous>, transform_indices = @transform_0, window_bounds = array<i64: 4, 576>}, {pipeline_mode = #tpu.pipeline_mode<synchronous>, transform_indices = @transform_1, window_bounds = array<i64: 576, 392>}, {pipeline_mode = #tpu.pipeline_mode<synchronous>, transform_indices = @transform_2, window_bounds = array<i64: 1, 1>}, {pipeline_mode = #tpu.pipeline_mode<synchronous>, transform_indices = @transform_3, window_bounds = array<i64: 4, 392>}]} {
    %c0 = arith.constant 0 : index
    %c0_0 = arith.constant 0 : index
    %0 = vector.load %arg1[%c0, %c0_0] : memref<4x576xbf16, #tpu.memory_space<vmem>>, vector<4x576xbf16>
    %c0_1 = arith.constant 0 : index
    %c0_2 = arith.constant 0 : index
    %1 = vector.load %arg2[%c0_1, %c0_2] : memref<576x392xbf16, #tpu.memory_space<vmem>>, vector<576x392xbf16>
    %cst = arith.constant dense<0.000000e+00> : vector<4x392xf32>
    %2 = tpu.matmul %0, %1, %cst {dimension_numbers = #tpu.dot_dimension_numbers<[1], [0], [0], [1], [0, 0, 1, 1], [], []>} : vector<4x576xbf16>, vector<576x392xbf16>, vector<4x392xf32> -> vector<4x392xf32>
    %c0_3 = arith.constant 0 : index
    %c0_4 = arith.constant 0 : index
    %3 = vector.load %arg3[%c0_3, %c0_4] : memref<1x1xf32, #tpu.memory_space<vmem>>, vector<1x1xf32>
    %4 = vector.broadcast %3 : vector<1x1xf32> to vector<4x392xf32>
    %5 = arith.addf %2, %4 : vector<4x392xf32>
    %cst_5 = arith.constant 0.000000e+00 : f32
    %6 = vector.broadcast %cst_5 : f32 to vector<4x392xf32>
    %7 = arith.subf %6, %5 : vector<4x392xf32>
    %8 = math.exp %7 : vector<4x392xf32>
    %cst_6 = arith.constant 1.000000e+00 : f32
    %9 = vector.broadcast %cst_6 : f32 to vector<4x392xf32>
    %10 = arith.addf %9, %8 : vector<4x392xf32>
    %11 = tpu.reciprocal %10 {approx = true} : vector<4x392xf32> -> vector<4x392xf32>
    %cst_7 = arith.constant 0.000000e+00 : f32
    %cst_8 = arith.constant 1.000000e+00 : f32
    %12 = vector.broadcast %cst_7 : f32 to vector<4x392xf32>
    %13 = arith.maximumf %12, %11 : vector<4x392xf32>
    %14 = vector.broadcast %cst_8 : f32 to vector<4x392xf32>
    %15 = arith.minimumf %14, %13 : vector<4x392xf32>
    %c0_9 = arith.constant 0 : index
    %c0_10 = arith.constant 0 : index
    %16 = vector.load %arg4[%c0_9, %c0_10] : memref<4x392xf32, #tpu.memory_space<vmem>>, vector<4x392xf32>
    tpu.vector_store %arg4[%c0_9, %c0_10], %15 {strides = array<i32>} : memref<4x392xf32, #tpu.memory_space<vmem>>, vector<4x392xf32>,
    return
  }
  func.func @transform_0(%arg0: i32) -> (i32, i32) {
    %c0_i32 = arith.constant 0 : i32
    %c0_i32_0 = arith.constant 0 : i32
    %c0_i32_1 = arith.constant 0 : i32
    return %c0_i32, %c0_i32_0 : i32, i32
  }
  func.func @transform_1(%arg0: i32) -> (i32, i32) {
    %c0_i32 = arith.constant 0 : i32
    %c0_i32_0 = arith.constant 0 : i32
    %c0_i32_1 = arith.constant 0 : i32
    return %c0_i32, %c0_i32_0 : i32, i32
  }
  func.func @transform_2(%arg0: i32) -> (i32, i32) {
    %c0_i32 = arith.constant 0 : i32
    %c0_i32_0 = arith.constant 0 : i32
    %c0_i32_1 = arith.constant 0 : i32
    return %c0_i32, %c0_i32_0 : i32, i32
  }
  func.func @transform_3(%arg0: i32) -> (i32, i32) {
    %c0_i32 = arith.constant 0 : i32
    %c0_i32_0 = arith.constant 0 : i32
    %c0_i32_1 = arith.constant 0 : i32
    return %c0_i32, %c0_i32_0 : i32, i32
  }
}

</mosaic_0001>

<llo_original>
// kernel: generator_emnist_forward.3
$region0: #{generator_emnist_forward.3}
  #allocation0 [shape = 'u32[]', space=smem, size = 0x4, offset = 0x4, fixed_abs, tag = 'smem constant byte address 0x4 - core index']
  #allocation1 [shape = 'u32[144,128]{1,0:T(1,128)}', space=vmem, size = 0x12000, scoped, tag = 'internal scratch']
  %s0 = inlined_call_operand.hbm [shape: f32[2,32], index: 0, kind: input, shape index: {}]
  %s1 = inlined_call_operand.hbm [shape: bf16[32,1024], index: 1, kind: input, shape index: {}]
  %s2 = inlined_call_operand.hbm [shape: f32[1,1024], index: 2, kind: input, shape index: {}]
  %s3 = inlined_call_operand.hbm [shape: f32[1,1024], index: 3, kind: input, shape index: {}]
  %s4 = inlined_call_operand.hbm [shape: bf16[1024,6272], index: 4, kind: input, shape index: {}]
  %s5 = inlined_call_operand.hbm [shape: f32[1,6272], index: 5, kind: input, shape index: {}]
  %s6 = inlined_call_operand.hbm [shape: f32[1,6272], index: 6, kind: input, shape index: {}]
  %s7 = inlined_call_operand.vmem [shape: bf16[2,6272], index: 7, kind: output, shape index: {}]
  %s8 = sld [smem:[#allocation0]]
  $region89: #{generator_emnist_forward.3} parent=0
    _
  %s10 = ssub.s32 1, %s8
  %s11 = scalar_select 0, %s10, %s8
  $region1: #{generator_emnist_forward.3} parent=0
    #allocation2 [shape = 'u8[1024]{0}', space=vmem, size = 0x400, scoped, tag = 'input window, operand 0, single buffered']
    #allocation3 [shape = 's32[2]{0}', space=sflag, size = 0x8, scoped, tag = 'scoped memory for generator_emnist_forward.3']
    #allocation4 [shape = 'u8[65536]{0}', space=vmem, size = 0x10000, scoped, tag = 'input window, operand 1, single buffered']
    #allocation5 [shape = 's32[1]{0}', space=sflag, size = 0x4, scoped, tag = 'scoped memory for generator_emnist_forward.3']
    #allocation6 [shape = 'u8[4096]{0}', space=vmem, size = 0x1000, scoped, tag = 'input window, operand 2, single buffered']
    #allocation7 [shape = 'u8[4096]{0}', space=vmem, size = 0x1000, scoped, tag = 'input window, operand 3, single buffered']
    #allocation8 [shape = 's32[1]{0}', space=sflag, size = 0x4, scoped, tag = 'scoped memory for generator_emnist_forward.3']
    #allocation9 [shape = 'u8[3670016]{0}', space=vmem, size = 0x380000, scoped, tag = 'input window, operand 4']
    #allocation10 [shape = 'u8[7168]{0}', space=vmem, size = 0x1c00, scoped, tag = 'input window, operand 5']
    #allocation11 [shape = 'u8[7168]{0}', space=vmem, size = 0x1c00, scoped, tag = 'input window, operand 6']
    %12 = vsyncpa [#allocation3], 0
    %13 = vsyncpa [#allocation5], 0
    %14 = vsyncpa [#allocation8], 0
    loop: start=0, step=1, limit=9
    $region2: #{generator_emnist_forward.3} parent=1 // loop_pre_header
      _
    $region3: #{generator_emnist_forward.3} parent=1 // loop_header
      %s16 = sphi 0, %s20
      %p17 = scmp.ge.s32.totalorder %s16, 9
      %s24 = sphi 0, %s24
      %s26 = sphi 0, %s24
      %s27 = sphi 0, %s26
      %s41 = sphi 0, %s27
      %s45 = sphi 0, %s45
      %s47 = sphi 0, %s45
      %s48 = sphi 0, %s47
      %s62 = sphi 0, %s48
      %s66 = sphi 0, %s66
      %s68 = sphi 0, %s66
      %s69 = sphi 0, %s68
      %s83 = sphi 0, %s69
      %s87 = sphi 0, %s87
      %s89 = sphi 0, %s87
      %s90 = sphi 0, %s89
      %s104 = sphi 0, %s90
      %s110 = sphi 0, %s112
      %s113 = sphi 0, %s110
      %s114 = sphi 0, %s113
      %s130 = sphi 0, %s114
      %s136 = sphi 0, %s138
      %s139 = sphi 0, %s136
      %s140 = sphi 0, %s139
      %s156 = sphi 0, %s140
      %s162 = sphi 0, %s164
      %s165 = sphi 0, %s162
      %s166 = sphi 0, %s165
      %s182 = sphi 0, %s166
      %s188 = sphi 0, %s190
      %s191 = sphi 0, %s188
      %s192 = sphi 0, %s191
      %s208 = sphi 0, %s192
    $region4: #{generator_emnist_forward.3} parent=1 // loop_header_branch
      %19 = sbr.rel (%p17) target = $region8
    $region5: #{generator_emnist_forward.3} parent=1 // loop_body
      %s21 = ssub.s32 %s16, 1
      %s22 = ssub.s32 %s16, 2
      %s23 = sadd.s32 %s16, 1
      %s25 = sadd.s32 %s24, 1
      %p28 = scmp.eq.s32.totalorder %s16, 6
      %p29 = scmp.ne.s32.totalorder %s24, %s26
      %p30 = scmp.eq.s32.totalorder %s16, 0
      %p31 = por %p29, %p30
      %p32 = scmp.ne.s32.totalorder %s24, %s26
      %p33 = scmp.eq.s32.totalorder %s21, 6
      %p34 = por %p32, %p33
      %p35 = scmp.ne.s32.totalorder %s26, %s27
      %p36 = scmp.eq.s32.totalorder %s21, 0
      %p37 = por %p35, %p36
      %p38 = scmp.ne.s32.totalorder %s26, %s27
      %p39 = scmp.eq.s32.totalorder %s22, 6
      %p40 = por %p38, %p39
      %p42 = scmp.ne.s32.totalorder %s27, %s41
      %p43 = scmp.eq.s32.totalorder %s22, 0
      %p44 = por %p42, %p43
      %s46 = sadd.s32 %s45, 1
      %p49 = scmp.eq.s32.totalorder %s16, 6
      %p50 = scmp.ne.s32.totalorder %s45, %s47
      %p51 = scmp.eq.s32.totalorder %s16, 0
      %p52 = por %p50, %p51
      %p53 = scmp.ne.s32.totalorder %s45, %s47
      %p54 = scmp.eq.s32.totalorder %s21, 6
      %p55 = por %p53, %p54
      %p56 = scmp.ne.s32.totalorder %s47, %s48
      %p57 = scmp.eq.s32.totalorder %s21, 0
      %p58 = por %p56, %p57
      %p59 = scmp.ne.s32.totalorder %s47, %s48
      %p60 = scmp.eq.s32.totalorder %s22, 6
      %p61 = por %p59, %p60
      %p63 = scmp.ne.s32.totalorder %s48, %s62
      %p64 = scmp.eq.s32.totalorder %s22, 0
      %p65 = por %p63, %p64
      %s67 = sadd.s32 %s66, 1
      %p70 = scmp.eq.s32.totalorder %s16, 6
      %p71 = scmp.ne.s32.totalorder %s66, %s68
      %p72 = scmp.eq.s32.totalorder %s16, 0
      %p73 = por %p71, %p72
      %p74 = scmp.ne.s32.totalorder %s66, %s68
      %p75 = scmp.eq.s32.totalorder %s21, 6
      %p76 = por %p74, %p75
      %p77 = scmp.ne.s32.totalorder %s68, %s69
      %p78 = scmp.eq.s32.totalorder %s21, 0
      %p79 = por %p77, %p78
      %p80 = scmp.ne.s32.totalorder %s68, %s69
      %p81 = scmp.eq.s32.totalorder %s22, 6
      %p82 = por %p80, %p81
      %p84 = scmp.ne.s32.totalorder %s69, %s83
      %p85 = scmp.eq.s32.totalorder %s22, 0
      %p86 = por %p84, %p85
      %s88 = sadd.s32 %s87, 1
      %p91 = scmp.eq.s32.totalorder %s16, 6
      %p92 = scmp.ne.s32.totalorder %s87, %s89
      %p93 = scmp.eq.s32.totalorder %s16, 0
      %p94 = por %p92, %p93
      %p95 = scmp.ne.s32.totalorder %s87, %s89
      %p96 = scmp.eq.s32.totalorder %s21, 6
      %p97 = por %p95, %p96
      %p98 = scmp.ne.s32.totalorder %s89, %s90
      %p99 = scmp.eq.s32.totalorder %s21, 0
      %p100 = por %p98, %p99
      %p101 = scmp.ne.s32.totalorder %s89, %s90
      %p102 = scmp.eq.s32.totalorder %s22, 6
      %p103 = por %p101, %p102
      %p105 = scmp.ne.s32.totalorder %s90, %s104
      %p106 = scmp.eq.s32.totalorder %s22, 0
      %p107 = por %p105, %p106
      %s108 = ssub.s32 %s16, %s23
      %p109 = scmp.eq.s32.totalorder %s108, 0
      %s111 = sadd.s32 %s110, 1
      %s112 = scalar_select %p109, %s110, %s111
      %p115 = pneg %p109
      %p116 = scmp.eq.s32.totalorder %s16, 6
      %p117 = por %p115, %p116
      %p118 = scmp.ne.s32.totalorder %s110, %s113
      %p119 = scmp.eq.s32.totalorder %s16, 0
      %p120 = por %p118, %p119
      %p121 = scmp.ne.s32.totalorder %s110, %s113
      %p122 = scmp.eq.s32.totalorder %s21, 6
      %p123 = por %p121, %p122
      %p124 = scmp.ne.s32.totalorder %s113, %s114
      %p125 = scmp.eq.s32.totalorder %s21, 0
      %p126 = por %p124, %p125
      %p127 = scmp.ne.s32.totalorder %s113, %s114
      %p128 = scmp.eq.s32.totalorder %s22, 6
      %p129 = por %p127, %p128
      %p131 = scmp.ne.s32.totalorder %s114, %s130
      %p132 = scmp.eq.s32.totalorder %s22, 0
      %p133 = por %p131, %p132
      %s134 = ssub.s32 %s16, %s23
      %p135 = scmp.eq.s32.totalorder %s134, 0
      %s137 = sadd.s32 %s136, 1
      %s138 = scalar_select %p135, %s136, %s137
      %p141 = pneg %p135
      %p142 = scmp.eq.s32.totalorder %s16, 6
      %p143 = por %p141, %p142
      %p144 = scmp.ne.s32.totalorder %s136, %s139
      %p145 = scmp.eq.s32.totalorder %s16, 0
      %p146 = por %p144, %p145
      %p147 = scmp.ne.s32.totalorder %s136, %s139
      %p148 = scmp.eq.s32.totalorder %s21, 6
      %p149 = por %p147, %p148
      %p150 = scmp.ne.s32.totalorder %s139, %s140
      %p151 = scmp.eq.s32.totalorder %s21, 0
      %p152 = por %p150, %p151
      %p153 = scmp.ne.s32.totalorder %s139, %s140
      %p154 = scmp.eq.s32.totalorder %s22, 6
      %p155 = por %p153, %p154
      %p157 = scmp.ne.s32.totalorder %s140, %s156
      %p158 = scmp.eq.s32.totalorder %s22, 0
      %p159 = por %p157, %p158
      %s160 = ssub.s32 %s16, %s23
      %p161 = scmp.eq.s32.totalorder %s160, 0
      %s163 = sadd.s32 %s162, 1
      %s164 = scalar_select %p161, %s162, %s163
      %p167 = pneg %p161
      %p168 = scmp.eq.s32.totalorder %s16, 6
      %p169 = por %p167, %p168
      %p170 = scmp.ne.s32.totalorder %s162, %s165
      %p171 = scmp.eq.s32.totalorder %s16, 0
      %p172 = por %p170, %p171
      %p173 = scmp.ne.s32.totalorder %s162, %s165
      %p174 = scmp.eq.s32.totalorder %s21, 6
      %p175 = por %p173, %p174
      %p176 = scmp.ne.s32.totalorder %s165, %s166
      %p177 = scmp.eq.s32.totalorder %s21, 0
      %p178 = por %p176, %p177
      %p179 = scmp.ne.s32.totalorder %s165, %s166
      %p180 = scmp.eq.s32.totalorder %s22, 6
      %p181 = por %p179, %p180
      %p183 = scmp.ne.s32.totalorder %s166, %s182
      %p184 = scmp.eq.s32.totalorder %s22, 0
      %p185 = por %p183, %p184
      %s186 = ssub.s32 %s16, %s23
      %p187 = scmp.eq.s32.totalorder %s186, 0
      %s189 = sadd.s32 %s188, 1
      %s190 = scalar_select %p187, %s188, %s189
      %p193 = pneg %p187
      %p194 = scmp.eq.s32.totalorder %s16, 6
      %p195 = por %p193, %p194
      %p196 = scmp.ne.s32.totalorder %s188, %s191
      %p197 = scmp.eq.s32.totalorder %s16, 0
      %p198 = por %p196, %p197
      %p199 = scmp.ne.s32.totalorder %s188, %s191
      %p200 = scmp.eq.s32.totalorder %s21, 6
      %p201 = por %p199, %p200
      %p202 = scmp.ne.s32.totalorder %s191, %s192
      %p203 = scmp.eq.s32.totalorder %s21, 0
      %p204 = por %p202, %p203
      %p205 = scmp.ne.s32.totalorder %s191, %s192
      %p206 = scmp.eq.s32.totalorder %s22, 6
      %p207 = por %p205, %p206
      %p209 = scmp.ne.s32.totalorder %s192, %s208
      %p210 = scmp.eq.s32.totalorder %s22, 0
      %p211 = por %p209, %p210
      %p212 = scmp.le.s32.totalorder 1, %s16
      %p213 = scmp.lt.s32.totalorder %s16, 8
      %p214 = pnand %p212, %p213
      %p215 = pneg %p214
      // Predicated region
      $region9: #{generator_emnist_forward.3} parent=5 // pred_check
        _
      $region10: #{generator_emnist_forward.3} parent=5 // pred_check_branch
        %217 = sbr.rel (%p214) target = $region12
      $region11: #{generator_emnist_forward.3} parent=5 // pred_region
        %s218 = ssub.s32 %s16, 1
        // Predicated region
        $region13: #{generator_emnist_forward.3} parent=11 // pred_check
          %p219 = pneg %p37
        $region14: #{generator_emnist_forward.3} parent=11 // pred_check_branch
          %221 = sbr.rel (%p219) target = $region16
        $region15: #{generator_emnist_forward.3} parent=11 // pred_region
          %s223 = ssub.s32 32, 32
          %224 = vsyncadd [#allocation3], %s223
          %s226 = sshll.u32 [#allocation2], 4
          %s227 = int_to_ptr.vmem [resolvable:$true] %s226
          %229 = dma.hbm_to_vmem [thread:$0]  %s0, 32, %s227, [#allocation3]
        $region16: #{generator_emnist_forward.3} parent=11 // pred_fallthru
          _
        // Predicated region
        $region17: #{generator_emnist_forward.3} parent=11 // pred_check
          %p230 = pneg %p58
        $region18: #{generator_emnist_forward.3} parent=11 // pred_check_branch
          %232 = sbr.rel (%p230) target = $region20
        $region19: #{generator_emnist_forward.3} parent=11 // pred_region
          %s234 = ssub.s32 2048, 2048
          %235 = vsyncadd [#allocation5], %s234
          %s236 = sshll.u32 [#allocation4], 4
          %s237 = int_to_ptr.vmem [resolvable:$true] %s236
          %242 = dma.hbm_to_vmem [thread:$0]  %s1, 2048, %s237, [#allocation5], 512, 512, 32
        $region20: #{generator_emnist_forward.3} parent=11 // pred_fallthru
          _
        // Predicated region
        $region21: #{generator_emnist_forward.3} parent=11 // pred_check
          %p243 = pneg %p79
        $region22: #{generator_emnist_forward.3} parent=11 // pred_check_branch
          %245 = sbr.rel (%p243) target = $region24
        $region23: #{generator_emnist_forward.3} parent=11 // pred_region
          %s247 = ssub.s32 128, 128
          %248 = vsyncadd [#allocation5], %s247
          %s250 = sshll.u32 [#allocation6], 4
          %s251 = int_to_ptr.vmem [resolvable:$true] %s250
          %253 = dma.hbm_to_vmem [thread:$0]  %s2, 128, %s251, [#allocation5]
        $region24: #{generator_emnist_forward.3} parent=11 // pred_fallthru
          _
        // Predicated region
        $region25: #{generator_emnist_forward.3} parent=11 // pred_check
          %p254 = pneg %p100
        $region26: #{generator_emnist_forward.3} parent=11 // pred_check_branch
          %256 = sbr.rel (%p254) target = $region28
        $region27: #{generator_emnist_forward.3} parent=11 // pred_region
          %s258 = ssub.s32 128, 128
          %259 = vsyncadd [#allocation8], %s258
          %s261 = sshll.u32 [#allocation7], 4
          %s262 = int_to_ptr.vmem [resolvable:$true] %s261
          %264 = dma.hbm_to_vmem [thread:$0]  %s3, 128, %s262, [#allocation8]
        $region28: #{generator_emnist_forward.3} parent=11 // pred_fallthru
          _
      $region12: #{generator_emnist_forward.3} parent=5 // pred_fallthru
        _
      %p265 = scmp.lt.s32.totalorder %s16, 7
      // Predicated region
      $region29: #{generator_emnist_forward.3} parent=5 // pred_check
        %p266 = pneg %p265
      $region30: #{generator_emnist_forward.3} parent=5 // pred_check_branch
        %268 = sbr.rel (%p266) target = $region32
      $region31: #{generator_emnist_forward.3} parent=5 // pred_region
        // Predicated region
        $region33: #{generator_emnist_forward.3} parent=31 // pred_check
          %p269 = pneg %p120
        $region34: #{generator_emnist_forward.3} parent=31 // pred_check_branch
          %271 = sbr.rel (%p269) target = $region36
        $region35: #{generator_emnist_forward.3} parent=31 // pred_region
          %s272 = sand.u32 %s16, 1
          %s273 = scalar_lea.sflag [#allocation3], %s272
          %s274 = sand.u32 %s110, 1
          %s275 = smul.addr %s274, 3584
          %s276 = scalar_lea.vmem [#allocation9], %s275
          %s277 = smul.u32 7, %s16
          %s279 = ssub.s32 57344, 57344
          %280 = vsyncadd %s273, %s279
          %s281 = smul.addr %s277, 64
          %s282 = scalar_lea.hbm %s4, %s281
          %s283 = sshll.u32 %s276, 4
          %s284 = int_to_ptr.vmem [resolvable:$true] %s283
          %289 = dma.hbm_to_vmem [thread:$0]  %s282, 57344, %s284, %s273, 3136, 448, 28
        $region36: #{generator_emnist_forward.3} parent=31 // pred_fallthru
          _
        // Predicated region
        $region37: #{generator_emnist_forward.3} parent=31 // pred_check
          %p290 = pneg %p146
        $region38: #{generator_emnist_forward.3} parent=31 // pred_check_branch
          %292 = sbr.rel (%p290) target = $region40
        $region39: #{generator_emnist_forward.3} parent=31 // pred_region
          %s293 = sand.u32 %s16, 1
          %s294 = scalar_lea.sflag [#allocation3], %s293
          %s295 = sand.u32 %s136, 1
          %s296 = smul.addr %s295, 7
          %s297 = scalar_lea.vmem [#allocation10], %s296
          %s298 = smul.u32 7, %s16
          %s300 = ssub.s32 112, 112
          %301 = vsyncadd %s294, %s300
          %s302 = smul.addr %s298, 16
          %s303 = scalar_lea.hbm %s5, %s302
          %s305 = sshll.u32 %s297, 4
          %s306 = int_to_ptr.vmem [resolvable:$true] %s305
          %308 = dma.hbm_to_vmem [thread:$0]  %s303, 112, %s306, %s294
        $region40: #{generator_emnist_forward.3} parent=31 // pred_fallthru
          _
        // Predicated region
        $region41: #{generator_emnist_forward.3} parent=31 // pred_check
          %p309 = pneg %p172
        $region42: #{generator_emnist_forward.3} parent=31 // pred_check_branch
          %311 = sbr.rel (%p309) target = $region44
        $region43: #{generator_emnist_forward.3} parent=31 // pred_region
          %s312 = sand.u32 %s16, 1
          %s313 = scalar_lea.sflag [#allocation3], %s312
          %s314 = sand.u32 %s162, 1
          %s315 = smul.addr %s314, 7
          %s316 = scalar_lea.vmem [#allocation11], %s315
          %s317 = smul.u32 7, %s16
          %s319 = ssub.s32 112, 112
          %320 = vsyncadd %s313, %s319
          %s321 = smul.addr %s317, 16
          %s322 = scalar_lea.hbm %s6, %s321
          %s324 = sshll.u32 %s316, 4
          %s325 = int_to_ptr.vmem [resolvable:$true] %s324
          %327 = dma.hbm_to_vmem [thread:$0]  %s322, 112, %s325, %s313
        $region44: #{generator_emnist_forward.3} parent=31 // pred_fallthru
          _
      $region32: #{generator_emnist_forward.3} parent=5 // pred_fallthru
        _
      %p328 = scmp.le.s32.totalorder 1, %s16
      %p329 = scmp.lt.s32.totalorder %s16, 8
      %p330 = pnand %p328, %p329
      %p331 = pneg %p330
      // Predicated region
      $region45: #{generator_emnist_forward.3} parent=5 // pred_check
        _
      $region46: #{generator_emnist_forward.3} parent=5 // pred_check_branch
        %333 = sbr.rel (%p330) target = $region48
      $region47: #{generator_emnist_forward.3} parent=5 // pred_region
        %s334 = ssub.s32 %s16, 1
        // Predicated region
        $region49: #{generator_emnist_forward.3} parent=47 // pred_check
          %p335 = pneg %p37
        $region50: #{generator_emnist_forward.3} parent=47 // pred_check_branch
          %337 = sbr.rel (%p335) target = $region52
        $region51: #{generator_emnist_forward.3} parent=47 // pred_region
          %338 = dma.done [#allocation3], 32
        $region52: #{generator_emnist_forward.3} parent=47 // pred_fallthru
          _
        // Predicated region
        $region53: #{generator_emnist_forward.3} parent=47 // pred_check
          %p339 = pneg %p58
        $region54: #{generator_emnist_forward.3} parent=47 // pred_check_branch
          %341 = sbr.rel (%p339) target = $region56
        $region55: #{generator_emnist_forward.3} parent=47 // pred_region
          %342 = dma.done [#allocation5], 2048
        $region56: #{generator_emnist_forward.3} parent=47 // pred_fallthru
          _
        // Predicated region
        $region57: #{generator_emnist_forward.3} parent=47 // pred_check
          %p343 = pneg %p79
        $region58: #{generator_emnist_forward.3} parent=47 // pred_check_branch
          %345 = sbr.rel (%p343) target = $region60
        $region59: #{generator_emnist_forward.3} parent=47 // pred_region
          %346 = dma.done [#allocation5], 128
        $region60: #{generator_emnist_forward.3} parent=47 // pred_fallthru
          _
        // Predicated region
        $region61: #{generator_emnist_forward.3} parent=47 // pred_check
          %p347 = pneg %p100
        $region62: #{generator_emnist_forward.3} parent=47 // pred_check_branch
          %349 = sbr.rel (%p347) target = $region64
        $region63: #{generator_emnist_forward.3} parent=47 // pred_region
          %350 = dma.done [#allocation8], 128
        $region64: #{generator_emnist_forward.3} parent=47 // pred_fallthru
          _
        %s351 = sand.u32 %s21, 1
        %s352 = scalar_lea.sflag [#allocation3], %s351
        %s353 = sand.u32 %s113, 1
        %s354 = smul.addr %s353, 3584
        %s355 = scalar_lea.vmem [#allocation9], %s354
        // Predicated region
        $region65: #{generator_emnist_forward.3} parent=47 // pred_check
          %p356 = pneg %p126
        $region66: #{generator_emnist_forward.3} parent=47 // pred_check_branch
          %358 = sbr.rel (%p356) target = $region68
        $region67: #{generator_emnist_forward.3} parent=47 // pred_region
          %359 = dma.done %s352, 57344
        $region68: #{generator_emnist_forward.3} parent=47 // pred_fallthru
          _
        %s360 = sand.u32 %s21, 1
        %s361 = scalar_lea.sflag [#allocation3], %s360
        %s362 = sand.u32 %s139, 1
        %s363 = smul.addr %s362, 7
        %s364 = scalar_lea.vmem [#allocation10], %s363
        // Predicated region
        $region69: #{generator_emnist_forward.3} parent=47 // pred_check
          %p365 = pneg %p152
        $region70: #{generator_emnist_forward.3} parent=47 // pred_check_branch
          %367 = sbr.rel (%p365) target = $region72
        $region71: #{generator_emnist_forward.3} parent=47 // pred_region
          %368 = dma.done %s361, 112
        $region72: #{generator_emnist_forward.3} parent=47 // pred_fallthru
          _
        %s369 = sand.u32 %s21, 1
        %s370 = scalar_lea.sflag [#allocation3], %s369
        %s371 = sand.u32 %s165, 1
        %s372 = smul.addr %s371, 7
        %s373 = scalar_lea.vmem [#allocation11], %s372
        // Predicated region
        $region73: #{generator_emnist_forward.3} parent=47 // pred_check
          %p374 = pneg %p178
        $region74: #{generator_emnist_forward.3} parent=47 // pred_check_branch
          %376 = sbr.rel (%p374) target = $region76
        $region75: #{generator_emnist_forward.3} parent=47 // pred_region
          %377 = dma.done %s370, 112
        $region76: #{generator_emnist_forward.3} parent=47 // pred_fallthru
          _
        %p378 = pneg %p37
        %p379 = pneg %p34
        %p380 = pneg %p58
        %p381 = pneg %p55
        %p382 = pneg %p79
        %p383 = pneg %p76
        %p384 = pneg %p100
        %p385 = pneg %p97
        %s386 = sand.u32 %s21, 1
        %s387 = scalar_lea.sflag [#allocation3], %s386
        %s388 = sand.u32 %s113, 1
        %s389 = smul.addr %s388, 3584
        %s390 = scalar_lea.vmem [#allocation9], %s389
        %p391 = pneg %p126
        %p392 = pneg %p123
        %s393 = sand.u32 %s21, 1
        %s394 = scalar_lea.sflag [#allocation3], %s393
        %s395 = sand.u32 %s139, 1
        %s396 = smul.addr %s395, 7
        %s397 = scalar_lea.vmem [#allocation10], %s396
        %p398 = pneg %p152
        %p399 = pneg %p149
        %s400 = sand.u32 %s21, 1
        %s401 = scalar_lea.sflag [#allocation3], %s400
        %s402 = sand.u32 %s165, 1
        %s403 = smul.addr %s402, 7
        %s404 = scalar_lea.vmem [#allocation11], %s403
        %p405 = pneg %p178
        %p406 = pneg %p175
        %p407 = pneg %p204
        %p408 = pneg %p201
        %s409 = smul.u32 7, %s21
        %p410 = scmp.lt.s32.totalorder %s409, 48
        %s411 = scalar_select %p410, %s409, 48
        %s412 = scalar_lea.vmem %s7, %s411
        %s413 = smul.u32 7, %s21
        %s414 = smul.u32 7, %s21
        %s415 = smul.u32 7, %s21
        %s416 = smul.u32 7, %s21
        %p417 = scmp.lt.s32.totalorder %s416, 48
        %s418 = scalar_select %p417, %s416, 48
        %s419 = scalar_lea.vmem %s7, %s418
        %s420 = smul.u32 7, %s21
        %v422 = vld [vmem:[#allocation2] sm:$0x3]
        %v423 = vpack.c.bf16 %v422, %v422
        %v424 = vld [vmem:[#allocation4] sm:$0xff]
        %v425 = vld [vmem:[#allocation4 + $0x8] sm:$0xff]
        %v426 = vld [vmem:[#allocation4 + $0x10] sm:$0xff]
        %v427 = vld [vmem:[#allocation4 + $0x18] sm:$0xff]
        %v428 = vld [vmem:[#allocation4 + $0x20] sm:$0xff]
        %v429 = vld [vmem:[#allocation4 + $0x28] sm:$0xff]
        %v430 = vld [vmem:[#allocation4 + $0x30] sm:$0xff]
        %v431 = vld [vmem:[#allocation4 + $0x38] sm:$0xff]
        %v432 = vld [vmem:[#allocation4 + $0x40] sm:$0xff]
        %v433 = vld [vmem:[#allocation4 + $0x48] sm:$0xff]
        %v434 = vld [vmem:[#allocation4 + $0x50] sm:$0xff]
        %v435 = vld [vmem:[#allocation4 + $0x58] sm:$0xff]
        %v436 = vld [vmem:[#allocation4 + $0x60] sm:$0xff]
        %v437 = vld [vmem:[#allocation4 + $0x68] sm:$0xff]
        %v438 = vld [vmem:[#allocation4 + $0x70] sm:$0xff]
        %v439 = vld [vmem:[#allocation4 + $0x78] sm:$0xff]
        %v456 = vunpack.c.l.b16 %v424
        %v457 = vunpack.c.h.b16 %v424
        %v458 = vunpack.c.l.b16 %v425
        %v459 = vunpack.c.h.b16 %v425
        %v460 = vunpack.c.l.b16 %v426
        %v461 = vunpack.c.h.b16 %v426
        %v462 = vunpack.c.l.b16 %v427
        %v463 = vunpack.c.h.b16 %v427
        %v464 = vunpack.c.l.b16 %v428
        %v465 = vunpack.c.h.b16 %v428
        %v466 = vunpack.c.l.b16 %v429
        %v467 = vunpack.c.h.b16 %v429
        %v468 = vunpack.c.l.b16 %v430
        %v469 = vunpack.c.h.b16 %v430
        %v470 = vunpack.c.l.b16 %v431
        %v471 = vunpack.c.h.b16 %v431
        %v472 = vunpack.c.l.b16 %v432
        %v473 = vunpack.c.h.b16 %v432
        %v474 = vunpack.c.l.b16 %v433
        %v475 = vunpack.c.h.b16 %v433
        %v476 = vunpack.c.l.b16 %v434
        %v477 = vunpack.c.h.b16 %v434
        %v478 = vunpack.c.l.b16 %v435
        %v479 = vunpack.c.h.b16 %v435
        %v480 = vunpack.c.l.b16 %v436
        %v481 = vunpack.c.h.b16 %v436
        %v482 = vunpack.c.l.b16 %v437
        %v483 = vunpack.c.h.b16 %v437
        %v484 = vunpack.c.l.b16 %v438
        %v485 = vunpack.c.h.b16 %v438
        %v486 = vunpack.c.l.b16 %v439
        %v487 = vunpack.c.h.b16 %v439
        %v488 = vpack.c.b16 %v464, %v456
        %v489 = vpack.c.b16 %v465, %v457
        %v490 = vpack.c.b16 %v466, %v458
        %v491 = vpack.c.b16 %v467, %v459
        %v492 = vpack.c.b16 %v468, %v460
        %v493 = vpack.c.b16 %v469, %v461
        %v494 = vpack.c.b16 %v470, %v462
        %v495 = vpack.c.b16 %v471, %v463
        %v496 = vpack.c.b16 %v480, %v472
        %v497 = vpack.c.b16 %v481, %v473
        %v498 = vpack.c.b16 %v482, %v474
        %v499 = vpack.c.b16 %v483, %v475
        %v500 = vpack.c.b16 %v484, %v476
        %v501 = vpack.c.b16 %v485, %v477
        %v502 = vpack.c.b16 %v486, %v478
        %v503 = vpack.c.b16 %v487, %v479
        %vm520 = vcmask 261120
        %v522 = vsel %vm520, %v423, 0
        %524 = vmatprep.subr.bf16.mxu0 %v489
        %525 = vmatpush1.bf16.msra.mxu0 %v488
        %526 = vmatprep.subr.bf16.mxu0 %v497
        %527 = vmatpush1.bf16.msra.mxu0 %v496
        %528 = vmatprep.subr.bf16.mxu0 0
        %529 = vmatpush1.bf16.msra.mxu0 0
        %530 = vmatprep.subr.bf16.mxu0 0
        %531 = vmatpush1.bf16.msra.mxu0 0
        %532 = vmatprep.subr.bf16.mxu0 0
        %533 = vmatpush1.bf16.msra.mxu0 0
        %534 = vmatprep.subr.bf16.mxu0 0
        %535 = vmatpush1.bf16.msra.mxu0 0
        %536 = vmatprep.subr.bf16.mxu0 0
        %537 = vmatpush1.bf16.msra.mxu0 0
        %538 = vmatprep.subr.bf16.mxu0 0
        %539 = vmatpush1.bf16.msra.mxu0 0
        %540 = vmatprep.subr.bf16.mxu0 0
        %541 = vmatpush1.bf16.msra.mxu0 0
        %542 = vmatprep.subr.bf16.mxu0 0
        %543 = vmatpush1.bf16.msra.mxu0 0
        %544 = vmatprep.subr.bf16.mxu0 0
        %545 = vmatpush1.bf16.msra.mxu0 0
        %546 = vmatprep.subr.bf16.mxu0 0
        %547 = vmatpush1.bf16.msra.mxu0 0
        %548 = vmatprep.subr.bf16.mxu0 0
        %549 = vmatpush1.bf16.msra.mxu0 0
        %550 = vmatprep.subr.bf16.mxu0 0
        %551 = vmatpush1.bf16.msra.mxu0 0
        %552 = vmatprep.subr.bf16.mxu0 0
        %553 = vmatpush1.bf16.msra.mxu0 0
        %554 = vmatprep.subr.bf16.mxu0 0
        %555 = vmatpush1.bf16.msra.mxu0 0
        %556 = vmatprep.mubr.bf16.mxu0 0
        %557 = vmatmul.mubr.bf16.gmra.mrb[0].mxu0 %v522
        %v558 = vpop.f32.mrb[0].mxu0
        %v559 = vadd.f32 0.0, %v558
        %v560 = vpop.f32.mrb[0].mxu0
        %v561 = vadd.f32 0.0, %v560
        %v562 = vpop.f32.mrb[0].mxu0
        %v563 = vpop.f32.mrb[0].mxu0
        %564 = vdwg.mxu0
        %565 = vmatprep.subr.bf16.mxu0 %v491
        %566 = vmatpush1.bf16.msra.mxu0 %v490
        %567 = vmatprep.subr.bf16.mxu0 %v499
        %568 = vmatpush1.bf16.msra.mxu0 %v498
        %569 = vmatprep.subr.bf16.mxu0 0
        %570 = vmatpush1.bf16.msra.mxu0 0
        %571 = vmatprep.subr.bf16.mxu0 0
        %572 = vmatpush1.bf16.msra.mxu0 0
        %573 = vmatprep.subr.bf16.mxu0 0
        %574 = vmatpush1.bf16.msra.mxu0 0
        %575 = vmatprep.subr.bf16.mxu0 0
        %576 = vmatpush1.bf16.msra.mxu0 0
        %577 = vmatprep.subr.bf16.mxu0 0
        %578 = vmatpush1.bf16.msra.mxu0 0
        %579 = vmatprep.subr.bf16.mxu0 0
        %580 = vmatpush1.bf16.msra.mxu0 0
        %581 = vmatprep.subr.bf16.mxu0 0
        %582 = vmatpush1.bf16.msra.mxu0 0
        %583 = vmatprep.subr.bf16.mxu0 0
        %584 = vmatpush1.bf16.msra.mxu0 0
        %585 = vmatprep.subr.bf16.mxu0 0
        %586 = vmatpush1.bf16.msra.mxu0 0
        %587 = vmatprep.subr.bf16.mxu0 0
        %588 = vmatpush1.bf16.msra.mxu0 0
        %589 = vmatprep.subr.bf16.mxu0 0
        %590 = vmatpush1.bf16.msra.mxu0 0
        %591 = vmatprep.subr.bf16.mxu0 0
        %592 = vmatpush1.bf16.msra.mxu0 0
        %593 = vmatprep.subr.bf16.mxu0 0
        %594 = vmatpush1.bf16.msra.mxu0 0
        %595 = vmatprep.subr.bf16.mxu0 0
        %596 = vmatpush1.bf16.msra.mxu0 0
        %597 = vmatprep.mubr.bf16.mxu0 0
        %598 = vmatmul.mubr.bf16.gmra.mrb[0].mxu0 %v522
        %v599 = vpop.f32.mrb[0].mxu0
        %v600 = vadd.f32 0.0, %v599
        %v601 = vpop.f32.mrb[0].mxu0
        %v602 = vadd.f32 0.0, %v601
        %v603 = vpop.f32.mrb[0].mxu0
        %v604 = vpop.f32.mrb[0].mxu0
        %605 = vdwg.mxu0
        %606 = vmatprep.subr.bf16.mxu0 %v493
        %607 = vmatpush1.bf16.msra.mxu0 %v492
        %608 = vmatprep.subr.bf16.mxu0 %v501
        %609 = vmatpush1.bf16.msra.mxu0 %v500
        %610 = vmatprep.subr.bf16.mxu0 0
        %611 = vmatpush1.bf16.msra.mxu0 0
        %612 = vmatprep.subr.bf16.mxu0 0
        %613 = vmatpush1.bf16.msra.mxu0 0
        %614 = vmatprep.subr.bf16.mxu0 0
        %615 = vmatpush1.bf16.msra.mxu0 0
        %616 = vmatprep.subr.bf16.mxu0 0
        %617 = vmatpush1.bf16.msra.mxu0 0
        %618 = vmatprep.subr.bf16.mxu0 0
        %619 = vmatpush1.bf16.msra.mxu0 0
        %620 = vmatprep.subr.bf16.mxu0 0
        %621 = vmatpush1.bf16.msra.mxu0 0
        %622 = vmatprep.subr.bf16.mxu0 0
        %623 = vmatpush1.bf16.msra.mxu0 0
        %624 = vmatprep.subr.bf16.mxu0 0
        %625 = vmatpush1.bf16.msra.mxu0 0
        %626 = vmatprep.subr.bf16.mxu0 0
        %627 = vmatpush1.bf16.msra.mxu0 0
        %628 = vmatprep.subr.bf16.mxu0 0
        %629 = vmatpush1.bf16.msra.mxu0 0
        %630 = vmatprep.subr.bf16.mxu0 0
        %631 = vmatpush1.bf16.msra.mxu0 0
        %632 = vmatprep.subr.bf16.mxu0 0
        %633 = vmatpush1.bf16.msra.mxu0 0
        %634 = vmatprep.subr.bf16.mxu0 0
        %635 = vmatpush1.bf16.msra.mxu0 0
        %636 = vmatprep.subr.bf16.mxu0 0
        %637 = vmatpush1.bf16.msra.mxu0 0
        %638 = vmatprep.mubr.bf16.mxu0 0
        %639 = vmatmul.mubr.bf16.gmra.mrb[0].mxu0 %v522
        %v640 = vpop.f32.mrb[0].mxu0
        %v641 = vadd.f32 0.0, %v640
        %v642 = vpop.f32.mrb[0].mxu0
        %v643 = vadd.f32 0.0, %v642
        %v644 = vpop.f32.mrb[0].mxu0
        %v645 = vpop.f32.mrb[0].mxu0
        %646 = vdwg.mxu0
        %647 = vmatprep.subr.bf16.mxu0 %v495
        %648 = vmatpush1.bf16.msra.mxu0 %v494
        %649 = vmatprep.subr.bf16.mxu0 %v503
        %650 = vmatpush1.bf16.msra.mxu0 %v502
        %651 = vmatprep.subr.bf16.mxu0 0
        %652 = vmatpush1.bf16.msra.mxu0 0
        %653 = vmatprep.subr.bf16.mxu0 0
        %654 = vmatpush1.bf16.msra.mxu0 0
        %655 = vmatprep.subr.bf16.mxu0 0
        %656 = vmatpush1.bf16.msra.mxu0 0
        %657 = vmatprep.subr.bf16.mxu0 0
        %658 = vmatpush1.bf16.msra.mxu0 0
        %659 = vmatprep.subr.bf16.mxu0 0
        %660 = vmatpush1.bf16.msra.mxu0 0
        %661 = vmatprep.subr.bf16.mxu0 0
        %662 = vmatpush1.bf16.msra.mxu0 0
        %663 = vmatprep.subr.bf16.mxu0 0
        %664 = vmatpush1.bf16.msra.mxu0 0
        %665 = vmatprep.subr.bf16.mxu0 0
        %666 = vmatpush1.bf16.msra.mxu0 0
        %667 = vmatprep.subr.bf16.mxu0 0
        %668 = vmatpush1.bf16.msra.mxu0 0
        %669 = vmatprep.subr.bf16.mxu0 0
        %670 = vmatpush1.bf16.msra.mxu0 0
        %671 = vmatprep.subr.bf16.mxu0 0
        %672 = vmatpush1.bf16.msra.mxu0 0
        %673 = vmatprep.subr.bf16.mxu0 0
        %674 = vmatpush1.bf16.msra.mxu0 0
        %675 = vmatprep.subr.bf16.mxu0 0
        %676 = vmatpush1.bf16.msra.mxu0 0
        %677 = vmatprep.subr.bf16.mxu0 0
        %678 = vmatpush1.bf16.msra.mxu0 0
        %679 = vmatprep.mubr.bf16.mxu0 0
        %680 = vmatmul.mubr.bf16.gmra.mrb[0].mxu0 %v522
        %v681 = vpop.f32.mrb[0].mxu0
        %v682 = vadd.f32 0.0, %v681
        %v683 = vpop.f32.mrb[0].mxu0
        %v684 = vadd.f32 0.0, %v683
        %v685 = vpop.f32.mrb[0].mxu0
        %v686 = vpop.f32.mrb[0].mxu0
        %687 = vdwg.mxu0
        %vm688 = vcmask 1041408
        %v689 = vsel %vm688, %v559, 0.0
        %v690 = vrot.slane %v689, 4
        %v691 = vadd.f32 %v689, %v690
        %v692 = vrot.slane %v691, 2
        %v693 = vadd.f32 %v691, %v692
        %v694 = vrot.slane %v693, 1
        %v695 = vadd.f32 %v693, %v694
        %v696 = vsel %vm688, %v561, 0.0
        %v697 = vrot.slane %v696, 4
        %v698 = vadd.f32 %v696, %v697
        %v699 = vrot.slane %v698, 2
        %v700 = vadd.f32 %v698, %v699
        %v701 = vrot.slane %v700, 1
        %v702 = vadd.f32 %v700, %v701
        %v703 = vsel %vm688, %v600, 0.0
        %v704 = vrot.slane %v703, 4
        %v705 = vadd.f32 %v703, %v704
        %v706 = vrot.slane %v705, 2
        %v707 = vadd.f32 %v705, %v706
        %v708 = vrot.slane %v707, 1
        %v709 = vadd.f32 %v707, %v708
        %v710 = vsel %vm688, %v602, 0.0
        %v711 = vrot.slane %v710, 4
        %v712 = vadd.f32 %v710, %v711
        %v713 = vrot.slane %v712, 2
        %v714 = vadd.f32 %v712, %v713
        %v715 = vrot.slane %v714, 1
        %v716 = vadd.f32 %v714, %v715
        %v717 = vsel %vm688, %v641, 0.0
        %v718 = vrot.slane %v717, 4
        %v719 = vadd.f32 %v717, %v718
        %v720 = vrot.slane %v719, 2
        %v721 = vadd.f32 %v719, %v720
        %v722 = vrot.slane %v721, 1
        %v723 = vadd.f32 %v721, %v722
        %v724 = vsel %vm688, %v643, 0.0
        %v725 = vrot.slane %v724, 4
        %v726 = vadd.f32 %v724, %v725
        %v727 = vrot.slane %v726, 2
        %v728 = vadd.f32 %v726, %v727
        %v729 = vrot.slane %v728, 1
        %v730 = vadd.f32 %v728, %v729
        %v731 = vsel %vm688, %v682, 0.0
        %v732 = vrot.slane %v731, 4
        %v733 = vadd.f32 %v731, %v732
        %v734 = vrot.slane %v733, 2
        %v735 = vadd.f32 %v733, %v734
        %v736 = vrot.slane %v735, 1
        %v737 = vadd.f32 %v735, %v736
        %v738 = vsel %vm688, %v684, 0.0
        %v739 = vrot.slane %v738, 4
        %v740 = vadd.f32 %v738, %v739
        %v741 = vrot.slane %v740, 2
        %v742 = vadd.f32 %v740, %v741
        %v743 = vrot.slane %v742, 1
        %v744 = vadd.f32 %v742, %v743
        %v745 = vrcp.pop 2.0
        %v746 = vmul.f32 %v695, %v745
        %v747 = vmul.f32 %v702, %v745
        %v748 = vmul.f32 %v709, %v745
        %v749 = vmul.f32 %v716, %v745
        %v750 = vmul.f32 %v723, %v745
        %v751 = vmul.f32 %v730, %v745
        %v752 = vmul.f32 %v737, %v745
        %v753 = vmul.f32 %v744, %v745
        %v754 = vsub.f32 %v559, %v746
        %v755 = vsub.f32 %v561, %v747
        %v756 = vsub.f32 %v600, %v748
        %v757 = vsub.f32 %v602, %v749
        %v758 = vsub.f32 %v641, %v750
        %v759 = vsub.f32 %v643, %v751
        %v760 = vsub.f32 %v682, %v752
        %v761 = vsub.f32 %v684, %v753
        %v762 = vmul.f32 %v754, %v754
        %v763 = vmul.f32 %v755, %v755
        %v764 = vmul.f32 %v756, %v756
        %v765 = vmul.f32 %v757, %v757
        %v766 = vmul.f32 %v758, %v758
        %v767 = vmul.f32 %v759, %v759
        %v768 = vmul.f32 %v760, %v760
        %v769 = vmul.f32 %v761, %v761
        %v770 = vsel %vm688, %v762, 0.0
        %v771 = vrot.slane %v770, 4
        %v772 = vadd.f32 %v770, %v771
        %v773 = vrot.slane %v772, 2
        %v774 = vadd.f32 %v772, %v773
        %v775 = vrot.slane %v774, 1
        %v776 = vadd.f32 %v774, %v775
        %v777 = vsel %vm688, %v763, 0.0
        %v778 = vrot.slane %v777, 4
        %v779 = vadd.f32 %v777, %v778
        %v780 = vrot.slane %v779, 2
        %v781 = vadd.f32 %v779, %v780
        %v782 = vrot.slane %v781, 1
        %v783 = vadd.f32 %v781, %v782
        %v784 = vsel %vm688, %v764, 0.0
        %v785 = vrot.slane %v784, 4
        %v786 = vadd.f32 %v784, %v785
        %v787 = vrot.slane %v786, 2
        %v788 = vadd.f32 %v786, %v787
        %v789 = vrot.slane %v788, 1
        %v790 = vadd.f32 %v788, %v789
        %v791 = vsel %vm688, %v765, 0.0
        %v792 = vrot.slane %v791, 4
        %v793 = vadd.f32 %v791, %v792
        %v794 = vrot.slane %v793, 2
        %v795 = vadd.f32 %v793, %v794
        %v796 = vrot.slane %v795, 1
        %v797 = vadd.f32 %v795, %v796
        %v798 = vsel %vm688, %v766, 0.0
        %v799 = vrot.slane %v798, 4
        %v800 = vadd.f32 %v798, %v799
        %v801 = vrot.slane %v800, 2
        %v802 = vadd.f32 %v800, %v801
        %v803 = vrot.slane %v802, 1
        %v804 = vadd.f32 %v802, %v803
        %v805 = vsel %vm688, %v767, 0.0
        %v806 = vrot.slane %v805, 4
        %v807 = vadd.f32 %v805, %v806
        %v808 = vrot.slane %v807, 2
        %v809 = vadd.f32 %v807, %v808
        %v810 = vrot.slane %v809, 1
        %v811 = vadd.f32 %v809, %v810
        %v812 = vsel %vm688, %v768, 0.0
        %v813 = vrot.slane %v812, 4
        %v814 = vadd.f32 %v812, %v813
        %v815 = vrot.slane %v814, 2
        %v816 = vadd.f32 %v814, %v815
        %v817 = vrot.slane %v816, 1
        %v818 = vadd.f32 %v816, %v817
        %v819 = vsel %vm688, %v769, 0.0
        %v820 = vrot.slane %v819, 4
        %v821 = vadd.f32 %v819, %v820
        %v822 = vrot.slane %v821, 2
        %v823 = vadd.f32 %v821, %v822
        %v824 = vrot.slane %v823, 1
        %v825 = vadd.f32 %v823, %v824
        %v826 = vmul.f32 %v776, %v745
        %v827 = vmul.f32 %v783, %v745
        %v828 = vmul.f32 %v790, %v745
        %v829 = vmul.f32 %v797, %v745
        %v830 = vmul.f32 %v804, %v745
        %v831 = vmul.f32 %v811, %v745
        %v832 = vmul.f32 %v818, %v745
        %v833 = vmul.f32 %v825, %v745
        %v834 = vld [vmem:[#allocation6] sm:$0xff]
        %v836 = vlaneseq
        %v837 = vshrl.u32 %v836, 7
        %v838 = vsub.s32 0, %v837
        %v839 = vrot.slane %v834, %v838
        %v840 = vlaneseq
        %v841 = vshrl.u32 %v840, 7
        %v842 = vsub.s32 1, %v841
        %v843 = vrot.slane %v834, %v842
        %v844 = vlaneseq
        %v845 = vshrl.u32 %v844, 7
        %v846 = vsub.s32 2, %v845
        %v847 = vrot.slane %v834, %v846
        %v848 = vlaneseq
        %v849 = vshrl.u32 %v848, 7
        %v850 = vsub.s32 3, %v849
        %v851 = vrot.slane %v834, %v850
        %v852 = vlaneseq
        %v853 = vshrl.u32 %v852, 7
        %v854 = vsub.s32 4, %v853
        %v855 = vrot.slane %v834, %v854
        %v856 = vlaneseq
        %v857 = vshrl.u32 %v856, 7
        %v858 = vsub.s32 5, %v857
        %v859 = vrot.slane %v834, %v858
        %v860 = vlaneseq
        %v861 = vshrl.u32 %v860, 7
        %v862 = vsub.s32 6, %v861
        %v863 = vrot.slane %v834, %v862
        %v864 = vlaneseq
        %v865 = vshrl.u32 %v864, 7
        %v866 = vsub.s32 7, %v865
        %v867 = vrot.slane %v834, %v866
        %v876 = vmul.f32 %v839, %v754
        %v877 = vmul.f32 %v843, %v755
        %v878 = vmul.f32 %v847, %v756
        %v879 = vmul.f32 %v851, %v757
        %v880 = vmul.f32 %v855, %v758
        %v881 = vmul.f32 %v859, %v759
        %v882 = vmul.f32 %v863, %v760
        %v883 = vmul.f32 %v867, %v761
        %v884 = vadd.f32 %v826, 1e-05
        %v885 = vadd.f32 %v827, 1e-05
        %v886 = vadd.f32 %v828, 1e-05
        %v887 = vadd.f32 %v829, 1e-05
        %v888 = vadd.f32 %v830, 1e-05
        %v889 = vadd.f32 %v831, 1e-05
        %v890 = vadd.f32 %v832, 1e-05
        %v891 = vadd.f32 %v833, 1e-05
        %v892 = vrsqrt.pop %v884
        %v893 = vrsqrt.pop %v885
        %v894 = vrsqrt.pop %v886
        %v895 = vrsqrt.pop %v887
        %v896 = vrsqrt.pop %v888
        %v897 = vrsqrt.pop %v889
        %v898 = vrsqrt.pop %v890
        %v899 = vrsqrt.pop %v891
        %v900 = vmul.f32 %v876, %v892
        %v901 = vmul.f32 %v877, %v893
        %v902 = vmul.f32 %v878, %v894
        %v903 = vmul.f32 %v879, %v895
        %v904 = vmul.f32 %v880, %v896
        %v905 = vmul.f32 %v881, %v897
        %v906 = vmul.f32 %v882, %v898
        %v907 = vmul.f32 %v883, %v899
        %v908 = vld [vmem:[#allocation7] sm:$0xff]
        %v910 = vlaneseq
        %v911 = vshrl.u32 %v910, 7
        %v912 = vsub.s32 0, %v911
        %v913 = vrot.slane %v908, %v912
        %v914 = vlaneseq
        %v915 = vshrl.u32 %v914, 7
        %v916 = vsub.s32 1, %v915
        %v917 = vrot.slane %v908, %v916
        %v918 = vlaneseq
        %v919 = vshrl.u32 %v918, 7
        %v920 = vsub.s32 2, %v919
        %v921 = vrot.slane %v908, %v920
        %v922 = vlaneseq
        %v923 = vshrl.u32 %v922, 7
        %v924 = vsub.s32 3, %v923
        %v925 = vrot.slane %v908, %v924
        %v926 = vlaneseq
        %v927 = vshrl.u32 %v926, 7
        %v928 = vsub.s32 4, %v927
        %v929 = vrot.slane %v908, %v928
        %v930 = vlaneseq
        %v931 = vshrl.u32 %v930, 7
        %v932 = vsub.s32 5, %v931
        %v933 = vrot.slane %v908, %v932
        %v934 = vlaneseq
        %v935 = vshrl.u32 %v934, 7
        %v936 = vsub.s32 6, %v935
        %v937 = vrot.slane %v908, %v936
        %v938 = vlaneseq
        %v939 = vshrl.u32 %v938, 7
        %v940 = vsub.s32 7, %v939
        %v941 = vrot.slane %v908, %v940
        %v950 = vadd.f32 %v900, %v913
        %v951 = vadd.f32 %v901, %v917
        %v952 = vadd.f32 %v902, %v921
        %v953 = vadd.f32 %v903, %v925
        %v954 = vadd.f32 %v904, %v929
        %v955 = vadd.f32 %v905, %v933
        %v956 = vadd.f32 %v906, %v937
        %v957 = vadd.f32 %v907, %v941
        %v958 = vmax.f32 %v950, 0.0
        %v959 = vmax.f32 %v951, 0.0
        %v960 = vmax.f32 %v952, 0.0
        %v961 = vmax.f32 %v953, 0.0
        %v962 = vmax.f32 %v954, 0.0
        %v963 = vmax.f32 %v955, 0.0
        %v964 = vmax.f32 %v956, 0.0
        %v965 = vmax.f32 %v957, 0.0
        %v966 = vpack.c.bf16 %v958, %v958
        %v967 = vpack.c.bf16 %v959, %v959
        %v968 = vpack.c.bf16 %v960, %v960
        %v969 = vpack.c.bf16 %v961, %v961
        %v970 = vpack.c.bf16 %v962, %v962
        %v971 = vpack.c.bf16 %v963, %v963
        %v972 = vpack.c.bf16 %v964, %v964
        %v973 = vpack.c.bf16 %v965, %v965
        %v974 = vld [vmem:[%s355] sm:$0xff]
        %v975 = vld [vmem:[%s355 + $0x8] sm:$0xff]
        %v976 = vld [vmem:[%s355 + $0x10] sm:$0xff]
        %v977 = vld [vmem:[%s355 + $0x18] sm:$0xf]
        %v978 = vld [vmem:[%s355 + $0x1c] sm:$0xff]
        %v979 = vld [vmem:[%s355 + $0x24] sm:$0xff]
        %v980 = vld [vmem:[%s355 + $0x2c] sm:$0xff]
        %v981 = vld [vmem:[%s355 + $0x34] sm:$0xf]
        %v982 = vld [vmem:[%s355 + $0x38] sm:$0xff]
        %v983 = vld [vmem:[%s355 + $0x40] sm:$0xff]
        %v984 = vld [vmem:[%s355 + $0x48] sm:$0xff]
        %v985 = vld [vmem:[%s355 + $0x50] sm:$0xf]
        %v986 = vld [vmem:[%s355 + $0x54] sm:$0xff]
        %v987 = vld [vmem:[%s355 + $0x5c] sm:$0xff]
        %v988 = vld [vmem:[%s355 + $0x64] sm:$0xff]
        %v989 = vld [vmem:[%s355 + $0x6c] sm:$0xf]
        %v990 = vld [vmem:[%s355 + $0x70] sm:$0xff]
        %v991 = vld [vmem:[%s355 + $0x78] sm:$0xff]
        %v992 = vld [vmem:[%s355 + $0x80] sm:$0xff]
        %v993 = vld [vmem:[%s355 + $0x88] sm:$0xf]
        %v994 = vld [vmem:[%s355 + $0x8c] sm:$0xff]
        %v995 = vld [vmem:[%s355 + $0x94] sm:$0xff]
        %v996 = vld [vmem:[%s355 + $0x9c] sm:$0xff]
        %v997 = vld [vmem:[%s355 + $0xa4] sm:$0xf]
        %v998 = vld [vmem:[%s355 + $0xa8] sm:$0xff]
        %v999 = vld [vmem:[%s355 + $0xb0] sm:$0xff]
        %v1000 = vld [vmem:[%s355 + $0xb8] sm:$0xff]
        %v1001 = vld [vmem:[%s355 + $0xc0] sm:$0xf]
        %v1002 = vld [vmem:[%s355 + $0xc4] sm:$0xff]
        %v1003 = vld [vmem:[%s355 + $0xcc] sm:$0xff]
        %v1004 = vld [vmem:[%s355 + $0xd4] sm:$0xff]
        %v1005 = vld [vmem:[%s355 + $0xdc] sm:$0xf]
        %v1006 = vld [vmem:[%s355 + $0xe0] sm:$0xff]
        %v1007 = vld [vmem:[%s355 + $0xe8] sm:$0xff]
        %v1008 = vld [vmem:[%s355 + $0xf0] sm:$0xff]
        %v1009 = vld [vmem:[%s355 + $0xf8] sm:$0xf]
        %v1010 = vld [vmem:[%s355 + $0xfc] sm:$0xff]
        %v1011 = vld [vmem:[%s355 + $0x104] sm:$0xff]
        %v1012 = vld [vmem:[%s355 + $0x10c] sm:$0xff]
        %v1013 = vld [vmem:[%s355 + $0x114] sm:$0xf]
        %v1014 = vld [vmem:[%s355 + $0x118] sm:$0xff]
        %v1015 = vld [vmem:[%s355 + $0x120] sm:$0xff]
        %v1016 = vld [vmem:[%s355 + $0x128] sm:$0xff]
        %v1017 = vld [vmem:[%s355 + $0x130] sm:$0xf]
        %v1018 = vld [vmem:[%s355 + $0x134] sm:$0xff]
        %v1019 = vld [vmem:[%s355 + $0x13c] sm:$0xff]
        %v1020 = vld [vmem:[%s355 + $0x144] sm:$0xff]
        %v1021 = vld [vmem:[%s355 + $0x14c] sm:$0xf]
        %v1022 = vld [vmem:[%s355 + $0x150] sm:$0xff]
        %v1023 = vld [vmem:[%s355 + $0x158] sm:$0xff]
        %v1024 = vld [vmem:[%s355 + $0x160] sm:$0xff]
        %v1025 = vld [vmem:[%s355 + $0x168] sm:$0xf]
        %v1026 = vld [vmem:[%s355 + $0x16c] sm:$0xff]
        %v1027 = vld [vmem:[%s355 + $0x174] sm:$0xff]
        %v1028 = vld [vmem:[%s355 + $0x17c] sm:$0xff]
        %v1029 = vld [vmem:[%s355 + $0x184] sm:$0xf]
        %v1030 = vld [vmem:[%s355 + $0x188] sm:$0xff]
        %v1031 = vld [vmem:[%s355 + $0x190] sm:$0xff]
        %v1032 = vld [vmem:[%s355 + $0x198] sm:$0xff]
        %v1033 = vld [vmem:[%s355 + $0x1a0] sm:$0xf]
        %v1034 = vld [vmem:[%s355 + $0x1a4] sm:$0xff]
        %v1035 = vld [vmem:[%s355 + $0x1ac] sm:$0xff]
        %v1036 = vld [vmem:[%s355 + $0x1b4] sm:$0xff]
        %v1037 = vld [vmem:[%s355 + $0x1bc] sm:$0xf]
        %v1038 = vld [vmem:[%s355 + $0x1c0] sm:$0xff]
        %v1039 = vld [vmem:[%s355 + $0x1c8] sm:$0xff]
        %v1040 = vld [vmem:[%s355 + $0x1d0] sm:$0xff]
        %v1041 = vld [vmem:[%s355 + $0x1d8] sm:$0xf]
        %v1042 = vld [vmem:[%s355 + $0x1dc] sm:$0xff]
        %v1043 = vld [vmem:[%s355 + $0x1e4] sm:$0xff]
        %v1044 = vld [vmem:[%s355 + $0x1ec] sm:$0xff]
        %v1045 = vld [vmem:[%s355 + $0x1f4] sm:$0xf]
        %v1046 = vld [vmem:[%s355 + $0x1f8] sm:$0xff]
        %v1047 = vld [vmem:[%s355 + $0x200] sm:$0xff]
        %v1048 = vld [vmem:[%s355 + $0x208] sm:$0xff]
        %v1049 = vld [vmem:[%s355 + $0x210] sm:$0xf]
        %v1050 = vld [vmem:[%s355 + $0x214] sm:$0xff]
        %v1051 = vld [vmem:[%s355 + $0x21c] sm:$0xff]
        %v1052 = vld [vmem:[%s355 + $0x224] sm:$0xff]
        %v1053 = vld [vmem:[%s355 + $0x22c] sm:$0xf]
        %v1054 = vld [vmem:[%s355 + $0x230] sm:$0xff]
        %v1055 = vld [vmem:[%s355 + $0x238] sm:$0xff]
        %v1056 = vld [vmem:[%s355 + $0x240] sm:$0xff]
        %v1057 = vld [vmem:[%s355 + $0x248] sm:$0xf]
        %v1058 = vld [vmem:[%s355 + $0x24c] sm:$0xff]
        %v1059 = vld [vmem:[%s355 + $0x254] sm:$0xff]
        %v1060 = vld [vmem:[%s355 + $0x25c] sm:$0xff]
        %v1061 = vld [vmem:[%s355 + $0x264] sm:$0xf]
        %v1062 = vld [vmem:[%s355 + $0x268] sm:$0xff]
        %v1063 = vld [vmem:[%s355 + $0x270] sm:$0xff]
        %v1064 = vld [vmem:[%s355 + $0x278] sm:$0xff]
        %v1065 = vld [vmem:[%s355 + $0x280] sm:$0xf]
        %v1066 = vld [vmem:[%s355 + $0x284] sm:$0xff]
        %v1067 = vld [vmem:[%s355 + $0x28c] sm:$0xff]
        %v1068 = vld [vmem:[%s355 + $0x294] sm:$0xff]
        %v1069 = vld [vmem:[%s355 + $0x29c] sm:$0xf]
        %v1070 = vld [vmem:[%s355 + $0x2a0] sm:$0xff]
        %v1071 = vld [vmem:[%s355 + $0x2a8] sm:$0xff]
        %v1072 = vld [vmem:[%s355 + $0x2b0] sm:$0xff]
        %v1073 = vld [vmem:[%s355 + $0x2b8] sm:$0xf]
        %v1074 = vld [vmem:[%s355 + $0x2bc] sm:$0xff]
        %v1075 = vld [vmem:[%s355 + $0x2c4] sm:$0xff]
        %v1076 = vld [vmem:[%s355 + $0x2cc] sm:$0xff]
        %v1077 = vld [vmem:[%s355 + $0x2d4] sm:$0xf]
        %v1078 = vld [vmem:[%s355 + $0x2d8] sm:$0xff]
        %v1079 = vld [vmem:[%s355 + $0x2e0] sm:$0xff]
        %v1080 = vld [vmem:[%s355 + $0x2e8] sm:$0xff]
        %v1081 = vld [vmem:[%s355 + $0x2f0] sm:$0xf]
        %v1082 = vld [vmem:[%s355 + $0x2f4] sm:$0xff]
        %v1083 = vld [vmem:[%s355 + $0x2fc] sm:$0xff]
        %v1084 = vld [vmem:[%s355 + $0x304] sm:$0xff]
        %v1085 = vld [vmem:[%s355 + $0x30c] sm:$0xf]
        %v1086 = vld [vmem:[%s355 + $0x310] sm:$0xff]
        %v1087 = vld [vmem:[%s355 + $0x318] sm:$0xff]
        %v1088 = vld [vmem:[%s355 + $0x320] sm:$0xff]
        %v1089 = vld [vmem:[%s355 + $0x328] sm:$0xf]
        %v1090 = vld [vmem:[%s355 + $0x32c] sm:$0xff]
        %v1091 = vld [vmem:[%s355 + $0x334] sm:$0xff]
        %v1092 = vld [vmem:[%s355 + $0x33c] sm:$0xff]
        %v1093 = vld [vmem:[%s355 + $0x344] sm:$0xf]
        %v1094 = vld [vmem:[%s355 + $0x348] sm:$0xff]
        %v1095 = vld [vmem:[%s355 + $0x350] sm:$0xff]
        %v1096 = vld [vmem:[%s355 + $0x358] sm:$0xff]
        %v1097 = vld [vmem:[%s355 + $0x360] sm:$0xf]
        %v1098 = vld [vmem:[%s355 + $0x364] sm:$0xff]
        %v1099 = vld [vmem:[%s355 + $0x36c] sm:$0xff]
        %v1100 = vld [vmem:[%s355 + $0x374] sm:$0xff]
        %v1101 = vld [vmem:[%s355 + $0x37c] sm:$0xf]
        %v1102 = vld [vmem:[%s355 + $0x380] sm:$0xff]
        %v1103 = vld [vmem:[%s355 + $0x388] sm:$0xff]
        %v1104 = vld [vmem:[%s355 + $0x390] sm:$0xff]
        %v1105 = vld [vmem:[%s355 + $0x398] sm:$0xf]
        %v1106 = vld [vmem:[%s355 + $0x39c] sm:$0xff]
        %v1107 = vld [vmem:[%s355 + $0x3a4] sm:$0xff]
        %v1108 = vld [vmem:[%s355 + $0x3ac] sm:$0xff]
        %v1109 = vld [vmem:[%s355 + $0x3b4] sm:$0xf]
        %v1110 = vld [vmem:[%s355 + $0x3b8] sm:$0xff]
        %v1111 = vld [vmem:[%s355 + $0x3c0] sm:$0xff]
        %v1112 = vld [vmem:[%s355 + $0x3c8] sm:$0xff]
        %v1113 = vld [vmem:[%s355 + $0x3d0] sm:$0xf]
        %v1114 = vld [vmem:[%s355 + $0x3d4] sm:$0xff]
        %v1115 = vld [vmem:[%s355 + $0x3dc] sm:$0xff]
        %v1116 = vld [vmem:[%s355 + $0x3e4] sm:$0xff]
        %v1117 = vld [vmem:[%s355 + $0x3ec] sm:$0xf]
        %v1118 = vld [vmem:[%s355 + $0x3f0] sm:$0xff]
        %v1119 = vld [vmem:[%s355 + $0x3f8] sm:$0xff]
        %v1120 = vld [vmem:[%s355 + $0x400] sm:$0xff]
        %v1121 = vld [vmem:[%s355 + $0x408] sm:$0xf]
        %v1122 = vld [vmem:[%s355 + $0x40c] sm:$0xff]
        %v1123 = vld [vmem:[%s355 + $0x414] sm:$0xff]
        %v1124 = vld [vmem:[%s355 + $0x41c] sm:$0xff]
        %v1125 = vld [vmem:[%s355 + $0x424] sm:$0xf]
        %v1126 = vld [vmem:[%s355 + $0x428] sm:$0xff]
        %v1127 = vld [vmem:[%s355 + $0x430] sm:$0xff]
        %v1128 = vld [vmem:[%s355 + $0x438] sm:$0xff]
        %v1129 = vld [vmem:[%s355 + $0x440] sm:$0xf]
        %v1130 = vld [vmem:[%s355 + $0x444] sm:$0xff]
        %v1131 = vld [vmem:[%s355 + $0x44c] sm:$0xff]
        %v1132 = vld [vmem:[%s355 + $0x454] sm:$0xff]
        %v1133 = vld [vmem:[%s355 + $0x45c] sm:$0xf]
        %v1134 = vld [vmem:[%s355 + $0x460] sm:$0xff]
        %v1135 = vld [vmem:[%s355 + $0x468] sm:$0xff]
        %v1136 = vld [vmem:[%s355 + $0x470] sm:$0xff]
        %v1137 = vld [vmem:[%s355 + $0x478] sm:$0xf]
        %v1138 = vld [vmem:[%s355 + $0x47c] sm:$0xff]
        %v1139 = vld [vmem:[%s355 + $0x484] sm:$0xff]
        %v1140 = vld [vmem:[%s355 + $0x48c] sm:$0xff]
        %v1141 = vld [vmem:[%s355 + $0x494] sm:$0xf]
        %v1142 = vld [vmem:[%s355 + $0x498] sm:$0xff]
        %v1143 = vld [vmem:[%s355 + $0x4a0] sm:$0xff]
        %v1144 = vld [vmem:[%s355 + $0x4a8] sm:$0xff]
        %v1145 = vld [vmem:[%s355 + $0x4b0] sm:$0xf]
        %v1146 = vld [vmem:[%s355 + $0x4b4] sm:$0xff]
        %v1147 = vld [vmem:[%s355 + $0x4bc] sm:$0xff]
        %v1148 = vld [vmem:[%s355 + $0x4c4] sm:$0xff]
        %v1149 = vld [vmem:[%s355 + $0x4cc] sm:$0xf]
        %v1150 = vld [vmem:[%s355 + $0x4d0] sm:$0xff]
        %v1151 = vld [vmem:[%s355 + $0x4d8] sm:$0xff]
        %v1152 = vld [vmem:[%s355 + $0x4e0] sm:$0xff]
        %v1153 = vld [vmem:[%s355 + $0x4e8] sm:$0xf]
        %v1154 = vld [vmem:[%s355 + $0x4ec] sm:$0xff]
        %v1155 = vld [vmem:[%s355 + $0x4f4] sm:$0xff]
        %v1156 = vld [vmem:[%s355 + $0x4fc] sm:$0xff]
        %v1157 = vld [vmem:[%s355 + $0x504] sm:$0xf]
        %v1158 = vld [vmem:[%s355 + $0x508] sm:$0xff]
        %v1159 = vld [vmem:[%s355 + $0x510] sm:$0xff]
        %v1160 = vld [vmem:[%s355 + $0x518] sm:$0xff]
        %v1161 = vld [vmem:[%s355 + $0x520] sm:$0xf]
        %v1162 = vld [vmem:[%s355 + $0x524] sm:$0xff]
        %v1163 = vld [vmem:[%s355 + $0x52c] sm:$0xff]
        %v1164 = vld [vmem:[%s355 + $0x534] sm:$0xff]
        %v1165 = vld [vmem:[%s355 + $0x53c] sm:$0xf]
        %v1166 = vld [vmem:[%s355 + $0x540] sm:$0xff]
        %v1167 = vld [vmem:[%s355 + $0x548] sm:$0xff]
        %v1168 = vld [vmem:[%s355 + $0x550] sm:$0xff]
        %v1169 = vld [vmem:[%s355 + $0x558] sm:$0xf]
        %v1170 = vld [vmem:[%s355 + $0x55c] sm:$0xff]
        %v1171 = vld [vmem:[%s355 + $0x564] sm:$0xff]
        %v1172 = vld [vmem:[%s355 + $0x56c] sm:$0xff]
        %v1173 = vld [vmem:[%s355 + $0x574] sm:$0xf]
        %v1174 = vld [vmem:[%s355 + $0x578] sm:$0xff]
        %v1175 = vld [vmem:[%s355 + $0x580] sm:$0xff]
        %v1176 = vld [vmem:[%s355 + $0x588] sm:$0xff]
        %v1177 = vld [vmem:[%s355 + $0x590] sm:$0xf]
        %v1178 = vld [vmem:[%s355 + $0x594] sm:$0xff]
        %v1179 = vld [vmem:[%s355 + $0x59c] sm:$0xff]
        %v1180 = vld [vmem:[%s355 + $0x5a4] sm:$0xff]
        %v1181 = vld [vmem:[%s355 + $0x5ac] sm:$0xf]
        %v1182 = vld [vmem:[%s355 + $0x5b0] sm:$0xff]
        %v1183 = vld [vmem:[%s355 + $0x5b8] sm:$0xff]
        %v1184 = vld [vmem:[%s355 + $0x5c0] sm:$0xff]
        %v1185 = vld [vmem:[%s355 + $0x5c8] sm:$0xf]
        %v1186 = vld [vmem:[%s355 + $0x5cc] sm:$0xff]
        %v1187 = vld [vmem:[%s355 + $0x5d4] sm:$0xff]
        %v1188 = vld [vmem:[%s355 + $0x5dc] sm:$0xff]
        %v1189 = vld [vmem:[%s355 + $0x5e4] sm:$0xf]
        %v1190 = vld [vmem:[%s355 + $0x5e8] sm:$0xff]
        %v1191 = vld [vmem:[%s355 + $0x5f0] sm:$0xff]
        %v1192 = vld [vmem:[%s355 + $0x5f8] sm:$0xff]
        %v1193 = vld [vmem:[%s355 + $0x600] sm:$0xf]
        %v1194 = vld [vmem:[%s355 + $0x604] sm:$0xff]
        %v1195 = vld [vmem:[%s355 + $0x60c] sm:$0xff]
        %v1196 = vld [vmem:[%s355 + $0x614] sm:$0xff]
        %v1197 = vld [vmem:[%s355 + $0x61c] sm:$0xf]
        %v1198 = vld [vmem:[%s355 + $0x620] sm:$0xff]
        %v1199 = vld [vmem:[%s355 + $0x628] sm:$0xff]
        %v1200 = vld [vmem:[%s355 + $0x630] sm:$0xff]
        %v1201 = vld [vmem:[%s355 + $0x638] sm:$0xf]
        %v1202 = vld [vmem:[%s355 + $0x63c] sm:$0xff]
        %v1203 = vld [vmem:[%s355 + $0x644] sm:$0xff]
        %v1204 = vld [vmem:[%s355 + $0x64c] sm:$0xff]
        %v1205 = vld [vmem:[%s355 + $0x654] sm:$0xf]
        %v1206 = vld [vmem:[%s355 + $0x658] sm:$0xff]
        %v1207 = vld [vmem:[%s355 + $0x660] sm:$0xff]
        %v1208 = vld [vmem:[%s355 + $0x668] sm:$0xff]
        %v1209 = vld [vmem:[%s355 + $0x670] sm:$0xf]
        %v1210 = vld [vmem:[%s355 + $0x674] sm:$0xff]
        %v1211 = vld [vmem:[%s355 + $0x67c] sm:$0xff]
        %v1212 = vld [vmem:[%s355 + $0x684] sm:$0xff]
        %v1213 = vld [vmem:[%s355 + $0x68c] sm:$0xf]
        %v1214 = vld [vmem:[%s355 + $0x690] sm:$0xff]
        %v1215 = vld [vmem:[%s355 + $0x698] sm:$0xff]
        %v1216 = vld [vmem:[%s355 + $0x6a0] sm:$0xff]
        %v1217 = vld [vmem:[%s355 + $0x6a8] sm:$0xf]
        %v1218 = vld [vmem:[%s355 + $0x6ac] sm:$0xff]
        %v1219 = vld [vmem:[%s355 + $0x6b4] sm:$0xff]
        %v1220 = vld [vmem:[%s355 + $0x6bc] sm:$0xff]
        %v1221 = vld [vmem:[%s355 + $0x6c4] sm:$0xf]
        %v1222 = vld [vmem:[%s355 + $0x6c8] sm:$0xff]
        %v1223 = vld [vmem:[%s355 + $0x6d0] sm:$0xff]
        %v1224 = vld [vmem:[%s355 + $0x6d8] sm:$0xff]
        %v1225 = vld [vmem:[%s355 + $0x6e0] sm:$0xf]
        %v1226 = vld [vmem:[%s355 + $0x6e4] sm:$0xff]
        %v1227 = vld [vmem:[%s355 + $0x6ec] sm:$0xff]
        %v1228 = vld [vmem:[%s355 + $0x6f4] sm:$0xff]
        %v1229 = vld [vmem:[%s355 + $0x6fc] sm:$0xf]
        %v1230 = vld [vmem:[%s355 + $0x700] sm:$0xff]
        %v1231 = vld [vmem:[%s355 + $0x708] sm:$0xff]
        %v1232 = vld [vmem:[%s355 + $0x710] sm:$0xff]
        %v1233 = vld [vmem:[%s355 + $0x718] sm:$0xf]
        %v1234 = vld [vmem:[%s355 + $0x71c] sm:$0xff]
        %v1235 = vld [vmem:[%s355 + $0x724] sm:$0xff]
        %v1236 = vld [vmem:[%s355 + $0x72c] sm:$0xff]
        %v1237 = vld [vmem:[%s355 + $0x734] sm:$0xf]
        %v1238 = vld [vmem:[%s355 + $0x738] sm:$0xff]
        %v1239 = vld [vmem:[%s355 + $0x740] sm:$0xff]
        %v1240 = vld [vmem:[%s355 + $0x748] sm:$0xff]
        %v1241 = vld [vmem:[%s355 + $0x750] sm:$0xf]
        %v1242 = vld [vmem:[%s355 + $0x754] sm:$0xff]
        %v1243 = vld [vmem:[%s355 + $0x75c] sm:$0xff]
        %v1244 = vld [vmem:[%s355 + $0x764] sm:$0xff]
        %v1245 = vld [vmem:[%s355 + $0x76c] sm:$0xf]
        %v1246 = vld [vmem:[%s355 + $0x770] sm:$0xff]
        %v1247 = vld [vmem:[%s355 + $0x778] sm:$0xff]
        %v1248 = vld [vmem:[%s355 + $0x780] sm:$0xff]
        %v1249 = vld [vmem:[%s355 + $0x788] sm:$0xf]
        %v1250 = vld [vmem:[%s355 + $0x78c] sm:$0xff]
        %v1251 = vld [vmem:[%s355 + $0x794] sm:$0xff]
        %v1252 = vld [vmem:[%s355 + $0x79c] sm:$0xff]
        %v1253 = vld [vmem:[%s355 + $0x7a4] sm:$0xf]
        %v1254 = vld [vmem:[%s355 + $0x7a8] sm:$0xff]
        %v1255 = vld [vmem:[%s355 + $0x7b0] sm:$0xff]
        %v1256 = vld [vmem:[%s355 + $0x7b8] sm:$0xff]
        %v1257 = vld [vmem:[%s355 + $0x7c0] sm:$0xf]
        %v1258 = vld [vmem:[%s355 + $0x7c4] sm:$0xff]
        %v1259 = vld [vmem:[%s355 + $0x7cc] sm:$0xff]
        %v1260 = vld [vmem:[%s355 + $0x7d4] sm:$0xff]
        %v1261 = vld [vmem:[%s355 + $0x7dc] sm:$0xf]
        %v1262 = vld [vmem:[%s355 + $0x7e0] sm:$0xff]
        %v1263 = vld [vmem:[%s355 + $0x7e8] sm:$0xff]
        %v1264 = vld [vmem:[%s355 + $0x7f0] sm:$0xff]
        %v1265 = vld [vmem:[%s355 + $0x7f8] sm:$0xf]
        %v1266 = vld [vmem:[%s355 + $0x7fc] sm:$0xff]
        %v1267 = vld [vmem:[%s355 + $0x804] sm:$0xff]
        %v1268 = vld [vmem:[%s355 + $0x80c] sm:$0xff]
        %v1269 = vld [vmem:[%s355 + $0x814] sm:$0xf]
        %v1270 = vld [vmem:[%s355 + $0x818] sm:$0xff]
        %v1271 = vld [vmem:[%s355 + $0x820] sm:$0xff]
        %v1272 = vld [vmem:[%s355 + $0x828] sm:$0xff]
        %v1273 = vld [vmem:[%s355 + $0x830] sm:$0xf]
        %v1274 = vld [vmem:[%s355 + $0x834] sm:$0xff]
        %v1275 = vld [vmem:[%s355 + $0x83c] sm:$0xff]
        %v1276 = vld [vmem:[%s355 + $0x844] sm:$0xff]
        %v1277 = vld [vmem:[%s355 + $0x84c] sm:$0xf]
        %v1278 = vld [vmem:[%s355 + $0x850] sm:$0xff]
        %v1279 = vld [vmem:[%s355 + $0x858] sm:$0xff]
        %v1280 = vld [vmem:[%s355 + $0x860] sm:$0xff]
        %v1281 = vld [vmem:[%s355 + $0x868] sm:$0xf]
        %v1282 = vld [vmem:[%s355 + $0x86c] sm:$0xff]
        %v1283 = vld [vmem:[%s355 + $0x874] sm:$0xff]
        %v1284 = vld [vmem:[%s355 + $0x87c] sm:$0xff]
        %v1285 = vld [vmem:[%s355 + $0x884] sm:$0xf]
        %v1286 = vld [vmem:[%s355 + $0x888] sm:$0xff]
        %v1287 = vld [vmem:[%s355 + $0x890] sm:$0xff]
        %v1288 = vld [vmem:[%s355 + $0x898] sm:$0xff]
        %v1289 = vld [vmem:[%s355 + $0x8a0] sm:$0xf]
        %v1290 = vld [vmem:[%s355 + $0x8a4] sm:$0xff]
        %v1291 = vld [vmem:[%s355 + $0x8ac] sm:$0xff]
        %v1292 = vld [vmem:[%s355 + $0x8b4] sm:$0xff]
        %v1293 = vld [vmem:[%s355 + $0x8bc] sm:$0xf]
        %v1294 = vld [vmem:[%s355 + $0x8c0] sm:$0xff]
        %v1295 = vld [vmem:[%s355 + $0x8c8] sm:$0xff]
        %v1296 = vld [vmem:[%s355 + $0x8d0] sm:$0xff]
        %v1297 = vld [vmem:[%s355 + $0x8d8] sm:$0xf]
        %v1298 = vld [vmem:[%s355 + $0x8dc] sm:$0xff]
        %v1299 = vld [vmem:[%s355 + $0x8e4] sm:$0xff]
        %v1300 = vld [vmem:[%s355 + $0x8ec] sm:$0xff]
        %v1301 = vld [vmem:[%s355 + $0x8f4] sm:$0xf]
        %v1302 = vld [vmem:[%s355 + $0x8f8] sm:$0xff]
        %v1303 = vld [vmem:[%s355 + $0x900] sm:$0xff]
        %v1304 = vld [vmem:[%s355 + $0x908] sm:$0xff]
        %v1305 = vld [vmem:[%s355 + $0x910] sm:$0xf]
        %v1306 = vld [vmem:[%s355 + $0x914] sm:$0xff]
        %v1307 = vld [vmem:[%s355 + $0x91c] sm:$0xff]
        %v1308 = vld [vmem:[%s355 + $0x924] sm:$0xff]
        %v1309 = vld [vmem:[%s355 + $0x92c] sm:$0xf]
        %v1310 = vld [vmem:[%s355 + $0x930] sm:$0xff]
        %v1311 = vld [vmem:[%s355 + $0x938] sm:$0xff]
        %v1312 = vld [vmem:[%s355 + $0x940] sm:$0xff]
        %v1313 = vld [vmem:[%s355 + $0x948] sm:$0xf]
        %v1314 = vld [vmem:[%s355 + $0x94c] sm:$0xff]
        %v1315 = vld [vmem:[%s355 + $0x954] sm:$0xff]
        %v1316 = vld [vmem:[%s355 + $0x95c] sm:$0xff]
        %v1317 = vld [vmem:[%s355 + $0x964] sm:$0xf]
        %v1318 = vld [vmem:[%s355 + $0x968] sm:$0xff]
        %v1319 = vld [vmem:[%s355 + $0x970] sm:$0xff]
        %v1320 = vld [vmem:[%s355 + $0x978] sm:$0xff]
        %v1321 = vld [vmem:[%s355 + $0x980] sm:$0xf]
        %v1322 = vld [vmem:[%s355 + $0x984] sm:$0xff]
        %v1323 = vld [vmem:[%s355 + $0x98c] sm:$0xff]
        %v1324 = vld [vmem:[%s355 + $0x994] sm:$0xff]
        %v1325 = vld [vmem:[%s355 + $0x99c] sm:$0xf]
        %v1326 = vld [vmem:[%s355 + $0x9a0] sm:$0xff]
        %v1327 = vld [vmem:[%s355 + $0x9a8] sm:$0xff]
        %v1328 = vld [vmem:[%s355 + $0x9b0] sm:$0xff]
        %v1329 = vld [vmem:[%s355 + $0x9b8] sm:$0xf]
        %v1330 = vld [vmem:[%s355 + $0x9bc] sm:$0xff]
        %v1331 = vld [vmem:[%s355 + $0x9c4] sm:$0xff]
        %v1332 = vld [vmem:[%s355 + $0x9cc] sm:$0xff]
        %v1333 = vld [vmem:[%s355 + $0x9d4] sm:$0xf]
        %v1334 = vld [vmem:[%s355 + $0x9d8] sm:$0xff]
        %v1335 = vld [vmem:[%s355 + $0x9e0] sm:$0xff]
        %v1336 = vld [vmem:[%s355 + $0x9e8] sm:$0xff]
        %v1337 = vld [vmem:[%s355 + $0x9f0] sm:$0xf]
        %v1338 = vld [vmem:[%s355 + $0x9f4] sm:$0xff]
        %v1339 = vld [vmem:[%s355 + $0x9fc] sm:$0xff]
        %v1340 = vld [vmem:[%s355 + $0xa04] sm:$0xff]
        %v1341 = vld [vmem:[%s355 + $0xa0c] sm:$0xf]
        %v1342 = vld [vmem:[%s355 + $0xa10] sm:$0xff]
        %v1343 = vld [vmem:[%s355 + $0xa18] sm:$0xff]
        %v1344 = vld [vmem:[%s355 + $0xa20] sm:$0xff]
        %v1345 = vld [vmem:[%s355 + $0xa28] sm:$0xf]
        %v1346 = vld [vmem:[%s355 + $0xa2c] sm:$0xff]
        %v1347 = vld [vmem:[%s355 + $0xa34] sm:$0xff]
        %v1348 = vld [vmem:[%s355 + $0xa3c] sm:$0xff]
        %v1349 = vld [vmem:[%s355 + $0xa44] sm:$0xf]
        %v1350 = vld [vmem:[%s355 + $0xa48] sm:$0xff]
        %v1351 = vld [vmem:[%s355 + $0xa50] sm:$0xff]
        %v1352 = vld [vmem:[%s355 + $0xa58] sm:$0xff]
        %v1353 = vld [vmem:[%s355 + $0xa60] sm:$0xf]
        %v1354 = vld [vmem:[%s355 + $0xa64] sm:$0xff]
        %v1355 = vld [vmem:[%s355 + $0xa6c] sm:$0xff]
        %v1356 = vld [vmem:[%s355 + $0xa74] sm:$0xff]
        %v1357 = vld [vmem:[%s355 + $0xa7c] sm:$0xf]
        %v1358 = vld [vmem:[%s355 + $0xa80] sm:$0xff]
        %v1359 = vld [vmem:[%s355 + $0xa88] sm:$0xff]
        %v1360 = vld [vmem:[%s355 + $0xa90] sm:$0xff]
        %v1361 = vld [vmem:[%s355 + $0xa98] sm:$0xf]
        %v1362 = vld [vmem:[%s355 + $0xa9c] sm:$0xff]
        %v1363 = vld [vmem:[%s355 + $0xaa4] sm:$0xff]
        %v1364 = vld [vmem:[%s355 + $0xaac] sm:$0xff]
        %v1365 = vld [vmem:[%s355 + $0xab4] sm:$0xf]
        %v1366 = vld [vmem:[%s355 + $0xab8] sm:$0xff]
        %v1367 = vld [vmem:[%s355 + $0xac0] sm:$0xff]
        %v1368 = vld [vmem:[%s355 + $0xac8] sm:$0xff]
        %v1369 = vld [vmem:[%s355 + $0xad0] sm:$0xf]
        %v1370 = vld [vmem:[%s355 + $0xad4] sm:$0xff]
        %v1371 = vld [vmem:[%s355 + $0xadc] sm:$0xff]
        %v1372 = vld [vmem:[%s355 + $0xae4] sm:$0xff]
        %v1373 = vld [vmem:[%s355 + $0xaec] sm:$0xf]
        %v1374 = vld [vmem:[%s355 + $0xaf0] sm:$0xff]
        %v1375 = vld [vmem:[%s355 + $0xaf8] sm:$0xff]
        %v1376 = vld [vmem:[%s355 + $0xb00] sm:$0xff]
        %v1377 = vld [vmem:[%s355 + $0xb08] sm:$0xf]
        %v1378 = vld [vmem:[%s355 + $0xb0c] sm:$0xff]
        %v1379 = vld [vmem:[%s355 + $0xb14] sm:$0xff]
        %v1380 = vld [vmem:[%s355 + $0xb1c] sm:$0xff]
        %v1381 = vld [vmem:[%s355 + $0xb24] sm:$0xf]
        %v1382 = vld [vmem:[%s355 + $0xb28] sm:$0xff]
        %v1383 = vld [vmem:[%s355 + $0xb30] sm:$0xff]
        %v1384 = vld [vmem:[%s355 + $0xb38] sm:$0xff]
        %v1385 = vld [vmem:[%s355 + $0xb40] sm:$0xf]
        %v1386 = vld [vmem:[%s355 + $0xb44] sm:$0xff]
        %v1387 = vld [vmem:[%s355 + $0xb4c] sm:$0xff]
        %v1388 = vld [vmem:[%s355 + $0xb54] sm:$0xff]
        %v1389 = vld [vmem:[%s355 + $0xb5c] sm:$0xf]
        %v1390 = vld [vmem:[%s355 + $0xb60] sm:$0xff]
        %v1391 = vld [vmem:[%s355 + $0xb68] sm:$0xff]
        %v1392 = vld [vmem:[%s355 + $0xb70] sm:$0xff]
        %v1393 = vld [vmem:[%s355 + $0xb78] sm:$0xf]
        %v1394 = vld [vmem:[%s355 + $0xb7c] sm:$0xff]
        %v1395 = vld [vmem:[%s355 + $0xb84] sm:$0xff]
        %v1396 = vld [vmem:[%s355 + $0xb8c] sm:$0xff]
        %v1397 = vld [vmem:[%s355 + $0xb94] sm:$0xf]
        %v1398 = vld [vmem:[%s355 + $0xb98] sm:$0xff]
        %v1399 = vld [vmem:[%s355 + $0xba0] sm:$0xff]
        %v1400 = vld [vmem:[%s355 + $0xba8] sm:$0xff]
        %v1401 = vld [vmem:[%s355 + $0xbb0] sm:$0xf]
        %v1402 = vld [vmem:[%s355 + $0xbb4] sm:$0xff]
        %v1403 = vld [vmem:[%s355 + $0xbbc] sm:$0xff]
        %v1404 = vld [vmem:[%s355 + $0xbc4] sm:$0xff]
        %v1405 = vld [vmem:[%s355 + $0xbcc] sm:$0xf]
        %v1406 = vld [vmem:[%s355 + $0xbd0] sm:$0xff]
        %v1407 = vld [vmem:[%s355 + $0xbd8] sm:$0xff]
        %v1408 = vld [vmem:[%s355 + $0xbe0] sm:$0xff]
        %v1409 = vld [vmem:[%s355 + $0xbe8] sm:$0xf]
        %v1410 = vld [vmem:[%s355 + $0xbec] sm:$0xff]
        %v1411 = vld [vmem:[%s355 + $0xbf4] sm:$0xff]
        %v1412 = vld [vmem:[%s355 + $0xbfc] sm:$0xff]
        %v1413 = vld [vmem:[%s355 + $0xc04] sm:$0xf]
        %v1414 = vld [vmem:[%s355 + $0xc08] sm:$0xff]
        %v1415 = vld [vmem:[%s355 + $0xc10] sm:$0xff]
        %v1416 = vld [vmem:[%s355 + $0xc18] sm:$0xff]
        %v1417 = vld [vmem:[%s355 + $0xc20] sm:$0xf]
        %v1418 = vld [vmem:[%s355 + $0xc24] sm:$0xff]
        %v1419 = vld [vmem:[%s355 + $0xc2c] sm:$0xff]
        %v1420 = vld [vmem:[%s355 + $0xc34] sm:$0xff]
        %v1421 = vld [vmem:[%s355 + $0xc3c] sm:$0xf]
        %v1422 = vld [vmem:[%s355 + $0xc40] sm:$0xff]
        %v1423 = vld [vmem:[%s355 + $0xc48] sm:$0xff]
        %v1424 = vld [vmem:[%s355 + $0xc50] sm:$0xff]
        %v1425 = vld [vmem:[%s355 + $0xc58] sm:$0xf]
        %v1426 = vld [vmem:[%s355 + $0xc5c] sm:$0xff]
        %v1427 = vld [vmem:[%s355 + $0xc64] sm:$0xff]
        %v1428 = vld [vmem:[%s355 + $0xc6c] sm:$0xff]
        %v1429 = vld [vmem:[%s355 + $0xc74] sm:$0xf]
        %v1430 = vld [vmem:[%s355 + $0xc78] sm:$0xff]
        %v1431 = vld [vmem:[%s355 + $0xc80] sm:$0xff]
        %v1432 = vld [vmem:[%s355 + $0xc88] sm:$0xff]
        %v1433 = vld [vmem:[%s355 + $0xc90] sm:$0xf]
        %v1434 = vld [vmem:[%s355 + $0xc94] sm:$0xff]
        %v1435 = vld [vmem:[%s355 + $0xc9c] sm:$0xff]
        %v1436 = vld [vmem:[%s355 + $0xca4] sm:$0xff]
        %v1437 = vld [vmem:[%s355 + $0xcac] sm:$0xf]
        %v1438 = vld [vmem:[%s355 + $0xcb0] sm:$0xff]
        %v1439 = vld [vmem:[%s355 + $0xcb8] sm:$0xff]
        %v1440 = vld [vmem:[%s355 + $0xcc0] sm:$0xff]
        %v1441 = vld [vmem:[%s355 + $0xcc8] sm:$0xf]
        %v1442 = vld [vmem:[%s355 + $0xccc] sm:$0xff]
        %v1443 = vld [vmem:[%s355 + $0xcd4] sm:$0xff]
        %v1444 = vld [vmem:[%s355 + $0xcdc] sm:$0xff]
        %v1445 = vld [vmem:[%s355 + $0xce4] sm:$0xf]
        %v1446 = vld [vmem:[%s355 + $0xce8] sm:$0xff]
        %v1447 = vld [vmem:[%s355 + $0xcf0] sm:$0xff]
        %v1448 = vld [vmem:[%s355 + $0xcf8] sm:$0xff]
        %v1449 = vld [vmem:[%s355 + $0xd00] sm:$0xf]
        %v1450 = vld [vmem:[%s355 + $0xd04] sm:$0xff]
        %v1451 = vld [vmem:[%s355 + $0xd0c] sm:$0xff]
        %v1452 = vld [vmem:[%s355 + $0xd14] sm:$0xff]
        %v1453 = vld [vmem:[%s355 + $0xd1c] sm:$0xf]
        %v1454 = vld [vmem:[%s355 + $0xd20] sm:$0xff]
        %v1455 = vld [vmem:[%s355 + $0xd28] sm:$0xff]
        %v1456 = vld [vmem:[%s355 + $0xd30] sm:$0xff]
        %v1457 = vld [vmem:[%s355 + $0xd38] sm:$0xf]
        %v1458 = vld [vmem:[%s355 + $0xd3c] sm:$0xff]
        %v1459 = vld [vmem:[%s355 + $0xd44] sm:$0xff]
        %v1460 = vld [vmem:[%s355 + $0xd4c] sm:$0xff]
        %v1461 = vld [vmem:[%s355 + $0xd54] sm:$0xf]
        %v1462 = vld [vmem:[%s355 + $0xd58] sm:$0xff]
        %v1463 = vld [vmem:[%s355 + $0xd60] sm:$0xff]
        %v1464 = vld [vmem:[%s355 + $0xd68] sm:$0xff]
        %v1465 = vld [vmem:[%s355 + $0xd70] sm:$0xf]
        %v1466 = vld [vmem:[%s355 + $0xd74] sm:$0xff]
        %v1467 = vld [vmem:[%s355 + $0xd7c] sm:$0xff]
        %v1468 = vld [vmem:[%s355 + $0xd84] sm:$0xff]
        %v1469 = vld [vmem:[%s355 + $0xd8c] sm:$0xf]
        %v1470 = vld [vmem:[%s355 + $0xd90] sm:$0xff]
        %v1471 = vld [vmem:[%s355 + $0xd98] sm:$0xff]
        %v1472 = vld [vmem:[%s355 + $0xda0] sm:$0xff]
        %v1473 = vld [vmem:[%s355 + $0xda8] sm:$0xf]
        %v1474 = vld [vmem:[%s355 + $0xdac] sm:$0xff]
        %v1475 = vld [vmem:[%s355 + $0xdb4] sm:$0xff]
        %v1476 = vld [vmem:[%s355 + $0xdbc] sm:$0xff]
        %v1477 = vld [vmem:[%s355 + $0xdc4] sm:$0xf]
        %v1478 = vld [vmem:[%s355 + $0xdc8] sm:$0xff]
        %v1479 = vld [vmem:[%s355 + $0xdd0] sm:$0xff]
        %v1480 = vld [vmem:[%s355 + $0xdd8] sm:$0xff]
        %v1481 = vld [vmem:[%s355 + $0xde0] sm:$0xf]
        %v1482 = vld [vmem:[%s355 + $0xde4] sm:$0xff]
        %v1483 = vld [vmem:[%s355 + $0xdec] sm:$0xff]
        %v1484 = vld [vmem:[%s355 + $0xdf4] sm:$0xff]
        %v1485 = vld [vmem:[%s355 + $0xdfc] sm:$0xf]
        %v1998 = vunpack.c.l.b16 %v974
        %v1999 = vunpack.c.h.b16 %v974
        %v2000 = vunpack.c.l.b16 %v975
        %v2001 = vunpack.c.h.b16 %v975
        %v2002 = vunpack.c.l.b16 %v976
        %v2003 = vunpack.c.h.b16 %v976
        %v2004 = vunpack.c.l.b16 %v977
        %v2005 = vunpack.c.l.b16 %v978
        %v2006 = vunpack.c.h.b16 %v978
        %v2007 = vunpack.c.l.b16 %v979
        %v2008 = vunpack.c.h.b16 %v979
        %v2009 = vunpack.c.l.b16 %v980
        %v2010 = vunpack.c.h.b16 %v980
        %v2011 = vunpack.c.l.b16 %v981
        %v2012 = vunpack.c.l.b16 %v982
        %v2013 = vunpack.c.h.b16 %v982
        %v2014 = vunpack.c.l.b16 %v983
        %v2015 = vunpack.c.h.b16 %v983
        %v2016 = vunpack.c.l.b16 %v984
        %v2017 = vunpack.c.h.b16 %v984
        %v2018 = vunpack.c.l.b16 %v985
        %v2019 = vunpack.c.l.b16 %v986
        %v2020 = vunpack.c.h.b16 %v986
        %v2021 = vunpack.c.l.b16 %v987
        %v2022 = vunpack.c.h.b16 %v987
        %v2023 = vunpack.c.l.b16 %v988
        %v2024 = vunpack.c.h.b16 %v988
        %v2025 = vunpack.c.l.b16 %v989
        %v2026 = vunpack.c.l.b16 %v990
        %v2027 = vunpack.c.h.b16 %v990
        %v2028 = vunpack.c.l.b16 %v991
        %v2029 = vunpack.c.h.b16 %v991
        %v2030 = vunpack.c.l.b16 %v992
        %v2031 = vunpack.c.h.b16 %v992
        %v2032 = vunpack.c.l.b16 %v993
        %v2033 = vunpack.c.l.b16 %v994
        %v2034 = vunpack.c.h.b16 %v994
        %v2035 = vunpack.c.l.b16 %v995
        %v2036 = vunpack.c.h.b16 %v995
        %v2037 = vunpack.c.l.b16 %v996
        %v2038 = vunpack.c.h.b16 %v996
        %v2039 = vunpack.c.l.b16 %v997
        %v2040 = vunpack.c.l.b16 %v998
        %v2041 = vunpack.c.h.b16 %v998
        %v2042 = vunpack.c.l.b16 %v999
        %v2043 = vunpack.c.h.b16 %v999
        %v2044 = vunpack.c.l.b16 %v1000
        %v2045 = vunpack.c.h.b16 %v1000
        %v2046 = vunpack.c.l.b16 %v1001
        %v2047 = vunpack.c.l.b16 %v1002
        %v2048 = vunpack.c.h.b16 %v1002
        %v2049 = vunpack.c.l.b16 %v1003
        %v2050 = vunpack.c.h.b16 %v1003
        %v2051 = vunpack.c.l.b16 %v1004
        %v2052 = vunpack.c.h.b16 %v1004
        %v2053 = vunpack.c.l.b16 %v1005
        %v2054 = vunpack.c.l.b16 %v1006
        %v2055 = vunpack.c.h.b16 %v1006
        %v2056 = vunpack.c.l.b16 %v1007
        %v2057 = vunpack.c.h.b16 %v1007
        %v2058 = vunpack.c.l.b16 %v1008
        %v2059 = vunpack.c.h.b16 %v1008
        %v2060 = vunpack.c.l.b16 %v1009
        %v2061 = vunpack.c.l.b16 %v1010
        %v2062 = vunpack.c.h.b16 %v1010
        %v2063 = vunpack.c.l.b16 %v1011
        %v2064 = vunpack.c.h.b16 %v1011
        %v2065 = vunpack.c.l.b16 %v1012
        %v2066 = vunpack.c.h.b16 %v1012
        %v2067 = vunpack.c.l.b16 %v1013
        %v2068 = vunpack.c.l.b16 %v1014
        %v2069 = vunpack.c.h.b16 %v1014
        %v2070 = vunpack.c.l.b16 %v1015
        %v2071 = vunpack.c.h.b16 %v1015
        %v2072 = vunpack.c.l.b16 %v1016
        %v2073 = vunpack.c.h.b16 %v1016
        %v2074 = vunpack.c.l.b16 %v1017
        %v2075 = vunpack.c.l.b16 %v1018
        %v2076 = vunpack.c.h.b16 %v1018
        %v2077 = vunpack.c.l.b16 %v1019
        %v2078 = vunpack.c.h.b16 %v1019
        %v2079 = vunpack.c.l.b16 %v1020
        %v2080 = vunpack.c.h.b16 %v1020
        %v2081 = vunpack.c.l.b16 %v1021
        %v2082 = vunpack.c.l.b16 %v1022
        %v2083 = vunpack.c.h.b16 %v1022
        %v2084 = vunpack.c.l.b16 %v1023
        %v2085 = vunpack.c.h.b16 %v1023
        %v2086 = vunpack.c.l.b16 %v1024
        %v2087 = vunpack.c.h.b16 %v1024
        %v2088 = vunpack.c.l.b16 %v1025
        %v2089 = vunpack.c.l.b16 %v1026
        %v2090 = vunpack.c.h.b16 %v1026
        %v2091 = vunpack.c.l.b16 %v1027
        %v2092 = vunpack.c.h.b16 %v1027
        %v2093 = vunpack.c.l.b16 %v1028
        %v2094 = vunpack.c.h.b16 %v1028
        %v2095 = vunpack.c.l.b16 %v1029
        %v2096 = vunpack.c.l.b16 %v1030
        %v2097 = vunpack.c.h.b16 %v1030
        %v2098 = vunpack.c.l.b16 %v1031
        %v2099 = vunpack.c.h.b16 %v1031
        %v2100 = vunpack.c.l.b16 %v1032
        %v2101 = vunpack.c.h.b16 %v1032
        %v2102 = vunpack.c.l.b16 %v1033
        %v2103 = vunpack.c.l.b16 %v1034
        %v2104 = vunpack.c.h.b16 %v1034
        %v2105 = vunpack.c.l.b16 %v1035
        %v2106 = vunpack.c.h.b16 %v1035
        %v2107 = vunpack.c.l.b16 %v1036
        %v2108 = vunpack.c.h.b16 %v1036
        %v2109 = vunpack.c.l.b16 %v1037
        %v2110 = vunpack.c.l.b16 %v1038
        %v2111 = vunpack.c.h.b16 %v1038
        %v2112 = vunpack.c.l.b16 %v1039
        %v2113 = vunpack.c.h.b16 %v1039
        %v2114 = vunpack.c.l.b16 %v1040
        %v2115 = vunpack.c.h.b16 %v1040
        %v2116 = vunpack.c.l.b16 %v1041
        %v2117 = vunpack.c.l.b16 %v1042
        %v2118 = vunpack.c.h.b16 %v1042
        %v2119 = vunpack.c.l.b16 %v1043
        %v2120 = vunpack.c.h.b16 %v1043
        %v2121 = vunpack.c.l.b16 %v1044
        %v2122 = vunpack.c.h.b16 %v1044
        %v2123 = vunpack.c.l.b16 %v1045
        %v2124 = vunpack.c.l.b16 %v1046
        %v2125 = vunpack.c.h.b16 %v1046
        %v2126 = vunpack.c.l.b16 %v1047
        %v2127 = vunpack.c.h.b16 %v1047
        %v2128 = vunpack.c.l.b16 %v1048
        %v2129 = vunpack.c.h.b16 %v1048
        %v2130 = vunpack.c.l.b16 %v1049
        %v2131 = vunpack.c.l.b16 %v1050
        %v2132 = vunpack.c.h.b16 %v1050
        %v2133 = vunpack.c.l.b16 %v1051
        %v2134 = vunpack.c.h.b16 %v1051
        %v2135 = vunpack.c.l.b16 %v1052
        %v2136 = vunpack.c.h.b16 %v1052
        %v2137 = vunpack.c.l.b16 %v1053
        %v2138 = vunpack.c.l.b16 %v1054
        %v2139 = vunpack.c.h.b16 %v1054
        %v2140 = vunpack.c.l.b16 %v1055
        %v2141 = vunpack.c.h.b16 %v1055
        %v2142 = vunpack.c.l.b16 %v1056
        %v2143 = vunpack.c.h.b16 %v1056
        %v2144 = vunpack.c.l.b16 %v1057
        %v2145 = vunpack.c.l.b16 %v1058
        %v2146 = vunpack.c.h.b16 %v1058
        %v2147 = vunpack.c.l.b16 %v1059
        %v2148 = vunpack.c.h.b16 %v1059
        %v2149 = vunpack.c.l.b16 %v1060
        %v2150 = vunpack.c.h.b16 %v1060
        %v2151 = vunpack.c.l.b16 %v1061
        %v2152 = vunpack.c.l.b16 %v1062
        %v2153 = vunpack.c.h.b16 %v1062
        %v2154 = vunpack.c.l.b16 %v1063
        %v2155 = vunpack.c.h.b16 %v1063
        %v2156 = vunpack.c.l.b16 %v1064
        %v2157 = vunpack.c.h.b16 %v1064
        %v2158 = vunpack.c.l.b16 %v1065
        %v2159 = vunpack.c.l.b16 %v1066
        %v2160 = vunpack.c.h.b16 %v1066
        %v2161 = vunpack.c.l.b16 %v1067
        %v2162 = vunpack.c.h.b16 %v1067
        %v2163 = vunpack.c.l.b16 %v1068
        %v2164 = vunpack.c.h.b16 %v1068
        %v2165 = vunpack.c.l.b16 %v1069
        %v2166 = vunpack.c.l.b16 %v1070
        %v2167 = vunpack.c.h.b16 %v1070
        %v2168 = vunpack.c.l.b16 %v1071
        %v2169 = vunpack.c.h.b16 %v1071
        %v2170 = vunpack.c.l.b16 %v1072
        %v2171 = vunpack.c.h.b16 %v1072
        %v2172 = vunpack.c.l.b16 %v1073
        %v2173 = vunpack.c.l.b16 %v1074
        %v2174 = vunpack.c.h.b16 %v1074
        %v2175 = vunpack.c.l.b16 %v1075
        %v2176 = vunpack.c.h.b16 %v1075
        %v2177 = vunpack.c.l.b16 %v1076
        %v2178 = vunpack.c.h.b16 %v1076
        %v2179 = vunpack.c.l.b16 %v1077
        %v2180 = vunpack.c.l.b16 %v1078
        %v2181 = vunpack.c.h.b16 %v1078
        %v2182 = vunpack.c.l.b16 %v1079
        %v2183 = vunpack.c.h.b16 %v1079
        %v2184 = vunpack.c.l.b16 %v1080
        %v2185 = vunpack.c.h.b16 %v1080
        %v2186 = vunpack.c.l.b16 %v1081
        %v2187 = vunpack.c.l.b16 %v1082
        %v2188 = vunpack.c.h.b16 %v1082
        %v2189 = vunpack.c.l.b16 %v1083
        %v2190 = vunpack.c.h.b16 %v1083
        %v2191 = vunpack.c.l.b16 %v1084
        %v2192 = vunpack.c.h.b16 %v1084
        %v2193 = vunpack.c.l.b16 %v1085
        %v2194 = vunpack.c.l.b16 %v1086
        %v2195 = vunpack.c.h.b16 %v1086
        %v2196 = vunpack.c.l.b16 %v1087
        %v2197 = vunpack.c.h.b16 %v1087
        %v2198 = vunpack.c.l.b16 %v1088
        %v2199 = vunpack.c.h.b16 %v1088
        %v2200 = vunpack.c.l.b16 %v1089
        %v2201 = vunpack.c.l.b16 %v1090
        %v2202 = vunpack.c.h.b16 %v1090
        %v2203 = vunpack.c.l.b16 %v1091
        %v2204 = vunpack.c.h.b16 %v1091
        %v2205 = vunpack.c.l.b16 %v1092
        %v2206 = vunpack.c.h.b16 %v1092
        %v2207 = vunpack.c.l.b16 %v1093
        %v2208 = vunpack.c.l.b16 %v1094
        %v2209 = vunpack.c.h.b16 %v1094
        %v2210 = vunpack.c.l.b16 %v1095
        %v2211 = vunpack.c.h.b16 %v1095
        %v2212 = vunpack.c.l.b16 %v1096
        %v2213 = vunpack.c.h.b16 %v1096
        %v2214 = vunpack.c.l.b16 %v1097
        %v2215 = vunpack.c.l.b16 %v1098
        %v2216 = vunpack.c.h.b16 %v1098
        %v2217 = vunpack.c.l.b16 %v1099
        %v2218 = vunpack.c.h.b16 %v1099
        %v2219 = vunpack.c.l.b16 %v1100
        %v2220 = vunpack.c.h.b16 %v1100
        %v2221 = vunpack.c.l.b16 %v1101
        %v2222 = vunpack.c.l.b16 %v1102
        %v2223 = vunpack.c.h.b16 %v1102
        %v2224 = vunpack.c.l.b16 %v1103
        %v2225 = vunpack.c.h.b16 %v1103
        %v2226 = vunpack.c.l.b16 %v1104
        %v2227 = vunpack.c.h.b16 %v1104
        %v2228 = vunpack.c.l.b16 %v1105
        %v2229 = vunpack.c.l.b16 %v1106
        %v2230 = vunpack.c.h.b16 %v1106
        %v2231 = vunpack.c.l.b16 %v1107
        %v2232 = vunpack.c.h.b16 %v1107
        %v2233 = vunpack.c.l.b16 %v1108
        %v2234 = vunpack.c.h.b16 %v1108
        %v2235 = vunpack.c.l.b16 %v1109
        %v2236 = vunpack.c.l.b16 %v1110
        %v2237 = vunpack.c.h.b16 %v1110
        %v2238 = vunpack.c.l.b16 %v1111
        %v2239 = vunpack.c.h.b16 %v1111
        %v2240 = vunpack.c.l.b16 %v1112
        %v2241 = vunpack.c.h.b16 %v1112
        %v2242 = vunpack.c.l.b16 %v1113
        %v2243 = vunpack.c.l.b16 %v1114
        %v2244 = vunpack.c.h.b16 %v1114
        %v2245 = vunpack.c.l.b16 %v1115
        %v2246 = vunpack.c.h.b16 %v1115
        %v2247 = vunpack.c.l.b16 %v1116
        %v2248 = vunpack.c.h.b16 %v1116
        %v2249 = vunpack.c.l.b16 %v1117
        %v2250 = vunpack.c.l.b16 %v1118
        %v2251 = vunpack.c.h.b16 %v1118
        %v2252 = vunpack.c.l.b16 %v1119
        %v2253 = vunpack.c.h.b16 %v1119
        %v2254 = vunpack.c.l.b16 %v1120
        %v2255 = vunpack.c.h.b16 %v1120
        %v2256 = vunpack.c.l.b16 %v1121
        %v2257 = vunpack.c.l.b16 %v1122
        %v2258 = vunpack.c.h.b16 %v1122
        %v2259 = vunpack.c.l.b16 %v1123
        %v2260 = vunpack.c.h.b16 %v1123
        %v2261 = vunpack.c.l.b16 %v1124
        %v2262 = vunpack.c.h.b16 %v1124
        %v2263 = vunpack.c.l.b16 %v1125
        %v2264 = vunpack.c.l.b16 %v1126
        %v2265 = vunpack.c.h.b16 %v1126
        %v2266 = vunpack.c.l.b16 %v1127
        %v2267 = vunpack.c.h.b16 %v1127
        %v2268 = vunpack.c.l.b16 %v1128
        %v2269 = vunpack.c.h.b16 %v1128
        %v2270 = vunpack.c.l.b16 %v1129
        %v2271 = vunpack.c.l.b16 %v1130
        %v2272 = vunpack.c.h.b16 %v1130
        %v2273 = vunpack.c.l.b16 %v1131
        %v2274 = vunpack.c.h.b16 %v1131
        %v2275 = vunpack.c.l.b16 %v1132
        %v2276 = vunpack.c.h.b16 %v1132
        %v2277 = vunpack.c.l.b16 %v1133
        %v2278 = vunpack.c.l.b16 %v1134
        %v2279 = vunpack.c.h.b16 %v1134
        %v2280 = vunpack.c.l.b16 %v1135
        %v2281 = vunpack.c.h.b16 %v1135
        %v2282 = vunpack.c.l.b16 %v1136
        %v2283 = vunpack.c.h.b16 %v1136
        %v2284 = vunpack.c.l.b16 %v1137
        %v2285 = vunpack.c.l.b16 %v1138
        %v2286 = vunpack.c.h.b16 %v1138
        %v2287 = vunpack.c.l.b16 %v1139
        %v2288 = vunpack.c.h.b16 %v1139
        %v2289 = vunpack.c.l.b16 %v1140
        %v2290 = vunpack.c.h.b16 %v1140
        %v2291 = vunpack.c.l.b16 %v1141
        %v2292 = vunpack.c.l.b16 %v1142
        %v2293 = vunpack.c.h.b16 %v1142
        %v2294 = vunpack.c.l.b16 %v1143
        %v2295 = vunpack.c.h.b16 %v1143
        %v2296 = vunpack.c.l.b16 %v1144
        %v2297 = vunpack.c.h.b16 %v1144
        %v2298 = vunpack.c.l.b16 %v1145
        %v2299 = vunpack.c.l.b16 %v1146
        %v2300 = vunpack.c.h.b16 %v1146
        %v2301 = vunpack.c.l.b16 %v1147
        %v2302 = vunpack.c.h.b16 %v1147
        %v2303 = vunpack.c.l.b16 %v1148
        %v2304 = vunpack.c.h.b16 %v1148
        %v2305 = vunpack.c.l.b16 %v1149
        %v2306 = vunpack.c.l.b16 %v1150
        %v2307 = vunpack.c.h.b16 %v1150
        %v2308 = vunpack.c.l.b16 %v1151
        %v2309 = vunpack.c.h.b16 %v1151
        %v2310 = vunpack.c.l.b16 %v1152
        %v2311 = vunpack.c.h.b16 %v1152
        %v2312 = vunpack.c.l.b16 %v1153
        %v2313 = vunpack.c.l.b16 %v1154
        %v2314 = vunpack.c.h.b16 %v1154
        %v2315 = vunpack.c.l.b16 %v1155
        %v2316 = vunpack.c.h.b16 %v1155
        %v2317 = vunpack.c.l.b16 %v1156
        %v2318 = vunpack.c.h.b16 %v1156
        %v2319 = vunpack.c.l.b16 %v1157
        %v2320 = vunpack.c.l.b16 %v1158
        %v2321 = vunpack.c.h.b16 %v1158
        %v2322 = vunpack.c.l.b16 %v1159
        %v2323 = vunpack.c.h.b16 %v1159
        %v2324 = vunpack.c.l.b16 %v1160
        %v2325 = vunpack.c.h.b16 %v1160
        %v2326 = vunpack.c.l.b16 %v1161
        %v2327 = vunpack.c.l.b16 %v1162
        %v2328 = vunpack.c.h.b16 %v1162
        %v2329 = vunpack.c.l.b16 %v1163
        %v2330 = vunpack.c.h.b16 %v1163
        %v2331 = vunpack.c.l.b16 %v1164
        %v2332 = vunpack.c.h.b16 %v1164
        %v2333 = vunpack.c.l.b16 %v1165
        %v2334 = vunpack.c.l.b16 %v1166
        %v2335 = vunpack.c.h.b16 %v1166
        %v2336 = vunpack.c.l.b16 %v1167
        %v2337 = vunpack.c.h.b16 %v1167
        %v2338 = vunpack.c.l.b16 %v1168
        %v2339 = vunpack.c.h.b16 %v1168
        %v2340 = vunpack.c.l.b16 %v1169
        %v2341 = vunpack.c.l.b16 %v1170
        %v2342 = vunpack.c.h.b16 %v1170
        %v2343 = vunpack.c.l.b16 %v1171
        %v2344 = vunpack.c.h.b16 %v1171
        %v2345 = vunpack.c.l.b16 %v1172
        %v2346 = vunpack.c.h.b16 %v1172
        %v2347 = vunpack.c.l.b16 %v1173
        %v2348 = vunpack.c.l.b16 %v1174
        %v2349 = vunpack.c.h.b16 %v1174
        %v2350 = vunpack.c.l.b16 %v1175
        %v2351 = vunpack.c.h.b16 %v1175
        %v2352 = vunpack.c.l.b16 %v1176
        %v2353 = vunpack.c.h.b16 %v1176
        %v2354 = vunpack.c.l.b16 %v1177
        %v2355 = vunpack.c.l.b16 %v1178
        %v2356 = vunpack.c.h.b16 %v1178
        %v2357 = vunpack.c.l.b16 %v1179
        %v2358 = vunpack.c.h.b16 %v1179
        %v2359 = vunpack.c.l.b16 %v1180
        %v2360 = vunpack.c.h.b16 %v1180
        %v2361 = vunpack.c.l.b16 %v1181
        %v2362 = vunpack.c.l.b16 %v1182
        %v2363 = vunpack.c.h.b16 %v1182
        %v2364 = vunpack.c.l.b16 %v1183
        %v2365 = vunpack.c.h.b16 %v1183
        %v2366 = vunpack.c.l.b16 %v1184
        %v2367 = vunpack.c.h.b16 %v1184
        %v2368 = vunpack.c.l.b16 %v1185
        %v2369 = vunpack.c.l.b16 %v1186
        %v2370 = vunpack.c.h.b16 %v1186
        %v2371 = vunpack.c.l.b16 %v1187
        %v2372 = vunpack.c.h.b16 %v1187
        %v2373 = vunpack.c.l.b16 %v1188
        %v2374 = vunpack.c.h.b16 %v1188
        %v2375 = vunpack.c.l.b16 %v1189
        %v2376 = vunpack.c.l.b16 %v1190
        %v2377 = vunpack.c.h.b16 %v1190
        %v2378 = vunpack.c.l.b16 %v1191
        %v2379 = vunpack.c.h.b16 %v1191
        %v2380 = vunpack.c.l.b16 %v1192
        %v2381 = vunpack.c.h.b16 %v1192
        %v2382 = vunpack.c.l.b16 %v1193
        %v2383 = vunpack.c.l.b16 %v1194
        %v2384 = vunpack.c.h.b16 %v1194
        %v2385 = vunpack.c.l.b16 %v1195
        %v2386 = vunpack.c.h.b16 %v1195
        %v2387 = vunpack.c.l.b16 %v1196
        %v2388 = vunpack.c.h.b16 %v1196
        %v2389 = vunpack.c.l.b16 %v1197
        %v2390 = vunpack.c.l.b16 %v1198
        %v2391 = vunpack.c.h.b16 %v1198
        %v2392 = vunpack.c.l.b16 %v1199
        %v2393 = vunpack.c.h.b16 %v1199
        %v2394 = vunpack.c.l.b16 %v1200
        %v2395 = vunpack.c.h.b16 %v1200
        %v2396 = vunpack.c.l.b16 %v1201
        %v2397 = vunpack.c.l.b16 %v1202
        %v2398 = vunpack.c.h.b16 %v1202
        %v2399 = vunpack.c.l.b16 %v1203
        %v2400 = vunpack.c.h.b16 %v1203
        %v2401 = vunpack.c.l.b16 %v1204
        %v2402 = vunpack.c.h.b16 %v1204
        %v2403 = vunpack.c.l.b16 %v1205
        %v2404 = vunpack.c.l.b16 %v1206
        %v2405 = vunpack.c.h.b16 %v1206
        %v2406 = vunpack.c.l.b16 %v1207
        %v2407 = vunpack.c.h.b16 %v1207
        %v2408 = vunpack.c.l.b16 %v1208
        %v2409 = vunpack.c.h.b16 %v1208
        %v2410 = vunpack.c.l.b16 %v1209
        %v2411 = vunpack.c.l.b16 %v1210
        %v2412 = vunpack.c.h.b16 %v1210
        %v2413 = vunpack.c.l.b16 %v1211
        %v2414 = vunpack.c.h.b16 %v1211
        %v2415 = vunpack.c.l.b16 %v1212
        %v2416 = vunpack.c.h.b16 %v1212
        %v2417 = vunpack.c.l.b16 %v1213
        %v2418 = vunpack.c.l.b16 %v1214
        %v2419 = vunpack.c.h.b16 %v1214
        %v2420 = vunpack.c.l.b16 %v1215
        %v2421 = vunpack.c.h.b16 %v1215
        %v2422 = vunpack.c.l.b16 %v1216
        %v2423 = vunpack.c.h.b16 %v1216
        %v2424 = vunpack.c.l.b16 %v1217
        %v2425 = vunpack.c.l.b16 %v1218
        %v2426 = vunpack.c.h.b16 %v1218
        %v2427 = vunpack.c.l.b16 %v1219
        %v2428 = vunpack.c.h.b16 %v1219
        %v2429 = vunpack.c.l.b16 %v1220
        %v2430 = vunpack.c.h.b16 %v1220
        %v2431 = vunpack.c.l.b16 %v1221
        %v2432 = vunpack.c.l.b16 %v1222
        %v2433 = vunpack.c.h.b16 %v1222
        %v2434 = vunpack.c.l.b16 %v1223
        %v2435 = vunpack.c.h.b16 %v1223
        %v2436 = vunpack.c.l.b16 %v1224
        %v2437 = vunpack.c.h.b16 %v1224
        %v2438 = vunpack.c.l.b16 %v1225
        %v2439 = vunpack.c.l.b16 %v1226
        %v2440 = vunpack.c.h.b16 %v1226
        %v2441 = vunpack.c.l.b16 %v1227
        %v2442 = vunpack.c.h.b16 %v1227
        %v2443 = vunpack.c.l.b16 %v1228
        %v2444 = vunpack.c.h.b16 %v1228
        %v2445 = vunpack.c.l.b16 %v1229
        %v2446 = vunpack.c.l.b16 %v1230
        %v2447 = vunpack.c.h.b16 %v1230
        %v2448 = vunpack.c.l.b16 %v1231
        %v2449 = vunpack.c.h.b16 %v1231
        %v2450 = vunpack.c.l.b16 %v1232
        %v2451 = vunpack.c.h.b16 %v1232
        %v2452 = vunpack.c.l.b16 %v1233
        %v2453 = vunpack.c.l.b16 %v1234
        %v2454 = vunpack.c.h.b16 %v1234
        %v2455 = vunpack.c.l.b16 %v1235
        %v2456 = vunpack.c.h.b16 %v1235
        %v2457 = vunpack.c.l.b16 %v1236
        %v2458 = vunpack.c.h.b16 %v1236
        %v2459 = vunpack.c.l.b16 %v1237
        %v2460 = vunpack.c.l.b16 %v1238
        %v2461 = vunpack.c.h.b16 %v1238
        %v2462 = vunpack.c.l.b16 %v1239
        %v2463 = vunpack.c.h.b16 %v1239
        %v2464 = vunpack.c.l.b16 %v1240
        %v2465 = vunpack.c.h.b16 %v1240
        %v2466 = vunpack.c.l.b16 %v1241
        %v2467 = vunpack.c.l.b16 %v1242
        %v2468 = vunpack.c.h.b16 %v1242
        %v2469 = vunpack.c.l.b16 %v1243
        %v2470 = vunpack.c.h.b16 %v1243
        %v2471 = vunpack.c.l.b16 %v1244
        %v2472 = vunpack.c.h.b16 %v1244
        %v2473 = vunpack.c.l.b16 %v1245
        %v2474 = vunpack.c.l.b16 %v1246
        %v2475 = vunpack.c.h.b16 %v1246
        %v2476 = vunpack.c.l.b16 %v1247
        %v2477 = vunpack.c.h.b16 %v1247
        %v2478 = vunpack.c.l.b16 %v1248
        %v2479 = vunpack.c.h.b16 %v1248
        %v2480 = vunpack.c.l.b16 %v1249
        %v2481 = vunpack.c.l.b16 %v1250
        %v2482 = vunpack.c.h.b16 %v1250
        %v2483 = vunpack.c.l.b16 %v1251
        %v2484 = vunpack.c.h.b16 %v1251
        %v2485 = vunpack.c.l.b16 %v1252
        %v2486 = vunpack.c.h.b16 %v1252
        %v2487 = vunpack.c.l.b16 %v1253
        %v2488 = vunpack.c.l.b16 %v1254
        %v2489 = vunpack.c.h.b16 %v1254
        %v2490 = vunpack.c.l.b16 %v1255
        %v2491 = vunpack.c.h.b16 %v1255
        %v2492 = vunpack.c.l.b16 %v1256
        %v2493 = vunpack.c.h.b16 %v1256
        %v2494 = vunpack.c.l.b16 %v1257
        %v2495 = vunpack.c.l.b16 %v1258
        %v2496 = vunpack.c.h.b16 %v1258
        %v2497 = vunpack.c.l.b16 %v1259
        %v2498 = vunpack.c.h.b16 %v1259
        %v2499 = vunpack.c.l.b16 %v1260
        %v2500 = vunpack.c.h.b16 %v1260
        %v2501 = vunpack.c.l.b16 %v1261
        %v2502 = vunpack.c.l.b16 %v1262
        %v2503 = vunpack.c.h.b16 %v1262
        %v2504 = vunpack.c.l.b16 %v1263
        %v2505 = vunpack.c.h.b16 %v1263
        %v2506 = vunpack.c.l.b16 %v1264
        %v2507 = vunpack.c.h.b16 %v1264
        %v2508 = vunpack.c.l.b16 %v1265
        %v2509 = vunpack.c.l.b16 %v1266
        %v2510 = vunpack.c.h.b16 %v1266
        %v2511 = vunpack.c.l.b16 %v1267
        %v2512 = vunpack.c.h.b16 %v1267
        %v2513 = vunpack.c.l.b16 %v1268
        %v2514 = vunpack.c.h.b16 %v1268
        %v2515 = vunpack.c.l.b16 %v1269
        %v2516 = vunpack.c.l.b16 %v1270
        %v2517 = vunpack.c.h.b16 %v1270
        %v2518 = vunpack.c.l.b16 %v1271
        %v2519 = vunpack.c.h.b16 %v1271
        %v2520 = vunpack.c.l.b16 %v1272
        %v2521 = vunpack.c.h.b16 %v1272
        %v2522 = vunpack.c.l.b16 %v1273
        %v2523 = vunpack.c.l.b16 %v1274
        %v2524 = vunpack.c.h.b16 %v1274
        %v2525 = vunpack.c.l.b16 %v1275
        %v2526 = vunpack.c.h.b16 %v1275
        %v2527 = vunpack.c.l.b16 %v1276
        %v2528 = vunpack.c.h.b16 %v1276
        %v2529 = vunpack.c.l.b16 %v1277
        %v2530 = vunpack.c.l.b16 %v1278
        %v2531 = vunpack.c.h.b16 %v1278
        %v2532 = vunpack.c.l.b16 %v1279
        %v2533 = vunpack.c.h.b16 %v1279
        %v2534 = vunpack.c.l.b16 %v1280
        %v2535 = vunpack.c.h.b16 %v1280
        %v2536 = vunpack.c.l.b16 %v1281
        %v2537 = vunpack.c.l.b16 %v1282
        %v2538 = vunpack.c.h.b16 %v1282
        %v2539 = vunpack.c.l.b16 %v1283
        %v2540 = vunpack.c.h.b16 %v1283
        %v2541 = vunpack.c.l.b16 %v1284
        %v2542 = vunpack.c.h.b16 %v1284
        %v2543 = vunpack.c.l.b16 %v1285
        %v2544 = vunpack.c.l.b16 %v1286
        %v2545 = vunpack.c.h.b16 %v1286
        %v2546 = vunpack.c.l.b16 %v1287
        %v2547 = vunpack.c.h.b16 %v1287
        %v2548 = vunpack.c.l.b16 %v1288
        %v2549 = vunpack.c.h.b16 %v1288
        %v2550 = vunpack.c.l.b16 %v1289
        %v2551 = vunpack.c.l.b16 %v1290
        %v2552 = vunpack.c.h.b16 %v1290
        %v2553 = vunpack.c.l.b16 %v1291
        %v2554 = vunpack.c.h.b16 %v1291
        %v2555 = vunpack.c.l.b16 %v1292
        %v2556 = vunpack.c.h.b16 %v1292
        %v2557 = vunpack.c.l.b16 %v1293
        %v2558 = vunpack.c.l.b16 %v1294
        %v2559 = vunpack.c.h.b16 %v1294
        %v2560 = vunpack.c.l.b16 %v1295
        %v2561 = vunpack.c.h.b16 %v1295
        %v2562 = vunpack.c.l.b16 %v1296
        %v2563 = vunpack.c.h.b16 %v1296
        %v2564 = vunpack.c.l.b16 %v1297
        %v2565 = vunpack.c.l.b16 %v1298
        %v2566 = vunpack.c.h.b16 %v1298
        %v2567 = vunpack.c.l.b16 %v1299
        %v2568 = vunpack.c.h.b16 %v1299
        %v2569 = vunpack.c.l.b16 %v1300
        %v2570 = vunpack.c.h.b16 %v1300
        %v2571 = vunpack.c.l.b16 %v1301
        %v2572 = vunpack.c.l.b16 %v1302
        %v2573 = vunpack.c.h.b16 %v1302
        %v2574 = vunpack.c.l.b16 %v1303
        %v2575 = vunpack.c.h.b16 %v1303
        %v2576 = vunpack.c.l.b16 %v1304
        %v2577 = vunpack.c.h.b16 %v1304
        %v2578 = vunpack.c.l.b16 %v1305
        %v2579 = vunpack.c.l.b16 %v1306
        %v2580 = vunpack.c.h.b16 %v1306
        %v2581 = vunpack.c.l.b16 %v1307
        %v2582 = vunpack.c.h.b16 %v1307
        %v2583 = vunpack.c.l.b16 %v1308
        %v2584 = vunpack.c.h.b16 %v1308
        %v2585 = vunpack.c.l.b16 %v1309
        %v2586 = vunpack.c.l.b16 %v1310
        %v2587 = vunpack.c.h.b16 %v1310
        %v2588 = vunpack.c.l.b16 %v1311
        %v2589 = vunpack.c.h.b16 %v1311
        %v2590 = vunpack.c.l.b16 %v1312
        %v2591 = vunpack.c.h.b16 %v1312
        %v2592 = vunpack.c.l.b16 %v1313
        %v2593 = vunpack.c.l.b16 %v1314
        %v2594 = vunpack.c.h.b16 %v1314
        %v2595 = vunpack.c.l.b16 %v1315
        %v2596 = vunpack.c.h.b16 %v1315
        %v2597 = vunpack.c.l.b16 %v1316
        %v2598 = vunpack.c.h.b16 %v1316
        %v2599 = vunpack.c.l.b16 %v1317
        %v2600 = vunpack.c.l.b16 %v1318
        %v2601 = vunpack.c.h.b16 %v1318
        %v2602 = vunpack.c.l.b16 %v1319
        %v2603 = vunpack.c.h.b16 %v1319
        %v2604 = vunpack.c.l.b16 %v1320
        %v2605 = vunpack.c.h.b16 %v1320
        %v2606 = vunpack.c.l.b16 %v1321
        %v2607 = vunpack.c.l.b16 %v1322
        %v2608 = vunpack.c.h.b16 %v1322
        %v2609 = vunpack.c.l.b16 %v1323
        %v2610 = vunpack.c.h.b16 %v1323
        %v2611 = vunpack.c.l.b16 %v1324
        %v2612 = vunpack.c.h.b16 %v1324
        %v2613 = vunpack.c.l.b16 %v1325
        %v2614 = vunpack.c.l.b16 %v1326
        %v2615 = vunpack.c.h.b16 %v1326
        %v2616 = vunpack.c.l.b16 %v1327
        %v2617 = vunpack.c.h.b16 %v1327
        %v2618 = vunpack.c.l.b16 %v1328
        %v2619 = vunpack.c.h.b16 %v1328
        %v2620 = vunpack.c.l.b16 %v1329
        %v2621 = vunpack.c.l.b16 %v1330
        %v2622 = vunpack.c.h.b16 %v1330
        %v2623 = vunpack.c.l.b16 %v1331
        %v2624 = vunpack.c.h.b16 %v1331
        %v2625 = vunpack.c.l.b16 %v1332
        %v2626 = vunpack.c.h.b16 %v1332
        %v2627 = vunpack.c.l.b16 %v1333
        %v2628 = vunpack.c.l.b16 %v1334
        %v2629 = vunpack.c.h.b16 %v1334
        %v2630 = vunpack.c.l.b16 %v1335
        %v2631 = vunpack.c.h.b16 %v1335
        %v2632 = vunpack.c.l.b16 %v1336
        %v2633 = vunpack.c.h.b16 %v1336
        %v2634 = vunpack.c.l.b16 %v1337
        %v2635 = vunpack.c.l.b16 %v1338
        %v2636 = vunpack.c.h.b16 %v1338
        %v2637 = vunpack.c.l.b16 %v1339
        %v2638 = vunpack.c.h.b16 %v1339
        %v2639 = vunpack.c.l.b16 %v1340
        %v2640 = vunpack.c.h.b16 %v1340
        %v2641 = vunpack.c.l.b16 %v1341
        %v2642 = vunpack.c.l.b16 %v1342
        %v2643 = vunpack.c.h.b16 %v1342
        %v2644 = vunpack.c.l.b16 %v1343
        %v2645 = vunpack.c.h.b16 %v1343
        %v2646 = vunpack.c.l.b16 %v1344
        %v2647 = vunpack.c.h.b16 %v1344
        %v2648 = vunpack.c.l.b16 %v1345
        %v2649 = vunpack.c.l.b16 %v1346
        %v2650 = vunpack.c.h.b16 %v1346
        %v2651 = vunpack.c.l.b16 %v1347
        %v2652 = vunpack.c.h.b16 %v1347
        %v2653 = vunpack.c.l.b16 %v1348
        %v2654 = vunpack.c.h.b16 %v1348
        %v2655 = vunpack.c.l.b16 %v1349
        %v2656 = vunpack.c.l.b16 %v1350
        %v2657 = vunpack.c.h.b16 %v1350
        %v2658 = vunpack.c.l.b16 %v1351
        %v2659 = vunpack.c.h.b16 %v1351
        %v2660 = vunpack.c.l.b16 %v1352
        %v2661 = vunpack.c.h.b16 %v1352
        %v2662 = vunpack.c.l.b16 %v1353
        %v2663 = vunpack.c.l.b16 %v1354
        %v2664 = vunpack.c.h.b16 %v1354
        %v2665 = vunpack.c.l.b16 %v1355
        %v2666 = vunpack.c.h.b16 %v1355
        %v2667 = vunpack.c.l.b16 %v1356
        %v2668 = vunpack.c.h.b16 %v1356
        %v2669 = vunpack.c.l.b16 %v1357
        %v2670 = vunpack.c.l.b16 %v1358
        %v2671 = vunpack.c.h.b16 %v1358
        %v2672 = vunpack.c.l.b16 %v1359
        %v2673 = vunpack.c.h.b16 %v1359
        %v2674 = vunpack.c.l.b16 %v1360
        %v2675 = vunpack.c.h.b16 %v1360
        %v2676 = vunpack.c.l.b16 %v1361
        %v2677 = vunpack.c.l.b16 %v1362
        %v2678 = vunpack.c.h.b16 %v1362
        %v2679 = vunpack.c.l.b16 %v1363
        %v2680 = vunpack.c.h.b16 %v1363
        %v2681 = vunpack.c.l.b16 %v1364
        %v2682 = vunpack.c.h.b16 %v1364
        %v2683 = vunpack.c.l.b16 %v1365
        %v2684 = vunpack.c.l.b16 %v1366
        %v2685 = vunpack.c.h.b16 %v1366
        %v2686 = vunpack.c.l.b16 %v1367
        %v2687 = vunpack.c.h.b16 %v1367
        %v2688 = vunpack.c.l.b16 %v1368
        %v2689 = vunpack.c.h.b16 %v1368
        %v2690 = vunpack.c.l.b16 %v1369
        %v2691 = vunpack.c.l.b16 %v1370
        %v2692 = vunpack.c.h.b16 %v1370
        %v2693 = vunpack.c.l.b16 %v1371
        %v2694 = vunpack.c.h.b16 %v1371
        %v2695 = vunpack.c.l.b16 %v1372
        %v2696 = vunpack.c.h.b16 %v1372
        %v2697 = vunpack.c.l.b16 %v1373
        %v2698 = vunpack.c.l.b16 %v1374
        %v2699 = vunpack.c.h.b16 %v1374
        %v2700 = vunpack.c.l.b16 %v1375
        %v2701 = vunpack.c.h.b16 %v1375
        %v2702 = vunpack.c.l.b16 %v1376
        %v2703 = vunpack.c.h.b16 %v1376
        %v2704 = vunpack.c.l.b16 %v1377
        %v2705 = vunpack.c.l.b16 %v1378
        %v2706 = vunpack.c.h.b16 %v1378
        %v2707 = vunpack.c.l.b16 %v1379
        %v2708 = vunpack.c.h.b16 %v1379
        %v2709 = vunpack.c.l.b16 %v1380
        %v2710 = vunpack.c.h.b16 %v1380
        %v2711 = vunpack.c.l.b16 %v1381
        %v2712 = vunpack.c.l.b16 %v1382
        %v2713 = vunpack.c.h.b16 %v1382
        %v2714 = vunpack.c.l.b16 %v1383
        %v2715 = vunpack.c.h.b16 %v1383
        %v2716 = vunpack.c.l.b16 %v1384
        %v2717 = vunpack.c.h.b16 %v1384
        %v2718 = vunpack.c.l.b16 %v1385
        %v2719 = vunpack.c.l.b16 %v1386
        %v2720 = vunpack.c.h.b16 %v1386
        %v2721 = vunpack.c.l.b16 %v1387
        %v2722 = vunpack.c.h.b16 %v1387
        %v2723 = vunpack.c.l.b16 %v1388
        %v2724 = vunpack.c.h.b16 %v1388
        %v2725 = vunpack.c.l.b16 %v1389
        %v2726 = vunpack.c.l.b16 %v1390
        %v2727 = vunpack.c.h.b16 %v1390
        %v2728 = vunpack.c.l.b16 %v1391
        %v2729 = vunpack.c.h.b16 %v1391
        %v2730 = vunpack.c.l.b16 %v1392
        %v2731 = vunpack.c.h.b16 %v1392
        %v2732 = vunpack.c.l.b16 %v1393
        %v2733 = vunpack.c.l.b16 %v1394
        %v2734 = vunpack.c.h.b16 %v1394
        %v2735 = vunpack.c.l.b16 %v1395
        %v2736 = vunpack.c.h.b16 %v1395
        %v2737 = vunpack.c.l.b16 %v1396
        %v2738 = vunpack.c.h.b16 %v1396
        %v2739 = vunpack.c.l.b16 %v1397
        %v2740 = vunpack.c.l.b16 %v1398
        %v2741 = vunpack.c.h.b16 %v1398
        %v2742 = vunpack.c.l.b16 %v1399
        %v2743 = vunpack.c.h.b16 %v1399
        %v2744 = vunpack.c.l.b16 %v1400
        %v2745 = vunpack.c.h.b16 %v1400
        %v2746 = vunpack.c.l.b16 %v1401
        %v2747 = vunpack.c.l.b16 %v1402
        %v2748 = vunpack.c.h.b16 %v1402
        %v2749 = vunpack.c.l.b16 %v1403
        %v2750 = vunpack.c.h.b16 %v1403
        %v2751 = vunpack.c.l.b16 %v1404
        %v2752 = vunpack.c.h.b16 %v1404
        %v2753 = vunpack.c.l.b16 %v1405
        %v2754 = vunpack.c.l.b16 %v1406
        %v2755 = vunpack.c.h.b16 %v1406
        %v2756 = vunpack.c.l.b16 %v1407
        %v2757 = vunpack.c.h.b16 %v1407
        %v2758 = vunpack.c.l.b16 %v1408
        %v2759 = vunpack.c.h.b16 %v1408
        %v2760 = vunpack.c.l.b16 %v1409
        %v2761 = vunpack.c.l.b16 %v1410
        %v2762 = vunpack.c.h.b16 %v1410
        %v2763 = vunpack.c.l.b16 %v1411
        %v2764 = vunpack.c.h.b16 %v1411
        %v2765 = vunpack.c.l.b16 %v1412
        %v2766 = vunpack.c.h.b16 %v1412
        %v2767 = vunpack.c.l.b16 %v1413
        %v2768 = vunpack.c.l.b16 %v1414
        %v2769 = vunpack.c.h.b16 %v1414
        %v2770 = vunpack.c.l.b16 %v1415
        %v2771 = vunpack.c.h.b16 %v1415
        %v2772 = vunpack.c.l.b16 %v1416
        %v2773 = vunpack.c.h.b16 %v1416
        %v2774 = vunpack.c.l.b16 %v1417
        %v2775 = vunpack.c.l.b16 %v1418
        %v2776 = vunpack.c.h.b16 %v1418
        %v2777 = vunpack.c.l.b16 %v1419
        %v2778 = vunpack.c.h.b16 %v1419
        %v2779 = vunpack.c.l.b16 %v1420
        %v2780 = vunpack.c.h.b16 %v1420
        %v2781 = vunpack.c.l.b16 %v1421
        %v2782 = vunpack.c.l.b16 %v1422
        %v2783 = vunpack.c.h.b16 %v1422
        %v2784 = vunpack.c.l.b16 %v1423
        %v2785 = vunpack.c.h.b16 %v1423
        %v2786 = vunpack.c.l.b16 %v1424
        %v2787 = vunpack.c.h.b16 %v1424
        %v2788 = vunpack.c.l.b16 %v1425
        %v2789 = vunpack.c.l.b16 %v1426
        %v2790 = vunpack.c.h.b16 %v1426
        %v2791 = vunpack.c.l.b16 %v1427
        %v2792 = vunpack.c.h.b16 %v1427
        %v2793 = vunpack.c.l.b16 %v1428
        %v2794 = vunpack.c.h.b16 %v1428
        %v2795 = vunpack.c.l.b16 %v1429
        %v2796 = vunpack.c.l.b16 %v1430
        %v2797 = vunpack.c.h.b16 %v1430
        %v2798 = vunpack.c.l.b16 %v1431
        %v2799 = vunpack.c.h.b16 %v1431
        %v2800 = vunpack.c.l.b16 %v1432
        %v2801 = vunpack.c.h.b16 %v1432
        %v2802 = vunpack.c.l.b16 %v1433
        %v2803 = vunpack.c.l.b16 %v1434
        %v2804 = vunpack.c.h.b16 %v1434
        %v2805 = vunpack.c.l.b16 %v1435
        %v2806 = vunpack.c.h.b16 %v1435
        %v2807 = vunpack.c.l.b16 %v1436
        %v2808 = vunpack.c.h.b16 %v1436
        %v2809 = vunpack.c.l.b16 %v1437
        %v2810 = vunpack.c.l.b16 %v1438
        %v2811 = vunpack.c.h.b16 %v1438
        %v2812 = vunpack.c.l.b16 %v1439
        %v2813 = vunpack.c.h.b16 %v1439
        %v2814 = vunpack.c.l.b16 %v1440
        %v2815 = vunpack.c.h.b16 %v1440
        %v2816 = vunpack.c.l.b16 %v1441
        %v2817 = vunpack.c.l.b16 %v1442
        %v2818 = vunpack.c.h.b16 %v1442
        %v2819 = vunpack.c.l.b16 %v1443
        %v2820 = vunpack.c.h.b16 %v1443
        %v2821 = vunpack.c.l.b16 %v1444
        %v2822 = vunpack.c.h.b16 %v1444
        %v2823 = vunpack.c.l.b16 %v1445
        %v2824 = vunpack.c.l.b16 %v1446
        %v2825 = vunpack.c.h.b16 %v1446
        %v2826 = vunpack.c.l.b16 %v1447
        %v2827 = vunpack.c.h.b16 %v1447
        %v2828 = vunpack.c.l.b16 %v1448
        %v2829 = vunpack.c.h.b16 %v1448
        %v2830 = vunpack.c.l.b16 %v1449
        %v2831 = vunpack.c.l.b16 %v1450
        %v2832 = vunpack.c.h.b16 %v1450
        %v2833 = vunpack.c.l.b16 %v1451
        %v2834 = vunpack.c.h.b16 %v1451
        %v2835 = vunpack.c.l.b16 %v1452
        %v2836 = vunpack.c.h.b16 %v1452
        %v2837 = vunpack.c.l.b16 %v1453
        %v2838 = vunpack.c.l.b16 %v1454
        %v2839 = vunpack.c.h.b16 %v1454
        %v2840 = vunpack.c.l.b16 %v1455
        %v2841 = vunpack.c.h.b16 %v1455
        %v2842 = vunpack.c.l.b16 %v1456
        %v2843 = vunpack.c.h.b16 %v1456
        %v2844 = vunpack.c.l.b16 %v1457
        %v2845 = vunpack.c.l.b16 %v1458
        %v2846 = vunpack.c.h.b16 %v1458
        %v2847 = vunpack.c.l.b16 %v1459
        %v2848 = vunpack.c.h.b16 %v1459
        %v2849 = vunpack.c.l.b16 %v1460
        %v2850 = vunpack.c.h.b16 %v1460
        %v2851 = vunpack.c.l.b16 %v1461
        %v2852 = vunpack.c.l.b16 %v1462
        %v2853 = vunpack.c.h.b16 %v1462
        %v2854 = vunpack.c.l.b16 %v1463
        %v2855 = vunpack.c.h.b16 %v1463
        %v2856 = vunpack.c.l.b16 %v1464
        %v2857 = vunpack.c.h.b16 %v1464
        %v2858 = vunpack.c.l.b16 %v1465
        %v2859 = vunpack.c.l.b16 %v1466
        %v2860 = vunpack.c.h.b16 %v1466
        %v2861 = vunpack.c.l.b16 %v1467
        %v2862 = vunpack.c.h.b16 %v1467
        %v2863 = vunpack.c.l.b16 %v1468
        %v2864 = vunpack.c.h.b16 %v1468
        %v2865 = vunpack.c.l.b16 %v1469
        %v2866 = vunpack.c.l.b16 %v1470
        %v2867 = vunpack.c.h.b16 %v1470
        %v2868 = vunpack.c.l.b16 %v1471
        %v2869 = vunpack.c.h.b16 %v1471
        %v2870 = vunpack.c.l.b16 %v1472
        %v2871 = vunpack.c.h.b16 %v1472
        %v2872 = vunpack.c.l.b16 %v1473
        %v2873 = vunpack.c.l.b16 %v1474
        %v2874 = vunpack.c.h.b16 %v1474
        %v2875 = vunpack.c.l.b16 %v1475
        %v2876 = vunpack.c.h.b16 %v1475
        %v2877 = vunpack.c.l.b16 %v1476
        %v2878 = vunpack.c.h.b16 %v1476
        %v2879 = vunpack.c.l.b16 %v1477
        %v2880 = vunpack.c.l.b16 %v1478
        %v2881 = vunpack.c.h.b16 %v1478
        %v2882 = vunpack.c.l.b16 %v1479
        %v2883 = vunpack.c.h.b16 %v1479
        %v2884 = vunpack.c.l.b16 %v1480
        %v2885 = vunpack.c.h.b16 %v1480
        %v2886 = vunpack.c.l.b16 %v1481
        %v2887 = vunpack.c.l.b16 %v1482
        %v2888 = vunpack.c.h.b16 %v1482
        %v2889 = vunpack.c.l.b16 %v1483
        %v2890 = vunpack.c.h.b16 %v1483
        %v2891 = vunpack.c.l.b16 %v1484
        %v2892 = vunpack.c.h.b16 %v1484
        %v2893 = vunpack.c.l.b16 %v1485
        %v2894 = vpack.c.b16 %v2005, %v1998
        %v2895 = vpack.c.b16 %v2006, %v1999
        %v2896 = vpack.c.b16 %v2007, %v2000
        %v2897 = vpack.c.b16 %v2008, %v2001
        %v2898 = vpack.c.b16 %v2009, %v2002
        %v2899 = vpack.c.b16 %v2010, %v2003
        %v2900 = vpack.c.b16 %v2011, %v2004
        %v2901 = vpack.c.b16 %v2019, %v2012
        %v2902 = vpack.c.b16 %v2020, %v2013
        %v2903 = vpack.c.b16 %v2021, %v2014
        %v2904 = vpack.c.b16 %v2022, %v2015
        %v2905 = vpack.c.b16 %v2023, %v2016
        %v2906 = vpack.c.b16 %v2024, %v2017
        %v2907 = vpack.c.b16 %v2025, %v2018
        %v2908 = vpack.c.b16 %v2033, %v2026
        %v2909 = vpack.c.b16 %v2034, %v2027
        %v2910 = vpack.c.b16 %v2035, %v2028
        %v2911 = vpack.c.b16 %v2036, %v2029
        %v2912 = vpack.c.b16 %v2037, %v2030
        %v2913 = vpack.c.b16 %v2038, %v2031
        %v2914 = vpack.c.b16 %v2039, %v2032
        %v2915 = vpack.c.b16 %v2047, %v2040
        %v2916 = vpack.c.b16 %v2048, %v2041
        %v2917 = vpack.c.b16 %v2049, %v2042
        %v2918 = vpack.c.b16 %v2050, %v2043
        %v2919 = vpack.c.b16 %v2051, %v2044
        %v2920 = vpack.c.b16 %v2052, %v2045
        %v2921 = vpack.c.b16 %v2053, %v2046
        %v2922 = vpack.c.b16 %v2061, %v2054
        %v2923 = vpack.c.b16 %v2062, %v2055
        %v2924 = vpack.c.b16 %v2063, %v2056
        %v2925 = vpack.c.b16 %v2064, %v2057
        %v2926 = vpack.c.b16 %v2065, %v2058
        %v2927 = vpack.c.b16 %v2066, %v2059
        %v2928 = vpack.c.b16 %v2067, %v2060
        %v2929 = vpack.c.b16 %v2075, %v2068
        %v2930 = vpack.c.b16 %v2076, %v2069
        %v2931 = vpack.c.b16 %v2077, %v2070
        %v2932 = vpack.c.b16 %v2078, %v2071
        %v2933 = vpack.c.b16 %v2079, %v2072
        %v2934 = vpack.c.b16 %v2080, %v2073
        %v2935 = vpack.c.b16 %v2081, %v2074
        %v2936 = vpack.c.b16 %v2089, %v2082
        %v2937 = vpack.c.b16 %v2090, %v2083
        %v2938 = vpack.c.b16 %v2091, %v2084
        %v2939 = vpack.c.b16 %v2092, %v2085
        %v2940 = vpack.c.b16 %v2093, %v2086
        %v2941 = vpack.c.b16 %v2094, %v2087
        %v2942 = vpack.c.b16 %v2095, %v2088
        %v2943 = vpack.c.b16 %v2103, %v2096
        %v2944 = vpack.c.b16 %v2104, %v2097
        %v2945 = vpack.c.b16 %v2105, %v2098
        %v2946 = vpack.c.b16 %v2106, %v2099
        %v2947 = vpack.c.b16 %v2107, %v2100
        %v2948 = vpack.c.b16 %v2108, %v2101
        %v2949 = vpack.c.b16 %v2109, %v2102
        %v2950 = vpack.c.b16 %v2117, %v2110
        %v2951 = vpack.c.b16 %v2118, %v2111
        %v2952 = vpack.c.b16 %v2119, %v2112
        %v2953 = vpack.c.b16 %v2120, %v2113
        %v2954 = vpack.c.b16 %v2121, %v2114
        %v2955 = vpack.c.b16 %v2122, %v2115
        %v2956 = vpack.c.b16 %v2123, %v2116
        %v2957 = vpack.c.b16 %v2131, %v2124
        %v2958 = vpack.c.b16 %v2132, %v2125
        %v2959 = vpack.c.b16 %v2133, %v2126
        %v2960 = vpack.c.b16 %v2134, %v2127
        %v2961 = vpack.c.b16 %v2135, %v2128
        %v2962 = vpack.c.b16 %v2136, %v2129
        %v2963 = vpack.c.b16 %v2137, %v2130
        %v2964 = vpack.c.b16 %v2145, %v2138
        %v2965 = vpack.c.b16 %v2146, %v2139
        %v2966 = vpack.c.b16 %v2147, %v2140
        %v2967 = vpack.c.b16 %v2148, %v2141
        %v2968 = vpack.c.b16 %v2149, %v2142
        %v2969 = vpack.c.b16 %v2150, %v2143
        %v2970 = vpack.c.b16 %v2151, %v2144
        %v2971 = vpack.c.b16 %v2159, %v2152
        %v2972 = vpack.c.b16 %v2160, %v2153
        %v2973 = vpack.c.b16 %v2161, %v2154
        %v2974 = vpack.c.b16 %v2162, %v2155
        %v2975 = vpack.c.b16 %v2163, %v2156
        %v2976 = vpack.c.b16 %v2164, %v2157
        %v2977 = vpack.c.b16 %v2165, %v2158
        %v2978 = vpack.c.b16 %v2173, %v2166
        %v2979 = vpack.c.b16 %v2174, %v2167
        %v2980 = vpack.c.b16 %v2175, %v2168
        %v2981 = vpack.c.b16 %v2176, %v2169
        %v2982 = vpack.c.b16 %v2177, %v2170
        %v2983 = vpack.c.b16 %v2178, %v2171
        %v2984 = vpack.c.b16 %v2179, %v2172
        %v2985 = vpack.c.b16 %v2187, %v2180
        %v2986 = vpack.c.b16 %v2188, %v2181
        %v2987 = vpack.c.b16 %v2189, %v2182
        %v2988 = vpack.c.b16 %v2190, %v2183
        %v2989 = vpack.c.b16 %v2191, %v2184
        %v2990 = vpack.c.b16 %v2192, %v2185
        %v2991 = vpack.c.b16 %v2193, %v2186
        %v2992 = vpack.c.b16 %v2201, %v2194
        %v2993 = vpack.c.b16 %v2202, %v2195
        %v2994 = vpack.c.b16 %v2203, %v2196
        %v2995 = vpack.c.b16 %v2204, %v2197
        %v2996 = vpack.c.b16 %v2205, %v2198
        %v2997 = vpack.c.b16 %v2206, %v2199
        %v2998 = vpack.c.b16 %v2207, %v2200
        %v2999 = vpack.c.b16 %v2215, %v2208
        %v3000 = vpack.c.b16 %v2216, %v2209
        %v3001 = vpack.c.b16 %v2217, %v2210
        %v3002 = vpack.c.b16 %v2218, %v2211
        %v3003 = vpack.c.b16 %v2219, %v2212
        %v3004 = vpack.c.b16 %v2220, %v2213
        %v3005 = vpack.c.b16 %v2221, %v2214
        %v3006 = vpack.c.b16 %v2229, %v2222
        %v3007 = vpack.c.b16 %v2230, %v2223
        %v3008 = vpack.c.b16 %v2231, %v2224
        %v3009 = vpack.c.b16 %v2232, %v2225
        %v3010 = vpack.c.b16 %v2233, %v2226
        %v3011 = vpack.c.b16 %v2234, %v2227
        %v3012 = vpack.c.b16 %v2235, %v2228
        %v3013 = vpack.c.b16 %v2243, %v2236
        %v3014 = vpack.c.b16 %v2244, %v2237
        %v3015 = vpack.c.b16 %v2245, %v2238
        %v3016 = vpack.c.b16 %v2246, %v2239
        %v3017 = vpack.c.b16 %v2247, %v2240
        %v3018 = vpack.c.b16 %v2248, %v2241
        %v3019 = vpack.c.b16 %v2249, %v2242
        %v3020 = vpack.c.b16 %v2257, %v2250
        %v3021 = vpack.c.b16 %v2258, %v2251
        %v3022 = vpack.c.b16 %v2259, %v2252
        %v3023 = vpack.c.b16 %v2260, %v2253
        %v3024 = vpack.c.b16 %v2261, %v2254
        %v3025 = vpack.c.b16 %v2262, %v2255
        %v3026 = vpack.c.b16 %v2263, %v2256
        %v3027 = vpack.c.b16 %v2271, %v2264
        %v3028 = vpack.c.b16 %v2272, %v2265
        %v3029 = vpack.c.b16 %v2273, %v2266
        %v3030 = vpack.c.b16 %v2274, %v2267
        %v3031 = vpack.c.b16 %v2275, %v2268
        %v3032 = vpack.c.b16 %v2276, %v2269
        %v3033 = vpack.c.b16 %v2277, %v2270
        %v3034 = vpack.c.b16 %v2285, %v2278
        %v3035 = vpack.c.b16 %v2286, %v2279
        %v3036 = vpack.c.b16 %v2287, %v2280
        %v3037 = vpack.c.b16 %v2288, %v2281
        %v3038 = vpack.c.b16 %v2289, %v2282
        %v3039 = vpack.c.b16 %v2290, %v2283
        %v3040 = vpack.c.b16 %v2291, %v2284
        %v3041 = vpack.c.b16 %v2299, %v2292
        %v3042 = vpack.c.b16 %v2300, %v2293
        %v3043 = vpack.c.b16 %v2301, %v2294
        %v3044 = vpack.c.b16 %v2302, %v2295
        %v3045 = vpack.c.b16 %v2303, %v2296
        %v3046 = vpack.c.b16 %v2304, %v2297
        %v3047 = vpack.c.b16 %v2305, %v2298
        %v3048 = vpack.c.b16 %v2313, %v2306
        %v3049 = vpack.c.b16 %v2314, %v2307
        %v3050 = vpack.c.b16 %v2315, %v2308
        %v3051 = vpack.c.b16 %v2316, %v2309
        %v3052 = vpack.c.b16 %v2317, %v2310
        %v3053 = vpack.c.b16 %v2318, %v2311
        %v3054 = vpack.c.b16 %v2319, %v2312
        %v3055 = vpack.c.b16 %v2327, %v2320
        %v3056 = vpack.c.b16 %v2328, %v2321
        %v3057 = vpack.c.b16 %v2329, %v2322
        %v3058 = vpack.c.b16 %v2330, %v2323
        %v3059 = vpack.c.b16 %v2331, %v2324
        %v3060 = vpack.c.b16 %v2332, %v2325
        %v3061 = vpack.c.b16 %v2333, %v2326
        %v3062 = vpack.c.b16 %v2341, %v2334
        %v3063 = vpack.c.b16 %v2342, %v2335
        %v3064 = vpack.c.b16 %v2343, %v2336
        %v3065 = vpack.c.b16 %v2344, %v2337
        %v3066 = vpack.c.b16 %v2345, %v2338
        %v3067 = vpack.c.b16 %v2346, %v2339
        %v3068 = vpack.c.b16 %v2347, %v2340
        %v3069 = vpack.c.b16 %v2355, %v2348
        %v3070 = vpack.c.b16 %v2356, %v2349
        %v3071 = vpack.c.b16 %v2357, %v2350
        %v3072 = vpack.c.b16 %v2358, %v2351
        %v3073 = vpack.c.b16 %v2359, %v2352
        %v3074 = vpack.c.b16 %v2360, %v2353
        %v3075 = vpack.c.b16 %v2361, %v2354
        %v3076 = vpack.c.b16 %v2369, %v2362
        %v3077 = vpack.c.b16 %v2370, %v2363
        %v3078 = vpack.c.b16 %v2371, %v2364
        %v3079 = vpack.c.b16 %v2372, %v2365
        %v3080 = vpack.c.b16 %v2373, %v2366
        %v3081 = vpack.c.b16 %v2374, %v2367
        %v3082 = vpack.c.b16 %v2375, %v2368
        %v3083 = vpack.c.b16 %v2383, %v2376
        %v3084 = vpack.c.b16 %v2384, %v2377
        %v3085 = vpack.c.b16 %v2385, %v2378
        %v3086 = vpack.c.b16 %v2386, %v2379
        %v3087 = vpack.c.b16 %v2387, %v2380
        %v3088 = vpack.c.b16 %v2388, %v2381
        %v3089 = vpack.c.b16 %v2389, %v2382
        %v3090 = vpack.c.b16 %v2397, %v2390
        %v3091 = vpack.c.b16 %v2398, %v2391
        %v3092 = vpack.c.b16 %v2399, %v2392
        %v3093 = vpack.c.b16 %v2400, %v2393
        %v3094 = vpack.c.b16 %v2401, %v2394
        %v3095 = vpack.c.b16 %v2402, %v2395
        %v3096 = vpack.c.b16 %v2403, %v2396
        %v3097 = vpack.c.b16 %v2411, %v2404
        %v3098 = vpack.c.b16 %v2412, %v2405
        %v3099 = vpack.c.b16 %v2413, %v2406
        %v3100 = vpack.c.b16 %v2414, %v2407
        %v3101 = vpack.c.b16 %v2415, %v2408
        %v3102 = vpack.c.b16 %v2416, %v2409
        %v3103 = vpack.c.b16 %v2417, %v2410
        %v3104 = vpack.c.b16 %v2425, %v2418
        %v3105 = vpack.c.b16 %v2426, %v2419
        %v3106 = vpack.c.b16 %v2427, %v2420
        %v3107 = vpack.c.b16 %v2428, %v2421
        %v3108 = vpack.c.b16 %v2429, %v2422
        %v3109 = vpack.c.b16 %v2430, %v2423
        %v3110 = vpack.c.b16 %v2431, %v2424
        %v3111 = vpack.c.b16 %v2439, %v2432
        %v3112 = vpack.c.b16 %v2440, %v2433
        %v3113 = vpack.c.b16 %v2441, %v2434
        %v3114 = vpack.c.b16 %v2442, %v2435
        %v3115 = vpack.c.b16 %v2443, %v2436
        %v3116 = vpack.c.b16 %v2444, %v2437
        %v3117 = vpack.c.b16 %v2445, %v2438
        %v3118 = vpack.c.b16 %v2453, %v2446
        %v3119 = vpack.c.b16 %v2454, %v2447
        %v3120 = vpack.c.b16 %v2455, %v2448
        %v3121 = vpack.c.b16 %v2456, %v2449
        %v3122 = vpack.c.b16 %v2457, %v2450
        %v3123 = vpack.c.b16 %v2458, %v2451
        %v3124 = vpack.c.b16 %v2459, %v2452
        %v3125 = vpack.c.b16 %v2467, %v2460
        %v3126 = vpack.c.b16 %v2468, %v2461
        %v3127 = vpack.c.b16 %v2469, %v2462
        %v3128 = vpack.c.b16 %v2470, %v2463
        %v3129 = vpack.c.b16 %v2471, %v2464
        %v3130 = vpack.c.b16 %v2472, %v2465
        %v3131 = vpack.c.b16 %v2473, %v2466
        %v3132 = vpack.c.b16 %v2481, %v2474
        %v3133 = vpack.c.b16 %v2482, %v2475
        %v3134 = vpack.c.b16 %v2483, %v2476
        %v3135 = vpack.c.b16 %v2484, %v2477
        %v3136 = vpack.c.b16 %v2485, %v2478
        %v3137 = vpack.c.b16 %v2486, %v2479
        %v3138 = vpack.c.b16 %v2487, %v2480
        %v3139 = vpack.c.b16 %v2495, %v2488
        %v3140 = vpack.c.b16 %v2496, %v2489
        %v3141 = vpack.c.b16 %v2497, %v2490
        %v3142 = vpack.c.b16 %v2498, %v2491
        %v3143 = vpack.c.b16 %v2499, %v2492
        %v3144 = vpack.c.b16 %v2500, %v2493
        %v3145 = vpack.c.b16 %v2501, %v2494
        %v3146 = vpack.c.b16 %v2509, %v2502
        %v3147 = vpack.c.b16 %v2510, %v2503
        %v3148 = vpack.c.b16 %v2511, %v2504
        %v3149 = vpack.c.b16 %v2512, %v2505
        %v3150 = vpack.c.b16 %v2513, %v2506
        %v3151 = vpack.c.b16 %v2514, %v2507
        %v3152 = vpack.c.b16 %v2515, %v2508
        %v3153 = vpack.c.b16 %v2523, %v2516
        %v3154 = vpack.c.b16 %v2524, %v2517
        %v3155 = vpack.c.b16 %v2525, %v2518
        %v3156 = vpack.c.b16 %v2526, %v2519
        %v3157 = vpack.c.b16 %v2527, %v2520
        %v3158 = vpack.c.b16 %v2528, %v2521
        %v3159 = vpack.c.b16 %v2529, %v2522
        %v3160 = vpack.c.b16 %v2537, %v2530
        %v3161 = vpack.c.b16 %v2538, %v2531
        %v3162 = vpack.c.b16 %v2539, %v2532
        %v3163 = vpack.c.b16 %v2540, %v2533
        %v3164 = vpack.c.b16 %v2541, %v2534
        %v3165 = vpack.c.b16 %v2542, %v2535
        %v3166 = vpack.c.b16 %v2543, %v2536
        %v3167 = vpack.c.b16 %v2551, %v2544
        %v3168 = vpack.c.b16 %v2552, %v2545
        %v3169 = vpack.c.b16 %v2553, %v2546
        %v3170 = vpack.c.b16 %v2554, %v2547
        %v3171 = vpack.c.b16 %v2555, %v2548
        %v3172 = vpack.c.b16 %v2556, %v2549
        %v3173 = vpack.c.b16 %v2557, %v2550
        %v3174 = vpack.c.b16 %v2565, %v2558
        %v3175 = vpack.c.b16 %v2566, %v2559
        %v3176 = vpack.c.b16 %v2567, %v2560
        %v3177 = vpack.c.b16 %v2568, %v2561
        %v3178 = vpack.c.b16 %v2569, %v2562
        %v3179 = vpack.c.b16 %v2570, %v2563
        %v3180 = vpack.c.b16 %v2571, %v2564
        %v3181 = vpack.c.b16 %v2579, %v2572
        %v3182 = vpack.c.b16 %v2580, %v2573
        %v3183 = vpack.c.b16 %v2581, %v2574
        %v3184 = vpack.c.b16 %v2582, %v2575
        %v3185 = vpack.c.b16 %v2583, %v2576
        %v3186 = vpack.c.b16 %v2584, %v2577
        %v3187 = vpack.c.b16 %v2585, %v2578
        %v3188 = vpack.c.b16 %v2593, %v2586
        %v3189 = vpack.c.b16 %v2594, %v2587
        %v3190 = vpack.c.b16 %v2595, %v2588
        %v3191 = vpack.c.b16 %v2596, %v2589
        %v3192 = vpack.c.b16 %v2597, %v2590
        %v3193 = vpack.c.b16 %v2598, %v2591
        %v3194 = vpack.c.b16 %v2599, %v2592
        %v3195 = vpack.c.b16 %v2607, %v2600
        %v3196 = vpack.c.b16 %v2608, %v2601
        %v3197 = vpack.c.b16 %v2609, %v2602
        %v3198 = vpack.c.b16 %v2610, %v2603
        %v3199 = vpack.c.b16 %v2611, %v2604
        %v3200 = vpack.c.b16 %v2612, %v2605
        %v3201 = vpack.c.b16 %v2613, %v2606
        %v3202 = vpack.c.b16 %v2621, %v2614
        %v3203 = vpack.c.b16 %v2622, %v2615
        %v3204 = vpack.c.b16 %v2623, %v2616
        %v3205 = vpack.c.b16 %v2624, %v2617
        %v3206 = vpack.c.b16 %v2625, %v2618
        %v3207 = vpack.c.b16 %v2626, %v2619
        %v3208 = vpack.c.b16 %v2627, %v2620
        %v3209 = vpack.c.b16 %v2635, %v2628
        %v3210 = vpack.c.b16 %v2636, %v2629
        %v3211 = vpack.c.b16 %v2637, %v2630
        %v3212 = vpack.c.b16 %v2638, %v2631
        %v3213 = vpack.c.b16 %v2639, %v2632
        %v3214 = vpack.c.b16 %v2640, %v2633
        %v3215 = vpack.c.b16 %v2641, %v2634
        %v3216 = vpack.c.b16 %v2649, %v2642
        %v3217 = vpack.c.b16 %v2650, %v2643
        %v3218 = vpack.c.b16 %v2651, %v2644
        %v3219 = vpack.c.b16 %v2652, %v2645
        %v3220 = vpack.c.b16 %v2653, %v2646
        %v3221 = vpack.c.b16 %v2654, %v2647
        %v3222 = vpack.c.b16 %v2655, %v2648
        %v3223 = vpack.c.b16 %v2663, %v2656
        %v3224 = vpack.c.b16 %v2664, %v2657
        %v3225 = vpack.c.b16 %v2665, %v2658
        %v3226 = vpack.c.b16 %v2666, %v2659
        %v3227 = vpack.c.b16 %v2667, %v2660
        %v3228 = vpack.c.b16 %v2668, %v2661
        %v3229 = vpack.c.b16 %v2669, %v2662
        %v3230 = vpack.c.b16 %v2677, %v2670
        %v3231 = vpack.c.b16 %v2678, %v2671
        %v3232 = vpack.c.b16 %v2679, %v2672
        %v3233 = vpack.c.b16 %v2680, %v2673
        %v3234 = vpack.c.b16 %v2681, %v2674
        %v3235 = vpack.c.b16 %v2682, %v2675
        %v3236 = vpack.c.b16 %v2683, %v2676
        %v3237 = vpack.c.b16 %v2691, %v2684
        %v3238 = vpack.c.b16 %v2692, %v2685
        %v3239 = vpack.c.b16 %v2693, %v2686
        %v3240 = vpack.c.b16 %v2694, %v2687
        %v3241 = vpack.c.b16 %v2695, %v2688
        %v3242 = vpack.c.b16 %v2696, %v2689
        %v3243 = vpack.c.b16 %v2697, %v2690
        %v3244 = vpack.c.b16 %v2705, %v2698
        %v3245 = vpack.c.b16 %v2706, %v2699
        %v3246 = vpack.c.b16 %v2707, %v2700
        %v3247 = vpack.c.b16 %v2708, %v2701
        %v3248 = vpack.c.b16 %v2709, %v2702
        %v3249 = vpack.c.b16 %v2710, %v2703
        %v3250 = vpack.c.b16 %v2711, %v2704
        %v3251 = vpack.c.b16 %v2719, %v2712
        %v3252 = vpack.c.b16 %v2720, %v2713
        %v3253 = vpack.c.b16 %v2721, %v2714
        %v3254 = vpack.c.b16 %v2722, %v2715
        %v3255 = vpack.c.b16 %v2723, %v2716
        %v3256 = vpack.c.b16 %v2724, %v2717
        %v3257 = vpack.c.b16 %v2725, %v2718
        %v3258 = vpack.c.b16 %v2733, %v2726
        %v3259 = vpack.c.b16 %v2734, %v2727
        %v3260 = vpack.c.b16 %v2735, %v2728
        %v3261 = vpack.c.b16 %v2736, %v2729
        %v3262 = vpack.c.b16 %v2737, %v2730
        %v3263 = vpack.c.b16 %v2738, %v2731
        %v3264 = vpack.c.b16 %v2739, %v2732
        %v3265 = vpack.c.b16 %v2747, %v2740
        %v3266 = vpack.c.b16 %v2748, %v2741
        %v3267 = vpack.c.b16 %v2749, %v2742
        %v3268 = vpack.c.b16 %v2750, %v2743
        %v3269 = vpack.c.b16 %v2751, %v2744
        %v3270 = vpack.c.b16 %v2752, %v2745
        %v3271 = vpack.c.b16 %v2753, %v2746
        %v3272 = vpack.c.b16 %v2761, %v2754
        %v3273 = vpack.c.b16 %v2762, %v2755
        %v3274 = vpack.c.b16 %v2763, %v2756
        %v3275 = vpack.c.b16 %v2764, %v2757
        %v3276 = vpack.c.b16 %v2765, %v2758
        %v3277 = vpack.c.b16 %v2766, %v2759
        %v3278 = vpack.c.b16 %v2767, %v2760
        %v3279 = vpack.c.b16 %v2775, %v2768
        %v3280 = vpack.c.b16 %v2776, %v2769
        %v3281 = vpack.c.b16 %v2777, %v2770
        %v3282 = vpack.c.b16 %v2778, %v2771
        %v3283 = vpack.c.b16 %v2779, %v2772
        %v3284 = vpack.c.b16 %v2780, %v2773
        %v3285 = vpack.c.b16 %v2781, %v2774
        %v3286 = vpack.c.b16 %v2789, %v2782
        %v3287 = vpack.c.b16 %v2790, %v2783
        %v3288 = vpack.c.b16 %v2791, %v2784
        %v3289 = vpack.c.b16 %v2792, %v2785
        %v3290 = vpack.c.b16 %v2793, %v2786
        %v3291 = vpack.c.b16 %v2794, %v2787
        %v3292 = vpack.c.b16 %v2795, %v2788
        %v3293 = vpack.c.b16 %v2803, %v2796
        %v3294 = vpack.c.b16 %v2804, %v2797
        %v3295 = vpack.c.b16 %v2805, %v2798
        %v3296 = vpack.c.b16 %v2806, %v2799
        %v3297 = vpack.c.b16 %v2807, %v2800
        %v3298 = vpack.c.b16 %v2808, %v2801
        %v3299 = vpack.c.b16 %v2809, %v2802
        %v3300 = vpack.c.b16 %v2817, %v2810
        %v3301 = vpack.c.b16 %v2818, %v2811
        %v3302 = vpack.c.b16 %v2819, %v2812
        %v3303 = vpack.c.b16 %v2820, %v2813
        %v3304 = vpack.c.b16 %v2821, %v2814
        %v3305 = vpack.c.b16 %v2822, %v2815
        %v3306 = vpack.c.b16 %v2823, %v2816
        %v3307 = vpack.c.b16 %v2831, %v2824
        %v3308 = vpack.c.b16 %v2832, %v2825
        %v3309 = vpack.c.b16 %v2833, %v2826
        %v3310 = vpack.c.b16 %v2834, %v2827
        %v3311 = vpack.c.b16 %v2835, %v2828
        %v3312 = vpack.c.b16 %v2836, %v2829
        %v3313 = vpack.c.b16 %v2837, %v2830
        %v3314 = vpack.c.b16 %v2845, %v2838
        %v3315 = vpack.c.b16 %v2846, %v2839
        %v3316 = vpack.c.b16 %v2847, %v2840
        %v3317 = vpack.c.b16 %v2848, %v2841
        %v3318 = vpack.c.b16 %v2849, %v2842
        %v3319 = vpack.c.b16 %v2850, %v2843
        %v3320 = vpack.c.b16 %v2851, %v2844
        %v3321 = vpack.c.b16 %v2859, %v2852
        %v3322 = vpack.c.b16 %v2860, %v2853
        %v3323 = vpack.c.b16 %v2861, %v2854
        %v3324 = vpack.c.b16 %v2862, %v2855
        %v3325 = vpack.c.b16 %v2863, %v2856
        %v3326 = vpack.c.b16 %v2864, %v2857
        %v3327 = vpack.c.b16 %v2865, %v2858
        %v3328 = vpack.c.b16 %v2873, %v2866
        %v3329 = vpack.c.b16 %v2874, %v2867
        %v3330 = vpack.c.b16 %v2875, %v2868
        %v3331 = vpack.c.b16 %v2876, %v2869
        %v3332 = vpack.c.b16 %v2877, %v2870
        %v3333 = vpack.c.b16 %v2878, %v2871
        %v3334 = vpack.c.b16 %v2879, %v2872
        %v3335 = vpack.c.b16 %v2887, %v2880
        %v3336 = vpack.c.b16 %v2888, %v2881
        %v3337 = vpack.c.b16 %v2889, %v2882
        %v3338 = vpack.c.b16 %v2890, %v2883
        %v3339 = vpack.c.b16 %v2891, %v2884
        %v3340 = vpack.c.b16 %v2892, %v2885
        %v3341 = vpack.c.b16 %v2893, %v2886
        %3790 = vmatprep.subr.bf16.mxu0 %v2895
        %3791 = vmatpush1.bf16.msra.mxu0 %v2894
        %3792 = vmatprep.subr.bf16.mxu0 %v2902
        %3793 = vmatpush1.bf16.msra.mxu0 %v2901
        %3794 = vmatprep.subr.bf16.mxu0 %v2909
        %3795 = vmatpush1.bf16.msra.mxu0 %v2908
        %3796 = vmatprep.subr.bf16.mxu0 %v2916
        %3797 = vmatpush1.bf16.msra.mxu0 %v2915
        %3798 = vmatprep.subr.bf16.mxu0 %v2923
        %3799 = vmatpush1.bf16.msra.mxu0 %v2922
        %3800 = vmatprep.subr.bf16.mxu0 %v2930
        %3801 = vmatpush1.bf16.msra.mxu0 %v2929
        %3802 = vmatprep.subr.bf16.mxu0 %v2937
        %3803 = vmatpush1.bf16.msra.mxu0 %v2936
        %3804 = vmatprep.subr.bf16.mxu0 %v2944
        %3805 = vmatpush1.bf16.msra.mxu0 %v2943
        %3806 = vmatprep.subr.bf16.mxu0 %v2951
        %3807 = vmatpush1.bf16.msra.mxu0 %v2950
        %3808 = vmatprep.subr.bf16.mxu0 %v2958
        %3809 = vmatpush1.bf16.msra.mxu0 %v2957
        %3810 = vmatprep.subr.bf16.mxu0 %v2965
        %3811 = vmatpush1.bf16.msra.mxu0 %v2964
        %3812 = vmatprep.subr.bf16.mxu0 %v2972
        %3813 = vmatpush1.bf16.msra.mxu0 %v2971
        %3814 = vmatprep.subr.bf16.mxu0 %v2979
        %3815 = vmatpush1.bf16.msra.mxu0 %v2978
        %3816 = vmatprep.subr.bf16.mxu0 %v2986
        %3817 = vmatpush1.bf16.msra.mxu0 %v2985
        %3818 = vmatprep.subr.bf16.mxu0 %v2993
        %3819 = vmatpush1.bf16.msra.mxu0 %v2992
        %3820 = vmatprep.subr.bf16.mxu0 %v3000
        %3821 = vmatpush1.bf16.msra.mxu0 %v2999
        %3822 = vmatprep.mubr.bf16.mxu0 %v967
        %3823 = vmatmul.mubr.bf16.gmra.mrb[0].mxu0 %v966
        %v3824 = vpop.f32.mrb[0].mxu0
        %v3825 = vadd.f32 0.0, %v3824
        %v3826 = vpop.f32.mrb[0].mxu0
        %v3827 = vadd.f32 0.0, %v3826
        %v3828 = vpop.f32.mrb[0].mxu0
        %v3829 = vpop.f32.mrb[0].mxu0
        %3830 = vdwg.mxu0
        %3831 = vmatprep.subr.bf16.mxu0 %v3007
        %3832 = vmatpush1.bf16.msra.mxu0 %v3006
        %3833 = vmatprep.subr.bf16.mxu0 %v3014
        %3834 = vmatpush1.bf16.msra.mxu0 %v3013
        %3835 = vmatprep.subr.bf16.mxu0 %v3021
        %3836 = vmatpush1.bf16.msra.mxu0 %v3020
        %3837 = vmatprep.subr.bf16.mxu0 %v3028
        %3838 = vmatpush1.bf16.msra.mxu0 %v3027
        %3839 = vmatprep.subr.bf16.mxu0 %v3035
        %3840 = vmatpush1.bf16.msra.mxu0 %v3034
        %3841 = vmatprep.subr.bf16.mxu0 %v3042
        %3842 = vmatpush1.bf16.msra.mxu0 %v3041
        %3843 = vmatprep.subr.bf16.mxu0 %v3049
        %3844 = vmatpush1.bf16.msra.mxu0 %v3048
        %3845 = vmatprep.subr.bf16.mxu0 %v3056
        %3846 = vmatpush1.bf16.msra.mxu0 %v3055
        %3847 = vmatprep.subr.bf16.mxu0 %v3063
        %3848 = vmatpush1.bf16.msra.mxu0 %v3062
        %3849 = vmatprep.subr.bf16.mxu0 %v3070
        %3850 = vmatpush1.bf16.msra.mxu0 %v3069
        %3851 = vmatprep.subr.bf16.mxu0 %v3077
        %3852 = vmatpush1.bf16.msra.mxu0 %v3076
        %3853 = vmatprep.subr.bf16.mxu0 %v3084
        %3854 = vmatpush1.bf16.msra.mxu0 %v3083
        %3855 = vmatprep.subr.bf16.mxu0 %v3091
        %3856 = vmatpush1.bf16.msra.mxu0 %v3090
        %3857 = vmatprep.subr.bf16.mxu0 %v3098
        %3858 = vmatpush1.bf16.msra.mxu0 %v3097
        %3859 = vmatprep.subr.bf16.mxu0 %v3105
        %3860 = vmatpush1.bf16.msra.mxu0 %v3104
        %3861 = vmatprep.subr.bf16.mxu0 %v3112
        %3862 = vmatpush1.bf16.msra.mxu0 %v3111
        %3863 = vmatprep.mubr.bf16.mxu0 %v969
        %3864 = vmatmul.mubr.bf16.gmra.mrb[0].mxu0 %v968
        %v3865 = vpop.f32.mrb[0].mxu0
        %v3866 = vadd.f32 %v3825, %v3865
        %v3867 = vpop.f32.mrb[0].mxu0
        %v3868 = vadd.f32 %v3827, %v3867
        %v3869 = vpop.f32.mrb[0].mxu0
        %v3870 = vpop.f32.mrb[0].mxu0
        %3871 = vdwg.mxu0
        %3872 = vmatprep.subr.bf16.mxu0 %v3119
        %3873 = vmatpush1.bf16.msra.mxu0 %v3118
        %3874 = vmatprep.subr.bf16.mxu0 %v3126
        %3875 = vmatpush1.bf16.msra.mxu0 %v3125
        %3876 = vmatprep.subr.bf16.mxu0 %v3133
        %3877 = vmatpush1.bf16.msra.mxu0 %v3132
        %3878 = vmatprep.subr.bf16.mxu0 %v3140
        %3879 = vmatpush1.bf16.msra.mxu0 %v3139
        %3880 = vmatprep.subr.bf16.mxu0 %v3147
        %3881 = vmatpush1.bf16.msra.mxu0 %v3146
        %3882 = vmatprep.subr.bf16.mxu0 %v3154
        %3883 = vmatpush1.bf16.msra.mxu0 %v3153
        %3884 = vmatprep.subr.bf16.mxu0 %v3161
        %3885 = vmatpush1.bf16.msra.mxu0 %v3160
        %3886 = vmatprep.subr.bf16.mxu0 %v3168
        %3887 = vmatpush1.bf16.msra.mxu0 %v3167
        %3888 = vmatprep.subr.bf16.mxu0 %v3175
        %3889 = vmatpush1.bf16.msra.mxu0 %v3174
        %3890 = vmatprep.subr.bf16.mxu0 %v3182
        %3891 = vmatpush1.bf16.msra.mxu0 %v3181
        %3892 = vmatprep.subr.bf16.mxu0 %v3189
        %3893 = vmatpush1.bf16.msra.mxu0 %v3188
        %3894 = vmatprep.subr.bf16.mxu0 %v3196
        %3895 = vmatpush1.bf16.msra.mxu0 %v3195
        %3896 = vmatprep.subr.bf16.mxu0 %v3203
        %3897 = vmatpush1.bf16.msra.mxu0 %v3202
        %3898 = vmatprep.subr.bf16.mxu0 %v3210
        %3899 = vmatpush1.bf16.msra.mxu0 %v3209
        %3900 = vmatprep.subr.bf16.mxu0 %v3217
        %3901 = vmatpush1.bf16.msra.mxu0 %v3216
        %3902 = vmatprep.subr.bf16.mxu0 %v3224
        %3903 = vmatpush1.bf16.msra.mxu0 %v3223
        %3904 = vmatprep.mubr.bf16.mxu0 %v971
        %3905 = vmatmul.mubr.bf16.gmra.mrb[0].mxu0 %v970
        %v3906 = vpop.f32.mrb[0].mxu0
        %v3907 = vadd.f32 %v3866, %v3906
        %v3908 = vpop.f32.mrb[0].mxu0
        %v3909 = vadd.f32 %v3868, %v3908
        %v3910 = vpop.f32.mrb[0].mxu0
        %v3911 = vpop.f32.mrb[0].mxu0
        %3912 = vdwg.mxu0
        %3913 = vmatprep.subr.bf16.mxu0 %v3231
        %3914 = vmatpush1.bf16.msra.mxu0 %v3230
        %3915 = vmatprep.subr.bf16.mxu0 %v3238
        %3916 = vmatpush1.bf16.msra.mxu0 %v3237
        %3917 = vmatprep.subr.bf16.mxu0 %v3245
        %3918 = vmatpush1.bf16.msra.mxu0 %v3244
        %3919 = vmatprep.subr.bf16.mxu0 %v3252
        %3920 = vmatpush1.bf16.msra.mxu0 %v3251
        %3921 = vmatprep.subr.bf16.mxu0 %v3259
        %3922 = vmatpush1.bf16.msra.mxu0 %v3258
        %3923 = vmatprep.subr.bf16.mxu0 %v3266
        %3924 = vmatpush1.bf16.msra.mxu0 %v3265
        %3925 = vmatprep.subr.bf16.mxu0 %v3273
        %3926 = vmatpush1.bf16.msra.mxu0 %v3272
        %3927 = vmatprep.subr.bf16.mxu0 %v3280
        %3928 = vmatpush1.bf16.msra.mxu0 %v3279
        %3929 = vmatprep.subr.bf16.mxu0 %v3287
        %3930 = vmatpush1.bf16.msra.mxu0 %v3286
        %3931 = vmatprep.subr.bf16.mxu0 %v3294
        %3932 = vmatpush1.bf16.msra.mxu0 %v3293
        %3933 = vmatprep.subr.bf16.mxu0 %v3301
        %3934 = vmatpush1.bf16.msra.mxu0 %v3300
        %3935 = vmatprep.subr.bf16.mxu0 %v3308
        %3936 = vmatpush1.bf16.msra.mxu0 %v3307
        %3937 = vmatprep.subr.bf16.mxu0 %v3315
        %3938 = vmatpush1.bf16.msra.mxu0 %v3314
        %3939 = vmatprep.subr.bf16.mxu0 %v3322
        %3940 = vmatpush1.bf16.msra.mxu0 %v3321
        %3941 = vmatprep.subr.bf16.mxu0 %v3329
        %3942 = vmatpush1.bf16.msra.mxu0 %v3328
        %3943 = vmatprep.subr.bf16.mxu0 %v3336
        %3944 = vmatpush1.bf16.msra.mxu0 %v3335
        %3945 = vmatprep.mubr.bf16.mxu0 %v973
        %3946 = vmatmul.mubr.bf16.gmra.mrb[0].mxu0 %v972
        %v3947 = vpop.f32.mrb[0].mxu0
        %v3948 = vadd.f32 %v3907, %v3947
        %v3949 = vpop.f32.mrb[0].mxu0
        %v3950 = vadd.f32 %v3909, %v3949
        %v3951 = vpop.f32.mrb[0].mxu0
        %v3952 = vpop.f32.mrb[0].mxu0
        %3953 = vdwg.mxu0
        %3954 = vmatprep.subr.bf16.mxu0 %v2897
        %3955 = vmatpush1.bf16.msra.mxu0 %v2896
        %3956 = vmatprep.subr.bf16.mxu0 %v2904
        %3957 = vmatpush1.bf16.msra.mxu0 %v2903
        %3958 = vmatprep.subr.bf16.mxu0 %v2911
        %3959 = vmatpush1.bf16.msra.mxu0 %v2910
        %3960 = vmatprep.subr.bf16.mxu0 %v2918
        %3961 = vmatpush1.bf16.msra.mxu0 %v2917
        %3962 = vmatprep.subr.bf16.mxu0 %v2925
        %3963 = vmatpush1.bf16.msra.mxu0 %v2924
        %3964 = vmatprep.subr.bf16.mxu0 %v2932
        %3965 = vmatpush1.bf16.msra.mxu0 %v2931
        %3966 = vmatprep.subr.bf16.mxu0 %v2939
        %3967 = vmatpush1.bf16.msra.mxu0 %v2938
        %3968 = vmatprep.subr.bf16.mxu0 %v2946
        %3969 = vmatpush1.bf16.msra.mxu0 %v2945
        %3970 = vmatprep.subr.bf16.mxu0 %v2953
        %3971 = vmatpush1.bf16.msra.mxu0 %v2952
        %3972 = vmatprep.subr.bf16.mxu0 %v2960
        %3973 = vmatpush1.bf16.msra.mxu0 %v2959
        %3974 = vmatprep.subr.bf16.mxu0 %v2967
        %3975 = vmatpush1.bf16.msra.mxu0 %v2966
        %3976 = vmatprep.subr.bf16.mxu0 %v2974
        %3977 = vmatpush1.bf16.msra.mxu0 %v2973
        %3978 = vmatprep.subr.bf16.mxu0 %v2981
        %3979 = vmatpush1.bf16.msra.mxu0 %v2980
        %3980 = vmatprep.subr.bf16.mxu0 %v2988
        %3981 = vmatpush1.bf16.msra.mxu0 %v2987
        %3982 = vmatprep.subr.bf16.mxu0 %v2995
        %3983 = vmatpush1.bf16.msra.mxu0 %v2994
        %3984 = vmatprep.subr.bf16.mxu0 %v3002
        %3985 = vmatpush1.bf16.msra.mxu0 %v3001
        %3986 = vmatprep.mubr.bf16.mxu0 %v967
        %3987 = vmatmul.mubr.bf16.gmra.mrb[0].mxu0 %v966
        %v3988 = vpop.f32.mrb[0].mxu0
        %v3989 = vadd.f32 0.0, %v3988
        %v3990 = vpop.f32.mrb[0].mxu0
        %v3991 = vadd.f32 0.0, %v3990
        %v3992 = vpop.f32.mrb[0].mxu0
        %v3993 = vpop.f32.mrb[0].mxu0
        %3994 = vdwg.mxu0
        %3995 = vmatprep.subr.bf16.mxu0 %v3009
        %3996 = vmatpush1.bf16.msra.mxu0 %v3008
        %3997 = vmatprep.subr.bf16.mxu0 %v3016
        %3998 = vmatpush1.bf16.msra.mxu0 %v3015
        %3999 = vmatprep.subr.bf16.mxu0 %v3023
        %4000 = vmatpush1.bf16.msra.mxu0 %v3022
        %4001 = vmatprep.subr.bf16.mxu0 %v3030
        %4002 = vmatpush1.bf16.msra.mxu0 %v3029
        %4003 = vmatprep.subr.bf16.mxu0 %v3037
        %4004 = vmatpush1.bf16.msra.mxu0 %v3036
        %4005 = vmatprep.subr.bf16.mxu0 %v3044
        %4006 = vmatpush1.bf16.msra.mxu0 %v3043
        %4007 = vmatprep.subr.bf16.mxu0 %v3051
        %4008 = vmatpush1.bf16.msra.mxu0 %v3050
        %4009 = vmatprep.subr.bf16.mxu0 %v3058
        %4010 = vmatpush1.bf16.msra.mxu0 %v3057
        %4011 = vmatprep.subr.bf16.mxu0 %v3065
        %4012 = vmatpush1.bf16.msra.mxu0 %v3064
        %4013 = vmatprep.subr.bf16.mxu0 %v3072
        %4014 = vmatpush1.bf16.msra.mxu0 %v3071
        %4015 = vmatprep.subr.bf16.mxu0 %v3079
        %4016 = vmatpush1.bf16.msra.mxu0 %v3078
        %4017 = vmatprep.subr.bf16.mxu0 %v3086
        %4018 = vmatpush1.bf16.msra.mxu0 %v3085
        %4019 = vmatprep.subr.bf16.mxu0 %v3093
        %4020 = vmatpush1.bf16.msra.mxu0 %v3092
        %4021 = vmatprep.subr.bf16.mxu0 %v3100
        %4022 = vmatpush1.bf16.msra.mxu0 %v3099
        %4023 = vmatprep.subr.bf16.mxu0 %v3107
        %4024 = vmatpush1.bf16.msra.mxu0 %v3106
        %4025 = vmatprep.subr.bf16.mxu0 %v3114
        %4026 = vmatpush1.bf16.msra.mxu0 %v3113
        %4027 = vmatprep.mubr.bf16.mxu0 %v969
        %4028 = vmatmul.mubr.bf16.gmra.mrb[0].mxu0 %v968
        %v4029 = vpop.f32.mrb[0].mxu0
        %v4030 = vadd.f32 %v3989, %v4029
        %v4031 = vpop.f32.mrb[0].mxu0
        %v4032 = vadd.f32 %v3991, %v4031
        %v4033 = vpop.f32.mrb[0].mxu0
        %v4034 = vpop.f32.mrb[0].mxu0
        %4035 = vdwg.mxu0
        %4036 = vmatprep.subr.bf16.mxu0 %v3121
        %4037 = vmatpush1.bf16.msra.mxu0 %v3120
        %4038 = vmatprep.subr.bf16.mxu0 %v3128
        %4039 = vmatpush1.bf16.msra.mxu0 %v3127
        %4040 = vmatprep.subr.bf16.mxu0 %v3135
        %4041 = vmatpush1.bf16.msra.mxu0 %v3134
        %4042 = vmatprep.subr.bf16.mxu0 %v3142
        %4043 = vmatpush1.bf16.msra.mxu0 %v3141
        %4044 = vmatprep.subr.bf16.mxu0 %v3149
        %4045 = vmatpush1.bf16.msra.mxu0 %v3148
        %4046 = vmatprep.subr.bf16.mxu0 %v3156
        %4047 = vmatpush1.bf16.msra.mxu0 %v3155
        %4048 = vmatprep.subr.bf16.mxu0 %v3163
        %4049 = vmatpush1.bf16.msra.mxu0 %v3162
        %4050 = vmatprep.subr.bf16.mxu0 %v3170
        %4051 = vmatpush1.bf16.msra.mxu0 %v3169
        %4052 = vmatprep.subr.bf16.mxu0 %v3177
        %4053 = vmatpush1.bf16.msra.mxu0 %v3176
        %4054 = vmatprep.subr.bf16.mxu0 %v3184
        %4055 = vmatpush1.bf16.msra.mxu0 %v3183
        %4056 = vmatprep.subr.bf16.mxu0 %v3191
        %4057 = vmatpush1.bf16.msra.mxu0 %v3190
        %4058 = vmatprep.subr.bf16.mxu0 %v3198
        %4059 = vmatpush1.bf16.msra.mxu0 %v3197
        %4060 = vmatprep.subr.bf16.mxu0 %v3205
        %4061 = vmatpush1.bf16.msra.mxu0 %v3204
        %4062 = vmatprep.subr.bf16.mxu0 %v3212
        %4063 = vmatpush1.bf16.msra.mxu0 %v3211
        %4064 = vmatprep.subr.bf16.mxu0 %v3219
        %4065 = vmatpush1.bf16.msra.mxu0 %v3218
        %4066 = vmatprep.subr.bf16.mxu0 %v3226
        %4067 = vmatpush1.bf16.msra.mxu0 %v3225
        %4068 = vmatprep.mubr.bf16.mxu0 %v971
        %4069 = vmatmul.mubr.bf16.gmra.mrb[0].mxu0 %v970
        %v4070 = vpop.f32.mrb[0].mxu0
        %v4071 = vadd.f32 %v4030, %v4070
        %v4072 = vpop.f32.mrb[0].mxu0
        %v4073 = vadd.f32 %v4032, %v4072
        %v4074 = vpop.f32.mrb[0].mxu0
        %v4075 = vpop.f32.mrb[0].mxu0
        %4076 = vdwg.mxu0
        %4077 = vmatprep.subr.bf16.mxu0 %v3233
        %4078 = vmatpush1.bf16.msra.mxu0 %v3232
        %4079 = vmatprep.subr.bf16.mxu0 %v3240
        %4080 = vmatpush1.bf16.msra.mxu0 %v3239
        %4081 = vmatprep.subr.bf16.mxu0 %v3247
        %4082 = vmatpush1.bf16.msra.mxu0 %v3246
        %4083 = vmatprep.subr.bf16.mxu0 %v3254
        %4084 = vmatpush1.bf16.msra.mxu0 %v3253
        %4085 = vmatprep.subr.bf16.mxu0 %v3261
        %4086 = vmatpush1.bf16.msra.mxu0 %v3260
        %4087 = vmatprep.subr.bf16.mxu0 %v3268
        %4088 = vmatpush1.bf16.msra.mxu0 %v3267
        %4089 = vmatprep.subr.bf16.mxu0 %v3275
        %4090 = vmatpush1.bf16.msra.mxu0 %v3274
        %4091 = vmatprep.subr.bf16.mxu0 %v3282
        %4092 = vmatpush1.bf16.msra.mxu0 %v3281
        %4093 = vmatprep.subr.bf16.mxu0 %v3289
        %4094 = vmatpush1.bf16.msra.mxu0 %v3288
        %4095 = vmatprep.subr.bf16.mxu0 %v3296
        %4096 = vmatpush1.bf16.msra.mxu0 %v3295
        %4097 = vmatprep.subr.bf16.mxu0 %v3303
        %4098 = vmatpush1.bf16.msra.mxu0 %v3302
        %4099 = vmatprep.subr.bf16.mxu0 %v3310
        %4100 = vmatpush1.bf16.msra.mxu0 %v3309
        %4101 = vmatprep.subr.bf16.mxu0 %v3317
        %4102 = vmatpush1.bf16.msra.mxu0 %v3316
        %4103 = vmatprep.subr.bf16.mxu0 %v3324
        %4104 = vmatpush1.bf16.msra.mxu0 %v3323
        %4105 = vmatprep.subr.bf16.mxu0 %v3331
        %4106 = vmatpush1.bf16.msra.mxu0 %v3330
        %4107 = vmatprep.subr.bf16.mxu0 %v3338
        %4108 = vmatpush1.bf16.msra.mxu0 %v3337
        %4109 = vmatprep.mubr.bf16.mxu0 %v973
        %4110 = vmatmul.mubr.bf16.gmra.mrb[0].mxu0 %v972
        %v4111 = vpop.f32.mrb[0].mxu0
        %v4112 = vadd.f32 %v4071, %v4111
        %v4113 = vpop.f32.mrb[0].mxu0
        %v4114 = vadd.f32 %v4073, %v4113
        %v4115 = vpop.f32.mrb[0].mxu0
        %v4116 = vpop.f32.mrb[0].mxu0
        %4117 = vdwg.mxu0
        %4118 = vmatprep.subr.bf16.mxu0 %v2899
        %4119 = vmatpush1.bf16.msra.mxu0 %v2898
        %4120 = vmatprep.subr.bf16.mxu0 %v2906
        %4121 = vmatpush1.bf16.msra.mxu0 %v2905
        %4122 = vmatprep.subr.bf16.mxu0 %v2913
        %4123 = vmatpush1.bf16.msra.mxu0 %v2912
        %4124 = vmatprep.subr.bf16.mxu0 %v2920
        %4125 = vmatpush1.bf16.msra.mxu0 %v2919
        %4126 = vmatprep.subr.bf16.mxu0 %v2927
        %4127 = vmatpush1.bf16.msra.mxu0 %v2926
        %4128 = vmatprep.subr.bf16.mxu0 %v2934
        %4129 = vmatpush1.bf16.msra.mxu0 %v2933
        %4130 = vmatprep.subr.bf16.mxu0 %v2941
        %4131 = vmatpush1.bf16.msra.mxu0 %v2940
        %4132 = vmatprep.subr.bf16.mxu0 %v2948
        %4133 = vmatpush1.bf16.msra.mxu0 %v2947
        %4134 = vmatprep.subr.bf16.mxu0 %v2955
        %4135 = vmatpush1.bf16.msra.mxu0 %v2954
        %4136 = vmatprep.subr.bf16.mxu0 %v2962
        %4137 = vmatpush1.bf16.msra.mxu0 %v2961
        %4138 = vmatprep.subr.bf16.mxu0 %v2969
        %4139 = vmatpush1.bf16.msra.mxu0 %v2968
        %4140 = vmatprep.subr.bf16.mxu0 %v2976
        %4141 = vmatpush1.bf16.msra.mxu0 %v2975
        %4142 = vmatprep.subr.bf16.mxu0 %v2983
        %4143 = vmatpush1.bf16.msra.mxu0 %v2982
        %4144 = vmatprep.subr.bf16.mxu0 %v2990
        %4145 = vmatpush1.bf16.msra.mxu0 %v2989
        %4146 = vmatprep.subr.bf16.mxu0 %v2997
        %4147 = vmatpush1.bf16.msra.mxu0 %v2996
        %4148 = vmatprep.subr.bf16.mxu0 %v3004
        %4149 = vmatpush1.bf16.msra.mxu0 %v3003
        %4150 = vmatprep.mubr.bf16.mxu0 %v967
        %4151 = vmatmul.mubr.bf16.gmra.mrb[0].mxu0 %v966
        %v4152 = vpop.f32.mrb[0].mxu0
        %v4153 = vadd.f32 0.0, %v4152
        %v4154 = vpop.f32.mrb[0].mxu0
        %v4155 = vadd.f32 0.0, %v4154
        %v4156 = vpop.f32.mrb[0].mxu0
        %v4157 = vpop.f32.mrb[0].mxu0
        %4158 = vdwg.mxu0
        %4159 = vmatprep.subr.bf16.mxu0 %v3011
        %4160 = vmatpush1.bf16.msra.mxu0 %v3010
        %4161 = vmatprep.subr.bf16.mxu0 %v3018
        %4162 = vmatpush1.bf16.msra.mxu0 %v3017
        %4163 = vmatprep.subr.bf16.mxu0 %v3025
        %4164 = vmatpush1.bf16.msra.mxu0 %v3024
        %4165 = vmatprep.subr.bf16.mxu0 %v3032
        %4166 = vmatpush1.bf16.msra.mxu0 %v3031
        %4167 = vmatprep.subr.bf16.mxu0 %v3039
        %4168 = vmatpush1.bf16.msra.mxu0 %v3038
        %4169 = vmatprep.subr.bf16.mxu0 %v3046
        %4170 = vmatpush1.bf16.msra.mxu0 %v3045
        %4171 = vmatprep.subr.bf16.mxu0 %v3053
        %4172 = vmatpush1.bf16.msra.mxu0 %v3052
        %4173 = vmatprep.subr.bf16.mxu0 %v3060
        %4174 = vmatpush1.bf16.msra.mxu0 %v3059
        %4175 = vmatprep.subr.bf16.mxu0 %v3067
        %4176 = vmatpush1.bf16.msra.mxu0 %v3066
        %4177 = vmatprep.subr.bf16.mxu0 %v3074
        %4178 = vmatpush1.bf16.msra.mxu0 %v3073
        %4179 = vmatprep.subr.bf16.mxu0 %v3081
        %4180 = vmatpush1.bf16.msra.mxu0 %v3080
        %4181 = vmatprep.subr.bf16.mxu0 %v3088
        %4182 = vmatpush1.bf16.msra.mxu0 %v3087
        %4183 = vmatprep.subr.bf16.mxu0 %v3095
        %4184 = vmatpush1.bf16.msra.mxu0 %v3094
        %4185 = vmatprep.subr.bf16.mxu0 %v3102
        %4186 = vmatpush1.bf16.msra.mxu0 %v3101
        %4187 = vmatprep.subr.bf16.mxu0 %v3109
        %4188 = vmatpush1.bf16.msra.mxu0 %v3108
        %4189 = vmatprep.subr.bf16.mxu0 %v3116
        %4190 = vmatpush1.bf16.msra.mxu0 %v3115
        %4191 = vmatprep.mubr.bf16.mxu0 %v969
        %4192 = vmatmul.mubr.bf16.gmra.mrb[0].mxu0 %v968
        %v4193 = vpop.f32.mrb[0].mxu0
        %v4194 = vadd.f32 %v4153, %v4193
        %v4195 = vpop.f32.mrb[0].mxu0
        %v4196 = vadd.f32 %v4155, %v4195
        %v4197 = vpop.f32.mrb[0].mxu0
        %v4198 = vpop.f32.mrb[0].mxu0
        %4199 = vdwg.mxu0
        %4200 = vmatprep.subr.bf16.mxu0 %v3123
        %4201 = vmatpush1.bf16.msra.mxu0 %v3122
        %4202 = vmatprep.subr.bf16.mxu0 %v3130
        %4203 = vmatpush1.bf16.msra.mxu0 %v3129
        %4204 = vmatprep.subr.bf16.mxu0 %v3137
        %4205 = vmatpush1.bf16.msra.mxu0 %v3136
        %4206 = vmatprep.subr.bf16.mxu0 %v3144
        %4207 = vmatpush1.bf16.msra.mxu0 %v3143
        %4208 = vmatprep.subr.bf16.mxu0 %v3151
        %4209 = vmatpush1.bf16.msra.mxu0 %v3150
        %4210 = vmatprep.subr.bf16.mxu0 %v3158
        %4211 = vmatpush1.bf16.msra.mxu0 %v3157
        %4212 = vmatprep.subr.bf16.mxu0 %v3165
        %4213 = vmatpush1.bf16.msra.mxu0 %v3164
        %4214 = vmatprep.subr.bf16.mxu0 %v3172
        %4215 = vmatpush1.bf16.msra.mxu0 %v3171
        %4216 = vmatprep.subr.bf16.mxu0 %v3179
        %4217 = vmatpush1.bf16.msra.mxu0 %v3178
        %4218 = vmatprep.subr.bf16.mxu0 %v3186
        %4219 = vmatpush1.bf16.msra.mxu0 %v3185
        %4220 = vmatprep.subr.bf16.mxu0 %v3193
        %4221 = vmatpush1.bf16.msra.mxu0 %v3192
        %4222 = vmatprep.subr.bf16.mxu0 %v3200
        %4223 = vmatpush1.bf16.msra.mxu0 %v3199
        %4224 = vmatprep.subr.bf16.mxu0 %v3207
        %4225 = vmatpush1.bf16.msra.mxu0 %v3206
        %4226 = vmatprep.subr.bf16.mxu0 %v3214
        %4227 = vmatpush1.bf16.msra.mxu0 %v3213
        %4228 = vmatprep.subr.bf16.mxu0 %v3221
        %4229 = vmatpush1.bf16.msra.mxu0 %v3220
        %4230 = vmatprep.subr.bf16.mxu0 %v3228
        %4231 = vmatpush1.bf16.msra.mxu0 %v3227
        %4232 = vmatprep.mubr.bf16.mxu0 %v971
        %4233 = vmatmul.mubr.bf16.gmra.mrb[0].mxu0 %v970
        %v4234 = vpop.f32.mrb[0].mxu0
        %v4235 = vadd.f32 %v4194, %v4234
        %v4236 = vpop.f32.mrb[0].mxu0
        %v4237 = vadd.f32 %v4196, %v4236
        %v4238 = vpop.f32.mrb[0].mxu0
        %v4239 = vpop.f32.mrb[0].mxu0
        %4240 = vdwg.mxu0
        %4241 = vmatprep.subr.bf16.mxu0 %v3235
        %4242 = vmatpush1.bf16.msra.mxu0 %v3234
        %4243 = vmatprep.subr.bf16.mxu0 %v3242
        %4244 = vmatpush1.bf16.msra.mxu0 %v3241
        %4245 = vmatprep.subr.bf16.mxu0 %v3249
        %4246 = vmatpush1.bf16.msra.mxu0 %v3248
        %4247 = vmatprep.subr.bf16.mxu0 %v3256
        %4248 = vmatpush1.bf16.msra.mxu0 %v3255
        %4249 = vmatprep.subr.bf16.mxu0 %v3263
        %4250 = vmatpush1.bf16.msra.mxu0 %v3262
        %4251 = vmatprep.subr.bf16.mxu0 %v3270
        %4252 = vmatpush1.bf16.msra.mxu0 %v3269
        %4253 = vmatprep.subr.bf16.mxu0 %v3277
        %4254 = vmatpush1.bf16.msra.mxu0 %v3276
        %4255 = vmatprep.subr.bf16.mxu0 %v3284
        %4256 = vmatpush1.bf16.msra.mxu0 %v3283
        %4257 = vmatprep.subr.bf16.mxu0 %v3291
        %4258 = vmatpush1.bf16.msra.mxu0 %v3290
        %4259 = vmatprep.subr.bf16.mxu0 %v3298
        %4260 = vmatpush1.bf16.msra.mxu0 %v3297
        %4261 = vmatprep.subr.bf16.mxu0 %v3305
        %4262 = vmatpush1.bf16.msra.mxu0 %v3304
        %4263 = vmatprep.subr.bf16.mxu0 %v3312
        %4264 = vmatpush1.bf16.msra.mxu0 %v3311
        %4265 = vmatprep.subr.bf16.mxu0 %v3319
        %4266 = vmatpush1.bf16.msra.mxu0 %v3318
        %4267 = vmatprep.subr.bf16.mxu0 %v3326
        %4268 = vmatpush1.bf16.msra.mxu0 %v3325
        %4269 = vmatprep.subr.bf16.mxu0 %v3333
        %4270 = vmatpush1.bf16.msra.mxu0 %v3332
        %4271 = vmatprep.subr.bf16.mxu0 %v3340
        %4272 = vmatpush1.bf16.msra.mxu0 %v3339
        %4273 = vmatprep.mubr.bf16.mxu0 %v973
        %4274 = vmatmul.mubr.bf16.gmra.mrb[0].mxu0 %v972
        %v4275 = vpop.f32.mrb[0].mxu0
        %v4276 = vadd.f32 %v4235, %v4275
        %v4277 = vpop.f32.mrb[0].mxu0
        %v4278 = vadd.f32 %v4237, %v4277
        %v4279 = vpop.f32.mrb[0].mxu0
        %v4280 = vpop.f32.mrb[0].mxu0
        %4281 = vdwg.mxu0
        %4282 = vmatprep.subr.bf16.mxu0 0
        %4283 = vmatpush1.bf16.msra.mxu0 %v2900
        %4284 = vmatprep.subr.bf16.mxu0 0
        %4285 = vmatpush1.bf16.msra.mxu0 %v2907
        %4286 = vmatprep.subr.bf16.mxu0 0
        %4287 = vmatpush1.bf16.msra.mxu0 %v2914
        %4288 = vmatprep.subr.bf16.mxu0 0
        %4289 = vmatpush1.bf16.msra.mxu0 %v2921
        %4290 = vmatprep.subr.bf16.mxu0 0
        %4291 = vmatpush1.bf16.msra.mxu0 %v2928
        %4292 = vmatprep.subr.bf16.mxu0 0
        %4293 = vmatpush1.bf16.msra.mxu0 %v2935
        %4294 = vmatprep.subr.bf16.mxu0 0
        %4295 = vmatpush1.bf16.msra.mxu0 %v2942
        %4296 = vmatprep.subr.bf16.mxu0 0
        %4297 = vmatpush1.bf16.msra.mxu0 %v2949
        %4298 = vmatprep.subr.bf16.mxu0 0
        %4299 = vmatpush1.bf16.msra.mxu0 %v2956
        %4300 = vmatprep.subr.bf16.mxu0 0
        %4301 = vmatpush1.bf16.msra.mxu0 %v2963
        %4302 = vmatprep.subr.bf16.mxu0 0
        %4303 = vmatpush1.bf16.msra.mxu0 %v2970
        %4304 = vmatprep.subr.bf16.mxu0 0
        %4305 = vmatpush1.bf16.msra.mxu0 %v2977
        %4306 = vmatprep.subr.bf16.mxu0 0
        %4307 = vmatpush1.bf16.msra.mxu0 %v2984
        %4308 = vmatprep.subr.bf16.mxu0 0
        %4309 = vmatpush1.bf16.msra.mxu0 %v2991
        %4310 = vmatprep.subr.bf16.mxu0 0
        %4311 = vmatpush1.bf16.msra.mxu0 %v2998
        %4312 = vmatprep.subr.bf16.mxu0 0
        %4313 = vmatpush1.bf16.msra.mxu0 %v3005
        %4314 = vmatprep.mubr.bf16.mxu0 %v967
        %4315 = vmatmul.mubr.bf16.gmra.mrb[0].mxu0 %v966
        %v4316 = vpop.f32.mrb[0].mxu0
        %v4317 = vadd.f32 0.0, %v4316
        %v4318 = vpop.f32.mrb[0].mxu0
        %v4319 = vpop.f32.mrb[0].mxu0
        %v4320 = vpop.f32.mrb[0].mxu0
        %4321 = vdwg.mxu0
        %4322 = vmatprep.subr.bf16.mxu0 0
        %4323 = vmatpush1.bf16.msra.mxu0 %v3012
        %4324 = vmatprep.subr.bf16.mxu0 0
        %4325 = vmatpush1.bf16.msra.mxu0 %v3019
        %4326 = vmatprep.subr.bf16.mxu0 0
        %4327 = vmatpush1.bf16.msra.mxu0 %v3026
        %4328 = vmatprep.subr.bf16.mxu0 0
        %4329 = vmatpush1.bf16.msra.mxu0 %v3033
        %4330 = vmatprep.subr.bf16.mxu0 0
        %4331 = vmatpush1.bf16.msra.mxu0 %v3040
        %4332 = vmatprep.subr.bf16.mxu0 0
        %4333 = vmatpush1.bf16.msra.mxu0 %v3047
        %4334 = vmatprep.subr.bf16.mxu0 0
        %4335 = vmatpush1.bf16.msra.mxu0 %v3054
        %4336 = vmatprep.subr.bf16.mxu0 0
        %4337 = vmatpush1.bf16.msra.mxu0 %v3061
        %4338 = vmatprep.subr.bf16.mxu0 0
        %4339 = vmatpush1.bf16.msra.mxu0 %v3068
        %4340 = vmatprep.subr.bf16.mxu0 0
        %4341 = vmatpush1.bf16.msra.mxu0 %v3075
        %4342 = vmatprep.subr.bf16.mxu0 0
        %4343 = vmatpush1.bf16.msra.mxu0 %v3082
        %4344 = vmatprep.subr.bf16.mxu0 0
        %4345 = vmatpush1.bf16.msra.mxu0 %v3089
        %4346 = vmatprep.subr.bf16.mxu0 0
        %4347 = vmatpush1.bf16.msra.mxu0 %v3096
        %4348 = vmatprep.subr.bf16.mxu0 0
        %4349 = vmatpush1.bf16.msra.mxu0 %v3103
        %4350 = vmatprep.subr.bf16.mxu0 0
        %4351 = vmatpush1.bf16.msra.mxu0 %v3110
        %4352 = vmatprep.subr.bf16.mxu0 0
        %4353 = vmatpush1.bf16.msra.mxu0 %v3117
        %4354 = vmatprep.mubr.bf16.mxu0 %v969
        %4355 = vmatmul.mubr.bf16.gmra.mrb[0].mxu0 %v968
        %v4356 = vpop.f32.mrb[0].mxu0
        %v4357 = vadd.f32 %v4317, %v4356
        %v4358 = vpop.f32.mrb[0].mxu0
        %v4359 = vpop.f32.mrb[0].mxu0
        %v4360 = vpop.f32.mrb[0].mxu0
        %4361 = vdwg.mxu0
        %4362 = vmatprep.subr.bf16.mxu0 0
        %4363 = vmatpush1.bf16.msra.mxu0 %v3124
        %4364 = vmatprep.subr.bf16.mxu0 0
        %4365 = vmatpush1.bf16.msra.mxu0 %v3131
        %4366 = vmatprep.subr.bf16.mxu0 0
        %4367 = vmatpush1.bf16.msra.mxu0 %v3138
        %4368 = vmatprep.subr.bf16.mxu0 0
        %4369 = vmatpush1.bf16.msra.mxu0 %v3145
        %4370 = vmatprep.subr.bf16.mxu0 0
        %4371 = vmatpush1.bf16.msra.mxu0 %v3152
        %4372 = vmatprep.subr.bf16.mxu0 0
        %4373 = vmatpush1.bf16.msra.mxu0 %v3159
        %4374 = vmatprep.subr.bf16.mxu0 0
        %4375 = vmatpush1.bf16.msra.mxu0 %v3166
        %4376 = vmatprep.subr.bf16.mxu0 0
        %4377 = vmatpush1.bf16.msra.mxu0 %v3173
        %4378 = vmatprep.subr.bf16.mxu0 0
        %4379 = vmatpush1.bf16.msra.mxu0 %v3180
        %4380 = vmatprep.subr.bf16.mxu0 0
        %4381 = vmatpush1.bf16.msra.mxu0 %v3187
        %4382 = vmatprep.subr.bf16.mxu0 0
        %4383 = vmatpush1.bf16.msra.mxu0 %v3194
        %4384 = vmatprep.subr.bf16.mxu0 0
        %4385 = vmatpush1.bf16.msra.mxu0 %v3201
        %4386 = vmatprep.subr.bf16.mxu0 0
        %4387 = vmatpush1.bf16.msra.mxu0 %v3208
        %4388 = vmatprep.subr.bf16.mxu0 0
        %4389 = vmatpush1.bf16.msra.mxu0 %v3215
        %4390 = vmatprep.subr.bf16.mxu0 0
        %4391 = vmatpush1.bf16.msra.mxu0 %v3222
        %4392 = vmatprep.subr.bf16.mxu0 0
        %4393 = vmatpush1.bf16.msra.mxu0 %v3229
        %4394 = vmatprep.mubr.bf16.mxu0 %v971
        %4395 = vmatmul.mubr.bf16.gmra.mrb[0].mxu0 %v970
        %v4396 = vpop.f32.mrb[0].mxu0
        %v4397 = vadd.f32 %v4357, %v4396
        %v4398 = vpop.f32.mrb[0].mxu0
        %v4399 = vpop.f32.mrb[0].mxu0
        %v4400 = vpop.f32.mrb[0].mxu0
        %4401 = vdwg.mxu0
        %4402 = vmatprep.subr.bf16.mxu0 0
        %4403 = vmatpush1.bf16.msra.mxu0 %v3236
        %4404 = vmatprep.subr.bf16.mxu0 0
        %4405 = vmatpush1.bf16.msra.mxu0 %v3243
        %4406 = vmatprep.subr.bf16.mxu0 0
        %4407 = vmatpush1.bf16.msra.mxu0 %v3250
        %4408 = vmatprep.subr.bf16.mxu0 0
        %4409 = vmatpush1.bf16.msra.mxu0 %v3257
        %4410 = vmatprep.subr.bf16.mxu0 0
        %4411 = vmatpush1.bf16.msra.mxu0 %v3264
        %4412 = vmatprep.subr.bf16.mxu0 0
        %4413 = vmatpush1.bf16.msra.mxu0 %v3271
        %4414 = vmatprep.subr.bf16.mxu0 0
        %4415 = vmatpush1.bf16.msra.mxu0 %v3278
        %4416 = vmatprep.subr.bf16.mxu0 0
        %4417 = vmatpush1.bf16.msra.mxu0 %v3285
        %4418 = vmatprep.subr.bf16.mxu0 0
        %4419 = vmatpush1.bf16.msra.mxu0 %v3292
        %4420 = vmatprep.subr.bf16.mxu0 0
        %4421 = vmatpush1.bf16.msra.mxu0 %v3299
        %4422 = vmatprep.subr.bf16.mxu0 0
        %4423 = vmatpush1.bf16.msra.mxu0 %v3306
        %4424 = vmatprep.subr.bf16.mxu0 0
        %4425 = vmatpush1.bf16.msra.mxu0 %v3313
        %4426 = vmatprep.subr.bf16.mxu0 0
        %4427 = vmatpush1.bf16.msra.mxu0 %v3320
        %4428 = vmatprep.subr.bf16.mxu0 0
        %4429 = vmatpush1.bf16.msra.mxu0 %v3327
        %4430 = vmatprep.subr.bf16.mxu0 0
        %4431 = vmatpush1.bf16.msra.mxu0 %v3334
        %4432 = vmatprep.subr.bf16.mxu0 0
        %4433 = vmatpush1.bf16.msra.mxu0 %v3341
        %4434 = vmatprep.mubr.bf16.mxu0 %v973
        %4435 = vmatmul.mubr.bf16.gmra.mrb[0].mxu0 %v972
        %v4436 = vpop.f32.mrb[0].mxu0
        %v4437 = vadd.f32 %v4397, %v4436
        %v4438 = vpop.f32.mrb[0].mxu0
        %v4439 = vpop.f32.mrb[0].mxu0
        %v4440 = vpop.f32.mrb[0].mxu0
        %4441 = vdwg.mxu0
        %v4442 = vsel %vm688, %v3948, 0.0
        %v4443 = vrot.slane %v4442, 4
        %v4444 = vadd.f32 %v4442, %v4443
        %v4445 = vrot.slane %v4444, 2
        %v4446 = vadd.f32 %v4444, %v4445
        %v4447 = vrot.slane %v4446, 1
        %v4448 = vadd.f32 %v4446, %v4447
        %v4449 = vsel %vm688, %v3950, 0.0
        %v4450 = vrot.slane %v4449, 4
        %v4451 = vadd.f32 %v4449, %v4450
        %v4452 = vrot.slane %v4451, 2
        %v4453 = vadd.f32 %v4451, %v4452
        %v4454 = vrot.slane %v4453, 1
        %v4455 = vadd.f32 %v4453, %v4454
        %v4456 = vsel %vm688, %v4112, 0.0
        %v4457 = vrot.slane %v4456, 4
        %v4458 = vadd.f32 %v4456, %v4457
        %v4459 = vrot.slane %v4458, 2
        %v4460 = vadd.f32 %v4458, %v4459
        %v4461 = vrot.slane %v4460, 1
        %v4462 = vadd.f32 %v4460, %v4461
        %v4463 = vsel %vm688, %v4114, 0.0
        %v4464 = vrot.slane %v4463, 4
        %v4465 = vadd.f32 %v4463, %v4464
        %v4466 = vrot.slane %v4465, 2
        %v4467 = vadd.f32 %v4465, %v4466
        %v4468 = vrot.slane %v4467, 1
        %v4469 = vadd.f32 %v4467, %v4468
        %v4470 = vsel %vm688, %v4276, 0.0
        %v4471 = vrot.slane %v4470, 4
        %v4472 = vadd.f32 %v4470, %v4471
        %v4473 = vrot.slane %v4472, 2
        %v4474 = vadd.f32 %v4472, %v4473
        %v4475 = vrot.slane %v4474, 1
        %v4476 = vadd.f32 %v4474, %v4475
        %v4477 = vsel %vm688, %v4278, 0.0
        %v4478 = vrot.slane %v4477, 4
        %v4479 = vadd.f32 %v4477, %v4478
        %v4480 = vrot.slane %v4479, 2
        %v4481 = vadd.f32 %v4479, %v4480
        %v4482 = vrot.slane %v4481, 1
        %v4483 = vadd.f32 %v4481, %v4482
        %v4484 = vsel %vm688, %v4437, 0.0
        %v4485 = vrot.slane %v4484, 4
        %v4486 = vadd.f32 %v4484, %v4485
        %v4487 = vrot.slane %v4486, 2
        %v4488 = vadd.f32 %v4486, %v4487
        %v4489 = vrot.slane %v4488, 1
        %v4490 = vadd.f32 %v4488, %v4489
        %v4491 = vmul.f32 %v4448, %v745
        %v4492 = vmul.f32 %v4455, %v745
        %v4493 = vmul.f32 %v4462, %v745
        %v4494 = vmul.f32 %v4469, %v745
        %v4495 = vmul.f32 %v4476, %v745
        %v4496 = vmul.f32 %v4483, %v745
        %v4497 = vmul.f32 %v4490, %v745
        %v4498 = vsub.f32 %v3948, %v4491
        %v4499 = vsub.f32 %v3950, %v4492
        %v4500 = vsub.f32 %v4112, %v4493
        %v4501 = vsub.f32 %v4114, %v4494
        %v4502 = vsub.f32 %v4276, %v4495
        %v4503 = vsub.f32 %v4278, %v4496
        %v4504 = vsub.f32 %v4437, %v4497
        %v4505 = vmul.f32 %v4498, %v4498
        %v4506 = vmul.f32 %v4499, %v4499
        %v4507 = vmul.f32 %v4500, %v4500
        %v4508 = vmul.f32 %v4501, %v4501
        %v4509 = vmul.f32 %v4502, %v4502
        %v4510 = vmul.f32 %v4503, %v4503
        %v4511 = vmul.f32 %v4504, %v4504
        %v4512 = vsel %vm688, %v4505, 0.0
        %v4513 = vrot.slane %v4512, 4
        %v4514 = vadd.f32 %v4512, %v4513
        %v4515 = vrot.slane %v4514, 2
        %v4516 = vadd.f32 %v4514, %v4515
        %v4517 = vrot.slane %v4516, 1
        %v4518 = vadd.f32 %v4516, %v4517
        %v4519 = vsel %vm688, %v4506, 0.0
        %v4520 = vrot.slane %v4519, 4
        %v4521 = vadd.f32 %v4519, %v4520
        %v4522 = vrot.slane %v4521, 2
        %v4523 = vadd.f32 %v4521, %v4522
        %v4524 = vrot.slane %v4523, 1
        %v4525 = vadd.f32 %v4523, %v4524
        %v4526 = vsel %vm688, %v4507, 0.0
        %v4527 = vrot.slane %v4526, 4
        %v4528 = vadd.f32 %v4526, %v4527
        %v4529 = vrot.slane %v4528, 2
        %v4530 = vadd.f32 %v4528, %v4529
        %v4531 = vrot.slane %v4530, 1
        %v4532 = vadd.f32 %v4530, %v4531
        %v4533 = vsel %vm688, %v4508, 0.0
        %v4534 = vrot.slane %v4533, 4
        %v4535 = vadd.f32 %v4533, %v4534
        %v4536 = vrot.slane %v4535, 2
        %v4537 = vadd.f32 %v4535, %v4536
        %v4538 = vrot.slane %v4537, 1
        %v4539 = vadd.f32 %v4537, %v4538
        %v4540 = vsel %vm688, %v4509, 0.0
        %v4541 = vrot.slane %v4540, 4
        %v4542 = vadd.f32 %v4540, %v4541
        %v4543 = vrot.slane %v4542, 2
        %v4544 = vadd.f32 %v4542, %v4543
        %v4545 = vrot.slane %v4544, 1
        %v4546 = vadd.f32 %v4544, %v4545
        %v4547 = vsel %vm688, %v4510, 0.0
        %v4548 = vrot.slane %v4547, 4
        %v4549 = vadd.f32 %v4547, %v4548
        %v4550 = vrot.slane %v4549, 2
        %v4551 = vadd.f32 %v4549, %v4550
        %v4552 = vrot.slane %v4551, 1
        %v4553 = vadd.f32 %v4551, %v4552
        %v4554 = vsel %vm688, %v4511, 0.0
        %v4555 = vrot.slane %v4554, 4
        %v4556 = vadd.f32 %v4554, %v4555
        %v4557 = vrot.slane %v4556, 2
        %v4558 = vadd.f32 %v4556, %v4557
        %v4559 = vrot.slane %v4558, 1
        %v4560 = vadd.f32 %v4558, %v4559
        %v4561 = vmul.f32 %v4518, %v745
        %v4562 = vmul.f32 %v4525, %v745
        %v4563 = vmul.f32 %v4532, %v745
        %v4564 = vmul.f32 %v4539, %v745
        %v4565 = vmul.f32 %v4546, %v745
        %v4566 = vmul.f32 %v4553, %v745
        %v4567 = vmul.f32 %v4560, %v745
        %v4568 = vld [vmem:[%s364] sm:$0xff]
        %v4570 = vlaneseq
        %v4571 = vshrl.u32 %v4570, 7
        %v4572 = vsub.s32 0, %v4571
        %v4573 = vrot.slane %v4568, %v4572
        %v4574 = vlaneseq
        %v4575 = vshrl.u32 %v4574, 7
        %v4576 = vsub.s32 1, %v4575
        %v4577 = vrot.slane %v4568, %v4576
        %v4578 = vlaneseq
        %v4579 = vshrl.u32 %v4578, 7
        %v4580 = vsub.s32 2, %v4579
        %v4581 = vrot.slane %v4568, %v4580
        %v4582 = vlaneseq
        %v4583 = vshrl.u32 %v4582, 7
        %v4584 = vsub.s32 3, %v4583
        %v4585 = vrot.slane %v4568, %v4584
        %v4586 = vlaneseq
        %v4587 = vshrl.u32 %v4586, 7
        %v4588 = vsub.s32 4, %v4587
        %v4589 = vrot.slane %v4568, %v4588
        %v4590 = vlaneseq
        %v4591 = vshrl.u32 %v4590, 7
        %v4592 = vsub.s32 5, %v4591
        %v4593 = vrot.slane %v4568, %v4592
        %v4594 = vlaneseq
        %v4595 = vshrl.u32 %v4594, 7
        %v4596 = vsub.s32 6, %v4595
        %v4597 = vrot.slane %v4568, %v4596
        %v4605 = vmul.f32 %v4573, %v4498
        %v4606 = vmul.f32 %v4577, %v4499
        %v4607 = vmul.f32 %v4581, %v4500
        %v4608 = vmul.f32 %v4585, %v4501
        %v4609 = vmul.f32 %v4589, %v4502
        %v4610 = vmul.f32 %v4593, %v4503
        %v4611 = vmul.f32 %v4597, %v4504
        %v4612 = vadd.f32 %v4561, 1e-05
        %v4613 = vadd.f32 %v4562, 1e-05
        %v4614 = vadd.f32 %v4563, 1e-05
        %v4615 = vadd.f32 %v4564, 1e-05
        %v4616 = vadd.f32 %v4565, 1e-05
        %v4617 = vadd.f32 %v4566, 1e-05
        %v4618 = vadd.f32 %v4567, 1e-05
        %v4619 = vrsqrt.pop %v4612
        %v4620 = vrsqrt.pop %v4613
        %v4621 = vrsqrt.pop %v4614
        %v4622 = vrsqrt.pop %v4615
        %v4623 = vrsqrt.pop %v4616
        %v4624 = vrsqrt.pop %v4617
        %v4625 = vrsqrt.pop %v4618
        %v4626 = vmul.f32 %v4605, %v4619
        %v4627 = vmul.f32 %v4606, %v4620
        %v4628 = vmul.f32 %v4607, %v4621
        %v4629 = vmul.f32 %v4608, %v4622
        %v4630 = vmul.f32 %v4609, %v4623
        %v4631 = vmul.f32 %v4610, %v4624
        %v4632 = vmul.f32 %v4611, %v4625
        %v4633 = vld [vmem:[%s373] sm:$0xff]
        %v4635 = vlaneseq
        %v4636 = vshrl.u32 %v4635, 7
        %v4637 = vsub.s32 0, %v4636
        %v4638 = vrot.slane %v4633, %v4637
        %v4639 = vlaneseq
        %v4640 = vshrl.u32 %v4639, 7
        %v4641 = vsub.s32 1, %v4640
        %v4642 = vrot.slane %v4633, %v4641
        %v4643 = vlaneseq
        %v4644 = vshrl.u32 %v4643, 7
        %v4645 = vsub.s32 2, %v4644
        %v4646 = vrot.slane %v4633, %v4645
        %v4647 = vlaneseq
        %v4648 = vshrl.u32 %v4647, 7
        %v4649 = vsub.s32 3, %v4648
        %v4650 = vrot.slane %v4633, %v4649
        %v4651 = vlaneseq
        %v4652 = vshrl.u32 %v4651, 7
        %v4653 = vsub.s32 4, %v4652
        %v4654 = vrot.slane %v4633, %v4653
        %v4655 = vlaneseq
        %v4656 = vshrl.u32 %v4655, 7
        %v4657 = vsub.s32 5, %v4656
        %v4658 = vrot.slane %v4633, %v4657
        %v4659 = vlaneseq
        %v4660 = vshrl.u32 %v4659, 7
        %v4661 = vsub.s32 6, %v4660
        %v4662 = vrot.slane %v4633, %v4661
        %v4670 = vadd.f32 %v4626, %v4638
        %v4671 = vadd.f32 %v4627, %v4642
        %v4672 = vadd.f32 %v4628, %v4646
        %v4673 = vadd.f32 %v4629, %v4650
        %v4674 = vadd.f32 %v4630, %v4654
        %v4675 = vadd.f32 %v4631, %v4658
        %v4676 = vadd.f32 %v4632, %v4662
        %v4677 = vmax.f32 %v4670, 0.0
        %v4678 = vmax.f32 %v4671, 0.0
        %v4679 = vmax.f32 %v4672, 0.0
        %v4680 = vmax.f32 %v4673, 0.0
        %v4681 = vmax.f32 %v4674, 0.0
        %v4682 = vmax.f32 %v4675, 0.0
        %v4683 = vmax.f32 %v4676, 0.0
        %v4684 = vpack.c.bf16 %v4677, %v4677
        %v4685 = vpack.c.bf16 %v4678, %v4678
        %v4686 = vpack.c.bf16 %v4679, %v4679
        %v4687 = vpack.c.bf16 %v4680, %v4680
        %v4688 = vpack.c.bf16 %v4681, %v4681
        %v4689 = vpack.c.bf16 %v4682, %v4682
        %v4690 = vpack.c.bf16 %v4683, %v4683
        %v4698 = vcombine.low %v4684, %v4685
        %v4699 = vcombine.low %v4686, %v4687
        %v4700 = vcombine.low %v4688, %v4689
        %v4702 = vunpack.c.l.s4 1966171168
        %v4703 = vunpack.c.0.s8 %v4702
        %v4704 = vlaneseq
        %v4705 = vshrl.u32 %v4704, 7
        %v4706 = vsub.s32 %v4703, %v4705
        %v4707 = vrot.slane %v4698, %v4706
        %v4709 = vunpack.c.l.s4 1966171168
        %v4710 = vunpack.c.0.s8 %v4709
        %v4711 = vlaneseq
        %v4712 = vshrl.u32 %v4711, 7
        %v4713 = vsub.s32 %v4710, %v4712
        %v4714 = vrot.slane %v4699, %v4713
        %v4716 = vunpack.c.l.s4 1966171168
        %v4717 = vunpack.c.0.s8 %v4716
        %v4718 = vlaneseq
        %v4719 = vshrl.u32 %v4718, 7
        %v4720 = vsub.s32 %v4717, %v4719
        %v4721 = vrot.slane %v4700, %v4720
        %v4723 = vunpack.c.l.s4 1966171168
        %v4724 = vunpack.c.0.s8 %v4723
        %v4725 = vlaneseq
        %v4726 = vshrl.u32 %v4725, 7
        %v4727 = vsub.s32 %v4724, %v4726
        %v4728 = vrot.slane %v4690, %v4727
        %v4729 = vcombine.low %v4707, %v4714
        %v4730 = vcombine.low %v4721, %v4728
        %v4732 = vunpack.c.l.s4 1966171168
        %v4733 = vunpack.c.0.s8 %v4732
        %v4734 = vlaneseq
        %v4735 = vshrl.u32 %v4734, 7
        %v4736 = vsub.s32 %v4733, %v4735
        %v4737 = vrot.slane %v4729, %v4736
        %v4739 = vunpack.c.l.s4 1966171168
        %v4740 = vunpack.c.0.s8 %v4739
        %v4741 = vlaneseq
        %v4742 = vshrl.u32 %v4741, 7
        %v4743 = vsub.s32 %v4740, %v4742
        %v4744 = vrot.slane %v4730, %v4743
        %v4745 = vcombine.low %v4737, %v4744
        %4747 = vst [vmem:[%s419] sm:$0x7f] %v4745
        %s4748 = smul.u32 7, %s21
        %p4749 = scmp.lt.s32.totalorder %s4748, 48
        %s4750 = scalar_select %p4749, %s4748, 48
        %s4751 = scalar_lea.vmem %s7, %s4750
        // Predicated region
        $region77: #{generator_emnist_forward.3} parent=47 // pred_check
          %p4752 = pneg %p201
        $region78: #{generator_emnist_forward.3} parent=47 // pred_check_branch
          %4754 = sbr.rel (%p4752) target = $region80
        $region79: #{generator_emnist_forward.3} parent=47 // pred_region
          %s4755 = smul.u32 7, %s21
        $region80: #{generator_emnist_forward.3} parent=47 // pred_fallthru
          _
      $region48: #{generator_emnist_forward.3} parent=5 // pred_fallthru
        _
      %p4756 = scmp.le.s32.totalorder 2, %s16
      // Predicated region
      $region81: #{generator_emnist_forward.3} parent=5 // pred_check
        %p4757 = pneg %p4756
      $region82: #{generator_emnist_forward.3} parent=5 // pred_check_branch
        %4759 = sbr.rel (%p4757) target = $region84
      $region83: #{generator_emnist_forward.3} parent=5 // pred_region
        %s4760 = ssub.s32 %s16, 2
        // Predicated region
        $region85: #{generator_emnist_forward.3} parent=83 // pred_check
          %p4761 = pneg %p207
        $region86: #{generator_emnist_forward.3} parent=83 // pred_check_branch
          %4763 = sbr.rel (%p4761) target = $region88
        $region87: #{generator_emnist_forward.3} parent=83 // pred_region
          %s4764 = smul.u32 7, %s22
          %p4765 = scmp.lt.s32.totalorder %s4764, 48
          %s4766 = scalar_select %p4765, %s4764, 48
          %s4767 = scalar_lea.vmem %s7, %s4766
        $region88: #{generator_emnist_forward.3} parent=83 // pred_fallthru
          _
      $region84: #{generator_emnist_forward.3} parent=5 // pred_fallthru
        _
    $region6: #{generator_emnist_forward.3} parent=1 // loop_footer
      %s20 = sadd.s32 1, %s16
    $region7: #{generator_emnist_forward.3} parent=1 // loop_footer_branch
      %15 = sbr.rel target = $region3
    $region8: #{generator_emnist_forward.3} parent=1 // loop_exit
      _
    %4768 = vsyncpa [#allocation3], 1
    %s4769 = scalar_lea.sflag [#allocation3], 1
    %4770 = vsyncpa %s4769, 1
    %4771 = vsyncpa [#allocation5], 1
    %4772 = vsyncpa [#allocation8], 1

// kernel: generator_emnist_forward.4
$region0: #{generator_emnist_forward.4}
  #allocation0 [shape = 'u32[]', space=smem, size = 0x4, offset = 0x4, fixed_abs, tag = 'smem constant byte address 0x4 - core index']
  #allocation1 [shape = 'u32[144,128]{1,0:T(1,128)}', space=vmem, size = 0x12000, scoped, tag = 'internal scratch']
  %s0 = inlined_call_operand.vmem [shape: bf16[98,1152], index: 0, kind: input, shape index: {}]
  %s1 = inlined_call_operand.vmem [shape: bf16[1152,256], index: 1, kind: input, shape index: {}]
  %s2 = inlined_call_operand.vmem [shape: f32[1,64], index: 2, kind: input, shape index: {}]
  %s3 = inlined_call_operand.vmem [shape: f32[1,64], index: 3, kind: input, shape index: {}]
  %s4 = inlined_call_operand.vmem [shape: bf16[98,256], index: 4, kind: output, shape index: {}]
  %s5 = sld [smem:[#allocation0]]
  $region26: #{generator_emnist_forward.4} parent=0
    _
  %s7 = ssub.s32 1, %s5
  %s8 = scalar_select 0, %s7, %s5
  // Predicated region
  $region2: #{generator_emnist_forward.4} parent=0 // pred_check
    _
  $region3: #{generator_emnist_forward.4} parent=0 // pred_check_branch
    %10 = sbr.rel (0) target = $region5
  $region4: #{generator_emnist_forward.4} parent=0 // pred_region
    _
  $region5: #{generator_emnist_forward.4} parent=0 // pred_fallthru
    _
  // Predicated region
  $region6: #{generator_emnist_forward.4} parent=0 // pred_check
    _
  $region7: #{generator_emnist_forward.4} parent=0 // pred_check_branch
    %12 = sbr.rel (0) target = $region9
  $region8: #{generator_emnist_forward.4} parent=0 // pred_region
    _
  $region9: #{generator_emnist_forward.4} parent=0 // pred_fallthru
    _
  // Predicated region
  $region10: #{generator_emnist_forward.4} parent=0 // pred_check
    _
  $region11: #{generator_emnist_forward.4} parent=0 // pred_check_branch
    %14 = sbr.rel (0) target = $region13
  $region12: #{generator_emnist_forward.4} parent=0 // pred_region
    _
  $region13: #{generator_emnist_forward.4} parent=0 // pred_fallthru
    _
  // Predicated region
  $region14: #{generator_emnist_forward.4} parent=0 // pred_check
    _
  $region15: #{generator_emnist_forward.4} parent=0 // pred_check_branch
    %16 = sbr.rel (0) target = $region17
  $region16: #{generator_emnist_forward.4} parent=0 // pred_region
    _
  $region17: #{generator_emnist_forward.4} parent=0 // pred_fallthru
    _
  %v18 = vld [vmem:[%s0] sm:$0xff]
  %v19 = vld [vmem:[%s0 + $0x8] sm:$0xff]
  %v20 = vld [vmem:[%s0 + $0x10] sm:$0xff]
  %v21 = vld [vmem:[%s0 + $0x18] sm:$0xff]
  %v22 = vld [vmem:[%s0 + $0x20] sm:$0xf]
  %v23 = vld [vmem:[%s0 + $0x24] sm:$0xff]
  %v24 = vld [vmem:[%s0 + $0x2c] sm:$0xff]
  %v25 = vld [vmem:[%s0 + $0x34] sm:$0xff]
  %v26 = vld [vmem:[%s0 + $0x3c] sm:$0xff]
  %v27 = vld [vmem:[%s0 + $0x44] sm:$0xf]
  %v28 = vld [vmem:[%s0 + $0x48] sm:$0xff]
  %v29 = vld [vmem:[%s0 + $0x50] sm:$0xff]
  %v30 = vld [vmem:[%s0 + $0x58] sm:$0xff]
  %v31 = vld [vmem:[%s0 + $0x60] sm:$0xff]
  %v32 = vld [vmem:[%s0 + $0x68] sm:$0xf]
  %v33 = vld [vmem:[%s0 + $0x6c] sm:$0xff]
  %v34 = vld [vmem:[%s0 + $0x74] sm:$0xff]
  %v35 = vld [vmem:[%s0 + $0x7c] sm:$0xff]
  %v36 = vld [vmem:[%s0 + $0x84] sm:$0xff]
  %v37 = vld [vmem:[%s0 + $0x8c] sm:$0xf]
  %v38 = vld [vmem:[%s0 + $0x90] sm:$0xff]
  %v39 = vld [vmem:[%s0 + $0x98] sm:$0xff]
  %v40 = vld [vmem:[%s0 + $0xa0] sm:$0xff]
  %v41 = vld [vmem:[%s0 + $0xa8] sm:$0xff]
  %v42 = vld [vmem:[%s0 + $0xb0] sm:$0xf]
  %v43 = vld [vmem:[%s0 + $0xb4] sm:$0xff]
  %v44 = vld [vmem:[%s0 + $0xbc] sm:$0xff]
  %v45 = vld [vmem:[%s0 + $0xc4] sm:$0xff]
  %v46 = vld [vmem:[%s0 + $0xcc] sm:$0xff]
  %v47 = vld [vmem:[%s0 + $0xd4] sm:$0xf]
  %v48 = vld [vmem:[%s0 + $0xd8] sm:$0xff]
  %v49 = vld [vmem:[%s0 + $0xe0] sm:$0xff]
  %v50 = vld [vmem:[%s0 + $0xe8] sm:$0xff]
  %v51 = vld [vmem:[%s0 + $0xf0] sm:$0xff]
  %v52 = vld [vmem:[%s0 + $0xf8] sm:$0xf]
  %v53 = vld [vmem:[%s0 + $0xfc] sm:$0xff]
  %v54 = vld [vmem:[%s0 + $0x104] sm:$0xff]
  %v55 = vld [vmem:[%s0 + $0x10c] sm:$0xff]
  %v56 = vld [vmem:[%s0 + $0x114] sm:$0xff]
  %v57 = vld [vmem:[%s0 + $0x11c] sm:$0xf]
  %v58 = vld [vmem:[%s0 + $0x120] sm:$0xff]
  %v59 = vld [vmem:[%s0 + $0x128] sm:$0xff]
  %v60 = vld [vmem:[%s0 + $0x130] sm:$0xff]
  %v61 = vld [vmem:[%s0 + $0x138] sm:$0xff]
  %v62 = vld [vmem:[%s0 + $0x140] sm:$0xf]
  %v63 = vld [vmem:[%s0 + $0x144] sm:$0xff]
  %v64 = vld [vmem:[%s0 + $0x14c] sm:$0xff]
  %v65 = vld [vmem:[%s0 + $0x154] sm:$0xff]
  %v66 = vld [vmem:[%s0 + $0x15c] sm:$0xff]
  %v67 = vld [vmem:[%s0 + $0x164] sm:$0xf]
  %v68 = vld [vmem:[%s0 + $0x168] sm:$0xff]
  %v69 = vld [vmem:[%s0 + $0x170] sm:$0xff]
  %v70 = vld [vmem:[%s0 + $0x178] sm:$0xff]
  %v71 = vld [vmem:[%s0 + $0x180] sm:$0xff]
  %v72 = vld [vmem:[%s0 + $0x188] sm:$0xf]
  %v73 = vld [vmem:[%s0 + $0x18c] sm:$0xff]
  %v74 = vld [vmem:[%s0 + $0x194] sm:$0xff]
  %v75 = vld [vmem:[%s0 + $0x19c] sm:$0xff]
  %v76 = vld [vmem:[%s0 + $0x1a4] sm:$0xff]
  %v77 = vld [vmem:[%s0 + $0x1ac] sm:$0xf]
  %v78 = vld [vmem:[%s0 + $0x1b0] sm:$0x11]
  %v79 = vld [vmem:[%s0 + $0x1b8] sm:$0x11]
  %v80 = vld [vmem:[%s0 + $0x1c0] sm:$0x11]
  %v81 = vld [vmem:[%s0 + $0x1c8] sm:$0x11]
  %v82 = vld [vmem:[%s0 + $0x1d0] sm:$0x1]
  %v83 = vld [vmem:[%s1] sm:$0xff]
  %v84 = vld [vmem:[%s1 + $0x8] sm:$0xff]
  %v85 = vld [vmem:[%s1 + $0x10] sm:$0xff]
  %v86 = vld [vmem:[%s1 + $0x18] sm:$0xff]
  %v87 = vld [vmem:[%s1 + $0x20] sm:$0xff]
  %v88 = vld [vmem:[%s1 + $0x28] sm:$0xff]
  %v89 = vld [vmem:[%s1 + $0x30] sm:$0xff]
  %v90 = vld [vmem:[%s1 + $0x38] sm:$0xff]
  %v91 = vld [vmem:[%s1 + $0x40] sm:$0xff]
  %v92 = vld [vmem:[%s1 + $0x48] sm:$0xff]
  %v93 = vld [vmem:[%s1 + $0x50] sm:$0xff]
  %v94 = vld [vmem:[%s1 + $0x58] sm:$0xff]
  %v95 = vld [vmem:[%s1 + $0x60] sm:$0xff]
  %v96 = vld [vmem:[%s1 + $0x68] sm:$0xff]
  %v97 = vld [vmem:[%s1 + $0x70] sm:$0xff]
  %v98 = vld [vmem:[%s1 + $0x78] sm:$0xff]
  %v99 = vld [vmem:[%s1 + $0x80] sm:$0xff]
  %v100 = vld [vmem:[%s1 + $0x88] sm:$0xff]
  %v101 = vld [vmem:[%s1 + $0x90] sm:$0xff]
  %v102 = vld [vmem:[%s1 + $0x98] sm:$0xff]
  %v103 = vld [vmem:[%s1 + $0xa0] sm:$0xff]
  %v104 = vld [vmem:[%s1 + $0xa8] sm:$0xff]
  %v105 = vld [vmem:[%s1 + $0xb0] sm:$0xff]
  %v106 = vld [vmem:[%s1 + $0xb8] sm:$0xff]
  %v107 = vld [vmem:[%s1 + $0xc0] sm:$0xff]
  %v108 = vld [vmem:[%s1 + $0xc8] sm:$0xff]
  %v109 = vld [vmem:[%s1 + $0xd0] sm:$0xff]
  %v110 = vld [vmem:[%s1 + $0xd8] sm:$0xff]
  %v111 = vld [vmem:[%s1 + $0xe0] sm:$0xff]
  %v112 = vld [vmem:[%s1 + $0xe8] sm:$0xff]
  %v113 = vld [vmem:[%s1 + $0xf0] sm:$0xff]
  %v114 = vld [vmem:[%s1 + $0xf8] sm:$0xff]
  %v115 = vld [vmem:[%s1 + $0x100] sm:$0xff]
  %v116 = vld [vmem:[%s1 + $0x108] sm:$0xff]
  %v117 = vld [vmem:[%s1 + $0x110] sm:$0xff]
  %v118 = vld [vmem:[%s1 + $0x118] sm:$0xff]
  %v119 = vld [vmem:[%s1 + $0x120] sm:$0xff]
  %v120 = vld [vmem:[%s1 + $0x128] sm:$0xff]
  %v121 = vld [vmem:[%s1 + $0x130] sm:$0xff]
  %v122 = vld [vmem:[%s1 + $0x138] sm:$0xff]
  %v123 = vld [vmem:[%s1 + $0x140] sm:$0xff]
  %v124 = vld [vmem:[%s1 + $0x148] sm:$0xff]
  %v125 = vld [vmem:[%s1 + $0x150] sm:$0xff]
  %v126 = vld [vmem:[%s1 + $0x158] sm:$0xff]
  %v127 = vld [vmem:[%s1 + $0x160] sm:$0xff]
  %v128 = vld [vmem:[%s1 + $0x168] sm:$0xff]
  %v129 = vld [vmem:[%s1 + $0x170] sm:$0xff]
  %v130 = vld [vmem:[%s1 + $0x178] sm:$0xff]
  %v131 = vld [vmem:[%s1 + $0x180] sm:$0xff]
  %v132 = vld [vmem:[%s1 + $0x188] sm:$0xff]
  %v133 = vld [vmem:[%s1 + $0x190] sm:$0xff]
  %v134 = vld [vmem:[%s1 + $0x198] sm:$0xff]
  %v135 = vld [vmem:[%s1 + $0x1a0] sm:$0xff]
  %v136 = vld [vmem:[%s1 + $0x1a8] sm:$0xff]
  %v137 = vld [vmem:[%s1 + $0x1b0] sm:$0xff]
  %v138 = vld [vmem:[%s1 + $0x1b8] sm:$0xff]
  %v139 = vld [vmem:[%s1 + $0x1c0] sm:$0xff]
  %v140 = vld [vmem:[%s1 + $0x1c8] sm:$0xff]
  %v141 = vld [vmem:[%s1 + $0x1d0] sm:$0xff]
  %v142 = vld [vmem:[%s1 + $0x1d8] sm:$0xff]
  %v143 = vld [vmem:[%s1 + $0x1e0] sm:$0xff]
  %v144 = vld [vmem:[%s1 + $0x1e8] sm:$0xff]
  %v145 = vld [vmem:[%s1 + $0x1f0] sm:$0xff]
  %v146 = vld [vmem:[%s1 + $0x1f8] sm:$0xff]
  %v147 = vld [vmem:[%s1 + $0x200] sm:$0xff]
  %v148 = vld [vmem:[%s1 + $0x208] sm:$0xff]
  %v149 = vld [vmem:[%s1 + $0x210] sm:$0xff]
  %v150 = vld [vmem:[%s1 + $0x218] sm:$0xff]
  %v151 = vld [vmem:[%s1 + $0x220] sm:$0xff]
  %v152 = vld [vmem:[%s1 + $0x228] sm:$0xff]
  %v153 = vld [vmem:[%s1 + $0x230] sm:$0xff]
  %v154 = vld [vmem:[%s1 + $0x238] sm:$0xff]
  %v155 = vld [vmem:[%s1 + $0x240] sm:$0xff]
  %v156 = vld [vmem:[%s1 + $0x248] sm:$0xff]
  %v157 = vld [vmem:[%s1 + $0x250] sm:$0xff]
  %v158 = vld [vmem:[%s1 + $0x258] sm:$0xff]
  %v159 = vld [vmem:[%s1 + $0x260] sm:$0xff]
  %v160 = vld [vmem:[%s1 + $0x268] sm:$0xff]
  %v161 = vld [vmem:[%s1 + $0x270] sm:$0xff]
  %v162 = vld [vmem:[%s1 + $0x278] sm:$0xff]
  %v163 = vld [vmem:[%s1 + $0x280] sm:$0xff]
  %v164 = vld [vmem:[%s1 + $0x288] sm:$0xff]
  %v165 = vld [vmem:[%s1 + $0x290] sm:$0xff]
  %v166 = vld [vmem:[%s1 + $0x298] sm:$0xff]
  %v167 = vld [vmem:[%s1 + $0x2a0] sm:$0xff]
  %v168 = vld [vmem:[%s1 + $0x2a8] sm:$0xff]
  %v169 = vld [vmem:[%s1 + $0x2b0] sm:$0xff]
  %v170 = vld [vmem:[%s1 + $0x2b8] sm:$0xff]
  %v171 = vld [vmem:[%s1 + $0x2c0] sm:$0xff]
  %v172 = vld [vmem:[%s1 + $0x2c8] sm:$0xff]
  %v173 = vld [vmem:[%s1 + $0x2d0] sm:$0xff]
  %v174 = vld [vmem:[%s1 + $0x2d8] sm:$0xff]
  %v175 = vld [vmem:[%s1 + $0x2e0] sm:$0xff]
  %v176 = vld [vmem:[%s1 + $0x2e8] sm:$0xff]
  %v177 = vld [vmem:[%s1 + $0x2f0] sm:$0xff]
  %v178 = vld [vmem:[%s1 + $0x2f8] sm:$0xff]
  %v179 = vld [vmem:[%s1 + $0x300] sm:$0xff]
  %v180 = vld [vmem:[%s1 + $0x308] sm:$0xff]
  %v181 = vld [vmem:[%s1 + $0x310] sm:$0xff]
  %v182 = vld [vmem:[%s1 + $0x318] sm:$0xff]
  %v183 = vld [vmem:[%s1 + $0x320] sm:$0xff]
  %v184 = vld [vmem:[%s1 + $0x328] sm:$0xff]
  %v185 = vld [vmem:[%s1 + $0x330] sm:$0xff]
  %v186 = vld [vmem:[%s1 + $0x338] sm:$0xff]
  %v187 = vld [vmem:[%s1 + $0x340] sm:$0xff]
  %v188 = vld [vmem:[%s1 + $0x348] sm:$0xff]
  %v189 = vld [vmem:[%s1 + $0x350] sm:$0xff]
  %v190 = vld [vmem:[%s1 + $0x358] sm:$0xff]
  %v191 = vld [vmem:[%s1 + $0x360] sm:$0xff]
  %v192 = vld [vmem:[%s1 + $0x368] sm:$0xff]
  %v193 = vld [vmem:[%s1 + $0x370] sm:$0xff]
  %v194 = vld [vmem:[%s1 + $0x378] sm:$0xff]
  %v195 = vld [vmem:[%s1 + $0x380] sm:$0xff]
  %v196 = vld [vmem:[%s1 + $0x388] sm:$0xff]
  %v197 = vld [vmem:[%s1 + $0x390] sm:$0xff]
  %v198 = vld [vmem:[%s1 + $0x398] sm:$0xff]
  %v199 = vld [vmem:[%s1 + $0x3a0] sm:$0xff]
  %v200 = vld [vmem:[%s1 + $0x3a8] sm:$0xff]
  %v201 = vld [vmem:[%s1 + $0x3b0] sm:$0xff]
  %v202 = vld [vmem:[%s1 + $0x3b8] sm:$0xff]
  %v203 = vld [vmem:[%s1 + $0x3c0] sm:$0xff]
  %v204 = vld [vmem:[%s1 + $0x3c8] sm:$0xff]
  %v205 = vld [vmem:[%s1 + $0x3d0] sm:$0xff]
  %v206 = vld [vmem:[%s1 + $0x3d8] sm:$0xff]
  %v207 = vld [vmem:[%s1 + $0x3e0] sm:$0xff]
  %v208 = vld [vmem:[%s1 + $0x3e8] sm:$0xff]
  %v209 = vld [vmem:[%s1 + $0x3f0] sm:$0xff]
  %v210 = vld [vmem:[%s1 + $0x3f8] sm:$0xff]
  %v211 = vld [vmem:[%s1 + $0x400] sm:$0xff]
  %v212 = vld [vmem:[%s1 + $0x408] sm:$0xff]
  %v213 = vld [vmem:[%s1 + $0x410] sm:$0xff]
  %v214 = vld [vmem:[%s1 + $0x418] sm:$0xff]
  %v215 = vld [vmem:[%s1 + $0x420] sm:$0xff]
  %v216 = vld [vmem:[%s1 + $0x428] sm:$0xff]
  %v217 = vld [vmem:[%s1 + $0x430] sm:$0xff]
  %v218 = vld [vmem:[%s1 + $0x438] sm:$0xff]
  %v219 = vld [vmem:[%s1 + $0x440] sm:$0xff]
  %v220 = vld [vmem:[%s1 + $0x448] sm:$0xff]
  %v221 = vld [vmem:[%s1 + $0x450] sm:$0xff]
  %v222 = vld [vmem:[%s1 + $0x458] sm:$0xff]
  %v223 = vld [vmem:[%s1 + $0x460] sm:$0xff]
  %v224 = vld [vmem:[%s1 + $0x468] sm:$0xff]
  %v225 = vld [vmem:[%s1 + $0x470] sm:$0xff]
  %v226 = vld [vmem:[%s1 + $0x478] sm:$0xff]
  %v292 = vunpack.c.l.b16 %v18
  %v293 = vunpack.c.h.b16 %v18
  %v294 = vunpack.c.l.b16 %v19
  %v295 = vunpack.c.h.b16 %v19
  %v296 = vunpack.c.l.b16 %v20
  %v297 = vunpack.c.h.b16 %v20
  %v298 = vunpack.c.l.b16 %v21
  %v299 = vunpack.c.h.b16 %v21
  %v300 = vunpack.c.l.b16 %v22
  %v301 = vunpack.c.l.b16 %v23
  %v302 = vunpack.c.h.b16 %v23
  %v303 = vunpack.c.l.b16 %v24
  %v304 = vunpack.c.h.b16 %v24
  %v305 = vunpack.c.l.b16 %v25
  %v306 = vunpack.c.h.b16 %v25
  %v307 = vunpack.c.l.b16 %v26
  %v308 = vunpack.c.h.b16 %v26
  %v309 = vunpack.c.l.b16 %v27
  %v310 = vunpack.c.l.b16 %v28
  %v311 = vunpack.c.h.b16 %v28
  %v312 = vunpack.c.l.b16 %v29
  %v313 = vunpack.c.h.b16 %v29
  %v314 = vunpack.c.l.b16 %v30
  %v315 = vunpack.c.h.b16 %v30
  %v316 = vunpack.c.l.b16 %v31
  %v317 = vunpack.c.h.b16 %v31
  %v318 = vunpack.c.l.b16 %v32
  %v319 = vunpack.c.l.b16 %v33
  %v320 = vunpack.c.h.b16 %v33
  %v321 = vunpack.c.l.b16 %v34
  %v322 = vunpack.c.h.b16 %v34
  %v323 = vunpack.c.l.b16 %v35
  %v324 = vunpack.c.h.b16 %v35
  %v325 = vunpack.c.l.b16 %v36
  %v326 = vunpack.c.h.b16 %v36
  %v327 = vunpack.c.l.b16 %v37
  %v328 = vunpack.c.l.b16 %v38
  %v329 = vunpack.c.h.b16 %v38
  %v330 = vunpack.c.l.b16 %v39
  %v331 = vunpack.c.h.b16 %v39
  %v332 = vunpack.c.l.b16 %v40
  %v333 = vunpack.c.h.b16 %v40
  %v334 = vunpack.c.l.b16 %v41
  %v335 = vunpack.c.h.b16 %v41
  %v336 = vunpack.c.l.b16 %v42
  %v337 = vunpack.c.l.b16 %v43
  %v338 = vunpack.c.h.b16 %v43
  %v339 = vunpack.c.l.b16 %v44
  %v340 = vunpack.c.h.b16 %v44
  %v341 = vunpack.c.l.b16 %v45
  %v342 = vunpack.c.h.b16 %v45
  %v343 = vunpack.c.l.b16 %v46
  %v344 = vunpack.c.h.b16 %v46
  %v345 = vunpack.c.l.b16 %v47
  %v346 = vunpack.c.l.b16 %v48
  %v347 = vunpack.c.h.b16 %v48
  %v348 = vunpack.c.l.b16 %v49
  %v349 = vunpack.c.h.b16 %v49
  %v350 = vunpack.c.l.b16 %v50
  %v351 = vunpack.c.h.b16 %v50
  %v352 = vunpack.c.l.b16 %v51
  %v353 = vunpack.c.h.b16 %v51
  %v354 = vunpack.c.l.b16 %v52
  %v355 = vunpack.c.l.b16 %v53
  %v356 = vunpack.c.h.b16 %v53
  %v357 = vunpack.c.l.b16 %v54
  %v358 = vunpack.c.h.b16 %v54
  %v359 = vunpack.c.l.b16 %v55
  %v360 = vunpack.c.h.b16 %v55
  %v361 = vunpack.c.l.b16 %v56
  %v362 = vunpack.c.h.b16 %v56
  %v363 = vunpack.c.l.b16 %v57
  %v364 = vunpack.c.l.b16 %v58
  %v365 = vunpack.c.h.b16 %v58
  %v366 = vunpack.c.l.b16 %v59
  %v367 = vunpack.c.h.b16 %v59
  %v368 = vunpack.c.l.b16 %v60
  %v369 = vunpack.c.h.b16 %v60
  %v370 = vunpack.c.l.b16 %v61
  %v371 = vunpack.c.h.b16 %v61
  %v372 = vunpack.c.l.b16 %v62
  %v373 = vunpack.c.l.b16 %v63
  %v374 = vunpack.c.h.b16 %v63
  %v375 = vunpack.c.l.b16 %v64
  %v376 = vunpack.c.h.b16 %v64
  %v377 = vunpack.c.l.b16 %v65
  %v378 = vunpack.c.h.b16 %v65
  %v379 = vunpack.c.l.b16 %v66
  %v380 = vunpack.c.h.b16 %v66
  %v381 = vunpack.c.l.b16 %v67
  %v382 = vunpack.c.l.b16 %v68
  %v383 = vunpack.c.h.b16 %v68
  %v384 = vunpack.c.l.b16 %v69
  %v385 = vunpack.c.h.b16 %v69
  %v386 = vunpack.c.l.b16 %v70
  %v387 = vunpack.c.h.b16 %v70
  %v388 = vunpack.c.l.b16 %v71
  %v389 = vunpack.c.h.b16 %v71
  %v390 = vunpack.c.l.b16 %v72
  %v391 = vunpack.c.l.b16 %v73
  %v392 = vunpack.c.h.b16 %v73
  %v393 = vunpack.c.l.b16 %v74
  %v394 = vunpack.c.h.b16 %v74
  %v395 = vunpack.c.l.b16 %v75
  %v396 = vunpack.c.h.b16 %v75
  %v397 = vunpack.c.l.b16 %v76
  %v398 = vunpack.c.h.b16 %v76
  %v399 = vunpack.c.l.b16 %v77
  %v400 = vunpack.c.l.b16 %v78
  %v401 = vunpack.c.h.b16 %v78
  %v402 = vunpack.c.l.b16 %v79
  %v403 = vunpack.c.h.b16 %v79
  %v404 = vunpack.c.l.b16 %v80
  %v405 = vunpack.c.h.b16 %v80
  %v406 = vunpack.c.l.b16 %v81
  %v407 = vunpack.c.h.b16 %v81
  %v408 = vunpack.c.l.b16 %v82
  %v409 = vpack.c.b16 %v301, %v292
  %v410 = vpack.c.b16 %v302, %v293
  %v411 = vpack.c.b16 %v303, %v294
  %v412 = vpack.c.b16 %v304, %v295
  %v413 = vpack.c.b16 %v305, %v296
  %v414 = vpack.c.b16 %v306, %v297
  %v415 = vpack.c.b16 %v307, %v298
  %v416 = vpack.c.b16 %v308, %v299
  %v417 = vpack.c.b16 %v309, %v300
  %v418 = vpack.c.b16 %v319, %v310
  %v419 = vpack.c.b16 %v320, %v311
  %v420 = vpack.c.b16 %v321, %v312
  %v421 = vpack.c.b16 %v322, %v313
  %v422 = vpack.c.b16 %v323, %v314
  %v423 = vpack.c.b16 %v324, %v315
  %v424 = vpack.c.b16 %v325, %v316
  %v425 = vpack.c.b16 %v326, %v317
  %v426 = vpack.c.b16 %v327, %v318
  %v427 = vpack.c.b16 %v337, %v328
  %v428 = vpack.c.b16 %v338, %v329
  %v429 = vpack.c.b16 %v339, %v330
  %v430 = vpack.c.b16 %v340, %v331
  %v431 = vpack.c.b16 %v341, %v332
  %v432 = vpack.c.b16 %v342, %v333
  %v433 = vpack.c.b16 %v343, %v334
  %v434 = vpack.c.b16 %v344, %v335
  %v435 = vpack.c.b16 %v345, %v336
  %v436 = vpack.c.b16 %v355, %v346
  %v437 = vpack.c.b16 %v356, %v347
  %v438 = vpack.c.b16 %v357, %v348
  %v439 = vpack.c.b16 %v358, %v349
  %v440 = vpack.c.b16 %v359, %v350
  %v441 = vpack.c.b16 %v360, %v351
  %v442 = vpack.c.b16 %v361, %v352
  %v443 = vpack.c.b16 %v362, %v353
  %v444 = vpack.c.b16 %v363, %v354
  %v445 = vpack.c.b16 %v373, %v364
  %v446 = vpack.c.b16 %v374, %v365
  %v447 = vpack.c.b16 %v375, %v366
  %v448 = vpack.c.b16 %v376, %v367
  %v449 = vpack.c.b16 %v377, %v368
  %v450 = vpack.c.b16 %v378, %v369
  %v451 = vpack.c.b16 %v379, %v370
  %v452 = vpack.c.b16 %v380, %v371
  %v453 = vpack.c.b16 %v381, %v372
  %v454 = vpack.c.b16 %v391, %v382
  %v455 = vpack.c.b16 %v392, %v383
  %v456 = vpack.c.b16 %v393, %v384
  %v457 = vpack.c.b16 %v394, %v385
  %v458 = vpack.c.b16 %v395, %v386
  %v459 = vpack.c.b16 %v396, %v387
  %v460 = vpack.c.b16 %v397, %v388
  %v461 = vpack.c.b16 %v398, %v389
  %v462 = vpack.c.b16 %v399, %v390
  %v463 = vpack.c.b16 %v400, %v400
  %v464 = vpack.c.b16 %v401, %v401
  %v465 = vpack.c.b16 %v402, %v402
  %v466 = vpack.c.b16 %v403, %v403
  %v467 = vpack.c.b16 %v404, %v404
  %v468 = vpack.c.b16 %v405, %v405
  %v469 = vpack.c.b16 %v406, %v406
  %v470 = vpack.c.b16 %v407, %v407
  %v471 = vpack.c.b16 %v408, %v408
  %v679 = vunpack.c.l.b16 %v83
  %v680 = vunpack.c.h.b16 %v83
  %v681 = vunpack.c.l.b16 %v84
  %v682 = vunpack.c.h.b16 %v84
  %v683 = vunpack.c.l.b16 %v85
  %v684 = vunpack.c.h.b16 %v85
  %v685 = vunpack.c.l.b16 %v86
  %v686 = vunpack.c.h.b16 %v86
  %v687 = vunpack.c.l.b16 %v87
  %v688 = vunpack.c.h.b16 %v87
  %v689 = vunpack.c.l.b16 %v88
  %v690 = vunpack.c.h.b16 %v88
  %v691 = vunpack.c.l.b16 %v89
  %v692 = vunpack.c.h.b16 %v89
  %v693 = vunpack.c.l.b16 %v90
  %v694 = vunpack.c.h.b16 %v90
  %v695 = vunpack.c.l.b16 %v91
  %v696 = vunpack.c.h.b16 %v91
  %v697 = vunpack.c.l.b16 %v92
  %v698 = vunpack.c.h.b16 %v92
  %v699 = vunpack.c.l.b16 %v93
  %v700 = vunpack.c.h.b16 %v93
  %v701 = vunpack.c.l.b16 %v94
  %v702 = vunpack.c.h.b16 %v94
  %v703 = vunpack.c.l.b16 %v95
  %v704 = vunpack.c.h.b16 %v95
  %v705 = vunpack.c.l.b16 %v96
  %v706 = vunpack.c.h.b16 %v96
  %v707 = vunpack.c.l.b16 %v97
  %v708 = vunpack.c.h.b16 %v97
  %v709 = vunpack.c.l.b16 %v98
  %v710 = vunpack.c.h.b16 %v98
  %v711 = vunpack.c.l.b16 %v99
  %v712 = vunpack.c.h.b16 %v99
  %v713 = vunpack.c.l.b16 %v100
  %v714 = vunpack.c.h.b16 %v100
  %v715 = vunpack.c.l.b16 %v101
  %v716 = vunpack.c.h.b16 %v101
  %v717 = vunpack.c.l.b16 %v102
  %v718 = vunpack.c.h.b16 %v102
  %v719 = vunpack.c.l.b16 %v103
  %v720 = vunpack.c.h.b16 %v103
  %v721 = vunpack.c.l.b16 %v104
  %v722 = vunpack.c.h.b16 %v104
  %v723 = vunpack.c.l.b16 %v105
  %v724 = vunpack.c.h.b16 %v105
  %v725 = vunpack.c.l.b16 %v106
  %v726 = vunpack.c.h.b16 %v106
  %v727 = vunpack.c.l.b16 %v107
  %v728 = vunpack.c.h.b16 %v107
  %v729 = vunpack.c.l.b16 %v108
  %v730 = vunpack.c.h.b16 %v108
  %v731 = vunpack.c.l.b16 %v109
  %v732 = vunpack.c.h.b16 %v109
  %v733 = vunpack.c.l.b16 %v110
  %v734 = vunpack.c.h.b16 %v110
  %v735 = vunpack.c.l.b16 %v111
  %v736 = vunpack.c.h.b16 %v111
  %v737 = vunpack.c.l.b16 %v112
  %v738 = vunpack.c.h.b16 %v112
  %v739 = vunpack.c.l.b16 %v113
  %v740 = vunpack.c.h.b16 %v113
  %v741 = vunpack.c.l.b16 %v114
  %v742 = vunpack.c.h.b16 %v114
  %v743 = vunpack.c.l.b16 %v115
  %v744 = vunpack.c.h.b16 %v115
  %v745 = vunpack.c.l.b16 %v116
  %v746 = vunpack.c.h.b16 %v116
  %v747 = vunpack.c.l.b16 %v117
  %v748 = vunpack.c.h.b16 %v117
  %v749 = vunpack.c.l.b16 %v118
  %v750 = vunpack.c.h.b16 %v118
  %v751 = vunpack.c.l.b16 %v119
  %v752 = vunpack.c.h.b16 %v119
  %v753 = vunpack.c.l.b16 %v120
  %v754 = vunpack.c.h.b16 %v120
  %v755 = vunpack.c.l.b16 %v121
  %v756 = vunpack.c.h.b16 %v121
  %v757 = vunpack.c.l.b16 %v122
  %v758 = vunpack.c.h.b16 %v122
  %v759 = vunpack.c.l.b16 %v123
  %v760 = vunpack.c.h.b16 %v123
  %v761 = vunpack.c.l.b16 %v124
  %v762 = vunpack.c.h.b16 %v124
  %v763 = vunpack.c.l.b16 %v125
  %v764 = vunpack.c.h.b16 %v125
  %v765 = vunpack.c.l.b16 %v126
  %v766 = vunpack.c.h.b16 %v126
  %v767 = vunpack.c.l.b16 %v127
  %v768 = vunpack.c.h.b16 %v127
  %v769 = vunpack.c.l.b16 %v128
  %v770 = vunpack.c.h.b16 %v128
  %v771 = vunpack.c.l.b16 %v129
  %v772 = vunpack.c.h.b16 %v129
  %v773 = vunpack.c.l.b16 %v130
  %v774 = vunpack.c.h.b16 %v130
  %v775 = vunpack.c.l.b16 %v131
  %v776 = vunpack.c.h.b16 %v131
  %v777 = vunpack.c.l.b16 %v132
  %v778 = vunpack.c.h.b16 %v132
  %v779 = vunpack.c.l.b16 %v133
  %v780 = vunpack.c.h.b16 %v133
  %v781 = vunpack.c.l.b16 %v134
  %v782 = vunpack.c.h.b16 %v134
  %v783 = vunpack.c.l.b16 %v135
  %v784 = vunpack.c.h.b16 %v135
  %v785 = vunpack.c.l.b16 %v136
  %v786 = vunpack.c.h.b16 %v136
  %v787 = vunpack.c.l.b16 %v137
  %v788 = vunpack.c.h.b16 %v137
  %v789 = vunpack.c.l.b16 %v138
  %v790 = vunpack.c.h.b16 %v138
  %v791 = vunpack.c.l.b16 %v139
  %v792 = vunpack.c.h.b16 %v139
  %v793 = vunpack.c.l.b16 %v140
  %v794 = vunpack.c.h.b16 %v140
  %v795 = vunpack.c.l.b16 %v141
  %v796 = vunpack.c.h.b16 %v141
  %v797 = vunpack.c.l.b16 %v142
  %v798 = vunpack.c.h.b16 %v142
  %v799 = vunpack.c.l.b16 %v143
  %v800 = vunpack.c.h.b16 %v143
  %v801 = vunpack.c.l.b16 %v144
  %v802 = vunpack.c.h.b16 %v144
  %v803 = vunpack.c.l.b16 %v145
  %v804 = vunpack.c.h.b16 %v145
  %v805 = vunpack.c.l.b16 %v146
  %v806 = vunpack.c.h.b16 %v146
  %v807 = vunpack.c.l.b16 %v147
  %v808 = vunpack.c.h.b16 %v147
  %v809 = vunpack.c.l.b16 %v148
  %v810 = vunpack.c.h.b16 %v148
  %v811 = vunpack.c.l.b16 %v149
  %v812 = vunpack.c.h.b16 %v149
  %v813 = vunpack.c.l.b16 %v150
  %v814 = vunpack.c.h.b16 %v150
  %v815 = vunpack.c.l.b16 %v151
  %v816 = vunpack.c.h.b16 %v151
  %v817 = vunpack.c.l.b16 %v152
  %v818 = vunpack.c.h.b16 %v152
  %v819 = vunpack.c.l.b16 %v153
  %v820 = vunpack.c.h.b16 %v153
  %v821 = vunpack.c.l.b16 %v154
  %v822 = vunpack.c.h.b16 %v154
  %v823 = vunpack.c.l.b16 %v155
  %v824 = vunpack.c.h.b16 %v155
  %v825 = vunpack.c.l.b16 %v156
  %v826 = vunpack.c.h.b16 %v156
  %v827 = vunpack.c.l.b16 %v157
  %v828 = vunpack.c.h.b16 %v157
  %v829 = vunpack.c.l.b16 %v158
  %v830 = vunpack.c.h.b16 %v158
  %v831 = vunpack.c.l.b16 %v159
  %v832 = vunpack.c.h.b16 %v159
  %v833 = vunpack.c.l.b16 %v160
  %v834 = vunpack.c.h.b16 %v160
  %v835 = vunpack.c.l.b16 %v161
  %v836 = vunpack.c.h.b16 %v161
  %v837 = vunpack.c.l.b16 %v162
  %v838 = vunpack.c.h.b16 %v162
  %v839 = vunpack.c.l.b16 %v163
  %v840 = vunpack.c.h.b16 %v163
  %v841 = vunpack.c.l.b16 %v164
  %v842 = vunpack.c.h.b16 %v164
  %v843 = vunpack.c.l.b16 %v165
  %v844 = vunpack.c.h.b16 %v165
  %v845 = vunpack.c.l.b16 %v166
  %v846 = vunpack.c.h.b16 %v166
  %v847 = vunpack.c.l.b16 %v167
  %v848 = vunpack.c.h.b16 %v167
  %v849 = vunpack.c.l.b16 %v168
  %v850 = vunpack.c.h.b16 %v168
  %v851 = vunpack.c.l.b16 %v169
  %v852 = vunpack.c.h.b16 %v169
  %v853 = vunpack.c.l.b16 %v170
  %v854 = vunpack.c.h.b16 %v170
  %v855 = vunpack.c.l.b16 %v171
  %v856 = vunpack.c.h.b16 %v171
  %v857 = vunpack.c.l.b16 %v172
  %v858 = vunpack.c.h.b16 %v172
  %v859 = vunpack.c.l.b16 %v173
  %v860 = vunpack.c.h.b16 %v173
  %v861 = vunpack.c.l.b16 %v174
  %v862 = vunpack.c.h.b16 %v174
  %v863 = vunpack.c.l.b16 %v175
  %v864 = vunpack.c.h.b16 %v175
  %v865 = vunpack.c.l.b16 %v176
  %v866 = vunpack.c.h.b16 %v176
  %v867 = vunpack.c.l.b16 %v177
  %v868 = vunpack.c.h.b16 %v177
  %v869 = vunpack.c.l.b16 %v178
  %v870 = vunpack.c.h.b16 %v178
  %v871 = vunpack.c.l.b16 %v179
  %v872 = vunpack.c.h.b16 %v179
  %v873 = vunpack.c.l.b16 %v180
  %v874 = vunpack.c.h.b16 %v180
  %v875 = vunpack.c.l.b16 %v181
  %v876 = vunpack.c.h.b16 %v181
  %v877 = vunpack.c.l.b16 %v182
  %v878 = vunpack.c.h.b16 %v182
  %v879 = vunpack.c.l.b16 %v183
  %v880 = vunpack.c.h.b16 %v183
  %v881 = vunpack.c.l.b16 %v184
  %v882 = vunpack.c.h.b16 %v184
  %v883 = vunpack.c.l.b16 %v185
  %v884 = vunpack.c.h.b16 %v185
  %v885 = vunpack.c.l.b16 %v186
  %v886 = vunpack.c.h.b16 %v186
  %v887 = vunpack.c.l.b16 %v187
  %v888 = vunpack.c.h.b16 %v187
  %v889 = vunpack.c.l.b16 %v188
  %v890 = vunpack.c.h.b16 %v188
  %v891 = vunpack.c.l.b16 %v189
  %v892 = vunpack.c.h.b16 %v189
  %v893 = vunpack.c.l.b16 %v190
  %v894 = vunpack.c.h.b16 %v190
  %v895 = vunpack.c.l.b16 %v191
  %v896 = vunpack.c.h.b16 %v191
  %v897 = vunpack.c.l.b16 %v192
  %v898 = vunpack.c.h.b16 %v192
  %v899 = vunpack.c.l.b16 %v193
  %v900 = vunpack.c.h.b16 %v193
  %v901 = vunpack.c.l.b16 %v194
  %v902 = vunpack.c.h.b16 %v194
  %v903 = vunpack.c.l.b16 %v195
  %v904 = vunpack.c.h.b16 %v195
  %v905 = vunpack.c.l.b16 %v196
  %v906 = vunpack.c.h.b16 %v196
  %v907 = vunpack.c.l.b16 %v197
  %v908 = vunpack.c.h.b16 %v197
  %v909 = vunpack.c.l.b16 %v198
  %v910 = vunpack.c.h.b16 %v198
  %v911 = vunpack.c.l.b16 %v199
  %v912 = vunpack.c.h.b16 %v199
  %v913 = vunpack.c.l.b16 %v200
  %v914 = vunpack.c.h.b16 %v200
  %v915 = vunpack.c.l.b16 %v201
  %v916 = vunpack.c.h.b16 %v201
  %v917 = vunpack.c.l.b16 %v202
  %v918 = vunpack.c.h.b16 %v202
  %v919 = vunpack.c.l.b16 %v203
  %v920 = vunpack.c.h.b16 %v203
  %v921 = vunpack.c.l.b16 %v204
  %v922 = vunpack.c.h.b16 %v204
  %v923 = vunpack.c.l.b16 %v205
  %v924 = vunpack.c.h.b16 %v205
  %v925 = vunpack.c.l.b16 %v206
  %v926 = vunpack.c.h.b16 %v206
  %v927 = vunpack.c.l.b16 %v207
  %v928 = vunpack.c.h.b16 %v207
  %v929 = vunpack.c.l.b16 %v208
  %v930 = vunpack.c.h.b16 %v208
  %v931 = vunpack.c.l.b16 %v209
  %v932 = vunpack.c.h.b16 %v209
  %v933 = vunpack.c.l.b16 %v210
  %v934 = vunpack.c.h.b16 %v210
  %v935 = vunpack.c.l.b16 %v211
  %v936 = vunpack.c.h.b16 %v211
  %v937 = vunpack.c.l.b16 %v212
  %v938 = vunpack.c.h.b16 %v212
  %v939 = vunpack.c.l.b16 %v213
  %v940 = vunpack.c.h.b16 %v213
  %v941 = vunpack.c.l.b16 %v214
  %v942 = vunpack.c.h.b16 %v214
  %v943 = vunpack.c.l.b16 %v215
  %v944 = vunpack.c.h.b16 %v215
  %v945 = vunpack.c.l.b16 %v216
  %v946 = vunpack.c.h.b16 %v216
  %v947 = vunpack.c.l.b16 %v217
  %v948 = vunpack.c.h.b16 %v217
  %v949 = vunpack.c.l.b16 %v218
  %v950 = vunpack.c.h.b16 %v218
  %v951 = vunpack.c.l.b16 %v219
  %v952 = vunpack.c.h.b16 %v219
  %v953 = vunpack.c.l.b16 %v220
  %v954 = vunpack.c.h.b16 %v220
  %v955 = vunpack.c.l.b16 %v221
  %v956 = vunpack.c.h.b16 %v221
  %v957 = vunpack.c.l.b16 %v222
  %v958 = vunpack.c.h.b16 %v222
  %v959 = vunpack.c.l.b16 %v223
  %v960 = vunpack.c.h.b16 %v223
  %v961 = vunpack.c.l.b16 %v224
  %v962 = vunpack.c.h.b16 %v224
  %v963 = vunpack.c.l.b16 %v225
  %v964 = vunpack.c.h.b16 %v225
  %v965 = vunpack.c.l.b16 %v226
  %v966 = vunpack.c.h.b16 %v226
  %v967 = vpack.c.b16 %v681, %v679
  %v968 = vpack.c.b16 %v682, %v680
  %v969 = vpack.c.b16 %v685, %v683
  %v970 = vpack.c.b16 %v686, %v684
  %v971 = vpack.c.b16 %v689, %v687
  %v972 = vpack.c.b16 %v690, %v688
  %v973 = vpack.c.b16 %v693, %v691
  %v974 = vpack.c.b16 %v694, %v692
  %v975 = vpack.c.b16 %v697, %v695
  %v976 = vpack.c.b16 %v698, %v696
  %v977 = vpack.c.b16 %v701, %v699
  %v978 = vpack.c.b16 %v702, %v700
  %v979 = vpack.c.b16 %v705, %v703
  %v980 = vpack.c.b16 %v706, %v704
  %v981 = vpack.c.b16 %v709, %v707
  %v982 = vpack.c.b16 %v710, %v708
  %v983 = vpack.c.b16 %v713, %v711
  %v984 = vpack.c.b16 %v714, %v712
  %v985 = vpack.c.b16 %v717, %v715
  %v986 = vpack.c.b16 %v718, %v716
  %v987 = vpack.c.b16 %v721, %v719
  %v988 = vpack.c.b16 %v722, %v720
  %v989 = vpack.c.b16 %v725, %v723
  %v990 = vpack.c.b16 %v726, %v724
  %v991 = vpack.c.b16 %v729, %v727
  %v992 = vpack.c.b16 %v730, %v728
  %v993 = vpack.c.b16 %v733, %v731
  %v994 = vpack.c.b16 %v734, %v732
  %v995 = vpack.c.b16 %v737, %v735
  %v996 = vpack.c.b16 %v738, %v736
  %v997 = vpack.c.b16 %v741, %v739
  %v998 = vpack.c.b16 %v742, %v740
  %v999 = vpack.c.b16 %v745, %v743
  %v1000 = vpack.c.b16 %v746, %v744
  %v1001 = vpack.c.b16 %v749, %v747
  %v1002 = vpack.c.b16 %v750, %v748
  %v1003 = vpack.c.b16 %v753, %v751
  %v1004 = vpack.c.b16 %v754, %v752
  %v1005 = vpack.c.b16 %v757, %v755
  %v1006 = vpack.c.b16 %v758, %v756
  %v1007 = vpack.c.b16 %v761, %v759
  %v1008 = vpack.c.b16 %v762, %v760
  %v1009 = vpack.c.b16 %v765, %v763
  %v1010 = vpack.c.b16 %v766, %v764
  %v1011 = vpack.c.b16 %v769, %v767
  %v1012 = vpack.c.b16 %v770, %v768
  %v1013 = vpack.c.b16 %v773, %v771
  %v1014 = vpack.c.b16 %v774, %v772
  %v1015 = vpack.c.b16 %v777, %v775
  %v1016 = vpack.c.b16 %v778, %v776
  %v1017 = vpack.c.b16 %v781, %v779
  %v1018 = vpack.c.b16 %v782, %v780
  %v1019 = vpack.c.b16 %v785, %v783
  %v1020 = vpack.c.b16 %v786, %v784
  %v1021 = vpack.c.b16 %v789, %v787
  %v1022 = vpack.c.b16 %v790, %v788
  %v1023 = vpack.c.b16 %v793, %v791
  %v1024 = vpack.c.b16 %v794, %v792
  %v1025 = vpack.c.b16 %v797, %v795
  %v1026 = vpack.c.b16 %v798, %v796
  %v1027 = vpack.c.b16 %v801, %v799
  %v1028 = vpack.c.b16 %v802, %v800
  %v1029 = vpack.c.b16 %v805, %v803
  %v1030 = vpack.c.b16 %v806, %v804
  %v1031 = vpack.c.b16 %v809, %v807
  %v1032 = vpack.c.b16 %v810, %v808
  %v1033 = vpack.c.b16 %v813, %v811
  %v1034 = vpack.c.b16 %v814, %v812
  %v1035 = vpack.c.b16 %v817, %v815
  %v1036 = vpack.c.b16 %v818, %v816
  %v1037 = vpack.c.b16 %v821, %v819
  %v1038 = vpack.c.b16 %v822, %v820
  %v1039 = vpack.c.b16 %v825, %v823
  %v1040 = vpack.c.b16 %v826, %v824
  %v1041 = vpack.c.b16 %v829, %v827
  %v1042 = vpack.c.b16 %v830, %v828
  %v1043 = vpack.c.b16 %v833, %v831
  %v1044 = vpack.c.b16 %v834, %v832
  %v1045 = vpack.c.b16 %v837, %v835
  %v1046 = vpack.c.b16 %v838, %v836
  %v1047 = vpack.c.b16 %v841, %v839
  %v1048 = vpack.c.b16 %v842, %v840
  %v1049 = vpack.c.b16 %v845, %v843
  %v1050 = vpack.c.b16 %v846, %v844
  %v1051 = vpack.c.b16 %v849, %v847
  %v1052 = vpack.c.b16 %v850, %v848
  %v1053 = vpack.c.b16 %v853, %v851
  %v1054 = vpack.c.b16 %v854, %v852
  %v1055 = vpack.c.b16 %v857, %v855
  %v1056 = vpack.c.b16 %v858, %v856
  %v1057 = vpack.c.b16 %v861, %v859
  %v1058 = vpack.c.b16 %v862, %v860
  %v1059 = vpack.c.b16 %v865, %v863
  %v1060 = vpack.c.b16 %v866, %v864
  %v1061 = vpack.c.b16 %v869, %v867
  %v1062 = vpack.c.b16 %v870, %v868
  %v1063 = vpack.c.b16 %v873, %v871
  %v1064 = vpack.c.b16 %v874, %v872
  %v1065 = vpack.c.b16 %v877, %v875
  %v1066 = vpack.c.b16 %v878, %v876
  %v1067 = vpack.c.b16 %v881, %v879
  %v1068 = vpack.c.b16 %v882, %v880
  %v1069 = vpack.c.b16 %v885, %v883
  %v1070 = vpack.c.b16 %v886, %v884
  %v1071 = vpack.c.b16 %v889, %v887
  %v1072 = vpack.c.b16 %v890, %v888
  %v1073 = vpack.c.b16 %v893, %v891
  %v1074 = vpack.c.b16 %v894, %v892
  %v1075 = vpack.c.b16 %v897, %v895
  %v1076 = vpack.c.b16 %v898, %v896
  %v1077 = vpack.c.b16 %v901, %v899
  %v1078 = vpack.c.b16 %v902, %v900
  %v1079 = vpack.c.b16 %v905, %v903
  %v1080 = vpack.c.b16 %v906, %v904
  %v1081 = vpack.c.b16 %v909, %v907
  %v1082 = vpack.c.b16 %v910, %v908
  %v1083 = vpack.c.b16 %v913, %v911
  %v1084 = vpack.c.b16 %v914, %v912
  %v1085 = vpack.c.b16 %v917, %v915
  %v1086 = vpack.c.b16 %v918, %v916
  %v1087 = vpack.c.b16 %v921, %v919
  %v1088 = vpack.c.b16 %v922, %v920
  %v1089 = vpack.c.b16 %v925, %v923
  %v1090 = vpack.c.b16 %v926, %v924
  %v1091 = vpack.c.b16 %v929, %v927
  %v1092 = vpack.c.b16 %v930, %v928
  %v1093 = vpack.c.b16 %v933, %v931
  %v1094 = vpack.c.b16 %v934, %v932
  %v1095 = vpack.c.b16 %v937, %v935
  %v1096 = vpack.c.b16 %v938, %v936
  %v1097 = vpack.c.b16 %v941, %v939
  %v1098 = vpack.c.b16 %v942, %v940
  %v1099 = vpack.c.b16 %v945, %v943
  %v1100 = vpack.c.b16 %v946, %v944
  %v1101 = vpack.c.b16 %v949, %v947
  %v1102 = vpack.c.b16 %v950, %v948
  %v1103 = vpack.c.b16 %v953, %v951
  %v1104 = vpack.c.b16 %v954, %v952
  %v1105 = vpack.c.b16 %v957, %v955
  %v1106 = vpack.c.b16 %v958, %v956
  %v1107 = vpack.c.b16 %v961, %v959
  %v1108 = vpack.c.b16 %v962, %v960
  %v1109 = vpack.c.b16 %v965, %v963
  %v1110 = vpack.c.b16 %v966, %v964
  %1255 = vmatprep.subr.bf16.mxu0 %v968
  %1256 = vmatpush1.bf16.msra.mxu0 %v967
  %1257 = vmatprep.subr.bf16.mxu0 %v970
  %1258 = vmatpush1.bf16.msra.mxu0 %v969
  %1259 = vmatprep.subr.bf16.mxu0 %v972
  %1260 = vmatpush1.bf16.msra.mxu0 %v971
  %1261 = vmatprep.subr.bf16.mxu0 %v974
  %1262 = vmatpush1.bf16.msra.mxu0 %v973
  %1263 = vmatprep.subr.bf16.mxu0 %v976
  %1264 = vmatpush1.bf16.msra.mxu0 %v975
  %1265 = vmatprep.subr.bf16.mxu0 %v978
  %1266 = vmatpush1.bf16.msra.mxu0 %v977
  %1267 = vmatprep.subr.bf16.mxu0 %v980
  %1268 = vmatpush1.bf16.msra.mxu0 %v979
  %1269 = vmatprep.subr.bf16.mxu0 %v982
  %1270 = vmatpush1.bf16.msra.mxu0 %v981
  %1271 = vmatprep.subr.bf16.mxu0 %v984
  %1272 = vmatpush1.bf16.msra.mxu0 %v983
  %1273 = vmatprep.subr.bf16.mxu0 %v986
  %1274 = vmatpush1.bf16.msra.mxu0 %v985
  %1275 = vmatprep.subr.bf16.mxu0 %v988
  %1276 = vmatpush1.bf16.msra.mxu0 %v987
  %1277 = vmatprep.subr.bf16.mxu0 %v990
  %1278 = vmatpush1.bf16.msra.mxu0 %v989
  %1279 = vmatprep.subr.bf16.mxu0 %v992
  %1280 = vmatpush1.bf16.msra.mxu0 %v991
  %1281 = vmatprep.subr.bf16.mxu0 %v994
  %1282 = vmatpush1.bf16.msra.mxu0 %v993
  %1283 = vmatprep.subr.bf16.mxu0 %v996
  %1284 = vmatpush1.bf16.msra.mxu0 %v995
  %1285 = vmatprep.subr.bf16.mxu0 %v998
  %1286 = vmatpush1.bf16.msra.mxu0 %v997
  %1287 = vmatprep.mubr.bf16.mxu0 %v410
  %1288 = vmatmul.mubr.bf16.gmra.mrb[0].mxu0 %v409
  %v1289 = vpop.f32.mrb[0].mxu0
  %v1290 = vadd.f32 0.0, %v1289
  %v1291 = vpop.f32.mrb[0].mxu0
  %v1292 = vadd.f32 0.0, %v1291
  %v1293 = vpop.f32.mrb[0].mxu0
  %v1294 = vadd.f32 0.0, %v1293
  %v1295 = vpop.f32.mrb[0].mxu0
  %v1296 = vadd.f32 0.0, %v1295
  %1297 = vmatprep.mubr.bf16.mxu0 %v419
  %1298 = vmatmul.mubr.bf16.gmra.mrb[0].mxu0 %v418
  %v1299 = vpop.f32.mrb[0].mxu0
  %v1300 = vadd.f32 0.0, %v1299
  %v1301 = vpop.f32.mrb[0].mxu0
  %v1302 = vadd.f32 0.0, %v1301
  %v1303 = vpop.f32.mrb[0].mxu0
  %v1304 = vadd.f32 0.0, %v1303
  %v1305 = vpop.f32.mrb[0].mxu0
  %v1306 = vadd.f32 0.0, %v1305
  %1307 = vmatprep.mubr.bf16.mxu0 %v428
  %1308 = vmatmul.mubr.bf16.gmra.mrb[0].mxu0 %v427
  %v1309 = vpop.f32.mrb[0].mxu0
  %v1310 = vadd.f32 0.0, %v1309
  %v1311 = vpop.f32.mrb[0].mxu0
  %v1312 = vadd.f32 0.0, %v1311
  %v1313 = vpop.f32.mrb[0].mxu0
  %v1314 = vadd.f32 0.0, %v1313
  %v1315 = vpop.f32.mrb[0].mxu0
  %v1316 = vadd.f32 0.0, %v1315
  %1317 = vmatprep.mubr.bf16.mxu0 %v437
  %1318 = vmatmul.mubr.bf16.gmra.mrb[0].mxu0 %v436
  %v1319 = vpop.f32.mrb[0].mxu0
  %v1320 = vadd.f32 0.0, %v1319
  %v1321 = vpop.f32.mrb[0].mxu0
  %v1322 = vadd.f32 0.0, %v1321
  %v1323 = vpop.f32.mrb[0].mxu0
  %v1324 = vadd.f32 0.0, %v1323
  %v1325 = vpop.f32.mrb[0].mxu0
  %v1326 = vadd.f32 0.0, %v1325
  %1327 = vmatprep.mubr.bf16.mxu0 %v446
  %1328 = vmatmul.mubr.bf16.gmra.mrb[0].mxu0 %v445
  %v1329 = vpop.f32.mrb[0].mxu0
  %v1330 = vadd.f32 0.0, %v1329
  %v1331 = vpop.f32.mrb[0].mxu0
  %v1332 = vadd.f32 0.0, %v1331
  %v1333 = vpop.f32.mrb[0].mxu0
  %v1334 = vadd.f32 0.0, %v1333
  %v1335 = vpop.f32.mrb[0].mxu0
  %v1336 = vadd.f32 0.0, %v1335
  %1337 = vmatprep.mubr.bf16.mxu0 %v455
  %1338 = vmatmul.mubr.bf16.gmra.mrb[0].mxu0 %v454
  %v1339 = vpop.f32.mrb[0].mxu0
  %v1340 = vadd.f32 0.0, %v1339
  %v1341 = vpop.f32.mrb[0].mxu0
  %v1342 = vadd.f32 0.0, %v1341
  %v1343 = vpop.f32.mrb[0].mxu0
  %v1344 = vadd.f32 0.0, %v1343
  %v1345 = vpop.f32.mrb[0].mxu0
  %v1346 = vadd.f32 0.0, %v1345
  %1347 = vmatprep.mubr.bf16.mxu0 %v464
  %1348 = vmatmul.mubr.bf16.gmra.mrb[0].mxu0 %v463
  %v1349 = vpop.f32.mrb[0].mxu0
  %v1350 = vadd.f32 0.0, %v1349
  %v1351 = vpop.f32.mrb[0].mxu0
  %v1352 = vadd.f32 0.0, %v1351
  %v1353 = vpop.f32.mrb[0].mxu0
  %v1354 = vpop.f32.mrb[0].mxu0
  %1355 = vdwg.mxu0
  %1356 = vmatprep.subr.bf16.mxu0 %v1000
  %1357 = vmatpush1.bf16.msra.mxu0 %v999
  %1358 = vmatprep.subr.bf16.mxu0 %v1002
  %1359 = vmatpush1.bf16.msra.mxu0 %v1001
  %1360 = vmatprep.subr.bf16.mxu0 %v1004
  %1361 = vmatpush1.bf16.msra.mxu0 %v1003
  %1362 = vmatprep.subr.bf16.mxu0 %v1006
  %1363 = vmatpush1.bf16.msra.mxu0 %v1005
  %1364 = vmatprep.subr.bf16.mxu0 %v1008
  %1365 = vmatpush1.bf16.msra.mxu0 %v1007
  %1366 = vmatprep.subr.bf16.mxu0 %v1010
  %1367 = vmatpush1.bf16.msra.mxu0 %v1009
  %1368 = vmatprep.subr.bf16.mxu0 %v1012
  %1369 = vmatpush1.bf16.msra.mxu0 %v1011
  %1370 = vmatprep.subr.bf16.mxu0 %v1014
  %1371 = vmatpush1.bf16.msra.mxu0 %v1013
  %1372 = vmatprep.subr.bf16.mxu0 %v1016
  %1373 = vmatpush1.bf16.msra.mxu0 %v1015
  %1374 = vmatprep.subr.bf16.mxu0 %v1018
  %1375 = vmatpush1.bf16.msra.mxu0 %v1017
  %1376 = vmatprep.subr.bf16.mxu0 %v1020
  %1377 = vmatpush1.bf16.msra.mxu0 %v1019
  %1378 = vmatprep.subr.bf16.mxu0 %v1022
  %1379 = vmatpush1.bf16.msra.mxu0 %v1021
  %1380 = vmatprep.subr.bf16.mxu0 %v1024
  %1381 = vmatpush1.bf16.msra.mxu0 %v1023
  %1382 = vmatprep.subr.bf16.mxu0 %v1026
  %1383 = vmatpush1.bf16.msra.mxu0 %v1025
  %1384 = vmatprep.subr.bf16.mxu0 %v1028
  %1385 = vmatpush1.bf16.msra.mxu0 %v1027
  %1386 = vmatprep.subr.bf16.mxu0 %v1030
  %1387 = vmatpush1.bf16.msra.mxu0 %v1029
  %1388 = vmatprep.mubr.bf16.mxu0 %v412
  %1389 = vmatmul.mubr.bf16.gmra.mrb[0].mxu0 %v411
  %v1390 = vpop.f32.mrb[0].mxu0
  %v1391 = vadd.f32 %v1290, %v1390
  %v1392 = vpop.f32.mrb[0].mxu0
  %v1393 = vadd.f32 %v1292, %v1392
  %v1394 = vpop.f32.mrb[0].mxu0
  %v1395 = vadd.f32 %v1294, %v1394
  %v1396 = vpop.f32.mrb[0].mxu0
  %v1397 = vadd.f32 %v1296, %v1396
  %1398 = vmatprep.mubr.bf16.mxu0 %v421
  %1399 = vmatmul.mubr.bf16.gmra.mrb[0].mxu0 %v420
  %v1400 = vpop.f32.mrb[0].mxu0
  %v1401 = vadd.f32 %v1300, %v1400
  %v1402 = vpop.f32.mrb[0].mxu0
  %v1403 = vadd.f32 %v1302, %v1402
  %v1404 = vpop.f32.mrb[0].mxu0
  %v1405 = vadd.f32 %v1304, %v1404
  %v1406 = vpop.f32.mrb[0].mxu0
  %v1407 = vadd.f32 %v1306, %v1406
  %1408 = vmatprep.mubr.bf16.mxu0 %v430
  %1409 = vmatmul.mubr.bf16.gmra.mrb[0].mxu0 %v429
  %v1410 = vpop.f32.mrb[0].mxu0
  %v1411 = vadd.f32 %v1310, %v1410
  %v1412 = vpop.f32.mrb[0].mxu0
  %v1413 = vadd.f32 %v1312, %v1412
  %v1414 = vpop.f32.mrb[0].mxu0
  %v1415 = vadd.f32 %v1314, %v1414
  %v1416 = vpop.f32.mrb[0].mxu0
  %v1417 = vadd.f32 %v1316, %v1416
  %1418 = vmatprep.mubr.bf16.mxu0 %v439
  %1419 = vmatmul.mubr.bf16.gmra.mrb[0].mxu0 %v438
  %v1420 = vpop.f32.mrb[0].mxu0
  %v1421 = vadd.f32 %v1320, %v1420
  %v1422 = vpop.f32.mrb[0].mxu0
  %v1423 = vadd.f32 %v1322, %v1422
  %v1424 = vpop.f32.mrb[0].mxu0
  %v1425 = vadd.f32 %v1324, %v1424
  %v1426 = vpop.f32.mrb[0].mxu0
  %v1427 = vadd.f32 %v1326, %v1426
  %1428 = vmatprep.mubr.bf16.mxu0 %v448
  %1429 = vmatmul.mubr.bf16.gmra.mrb[0].mxu0 %v447
  %v1430 = vpop.f32.mrb[0].mxu0
  %v1431 = vadd.f32 %v1330, %v1430
  %v1432 = vpop.f32.mrb[0].mxu0
  %v1433 = vadd.f32 %v1332, %v1432
  %v1434 = vpop.f32.mrb[0].mxu0
  %v1435 = vadd.f32 %v1334, %v1434
  %v1436 = vpop.f32.mrb[0].mxu0
  %v1437 = vadd.f32 %v1336, %v1436
  %1438 = vmatprep.mubr.bf16.mxu0 %v457
  %1439 = vmatmul.mubr.bf16.gmra.mrb[0].mxu0 %v456
  %v1440 = vpop.f32.mrb[0].mxu0
  %v1441 = vadd.f32 %v1340, %v1440
  %v1442 = vpop.f32.mrb[0].mxu0
  %v1443 = vadd.f32 %v1342, %v1442
  %v1444 = vpop.f32.mrb[0].mxu0
  %v1445 = vadd.f32 %v1344, %v1444
  %v1446 = vpop.f32.mrb[0].mxu0
  %v1447 = vadd.f32 %v1346, %v1446
  %1448 = vmatprep.mubr.bf16.mxu0 %v466
  %1449 = vmatmul.mubr.bf16.gmra.mrb[0].mxu0 %v465
  %v1450 = vpop.f32.mrb[0].mxu0
  %v1451 = vadd.f32 %v1350, %v1450
  %v1452 = vpop.f32.mrb[0].mxu0
  %v1453 = vadd.f32 %v1352, %v1452
  %v1454 = vpop.f32.mrb[0].mxu0
  %v1455 = vpop.f32.mrb[0].mxu0
  %1456 = vdwg.mxu0
  %1457 = vmatprep.subr.bf16.mxu0 %v1032
  %1458 = vmatpush1.bf16.msra.mxu0 %v1031
  %1459 = vmatprep.subr.bf16.mxu0 %v1034
  %1460 = vmatpush1.bf16.msra.mxu0 %v1033
  %1461 = vmatprep.subr.bf16.mxu0 %v1036
  %1462 = vmatpush1.bf16.msra.mxu0 %v1035
  %1463 = vmatprep.subr.bf16.mxu0 %v1038
  %1464 = vmatpush1.bf16.msra.mxu0 %v1037
  %1465 = vmatprep.subr.bf16.mxu0 %v1040
  %1466 = vmatpush1.bf16.msra.mxu0 %v1039
  %1467 = vmatprep.subr.bf16.mxu0 %v1042
  %1468 = vmatpush1.bf16.msra.mxu0 %v1041
  %1469 = vmatprep.subr.bf16.mxu0 %v1044
  %1470 = vmatpush1.bf16.msra.mxu0 %v1043
  %1471 = vmatprep.subr.bf16.mxu0 %v1046
  %1472 = vmatpush1.bf16.msra.mxu0 %v1045
  %1473 = vmatprep.subr.bf16.mxu0 %v1048
  %1474 = vmatpush1.bf16.msra.mxu0 %v1047
  %1475 = vmatprep.subr.bf16.mxu0 %v1050
  %1476 = vmatpush1.bf16.msra.mxu0 %v1049
  %1477 = vmatprep.subr.bf16.mxu0 %v1052
  %1478 = vmatpush1.bf16.msra.mxu0 %v1051
  %1479 = vmatprep.subr.bf16.mxu0 %v1054
  %1480 = vmatpush1.bf16.msra.mxu0 %v1053
  %1481 = vmatprep.subr.bf16.mxu0 %v1056
  %1482 = vmatpush1.bf16.msra.mxu0 %v1055
  %1483 = vmatprep.subr.bf16.mxu0 %v1058
  %1484 = vmatpush1.bf16.msra.mxu0 %v1057
  %1485 = vmatprep.subr.bf16.mxu0 %v1060
  %1486 = vmatpush1.bf16.msra.mxu0 %v1059
  %1487 = vmatprep.subr.bf16.mxu0 %v1062
  %1488 = vmatpush1.bf16.msra.mxu0 %v1061
  %1489 = vmatprep.mubr.bf16.mxu0 %v414
  %1490 = vmatmul.mubr.bf16.gmra.mrb[0].mxu0 %v413
  %v1491 = vpop.f32.mrb[0].mxu0
  %v1492 = vadd.f32 %v1391, %v1491
  %v1493 = vpop.f32.mrb[0].mxu0
  %v1494 = vadd.f32 %v1393, %v1493
  %v1495 = vpop.f32.mrb[0].mxu0
  %v1496 = vadd.f32 %v1395, %v1495
  %v1497 = vpop.f32.mrb[0].mxu0
  %v1498 = vadd.f32 %v1397, %v1497
  %1499 = vmatprep.mubr.bf16.mxu0 %v423
  %1500 = vmatmul.mubr.bf16.gmra.mrb[0].mxu0 %v422
  %v1501 = vpop.f32.mrb[0].mxu0
  %v1502 = vadd.f32 %v1401, %v1501
  %v1503 = vpop.f32.mrb[0].mxu0
  %v1504 = vadd.f32 %v1403, %v1503
  %v1505 = vpop.f32.mrb[0].mxu0
  %v1506 = vadd.f32 %v1405, %v1505
  %v1507 = vpop.f32.mrb[0].mxu0
  %v1508 = vadd.f32 %v1407, %v1507
  %1509 = vmatprep.mubr.bf16.mxu0 %v432
  %1510 = vmatmul.mubr.bf16.gmra.mrb[0].mxu0 %v431
  %v1511 = vpop.f32.mrb[0].mxu0
  %v1512 = vadd.f32 %v1411, %v1511
  %v1513 = vpop.f32.mrb[0].mxu0
  %v1514 = vadd.f32 %v1413, %v1513
  %v1515 = vpop.f32.mrb[0].mxu0
  %v1516 = vadd.f32 %v1415, %v1515
  %v1517 = vpop.f32.mrb[0].mxu0
  %v1518 = vadd.f32 %v1417, %v1517
  %1519 = vmatprep.mubr.bf16.mxu0 %v441
  %1520 = vmatmul.mubr.bf16.gmra.mrb[0].mxu0 %v440
  %v1521 = vpop.f32.mrb[0].mxu0
  %v1522 = vadd.f32 %v1421, %v1521
  %v1523 = vpop.f32.mrb[0].mxu0
  %v1524 = vadd.f32 %v1423, %v1523
  %v1525 = vpop.f32.mrb[0].mxu0
  %v1526 = vadd.f32 %v1425, %v1525
  %v1527 = vpop.f32.mrb[0].mxu0
  %v1528 = vadd.f32 %v1427, %v1527
  %1529 = vmatprep.mubr.bf16.mxu0 %v450
  %1530 = vmatmul.mubr.bf16.gmra.mrb[0].mxu0 %v449
  %v1531 = vpop.f32.mrb[0].mxu0
  %v1532 = vadd.f32 %v1431, %v1531
  %v1533 = vpop.f32.mrb[0].mxu0
  %v1534 = vadd.f32 %v1433, %v1533
  %v1535 = vpop.f32.mrb[0].mxu0
  %v1536 = vadd.f32 %v1435, %v1535
  %v1537 = vpop.f32.mrb[0].mxu0
  %v1538 = vadd.f32 %v1437, %v1537
  %1539 = vmatprep.mubr.bf16.mxu0 %v459
  %1540 = vmatmul.mubr.bf16.gmra.mrb[0].mxu0 %v458
  %v1541 = vpop.f32.mrb[0].mxu0
  %v1542 = vadd.f32 %v1441, %v1541
  %v1543 = vpop.f32.mrb[0].mxu0
  %v1544 = vadd.f32 %v1443, %v1543
  %v1545 = vpop.f32.mrb[0].mxu0
  %v1546 = vadd.f32 %v1445, %v1545
  %v1547 = vpop.f32.mrb[0].mxu0
  %v1548 = vadd.f32 %v1447, %v1547
  %1549 = vmatprep.mubr.bf16.mxu0 %v468
  %1550 = vmatmul.mubr.bf16.gmra.mrb[0].mxu0 %v467
  %v1551 = vpop.f32.mrb[0].mxu0
  %v1552 = vadd.f32 %v1451, %v1551
  %v1553 = vpop.f32.mrb[0].mxu0
  %v1554 = vadd.f32 %v1453, %v1553
  %v1555 = vpop.f32.mrb[0].mxu0
  %v1556 = vpop.f32.mrb[0].mxu0
  %1557 = vdwg.mxu0
  %1558 = vmatprep.subr.bf16.mxu0 %v1064
  %1559 = vmatpush1.bf16.msra.mxu0 %v1063
  %1560 = vmatprep.subr.bf16.mxu0 %v1066
  %1561 = vmatpush1.bf16.msra.mxu0 %v1065
  %1562 = vmatprep.subr.bf16.mxu0 %v1068
  %1563 = vmatpush1.bf16.msra.mxu0 %v1067
  %1564 = vmatprep.subr.bf16.mxu0 %v1070
  %1565 = vmatpush1.bf16.msra.mxu0 %v1069
  %1566 = vmatprep.subr.bf16.mxu0 %v1072
  %1567 = vmatpush1.bf16.msra.mxu0 %v1071
  %1568 = vmatprep.subr.bf16.mxu0 %v1074
  %1569 = vmatpush1.bf16.msra.mxu0 %v1073
  %1570 = vmatprep.subr.bf16.mxu0 %v1076
  %1571 = vmatpush1.bf16.msra.mxu0 %v1075
  %1572 = vmatprep.subr.bf16.mxu0 %v1078
  %1573 = vmatpush1.bf16.msra.mxu0 %v1077
  %1574 = vmatprep.subr.bf16.mxu0 %v1080
  %1575 = vmatpush1.bf16.msra.mxu0 %v1079
  %1576 = vmatprep.subr.bf16.mxu0 %v1082
  %1577 = vmatpush1.bf16.msra.mxu0 %v1081
  %1578 = vmatprep.subr.bf16.mxu0 %v1084
  %1579 = vmatpush1.bf16.msra.mxu0 %v1083
  %1580 = vmatprep.subr.bf16.mxu0 %v1086
  %1581 = vmatpush1.bf16.msra.mxu0 %v1085
  %1582 = vmatprep.subr.bf16.mxu0 %v1088
  %1583 = vmatpush1.bf16.msra.mxu0 %v1087
  %1584 = vmatprep.subr.bf16.mxu0 %v1090
  %1585 = vmatpush1.bf16.msra.mxu0 %v1089
  %1586 = vmatprep.subr.bf16.mxu0 %v1092
  %1587 = vmatpush1.bf16.msra.mxu0 %v1091
  %1588 = vmatprep.subr.bf16.mxu0 %v1094
  %1589 = vmatpush1.bf16.msra.mxu0 %v1093
  %1590 = vmatprep.mubr.bf16.mxu0 %v416
  %1591 = vmatmul.mubr.bf16.gmra.mrb[0].mxu0 %v415
  %v1592 = vpop.f32.mrb[0].mxu0
  %v1593 = vadd.f32 %v1492, %v1592
  %v1594 = vpop.f32.mrb[0].mxu0
  %v1595 = vadd.f32 %v1494, %v1594
  %v1596 = vpop.f32.mrb[0].mxu0
  %v1597 = vadd.f32 %v1496, %v1596
  %v1598 = vpop.f32.mrb[0].mxu0
  %v1599 = vadd.f32 %v1498, %v1598
  %1600 = vmatprep.mubr.bf16.mxu0 %v425
  %1601 = vmatmul.mubr.bf16.gmra.mrb[0].mxu0 %v424
  %v1602 = vpop.f32.mrb[0].mxu0
  %v1603 = vadd.f32 %v1502, %v1602
  %v1604 = vpop.f32.mrb[0].mxu0
  %v1605 = vadd.f32 %v1504, %v1604
  %v1606 = vpop.f32.mrb[0].mxu0
  %v1607 = vadd.f32 %v1506, %v1606
  %v1608 = vpop.f32.mrb[0].mxu0
  %v1609 = vadd.f32 %v1508, %v1608
  %1610 = vmatprep.mubr.bf16.mxu0 %v434
  %1611 = vmatmul.mubr.bf16.gmra.mrb[0].mxu0 %v433
  %v1612 = vpop.f32.mrb[0].mxu0
  %v1613 = vadd.f32 %v1512, %v1612
  %v1614 = vpop.f32.mrb[0].mxu0
  %v1615 = vadd.f32 %v1514, %v1614
  %v1616 = vpop.f32.mrb[0].mxu0
  %v1617 = vadd.f32 %v1516, %v1616
  %v1618 = vpop.f32.mrb[0].mxu0
  %v1619 = vadd.f32 %v1518, %v1618
  %1620 = vmatprep.mubr.bf16.mxu0 %v443
  %1621 = vmatmul.mubr.bf16.gmra.mrb[0].mxu0 %v442
  %v1622 = vpop.f32.mrb[0].mxu0
  %v1623 = vadd.f32 %v1522, %v1622
  %v1624 = vpop.f32.mrb[0].mxu0
  %v1625 = vadd.f32 %v1524, %v1624
  %v1626 = vpop.f32.mrb[0].mxu0
  %v1627 = vadd.f32 %v1526, %v1626
  %v1628 = vpop.f32.mrb[0].mxu0
  %v1629 = vadd.f32 %v1528, %v1628
  %1630 = vmatprep.mubr.bf16.mxu0 %v452
  %1631 = vmatmul.mubr.bf16.gmra.mrb[0].mxu0 %v451
  %v1632 = vpop.f32.mrb[0].mxu0
  %v1633 = vadd.f32 %v1532, %v1632
  %v1634 = vpop.f32.mrb[0].mxu0
  %v1635 = vadd.f32 %v1534, %v1634
  %v1636 = vpop.f32.mrb[0].mxu0
  %v1637 = vadd.f32 %v1536, %v1636
  %v1638 = vpop.f32.mrb[0].mxu0
  %v1639 = vadd.f32 %v1538, %v1638
  %1640 = vmatprep.mubr.bf16.mxu0 %v461
  %1641 = vmatmul.mubr.bf16.gmra.mrb[0].mxu0 %v460
  %v1642 = vpop.f32.mrb[0].mxu0
  %v1643 = vadd.f32 %v1542, %v1642
  %v1644 = vpop.f32.mrb[0].mxu0
  %v1645 = vadd.f32 %v1544, %v1644
  %v1646 = vpop.f32.mrb[0].mxu0
  %v1647 = vadd.f32 %v1546, %v1646
  %v1648 = vpop.f32.mrb[0].mxu0
  %v1649 = vadd.f32 %v1548, %v1648
  %1650 = vmatprep.mubr.bf16.mxu0 %v470
  %1651 = vmatmul.mubr.bf16.gmra.mrb[0].mxu0 %v469
  %v1652 = vpop.f32.mrb[0].mxu0
  %v1653 = vadd.f32 %v1552, %v1652
  %v1654 = vpop.f32.mrb[0].mxu0
  %v1655 = vadd.f32 %v1554, %v1654
  %v1656 = vpop.f32.mrb[0].mxu0
  %v1657 = vpop.f32.mrb[0].mxu0
  %1658 = vdwg.mxu0
  %1659 = vmatprep.subr.bf16.mxu0 %v1096
  %1660 = vmatpush1.bf16.msra.mxu0 %v1095
  %1661 = vmatprep.subr.bf16.mxu0 %v1098
  %1662 = vmatpush1.bf16.msra.mxu0 %v1097
  %1663 = vmatprep.subr.bf16.mxu0 %v1100
  %1664 = vmatpush1.bf16.msra.mxu0 %v1099
  %1665 = vmatprep.subr.bf16.mxu0 %v1102
  %1666 = vmatpush1.bf16.msra.mxu0 %v1101
  %1667 = vmatprep.subr.bf16.mxu0 %v1104
  %1668 = vmatpush1.bf16.msra.mxu0 %v1103
  %1669 = vmatprep.subr.bf16.mxu0 %v1106
  %1670 = vmatpush1.bf16.msra.mxu0 %v1105
  %1671 = vmatprep.subr.bf16.mxu0 %v1108
  %1672 = vmatpush1.bf16.msra.mxu0 %v1107
  %1673 = vmatprep.subr.bf16.mxu0 %v1110
  %1674 = vmatpush1.bf16.msra.mxu0 %v1109
  %1675 = vmatprep.subr.bf16.mxu0 0
  %1676 = vmatpush1.bf16.msra.mxu0 0
  %1677 = vmatprep.subr.bf16.mxu0 0
  %1678 = vmatpush1.bf16.msra.mxu0 0
  %1679 = vmatprep.subr.bf16.mxu0 0
  %1680 = vmatpush1.bf16.msra.mxu0 0
  %1681 = vmatprep.subr.bf16.mxu0 0
  %1682 = vmatpush1.bf16.msra.mxu0 0
  %1683 = vmatprep.subr.bf16.mxu0 0
  %1684 = vmatpush1.bf16.msra.mxu0 0
  %1685 = vmatprep.subr.bf16.mxu0 0
  %1686 = vmatpush1.bf16.msra.mxu0 0
  %1687 = vmatprep.subr.bf16.mxu0 0
  %1688 = vmatpush1.bf16.msra.mxu0 0
  %1689 = vmatprep.subr.bf16.mxu0 0
  %1690 = vmatpush1.bf16.msra.mxu0 0
  %1691 = vmatprep.mubr.bf16.mxu0 0
  %1692 = vmatmul.mubr.bf16.gmra.mrb[0].mxu0 %v417
  %v1693 = vpop.f32.mrb[0].mxu0
  %v1694 = vadd.f32 %v1593, %v1693
  %v1695 = vpop.f32.mrb[0].mxu0
  %v1696 = vadd.f32 %v1595, %v1695
  %v1697 = vpop.f32.mrb[0].mxu0
  %v1698 = vadd.f32 %v1597, %v1697
  %v1699 = vpop.f32.mrb[0].mxu0
  %v1700 = vadd.f32 %v1599, %v1699
  %1701 = vmatprep.mubr.bf16.mxu0 0
  %1702 = vmatmul.mubr.bf16.gmra.mrb[0].mxu0 %v426
  %v1703 = vpop.f32.mrb[0].mxu0
  %v1704 = vadd.f32 %v1603, %v1703
  %v1705 = vpop.f32.mrb[0].mxu0
  %v1706 = vadd.f32 %v1605, %v1705
  %v1707 = vpop.f32.mrb[0].mxu0
  %v1708 = vadd.f32 %v1607, %v1707
  %v1709 = vpop.f32.mrb[0].mxu0
  %v1710 = vadd.f32 %v1609, %v1709
  %1711 = vmatprep.mubr.bf16.mxu0 0
  %1712 = vmatmul.mubr.bf16.gmra.mrb[0].mxu0 %v435
  %v1713 = vpop.f32.mrb[0].mxu0
  %v1714 = vadd.f32 %v1613, %v1713
  %v1715 = vpop.f32.mrb[0].mxu0
  %v1716 = vadd.f32 %v1615, %v1715
  %v1717 = vpop.f32.mrb[0].mxu0
  %v1718 = vadd.f32 %v1617, %v1717
  %v1719 = vpop.f32.mrb[0].mxu0
  %v1720 = vadd.f32 %v1619, %v1719
  %1721 = vmatprep.mubr.bf16.mxu0 0
  %1722 = vmatmul.mubr.bf16.gmra.mrb[0].mxu0 %v444
  %v1723 = vpop.f32.mrb[0].mxu0
  %v1724 = vadd.f32 %v1623, %v1723
  %v1725 = vpop.f32.mrb[0].mxu0
  %v1726 = vadd.f32 %v1625, %v1725
  %v1727 = vpop.f32.mrb[0].mxu0
  %v1728 = vadd.f32 %v1627, %v1727
  %v1729 = vpop.f32.mrb[0].mxu0
  %v1730 = vadd.f32 %v1629, %v1729
  %1731 = vmatprep.mubr.bf16.mxu0 0
  %1732 = vmatmul.mubr.bf16.gmra.mrb[0].mxu0 %v453
  %v1733 = vpop.f32.mrb[0].mxu0
  %v1734 = vadd.f32 %v1633, %v1733
  %v1735 = vpop.f32.mrb[0].mxu0
  %v1736 = vadd.f32 %v1635, %v1735
  %v1737 = vpop.f32.mrb[0].mxu0
  %v1738 = vadd.f32 %v1637, %v1737
  %v1739 = vpop.f32.mrb[0].mxu0
  %v1740 = vadd.f32 %v1639, %v1739
  %1741 = vmatprep.mubr.bf16.mxu0 0
  %1742 = vmatmul.mubr.bf16.gmra.mrb[0].mxu0 %v462
  %v1743 = vpop.f32.mrb[0].mxu0
  %v1744 = vadd.f32 %v1643, %v1743
  %v1745 = vpop.f32.mrb[0].mxu0
  %v1746 = vadd.f32 %v1645, %v1745
  %v1747 = vpop.f32.mrb[0].mxu0
  %v1748 = vadd.f32 %v1647, %v1747
  %v1749 = vpop.f32.mrb[0].mxu0
  %v1750 = vadd.f32 %v1649, %v1749
  %1751 = vmatprep.mubr.bf16.mxu0 0
  %1752 = vmatmul.mubr.bf16.gmra.mrb[0].mxu0 %v471
  %v1753 = vpop.f32.mrb[0].mxu0
  %v1754 = vadd.f32 %v1653, %v1753
  %v1755 = vpop.f32.mrb[0].mxu0
  %v1756 = vadd.f32 %v1655, %v1755
  %v1757 = vpop.f32.mrb[0].mxu0
  %v1758 = vpop.f32.mrb[0].mxu0
  %1759 = vdwg.mxu0
  %v1760 = vadd.f32 %v1694, %v1698
  %v1761 = vadd.f32 %v1760, %v1704
  %v1762 = vadd.f32 %v1761, %v1708
  %v1763 = vadd.f32 %v1762, %v1714
  %v1764 = vadd.f32 %v1763, %v1718
  %v1765 = vadd.f32 %v1764, %v1724
  %v1766 = vadd.f32 %v1765, %v1728
  %v1767 = vadd.f32 %v1766, %v1734
  %v1768 = vadd.f32 %v1767, %v1738
  %v1769 = vadd.f32 %v1768, %v1744
  %v1770 = vadd.f32 %v1769, %v1748
  %vm1771 = vcmask 1041408
  %v1772 = vsel %vm1771, %v1754, 0.0
  %v1773 = vadd.f32 %v1770, %v1772
  %v1774 = vrot.slane %v1773, 4
  %v1775 = vadd.f32 %v1773, %v1774
  %v1776 = vrot.slane %v1775, 2
  %v1777 = vadd.f32 %v1775, %v1776
  %v1778 = vrot.slane %v1777, 1
  %v1779 = vadd.f32 %v1777, %v1778
  %v1780 = vadd.f32 %v1696, %v1700
  %v1781 = vadd.f32 %v1780, %v1706
  %v1782 = vadd.f32 %v1781, %v1710
  %v1783 = vadd.f32 %v1782, %v1716
  %v1784 = vadd.f32 %v1783, %v1720
  %v1785 = vadd.f32 %v1784, %v1726
  %v1786 = vadd.f32 %v1785, %v1730
  %v1787 = vadd.f32 %v1786, %v1736
  %v1788 = vadd.f32 %v1787, %v1740
  %v1789 = vadd.f32 %v1788, %v1746
  %v1790 = vadd.f32 %v1789, %v1750
  %v1791 = vsel %vm1771, %v1756, 0.0
  %v1792 = vadd.f32 %v1790, %v1791
  %v1793 = vrot.slane %v1792, 4
  %v1794 = vadd.f32 %v1792, %v1793
  %v1795 = vrot.slane %v1794, 2
  %v1796 = vadd.f32 %v1794, %v1795
  %v1797 = vrot.slane %v1796, 1
  %v1798 = vadd.f32 %v1796, %v1797
  %1800 = vrot.lane.b32.xlu0 %v1779, 64
  %v1801 = vpop.permute.xlu0 %1800
  %v1803 = vadd.f32 %v1779, %v1801
  %v1804 = vadd.f32 %v1803, %v1798
  %1806 = vrot.lane.b32.xlu0 %v1798, 64
  %v1807 = vpop.permute.xlu0 %1806
  %v1809 = vadd.f32 %v1804, %v1807
  %v1810 = vrcp.pop 392.0
  %v1811 = vmul.f32 %v1809, %v1810
  %1813 = vrot.lane.b32.xlu0 %v1811, 64
  %v1814 = vpop.permute.xlu0 %1813
  %vm1816 = vcmask 523264
  %v1817 = vsel %vm1816, %v1811, %v1814
  %v1818 = vlaneseq
  %v1819 = vshrl.u32 %v1818, 7
  %v1820 = vsub.s32 0, %v1819
  %v1821 = vrot.slane %v1817, %v1820
  %v1822 = vsub.f32 %v1694, %v1821
  %v1823 = vsub.f32 %v1696, %v1821
  %v1824 = vsub.f32 %v1698, %v1821
  %v1825 = vsub.f32 %v1700, %v1821
  %v1826 = vsub.f32 %v1704, %v1821
  %v1827 = vsub.f32 %v1706, %v1821
  %v1828 = vsub.f32 %v1708, %v1821
  %v1829 = vsub.f32 %v1710, %v1821
  %v1830 = vsub.f32 %v1714, %v1821
  %v1831 = vsub.f32 %v1716, %v1821
  %v1832 = vsub.f32 %v1718, %v1821
  %v1833 = vsub.f32 %v1720, %v1821
  %v1834 = vsub.f32 %v1724, %v1821
  %v1835 = vsub.f32 %v1726, %v1821
  %v1836 = vsub.f32 %v1728, %v1821
  %v1837 = vsub.f32 %v1730, %v1821
  %v1838 = vsub.f32 %v1734, %v1821
  %v1839 = vsub.f32 %v1736, %v1821
  %v1840 = vsub.f32 %v1738, %v1821
  %v1841 = vsub.f32 %v1740, %v1821
  %v1842 = vsub.f32 %v1744, %v1821
  %v1843 = vsub.f32 %v1746, %v1821
  %v1844 = vsub.f32 %v1748, %v1821
  %v1845 = vsub.f32 %v1750, %v1821
  %v1846 = vsub.f32 %v1754, %v1821
  %v1847 = vsub.f32 %v1756, %v1821
  %v1848 = vmul.f32 %v1822, %v1822
  %v1849 = vmul.f32 %v1823, %v1823
  %v1850 = vmul.f32 %v1824, %v1824
  %v1851 = vmul.f32 %v1825, %v1825
  %v1852 = vmul.f32 %v1826, %v1826
  %v1853 = vmul.f32 %v1827, %v1827
  %v1854 = vmul.f32 %v1828, %v1828
  %v1855 = vmul.f32 %v1829, %v1829
  %v1856 = vmul.f32 %v1830, %v1830
  %v1857 = vmul.f32 %v1831, %v1831
  %v1858 = vmul.f32 %v1832, %v1832
  %v1859 = vmul.f32 %v1833, %v1833
  %v1860 = vmul.f32 %v1834, %v1834
  %v1861 = vmul.f32 %v1835, %v1835
  %v1862 = vmul.f32 %v1836, %v1836
  %v1863 = vmul.f32 %v1837, %v1837
  %v1864 = vmul.f32 %v1838, %v1838
  %v1865 = vmul.f32 %v1839, %v1839
  %v1866 = vmul.f32 %v1840, %v1840
  %v1867 = vmul.f32 %v1841, %v1841
  %v1868 = vmul.f32 %v1842, %v1842
  %v1869 = vmul.f32 %v1843, %v1843
  %v1870 = vmul.f32 %v1844, %v1844
  %v1871 = vmul.f32 %v1845, %v1845
  %v1872 = vmul.f32 %v1846, %v1846
  %v1873 = vmul.f32 %v1847, %v1847
  %v1874 = vadd.f32 %v1848, %v1850
  %v1875 = vadd.f32 %v1874, %v1852
  %v1876 = vadd.f32 %v1875, %v1854
  %v1877 = vadd.f32 %v1876, %v1856
  %v1878 = vadd.f32 %v1877, %v1858
  %v1879 = vadd.f32 %v1878, %v1860
  %v1880 = vadd.f32 %v1879, %v1862
  %v1881 = vadd.f32 %v1880, %v1864
  %v1882 = vadd.f32 %v1881, %v1866
  %v1883 = vadd.f32 %v1882, %v1868
  %v1884 = vadd.f32 %v1883, %v1870
  %v1885 = vsel %vm1771, %v1872, 0.0
  %v1886 = vadd.f32 %v1884, %v1885
  %v1887 = vrot.slane %v1886, 4
  %v1888 = vadd.f32 %v1886, %v1887
  %v1889 = vrot.slane %v1888, 2
  %v1890 = vadd.f32 %v1888, %v1889
  %v1891 = vrot.slane %v1890, 1
  %v1892 = vadd.f32 %v1890, %v1891
  %v1893 = vadd.f32 %v1849, %v1851
  %v1894 = vadd.f32 %v1893, %v1853
  %v1895 = vadd.f32 %v1894, %v1855
  %v1896 = vadd.f32 %v1895, %v1857
  %v1897 = vadd.f32 %v1896, %v1859
  %v1898 = vadd.f32 %v1897, %v1861
  %v1899 = vadd.f32 %v1898, %v1863
  %v1900 = vadd.f32 %v1899, %v1865
  %v1901 = vadd.f32 %v1900, %v1867
  %v1902 = vadd.f32 %v1901, %v1869
  %v1903 = vadd.f32 %v1902, %v1871
  %v1904 = vsel %vm1771, %v1873, 0.0
  %v1905 = vadd.f32 %v1903, %v1904
  %v1906 = vrot.slane %v1905, 4
  %v1907 = vadd.f32 %v1905, %v1906
  %v1908 = vrot.slane %v1907, 2
  %v1909 = vadd.f32 %v1907, %v1908
  %v1910 = vrot.slane %v1909, 1
  %v1911 = vadd.f32 %v1909, %v1910
  %1913 = vrot.lane.b32.xlu0 %v1892, 64
  %v1914 = vpop.permute.xlu0 %1913
  %v1916 = vadd.f32 %v1892, %v1914
  %v1917 = vadd.f32 %v1916, %v1911
  %1919 = vrot.lane.b32.xlu0 %v1911, 64
  %v1920 = vpop.permute.xlu0 %1919
  %v1922 = vadd.f32 %v1917, %v1920
  %v1923 = vmul.f32 %v1922, %v1810
  %v1924 = vld [vmem:[%s2] sm:$0x1]
  %v1925 = vadd.f32 %v1923, 1e-05
  %v1926 = vrsqrt.pop %v1925
  %v1927 = vmul.f32 %v1924, %v1926
  %v1929 = vlaneseq
  %v1930 = vshrl.u32 %v1929, 7
  %v1931 = vsub.s32 0, %v1930
  %v1932 = vrot.slane %v1927, %v1931
  %1933 = vrot.lane.b32.xlu0 %v1932, 64
  %v1934 = vpop.permute.xlu0 %1933
  %v1936 = vsel %vm1816, %v1927, %v1934
  %v1937 = vld [vmem:[%s3] sm:$0x1]
  %v1939 = vlaneseq
  %v1940 = vshrl.u32 %v1939, 7
  %v1941 = vsub.s32 0, %v1940
  %v1942 = vrot.slane %v1937, %v1941
  %1943 = vrot.lane.b32.xlu0 %v1942, 64
  %v1944 = vpop.permute.xlu0 %1943
  %v1946 = vsel %vm1816, %v1937, %v1944
  %v1947 = vlaneseq
  %v1948 = vshrl.u32 %v1947, 7
  %v1949 = vsub.s32 0, %v1948
  %v1950 = vrot.slane %v1936, %v1949
  %v1951 = vmul.f32 %v1822, %v1950
  %v1952 = vmul.f32 %v1823, %v1950
  %v1953 = vmul.f32 %v1824, %v1950
  %v1954 = vmul.f32 %v1825, %v1950
  %v1955 = vmul.f32 %v1826, %v1950
  %v1956 = vmul.f32 %v1827, %v1950
  %v1957 = vmul.f32 %v1828, %v1950
  %v1958 = vmul.f32 %v1829, %v1950
  %v1959 = vmul.f32 %v1830, %v1950
  %v1960 = vmul.f32 %v1831, %v1950
  %v1961 = vmul.f32 %v1832, %v1950
  %v1962 = vmul.f32 %v1833, %v1950
  %v1963 = vmul.f32 %v1834, %v1950
  %v1964 = vmul.f32 %v1835, %v1950
  %v1965 = vmul.f32 %v1836, %v1950
  %v1966 = vmul.f32 %v1837, %v1950
  %v1967 = vmul.f32 %v1838, %v1950
  %v1968 = vmul.f32 %v1839, %v1950
  %v1969 = vmul.f32 %v1840, %v1950
  %v1970 = vmul.f32 %v1841, %v1950
  %v1971 = vmul.f32 %v1842, %v1950
  %v1972 = vmul.f32 %v1843, %v1950
  %v1973 = vmul.f32 %v1844, %v1950
  %v1974 = vmul.f32 %v1845, %v1950
  %v1975 = vmul.f32 %v1846, %v1950
  %v1976 = vmul.f32 %v1847, %v1950
  %v1977 = vlaneseq
  %v1978 = vshrl.u32 %v1977, 7
  %v1979 = vsub.s32 0, %v1978
  %v1980 = vrot.slane %v1946, %v1979
  %v1981 = vadd.f32 %v1951, %v1980
  %v1982 = vadd.f32 %v1952, %v1980
  %v1983 = vadd.f32 %v1953, %v1980
  %v1984 = vadd.f32 %v1954, %v1980
  %v1985 = vadd.f32 %v1955, %v1980
  %v1986 = vadd.f32 %v1956, %v1980
  %v1987 = vadd.f32 %v1957, %v1980
  %v1988 = vadd.f32 %v1958, %v1980
  %v1989 = vadd.f32 %v1959, %v1980
  %v1990 = vadd.f32 %v1960, %v1980
  %v1991 = vadd.f32 %v1961, %v1980
  %v1992 = vadd.f32 %v1962, %v1980
  %v1993 = vadd.f32 %v1963, %v1980
  %v1994 = vadd.f32 %v1964, %v1980
  %v1995 = vadd.f32 %v1965, %v1980
  %v1996 = vadd.f32 %v1966, %v1980
  %v1997 = vadd.f32 %v1967, %v1980
  %v1998 = vadd.f32 %v1968, %v1980
  %v1999 = vadd.f32 %v1969, %v1980
  %v2000 = vadd.f32 %v1970, %v1980
  %v2001 = vadd.f32 %v1971, %v1980
  %v2002 = vadd.f32 %v1972, %v1980
  %v2003 = vadd.f32 %v1973, %v1980
  %v2004 = vadd.f32 %v1974, %v1980
  %v2005 = vadd.f32 %v1975, %v1980
  %v2006 = vadd.f32 %v1976, %v1980
  %v2007 = vmax.f32 %v1981, 0.0
  %v2008 = vmax.f32 %v1982, 0.0
  %v2009 = vmax.f32 %v1983, 0.0
  %v2010 = vmax.f32 %v1984, 0.0
  %v2011 = vmax.f32 %v1985, 0.0
  %v2012 = vmax.f32 %v1986, 0.0
  %v2013 = vmax.f32 %v1987, 0.0
  %v2014 = vmax.f32 %v1988, 0.0
  %v2015 = vmax.f32 %v1989, 0.0
  %v2016 = vmax.f32 %v1990, 0.0
  %v2017 = vmax.f32 %v1991, 0.0
  %v2018 = vmax.f32 %v1992, 0.0
  %v2019 = vmax.f32 %v1993, 0.0
  %v2020 = vmax.f32 %v1994, 0.0
  %v2021 = vmax.f32 %v1995, 0.0
  %v2022 = vmax.f32 %v1996, 0.0
  %v2023 = vmax.f32 %v1997, 0.0
  %v2024 = vmax.f32 %v1998, 0.0
  %v2025 = vmax.f32 %v1999, 0.0
  %v2026 = vmax.f32 %v2000, 0.0
  %v2027 = vmax.f32 %v2001, 0.0
  %v2028 = vmax.f32 %v2002, 0.0
  %v2029 = vmax.f32 %v2003, 0.0
  %v2030 = vmax.f32 %v2004, 0.0
  %v2031 = vmax.f32 %v2005, 0.0
  %v2032 = vmax.f32 %v2006, 0.0
  %v2033 = vpack.c.bf16 %v2009, %v2007
  %v2034 = vpack.c.bf16 %v2010, %v2008
  %v2035 = vpack.c.bf16 %v2013, %v2011
  %v2036 = vpack.c.bf16 %v2014, %v2012
  %v2037 = vpack.c.bf16 %v2017, %v2015
  %v2038 = vpack.c.bf16 %v2018, %v2016
  %v2039 = vpack.c.bf16 %v2021, %v2019
  %v2040 = vpack.c.bf16 %v2022, %v2020
  %v2041 = vpack.c.bf16 %v2025, %v2023
  %v2042 = vpack.c.bf16 %v2026, %v2024
  %v2043 = vpack.c.bf16 %v2029, %v2027
  %v2044 = vpack.c.bf16 %v2030, %v2028
  %v2045 = vpack.c.bf16 %v2031, %v2031
  %v2046 = vpack.c.bf16 %v2032, %v2032
  %v2061 = vunpack.c.l.b16 %v2033
  %v2062 = vunpack.c.l.b16 %v2034
  %v2063 = vunpack.c.h.b16 %v2033
  %v2064 = vunpack.c.h.b16 %v2034
  %v2065 = vunpack.c.l.b16 %v2035
  %v2066 = vunpack.c.l.b16 %v2036
  %v2067 = vunpack.c.h.b16 %v2035
  %v2068 = vunpack.c.h.b16 %v2036
  %v2069 = vunpack.c.l.b16 %v2037
  %v2070 = vunpack.c.l.b16 %v2038
  %v2071 = vunpack.c.h.b16 %v2037
  %v2072 = vunpack.c.h.b16 %v2038
  %v2073 = vunpack.c.l.b16 %v2039
  %v2074 = vunpack.c.l.b16 %v2040
  %v2075 = vunpack.c.h.b16 %v2039
  %v2076 = vunpack.c.h.b16 %v2040
  %v2077 = vunpack.c.l.b16 %v2041
  %v2078 = vunpack.c.l.b16 %v2042
  %v2079 = vunpack.c.h.b16 %v2041
  %v2080 = vunpack.c.h.b16 %v2042
  %v2081 = vunpack.c.l.b16 %v2043
  %v2082 = vunpack.c.l.b16 %v2044
  %v2083 = vunpack.c.h.b16 %v2043
  %v2084 = vunpack.c.h.b16 %v2044
  %v2085 = vunpack.c.l.b16 %v2045
  %v2086 = vunpack.c.l.b16 %v2046
  %v2087 = vpack.c.b16 %v2062, %v2061
  %v2088 = vpack.c.b16 %v2064, %v2063
  %v2089 = vpack.c.b16 %v2066, %v2065
  %v2090 = vpack.c.b16 %v2068, %v2067
  %v2091 = vpack.c.b16 %v2070, %v2069
  %v2092 = vpack.c.b16 %v2072, %v2071
  %v2093 = vpack.c.b16 %v2074, %v2073
  %v2094 = vpack.c.b16 %v2076, %v2075
  %v2095 = vpack.c.b16 %v2078, %v2077
  %v2096 = vpack.c.b16 %v2080, %v2079
  %v2097 = vpack.c.b16 %v2082, %v2081
  %v2098 = vpack.c.b16 %v2084, %v2083
  %v2099 = vpack.c.b16 %v2086, %v2085
  %2113 = vst [vmem:[%s4] sm:$0xff] %v2087
  %2114 = vst [vmem:[%s4 + $0x8] sm:$0xff] %v2088
  %2115 = vst [vmem:[%s4 + $0x10] sm:$0xff] %v2089
  %2116 = vst [vmem:[%s4 + $0x18] sm:$0xff] %v2090
  %2117 = vst [vmem:[%s4 + $0x20] sm:$0xff] %v2091
  %2118 = vst [vmem:[%s4 + $0x28] sm:$0xff] %v2092
  %2119 = vst [vmem:[%s4 + $0x30] sm:$0xff] %v2093
  %2120 = vst [vmem:[%s4 + $0x38] sm:$0xff] %v2094
  %2121 = vst [vmem:[%s4 + $0x40] sm:$0xff] %v2095
  %2122 = vst [vmem:[%s4 + $0x48] sm:$0xff] %v2096
  %2123 = vst [vmem:[%s4 + $0x50] sm:$0xff] %v2097
  %2124 = vst [vmem:[%s4 + $0x58] sm:$0xff] %v2098
  %2125 = vst [vmem:[%s4 + $0x60] sm:$0x11] %v2099
  // Predicated region
  $region18: #{generator_emnist_forward.4} parent=0 // pred_check
    _
  $region19: #{generator_emnist_forward.4} parent=0 // pred_check_branch
    %2127 = sbr.rel (0) target = $region21
  $region20: #{generator_emnist_forward.4} parent=0 // pred_region
    _
  $region21: #{generator_emnist_forward.4} parent=0 // pred_fallthru
    _
  // Predicated region
  $region22: #{generator_emnist_forward.4} parent=0 // pred_check
    _
  $region23: #{generator_emnist_forward.4} parent=0 // pred_check_branch
    %2129 = sbr.rel (0) target = $region25
  $region24: #{generator_emnist_forward.4} parent=0 // pred_region
    _
  $region25: #{generator_emnist_forward.4} parent=0 // pred_fallthru
    _

// kernel: generator_emnist_forward.5
$region0: #{generator_emnist_forward.5}
  #allocation0 [shape = 'u32[]', space=smem, size = 0x4, offset = 0x4, fixed_abs, tag = 'smem constant byte address 0x4 - core index']
  #allocation1 [shape = 'u32[144,128]{1,0:T(1,128)}', space=vmem, size = 0x12000, scoped, tag = 'internal scratch']
  #allocation2 [shape = 'f32[1,1]{1,0:T(1,128)S(1)}', space=vmem, size = 0x200, scoped, tag = 'scoped memory for generator_emnist_forward.5']
  %s0 = inlined_call_operand.vmem [shape: bf16[4,576], index: 0, kind: input, shape index: {}]
  %s1 = inlined_call_operand.vmem [shape: bf16[576,392], index: 1, kind: input, shape index: {}]
  %s2 = inlined_call_operand.<no memory space> [shape: f32[1,1], index: 2, kind: input, shape index: {}]
  %s3 = inlined_call_operand.vmem [shape: f32[4,392], index: 3, kind: output, shape index: {}]
  %s4 = sld [smem:[#allocation0]]
  $region22: #{generator_emnist_forward.5} parent=0
    _
  %s6 = ssub.s32 1, %s4
  %s7 = scalar_select 0, %s6, %s4
  %v8 = vstv %s2
  %9 = vst [vmem:[#allocation2] sm:$0x1] %v8
  // Predicated region
  $region2: #{generator_emnist_forward.5} parent=0 // pred_check
    _
  $region3: #{generator_emnist_forward.5} parent=0 // pred_check_branch
    %11 = sbr.rel (0) target = $region5
  $region4: #{generator_emnist_forward.5} parent=0 // pred_region
    _
  $region5: #{generator_emnist_forward.5} parent=0 // pred_fallthru
    _
  // Predicated region
  $region6: #{generator_emnist_forward.5} parent=0 // pred_check
    _
  $region7: #{generator_emnist_forward.5} parent=0 // pred_check_branch
    %13 = sbr.rel (0) target = $region9
  $region8: #{generator_emnist_forward.5} parent=0 // pred_region
    _
  $region9: #{generator_emnist_forward.5} parent=0 // pred_fallthru
    _
  // Predicated region
  $region10: #{generator_emnist_forward.5} parent=0 // pred_check
    _
  $region11: #{generator_emnist_forward.5} parent=0 // pred_check_branch
    %15 = sbr.rel (0) target = $region13
  $region12: #{generator_emnist_forward.5} parent=0 // pred_region
    _
  $region13: #{generator_emnist_forward.5} parent=0 // pred_fallthru
    _
  %v17 = vld [vmem:[%s0] sm:$0xff]
  %v18 = vld [vmem:[%s0 + $0x8] sm:$0x3]
  %v19 = vld [vmem:[%s1] sm:$0xff]
  %v20 = vld [vmem:[%s1 + $0x8] sm:$0xff]
  %v21 = vld [vmem:[%s1 + $0x10] sm:$0xff]
  %v22 = vld [vmem:[%s1 + $0x18] sm:$0xff]
  %v23 = vld [vmem:[%s1 + $0x20] sm:$0xff]
  %v24 = vld [vmem:[%s1 + $0x28] sm:$0xff]
  %v25 = vld [vmem:[%s1 + $0x30] sm:$0xff]
  %v26 = vld [vmem:[%s1 + $0x38] sm:$0xff]
  %v27 = vld [vmem:[%s1 + $0x40] sm:$0xff]
  %v28 = vld [vmem:[%s1 + $0x48] sm:$0xff]
  %v29 = vld [vmem:[%s1 + $0x50] sm:$0xff]
  %v30 = vld [vmem:[%s1 + $0x58] sm:$0xff]
  %v31 = vld [vmem:[%s1 + $0x60] sm:$0xff]
  %v32 = vld [vmem:[%s1 + $0x68] sm:$0xff]
  %v33 = vld [vmem:[%s1 + $0x70] sm:$0xff]
  %v34 = vld [vmem:[%s1 + $0x78] sm:$0xff]
  %v35 = vld [vmem:[%s1 + $0x80] sm:$0xff]
  %v36 = vld [vmem:[%s1 + $0x88] sm:$0xff]
  %v37 = vld [vmem:[%s1 + $0x90] sm:$0xff]
  %v38 = vld [vmem:[%s1 + $0x98] sm:$0xff]
  %v39 = vld [vmem:[%s1 + $0xa0] sm:$0xff]
  %v40 = vld [vmem:[%s1 + $0xa8] sm:$0xff]
  %v41 = vld [vmem:[%s1 + $0xb0] sm:$0xff]
  %v42 = vld [vmem:[%s1 + $0xb8] sm:$0xff]
  %v43 = vld [vmem:[%s1 + $0xc0] sm:$0xff]
  %v44 = vld [vmem:[%s1 + $0xc8] sm:$0xff]
  %v45 = vld [vmem:[%s1 + $0xd0] sm:$0xff]
  %v46 = vld [vmem:[%s1 + $0xd8] sm:$0xff]
  %v47 = vld [vmem:[%s1 + $0xe0] sm:$0xff]
  %v48 = vld [vmem:[%s1 + $0xe8] sm:$0xff]
  %v49 = vld [vmem:[%s1 + $0xf0] sm:$0xff]
  %v50 = vld [vmem:[%s1 + $0xf8] sm:$0xff]
  %v51 = vld [vmem:[%s1 + $0x100] sm:$0xff]
  %v52 = vld [vmem:[%s1 + $0x108] sm:$0xff]
  %v53 = vld [vmem:[%s1 + $0x110] sm:$0xff]
  %v54 = vld [vmem:[%s1 + $0x118] sm:$0xff]
  %v55 = vld [vmem:[%s1 + $0x120] sm:$0xff]
  %v56 = vld [vmem:[%s1 + $0x128] sm:$0xff]
  %v57 = vld [vmem:[%s1 + $0x130] sm:$0xff]
  %v58 = vld [vmem:[%s1 + $0x138] sm:$0xff]
  %v59 = vld [vmem:[%s1 + $0x140] sm:$0xff]
  %v60 = vld [vmem:[%s1 + $0x148] sm:$0xff]
  %v61 = vld [vmem:[%s1 + $0x150] sm:$0xff]
  %v62 = vld [vmem:[%s1 + $0x158] sm:$0xff]
  %v63 = vld [vmem:[%s1 + $0x160] sm:$0xff]
  %v64 = vld [vmem:[%s1 + $0x168] sm:$0xff]
  %v65 = vld [vmem:[%s1 + $0x170] sm:$0xff]
  %v66 = vld [vmem:[%s1 + $0x178] sm:$0xff]
  %v67 = vld [vmem:[%s1 + $0x180] sm:$0xff]
  %v68 = vld [vmem:[%s1 + $0x188] sm:$0xff]
  %v69 = vld [vmem:[%s1 + $0x190] sm:$0xff]
  %v70 = vld [vmem:[%s1 + $0x198] sm:$0xff]
  %v71 = vld [vmem:[%s1 + $0x1a0] sm:$0xff]
  %v72 = vld [vmem:[%s1 + $0x1a8] sm:$0xff]
  %v73 = vld [vmem:[%s1 + $0x1b0] sm:$0xff]
  %v74 = vld [vmem:[%s1 + $0x1b8] sm:$0xff]
  %v75 = vld [vmem:[%s1 + $0x1c0] sm:$0xff]
  %v76 = vld [vmem:[%s1 + $0x1c8] sm:$0xff]
  %v77 = vld [vmem:[%s1 + $0x1d0] sm:$0xff]
  %v78 = vld [vmem:[%s1 + $0x1d8] sm:$0xff]
  %v79 = vld [vmem:[%s1 + $0x1e0] sm:$0xff]
  %v80 = vld [vmem:[%s1 + $0x1e8] sm:$0xff]
  %v81 = vld [vmem:[%s1 + $0x1f0] sm:$0xff]
  %v82 = vld [vmem:[%s1 + $0x1f8] sm:$0xff]
  %v83 = vld [vmem:[%s1 + $0x200] sm:$0xff]
  %v84 = vld [vmem:[%s1 + $0x208] sm:$0xff]
  %v85 = vld [vmem:[%s1 + $0x210] sm:$0xff]
  %v86 = vld [vmem:[%s1 + $0x218] sm:$0xff]
  %v87 = vld [vmem:[%s1 + $0x220] sm:$0xff]
  %v88 = vld [vmem:[%s1 + $0x228] sm:$0xff]
  %v89 = vld [vmem:[%s1 + $0x230] sm:$0xff]
  %v90 = vld [vmem:[%s1 + $0x238] sm:$0xff]
  %v91 = vld [vmem:[%s1 + $0x240] sm:$0xff]
  %v92 = vld [vmem:[%s1 + $0x248] sm:$0xff]
  %v93 = vld [vmem:[%s1 + $0x250] sm:$0xff]
  %v94 = vld [vmem:[%s1 + $0x258] sm:$0xff]
  %v95 = vld [vmem:[%s1 + $0x260] sm:$0xff]
  %v96 = vld [vmem:[%s1 + $0x268] sm:$0xff]
  %v97 = vld [vmem:[%s1 + $0x270] sm:$0xff]
  %v98 = vld [vmem:[%s1 + $0x278] sm:$0xff]
  %v99 = vld [vmem:[%s1 + $0x280] sm:$0xff]
  %v100 = vld [vmem:[%s1 + $0x288] sm:$0xff]
  %v101 = vld [vmem:[%s1 + $0x290] sm:$0xff]
  %v102 = vld [vmem:[%s1 + $0x298] sm:$0xff]
  %v103 = vld [vmem:[%s1 + $0x2a0] sm:$0xff]
  %v104 = vld [vmem:[%s1 + $0x2a8] sm:$0xff]
  %v105 = vld [vmem:[%s1 + $0x2b0] sm:$0xff]
  %v106 = vld [vmem:[%s1 + $0x2b8] sm:$0xff]
  %v107 = vld [vmem:[%s1 + $0x2c0] sm:$0xff]
  %v108 = vld [vmem:[%s1 + $0x2c8] sm:$0xff]
  %v109 = vld [vmem:[%s1 + $0x2d0] sm:$0xff]
  %v110 = vld [vmem:[%s1 + $0x2d8] sm:$0xff]
  %v111 = vld [vmem:[%s1 + $0x2e0] sm:$0xff]
  %v112 = vld [vmem:[%s1 + $0x2e8] sm:$0xff]
  %v113 = vld [vmem:[%s1 + $0x2f0] sm:$0xff]
  %v114 = vld [vmem:[%s1 + $0x2f8] sm:$0xff]
  %v115 = vld [vmem:[%s1 + $0x300] sm:$0xff]
  %v116 = vld [vmem:[%s1 + $0x308] sm:$0xff]
  %v117 = vld [vmem:[%s1 + $0x310] sm:$0xff]
  %v118 = vld [vmem:[%s1 + $0x318] sm:$0xff]
  %v119 = vld [vmem:[%s1 + $0x320] sm:$0xff]
  %v120 = vld [vmem:[%s1 + $0x328] sm:$0xff]
  %v121 = vld [vmem:[%s1 + $0x330] sm:$0xff]
  %v122 = vld [vmem:[%s1 + $0x338] sm:$0xff]
  %v123 = vld [vmem:[%s1 + $0x340] sm:$0xff]
  %v124 = vld [vmem:[%s1 + $0x348] sm:$0xff]
  %v125 = vld [vmem:[%s1 + $0x350] sm:$0xff]
  %v126 = vld [vmem:[%s1 + $0x358] sm:$0xff]
  %v127 = vld [vmem:[%s1 + $0x360] sm:$0xff]
  %v128 = vld [vmem:[%s1 + $0x368] sm:$0xff]
  %v129 = vld [vmem:[%s1 + $0x370] sm:$0xff]
  %v130 = vld [vmem:[%s1 + $0x378] sm:$0xff]
  %v131 = vld [vmem:[%s1 + $0x380] sm:$0xff]
  %v132 = vld [vmem:[%s1 + $0x388] sm:$0xff]
  %v133 = vld [vmem:[%s1 + $0x390] sm:$0xff]
  %v134 = vld [vmem:[%s1 + $0x398] sm:$0xff]
  %v135 = vld [vmem:[%s1 + $0x3a0] sm:$0xff]
  %v136 = vld [vmem:[%s1 + $0x3a8] sm:$0xff]
  %v137 = vld [vmem:[%s1 + $0x3b0] sm:$0xff]
  %v138 = vld [vmem:[%s1 + $0x3b8] sm:$0xff]
  %v139 = vld [vmem:[%s1 + $0x3c0] sm:$0xff]
  %v140 = vld [vmem:[%s1 + $0x3c8] sm:$0xff]
  %v141 = vld [vmem:[%s1 + $0x3d0] sm:$0xff]
  %v142 = vld [vmem:[%s1 + $0x3d8] sm:$0xff]
  %v143 = vld [vmem:[%s1 + $0x3e0] sm:$0xff]
  %v144 = vld [vmem:[%s1 + $0x3e8] sm:$0xff]
  %v145 = vld [vmem:[%s1 + $0x3f0] sm:$0xff]
  %v146 = vld [vmem:[%s1 + $0x3f8] sm:$0xff]
  %v147 = vld [vmem:[%s1 + $0x400] sm:$0xff]
  %v148 = vld [vmem:[%s1 + $0x408] sm:$0xff]
  %v149 = vld [vmem:[%s1 + $0x410] sm:$0xff]
  %v150 = vld [vmem:[%s1 + $0x418] sm:$0xff]
  %v151 = vld [vmem:[%s1 + $0x420] sm:$0xff]
  %v152 = vld [vmem:[%s1 + $0x428] sm:$0xff]
  %v153 = vld [vmem:[%s1 + $0x430] sm:$0xff]
  %v154 = vld [vmem:[%s1 + $0x438] sm:$0xff]
  %v155 = vld [vmem:[%s1 + $0x440] sm:$0xff]
  %v156 = vld [vmem:[%s1 + $0x448] sm:$0xff]
  %v157 = vld [vmem:[%s1 + $0x450] sm:$0xff]
  %v158 = vld [vmem:[%s1 + $0x458] sm:$0xff]
  %v159 = vld [vmem:[%s1 + $0x460] sm:$0xff]
  %v160 = vld [vmem:[%s1 + $0x468] sm:$0xff]
  %v161 = vld [vmem:[%s1 + $0x470] sm:$0xff]
  %v162 = vld [vmem:[%s1 + $0x478] sm:$0xff]
  %v163 = vld [vmem:[#allocation2] sm:$0x1]
  %v165 = vlaneseq
  %v166 = vshrl.u32 %v165, 7
  %v167 = vsub.s32 0, %v166
  %v168 = vrot.slane %v163, %v167
  %169 = vset.pattern.permute.xlu0 0
  %170 = vperm.xlu0 %169, %v168
  %v171 = vpop.permute.xlu0 %170
  %v175 = vcombine.high %v17, %v17
  %v177 = vunpack.c.l.s4 1983009808
  %v178 = vunpack.c.0.s8 %v177
  %v179 = vlaneseq
  %v180 = vshrl.u32 %v179, 7
  %v181 = vsub.s32 %v178, %v180
  %v182 = vrot.slane %v17, %v181
  %v184 = vunpack.c.l.s4 1983009808
  %v185 = vunpack.c.0.s8 %v184
  %v186 = vlaneseq
  %v187 = vshrl.u32 %v186, 7
  %v188 = vsub.s32 %v185, %v187
  %v189 = vrot.slane %v175, %v188
  %v190 = vcombine.high %v182, %v182
  %v191 = vcombine.high %v189, %v189
  %v193 = vunpack.c.l.s4 1983009808
  %v194 = vunpack.c.0.s8 %v193
  %v195 = vlaneseq
  %v196 = vshrl.u32 %v195, 7
  %v197 = vsub.s32 %v194, %v196
  %v198 = vrot.slane %v18, %v197
  %v347 = vunpack.c.l.b16 %v19
  %v348 = vunpack.c.h.b16 %v19
  %v349 = vunpack.c.l.b16 %v20
  %v350 = vunpack.c.h.b16 %v20
  %v351 = vunpack.c.l.b16 %v21
  %v352 = vunpack.c.h.b16 %v21
  %v353 = vunpack.c.l.b16 %v22
  %v354 = vunpack.c.h.b16 %v22
  %v355 = vunpack.c.l.b16 %v23
  %v356 = vunpack.c.h.b16 %v23
  %v357 = vunpack.c.l.b16 %v24
  %v358 = vunpack.c.h.b16 %v24
  %v359 = vunpack.c.l.b16 %v25
  %v360 = vunpack.c.h.b16 %v25
  %v361 = vunpack.c.l.b16 %v26
  %v362 = vunpack.c.h.b16 %v26
  %v363 = vunpack.c.l.b16 %v27
  %v364 = vunpack.c.h.b16 %v27
  %v365 = vunpack.c.l.b16 %v28
  %v366 = vunpack.c.h.b16 %v28
  %v367 = vunpack.c.l.b16 %v29
  %v368 = vunpack.c.h.b16 %v29
  %v369 = vunpack.c.l.b16 %v30
  %v370 = vunpack.c.h.b16 %v30
  %v371 = vunpack.c.l.b16 %v31
  %v372 = vunpack.c.h.b16 %v31
  %v373 = vunpack.c.l.b16 %v32
  %v374 = vunpack.c.h.b16 %v32
  %v375 = vunpack.c.l.b16 %v33
  %v376 = vunpack.c.h.b16 %v33
  %v377 = vunpack.c.l.b16 %v34
  %v378 = vunpack.c.h.b16 %v34
  %v379 = vunpack.c.l.b16 %v35
  %v380 = vunpack.c.h.b16 %v35
  %v381 = vunpack.c.l.b16 %v36
  %v382 = vunpack.c.h.b16 %v36
  %v383 = vunpack.c.l.b16 %v37
  %v384 = vunpack.c.h.b16 %v37
  %v385 = vunpack.c.l.b16 %v38
  %v386 = vunpack.c.h.b16 %v38
  %v387 = vunpack.c.l.b16 %v39
  %v388 = vunpack.c.h.b16 %v39
  %v389 = vunpack.c.l.b16 %v40
  %v390 = vunpack.c.h.b16 %v40
  %v391 = vunpack.c.l.b16 %v41
  %v392 = vunpack.c.h.b16 %v41
  %v393 = vunpack.c.l.b16 %v42
  %v394 = vunpack.c.h.b16 %v42
  %v395 = vunpack.c.l.b16 %v43
  %v396 = vunpack.c.h.b16 %v43
  %v397 = vunpack.c.l.b16 %v44
  %v398 = vunpack.c.h.b16 %v44
  %v399 = vunpack.c.l.b16 %v45
  %v400 = vunpack.c.h.b16 %v45
  %v401 = vunpack.c.l.b16 %v46
  %v402 = vunpack.c.h.b16 %v46
  %v403 = vunpack.c.l.b16 %v47
  %v404 = vunpack.c.h.b16 %v47
  %v405 = vunpack.c.l.b16 %v48
  %v406 = vunpack.c.h.b16 %v48
  %v407 = vunpack.c.l.b16 %v49
  %v408 = vunpack.c.h.b16 %v49
  %v409 = vunpack.c.l.b16 %v50
  %v410 = vunpack.c.h.b16 %v50
  %v411 = vunpack.c.l.b16 %v51
  %v412 = vunpack.c.h.b16 %v51
  %v413 = vunpack.c.l.b16 %v52
  %v414 = vunpack.c.h.b16 %v52
  %v415 = vunpack.c.l.b16 %v53
  %v416 = vunpack.c.h.b16 %v53
  %v417 = vunpack.c.l.b16 %v54
  %v418 = vunpack.c.h.b16 %v54
  %v419 = vunpack.c.l.b16 %v55
  %v420 = vunpack.c.h.b16 %v55
  %v421 = vunpack.c.l.b16 %v56
  %v422 = vunpack.c.h.b16 %v56
  %v423 = vunpack.c.l.b16 %v57
  %v424 = vunpack.c.h.b16 %v57
  %v425 = vunpack.c.l.b16 %v58
  %v426 = vunpack.c.h.b16 %v58
  %v427 = vunpack.c.l.b16 %v59
  %v428 = vunpack.c.h.b16 %v59
  %v429 = vunpack.c.l.b16 %v60
  %v430 = vunpack.c.h.b16 %v60
  %v431 = vunpack.c.l.b16 %v61
  %v432 = vunpack.c.h.b16 %v61
  %v433 = vunpack.c.l.b16 %v62
  %v434 = vunpack.c.h.b16 %v62
  %v435 = vunpack.c.l.b16 %v63
  %v436 = vunpack.c.h.b16 %v63
  %v437 = vunpack.c.l.b16 %v64
  %v438 = vunpack.c.h.b16 %v64
  %v439 = vunpack.c.l.b16 %v65
  %v440 = vunpack.c.h.b16 %v65
  %v441 = vunpack.c.l.b16 %v66
  %v442 = vunpack.c.h.b16 %v66
  %v443 = vunpack.c.l.b16 %v67
  %v444 = vunpack.c.h.b16 %v67
  %v445 = vunpack.c.l.b16 %v68
  %v446 = vunpack.c.h.b16 %v68
  %v447 = vunpack.c.l.b16 %v69
  %v448 = vunpack.c.h.b16 %v69
  %v449 = vunpack.c.l.b16 %v70
  %v450 = vunpack.c.h.b16 %v70
  %v451 = vunpack.c.l.b16 %v71
  %v452 = vunpack.c.h.b16 %v71
  %v453 = vunpack.c.l.b16 %v72
  %v454 = vunpack.c.h.b16 %v72
  %v455 = vunpack.c.l.b16 %v73
  %v456 = vunpack.c.h.b16 %v73
  %v457 = vunpack.c.l.b16 %v74
  %v458 = vunpack.c.h.b16 %v74
  %v459 = vunpack.c.l.b16 %v75
  %v460 = vunpack.c.h.b16 %v75
  %v461 = vunpack.c.l.b16 %v76
  %v462 = vunpack.c.h.b16 %v76
  %v463 = vunpack.c.l.b16 %v77
  %v464 = vunpack.c.h.b16 %v77
  %v465 = vunpack.c.l.b16 %v78
  %v466 = vunpack.c.h.b16 %v78
  %v467 = vunpack.c.l.b16 %v79
  %v468 = vunpack.c.h.b16 %v79
  %v469 = vunpack.c.l.b16 %v80
  %v470 = vunpack.c.h.b16 %v80
  %v471 = vunpack.c.l.b16 %v81
  %v472 = vunpack.c.h.b16 %v81
  %v473 = vunpack.c.l.b16 %v82
  %v474 = vunpack.c.h.b16 %v82
  %v475 = vunpack.c.l.b16 %v83
  %v476 = vunpack.c.h.b16 %v83
  %v477 = vunpack.c.l.b16 %v84
  %v478 = vunpack.c.h.b16 %v84
  %v479 = vunpack.c.l.b16 %v85
  %v480 = vunpack.c.h.b16 %v85
  %v481 = vunpack.c.l.b16 %v86
  %v482 = vunpack.c.h.b16 %v86
  %v483 = vunpack.c.l.b16 %v87
  %v484 = vunpack.c.h.b16 %v87
  %v485 = vunpack.c.l.b16 %v88
  %v486 = vunpack.c.h.b16 %v88
  %v487 = vunpack.c.l.b16 %v89
  %v488 = vunpack.c.h.b16 %v89
  %v489 = vunpack.c.l.b16 %v90
  %v490 = vunpack.c.h.b16 %v90
  %v491 = vunpack.c.l.b16 %v91
  %v492 = vunpack.c.h.b16 %v91
  %v493 = vunpack.c.l.b16 %v92
  %v494 = vunpack.c.h.b16 %v92
  %v495 = vunpack.c.l.b16 %v93
  %v496 = vunpack.c.h.b16 %v93
  %v497 = vunpack.c.l.b16 %v94
  %v498 = vunpack.c.h.b16 %v94
  %v499 = vunpack.c.l.b16 %v95
  %v500 = vunpack.c.h.b16 %v95
  %v501 = vunpack.c.l.b16 %v96
  %v502 = vunpack.c.h.b16 %v96
  %v503 = vunpack.c.l.b16 %v97
  %v504 = vunpack.c.h.b16 %v97
  %v505 = vunpack.c.l.b16 %v98
  %v506 = vunpack.c.h.b16 %v98
  %v507 = vunpack.c.l.b16 %v99
  %v508 = vunpack.c.h.b16 %v99
  %v509 = vunpack.c.l.b16 %v100
  %v510 = vunpack.c.h.b16 %v100
  %v511 = vunpack.c.l.b16 %v101
  %v512 = vunpack.c.h.b16 %v101
  %v513 = vunpack.c.l.b16 %v102
  %v514 = vunpack.c.h.b16 %v102
  %v515 = vunpack.c.l.b16 %v103
  %v516 = vunpack.c.h.b16 %v103
  %v517 = vunpack.c.l.b16 %v104
  %v518 = vunpack.c.h.b16 %v104
  %v519 = vunpack.c.l.b16 %v105
  %v520 = vunpack.c.h.b16 %v105
  %v521 = vunpack.c.l.b16 %v106
  %v522 = vunpack.c.h.b16 %v106
  %v523 = vunpack.c.l.b16 %v107
  %v524 = vunpack.c.h.b16 %v107
  %v525 = vunpack.c.l.b16 %v108
  %v526 = vunpack.c.h.b16 %v108
  %v527 = vunpack.c.l.b16 %v109
  %v528 = vunpack.c.h.b16 %v109
  %v529 = vunpack.c.l.b16 %v110
  %v530 = vunpack.c.h.b16 %v110
  %v531 = vunpack.c.l.b16 %v111
  %v532 = vunpack.c.h.b16 %v111
  %v533 = vunpack.c.l.b16 %v112
  %v534 = vunpack.c.h.b16 %v112
  %v535 = vunpack.c.l.b16 %v113
  %v536 = vunpack.c.h.b16 %v113
  %v537 = vunpack.c.l.b16 %v114
  %v538 = vunpack.c.h.b16 %v114
  %v539 = vunpack.c.l.b16 %v115
  %v540 = vunpack.c.h.b16 %v115
  %v541 = vunpack.c.l.b16 %v116
  %v542 = vunpack.c.h.b16 %v116
  %v543 = vunpack.c.l.b16 %v117
  %v544 = vunpack.c.h.b16 %v117
  %v545 = vunpack.c.l.b16 %v118
  %v546 = vunpack.c.h.b16 %v118
  %v547 = vunpack.c.l.b16 %v119
  %v548 = vunpack.c.h.b16 %v119
  %v549 = vunpack.c.l.b16 %v120
  %v550 = vunpack.c.h.b16 %v120
  %v551 = vunpack.c.l.b16 %v121
  %v552 = vunpack.c.h.b16 %v121
  %v553 = vunpack.c.l.b16 %v122
  %v554 = vunpack.c.h.b16 %v122
  %v555 = vunpack.c.l.b16 %v123
  %v556 = vunpack.c.h.b16 %v123
  %v557 = vunpack.c.l.b16 %v124
  %v558 = vunpack.c.h.b16 %v124
  %v559 = vunpack.c.l.b16 %v125
  %v560 = vunpack.c.h.b16 %v125
  %v561 = vunpack.c.l.b16 %v126
  %v562 = vunpack.c.h.b16 %v126
  %v563 = vunpack.c.l.b16 %v127
  %v564 = vunpack.c.h.b16 %v127
  %v565 = vunpack.c.l.b16 %v128
  %v566 = vunpack.c.h.b16 %v128
  %v567 = vunpack.c.l.b16 %v129
  %v568 = vunpack.c.h.b16 %v129
  %v569 = vunpack.c.l.b16 %v130
  %v570 = vunpack.c.h.b16 %v130
  %v571 = vunpack.c.l.b16 %v131
  %v572 = vunpack.c.h.b16 %v131
  %v573 = vunpack.c.l.b16 %v132
  %v574 = vunpack.c.h.b16 %v132
  %v575 = vunpack.c.l.b16 %v133
  %v576 = vunpack.c.h.b16 %v133
  %v577 = vunpack.c.l.b16 %v134
  %v578 = vunpack.c.h.b16 %v134
  %v579 = vunpack.c.l.b16 %v135
  %v580 = vunpack.c.h.b16 %v135
  %v581 = vunpack.c.l.b16 %v136
  %v582 = vunpack.c.h.b16 %v136
  %v583 = vunpack.c.l.b16 %v137
  %v584 = vunpack.c.h.b16 %v137
  %v585 = vunpack.c.l.b16 %v138
  %v586 = vunpack.c.h.b16 %v138
  %v587 = vunpack.c.l.b16 %v139
  %v588 = vunpack.c.h.b16 %v139
  %v589 = vunpack.c.l.b16 %v140
  %v590 = vunpack.c.h.b16 %v140
  %v591 = vunpack.c.l.b16 %v141
  %v592 = vunpack.c.h.b16 %v141
  %v593 = vunpack.c.l.b16 %v142
  %v594 = vunpack.c.h.b16 %v142
  %v595 = vunpack.c.l.b16 %v143
  %v596 = vunpack.c.h.b16 %v143
  %v597 = vunpack.c.l.b16 %v144
  %v598 = vunpack.c.h.b16 %v144
  %v599 = vunpack.c.l.b16 %v145
  %v600 = vunpack.c.h.b16 %v145
  %v601 = vunpack.c.l.b16 %v146
  %v602 = vunpack.c.h.b16 %v146
  %v603 = vunpack.c.l.b16 %v147
  %v604 = vunpack.c.h.b16 %v147
  %v605 = vunpack.c.l.b16 %v148
  %v606 = vunpack.c.h.b16 %v148
  %v607 = vunpack.c.l.b16 %v149
  %v608 = vunpack.c.h.b16 %v149
  %v609 = vunpack.c.l.b16 %v150
  %v610 = vunpack.c.h.b16 %v150
  %v611 = vunpack.c.l.b16 %v151
  %v612 = vunpack.c.h.b16 %v151
  %v613 = vunpack.c.l.b16 %v152
  %v614 = vunpack.c.h.b16 %v152
  %v615 = vunpack.c.l.b16 %v153
  %v616 = vunpack.c.h.b16 %v153
  %v617 = vunpack.c.l.b16 %v154
  %v618 = vunpack.c.h.b16 %v154
  %v619 = vunpack.c.l.b16 %v155
  %v620 = vunpack.c.h.b16 %v155
  %v621 = vunpack.c.l.b16 %v156
  %v622 = vunpack.c.h.b16 %v156
  %v623 = vunpack.c.l.b16 %v157
  %v624 = vunpack.c.h.b16 %v157
  %v625 = vunpack.c.l.b16 %v158
  %v626 = vunpack.c.h.b16 %v158
  %v627 = vunpack.c.l.b16 %v159
  %v628 = vunpack.c.h.b16 %v159
  %v629 = vunpack.c.l.b16 %v160
  %v630 = vunpack.c.h.b16 %v160
  %v631 = vunpack.c.l.b16 %v161
  %v632 = vunpack.c.h.b16 %v161
  %v633 = vunpack.c.l.b16 %v162
  %v634 = vunpack.c.h.b16 %v162
  %v635 = vpack.c.b16 %v351, %v347
  %v636 = vpack.c.b16 %v352, %v348
  %v637 = vpack.c.b16 %v353, %v349
  %v638 = vpack.c.b16 %v354, %v350
  %v639 = vpack.c.b16 %v359, %v355
  %v640 = vpack.c.b16 %v360, %v356
  %v641 = vpack.c.b16 %v361, %v357
  %v642 = vpack.c.b16 %v362, %v358
  %v643 = vpack.c.b16 %v367, %v363
  %v644 = vpack.c.b16 %v368, %v364
  %v645 = vpack.c.b16 %v369, %v365
  %v646 = vpack.c.b16 %v370, %v366
  %v647 = vpack.c.b16 %v375, %v371
  %v648 = vpack.c.b16 %v376, %v372
  %v649 = vpack.c.b16 %v377, %v373
  %v650 = vpack.c.b16 %v378, %v374
  %v651 = vpack.c.b16 %v383, %v379
  %v652 = vpack.c.b16 %v384, %v380
  %v653 = vpack.c.b16 %v385, %v381
  %v654 = vpack.c.b16 %v386, %v382
  %v655 = vpack.c.b16 %v391, %v387
  %v656 = vpack.c.b16 %v392, %v388
  %v657 = vpack.c.b16 %v393, %v389
  %v658 = vpack.c.b16 %v394, %v390
  %v659 = vpack.c.b16 %v399, %v395
  %v660 = vpack.c.b16 %v400, %v396
  %v661 = vpack.c.b16 %v401, %v397
  %v662 = vpack.c.b16 %v402, %v398
  %v663 = vpack.c.b16 %v407, %v403
  %v664 = vpack.c.b16 %v408, %v404
  %v665 = vpack.c.b16 %v409, %v405
  %v666 = vpack.c.b16 %v410, %v406
  %v667 = vpack.c.b16 %v415, %v411
  %v668 = vpack.c.b16 %v416, %v412
  %v669 = vpack.c.b16 %v417, %v413
  %v670 = vpack.c.b16 %v418, %v414
  %v671 = vpack.c.b16 %v423, %v419
  %v672 = vpack.c.b16 %v424, %v420
  %v673 = vpack.c.b16 %v425, %v421
  %v674 = vpack.c.b16 %v426, %v422
  %v675 = vpack.c.b16 %v431, %v427
  %v676 = vpack.c.b16 %v432, %v428
  %v677 = vpack.c.b16 %v433, %v429
  %v678 = vpack.c.b16 %v434, %v430
  %v679 = vpack.c.b16 %v439, %v435
  %v680 = vpack.c.b16 %v440, %v436
  %v681 = vpack.c.b16 %v441, %v437
  %v682 = vpack.c.b16 %v442, %v438
  %v683 = vpack.c.b16 %v447, %v443
  %v684 = vpack.c.b16 %v448, %v444
  %v685 = vpack.c.b16 %v449, %v445
  %v686 = vpack.c.b16 %v450, %v446
  %v687 = vpack.c.b16 %v455, %v451
  %v688 = vpack.c.b16 %v456, %v452
  %v689 = vpack.c.b16 %v457, %v453
  %v690 = vpack.c.b16 %v458, %v454
  %v691 = vpack.c.b16 %v463, %v459
  %v692 = vpack.c.b16 %v464, %v460
  %v693 = vpack.c.b16 %v465, %v461
  %v694 = vpack.c.b16 %v466, %v462
  %v695 = vpack.c.b16 %v471, %v467
  %v696 = vpack.c.b16 %v472, %v468
  %v697 = vpack.c.b16 %v473, %v469
  %v698 = vpack.c.b16 %v474, %v470
  %v699 = vpack.c.b16 %v479, %v475
  %v700 = vpack.c.b16 %v480, %v476
  %v701 = vpack.c.b16 %v481, %v477
  %v702 = vpack.c.b16 %v482, %v478
  %v703 = vpack.c.b16 %v487, %v483
  %v704 = vpack.c.b16 %v488, %v484
  %v705 = vpack.c.b16 %v489, %v485
  %v706 = vpack.c.b16 %v490, %v486
  %v707 = vpack.c.b16 %v495, %v491
  %v708 = vpack.c.b16 %v496, %v492
  %v709 = vpack.c.b16 %v497, %v493
  %v710 = vpack.c.b16 %v498, %v494
  %v711 = vpack.c.b16 %v503, %v499
  %v712 = vpack.c.b16 %v504, %v500
  %v713 = vpack.c.b16 %v505, %v501
  %v714 = vpack.c.b16 %v506, %v502
  %v715 = vpack.c.b16 %v511, %v507
  %v716 = vpack.c.b16 %v512, %v508
  %v717 = vpack.c.b16 %v513, %v509
  %v718 = vpack.c.b16 %v514, %v510
  %v719 = vpack.c.b16 %v519, %v515
  %v720 = vpack.c.b16 %v520, %v516
  %v721 = vpack.c.b16 %v521, %v517
  %v722 = vpack.c.b16 %v522, %v518
  %v723 = vpack.c.b16 %v527, %v523
  %v724 = vpack.c.b16 %v528, %v524
  %v725 = vpack.c.b16 %v529, %v525
  %v726 = vpack.c.b16 %v530, %v526
  %v727 = vpack.c.b16 %v535, %v531
  %v728 = vpack.c.b16 %v536, %v532
  %v729 = vpack.c.b16 %v537, %v533
  %v730 = vpack.c.b16 %v538, %v534
  %v731 = vpack.c.b16 %v543, %v539
  %v732 = vpack.c.b16 %v544, %v540
  %v733 = vpack.c.b16 %v545, %v541
  %v734 = vpack.c.b16 %v546, %v542
  %v735 = vpack.c.b16 %v551, %v547
  %v736 = vpack.c.b16 %v552, %v548
  %v737 = vpack.c.b16 %v553, %v549
  %v738 = vpack.c.b16 %v554, %v550
  %v739 = vpack.c.b16 %v559, %v555
  %v740 = vpack.c.b16 %v560, %v556
  %v741 = vpack.c.b16 %v561, %v557
  %v742 = vpack.c.b16 %v562, %v558
  %v743 = vpack.c.b16 %v567, %v563
  %v744 = vpack.c.b16 %v568, %v564
  %v745 = vpack.c.b16 %v569, %v565
  %v746 = vpack.c.b16 %v570, %v566
  %v747 = vpack.c.b16 %v575, %v571
  %v748 = vpack.c.b16 %v576, %v572
  %v749 = vpack.c.b16 %v577, %v573
  %v750 = vpack.c.b16 %v578, %v574
  %v751 = vpack.c.b16 %v583, %v579
  %v752 = vpack.c.b16 %v584, %v580
  %v753 = vpack.c.b16 %v585, %v581
  %v754 = vpack.c.b16 %v586, %v582
  %v755 = vpack.c.b16 %v591, %v587
  %v756 = vpack.c.b16 %v592, %v588
  %v757 = vpack.c.b16 %v593, %v589
  %v758 = vpack.c.b16 %v594, %v590
  %v759 = vpack.c.b16 %v599, %v595
  %v760 = vpack.c.b16 %v600, %v596
  %v761 = vpack.c.b16 %v601, %v597
  %v762 = vpack.c.b16 %v602, %v598
  %v763 = vpack.c.b16 %v607, %v603
  %v764 = vpack.c.b16 %v608, %v604
  %v765 = vpack.c.b16 %v609, %v605
  %v766 = vpack.c.b16 %v610, %v606
  %v767 = vpack.c.b16 %v615, %v611
  %v768 = vpack.c.b16 %v616, %v612
  %v769 = vpack.c.b16 %v617, %v613
  %v770 = vpack.c.b16 %v618, %v614
  %v771 = vpack.c.b16 %v623, %v619
  %v772 = vpack.c.b16 %v624, %v620
  %v773 = vpack.c.b16 %v625, %v621
  %v774 = vpack.c.b16 %v626, %v622
  %v775 = vpack.c.b16 %v631, %v627
  %v776 = vpack.c.b16 %v632, %v628
  %v777 = vpack.c.b16 %v633, %v629
  %v778 = vpack.c.b16 %v634, %v630
  %vm923 = vcmask 523264
  %v925 = vsel %vm923, %v198, 0
  %927 = vmatprep.subr.bf16.mxu0 %v636
  %928 = vmatpush1.bf16.msra.mxu0 %v635
  %929 = vmatprep.subr.bf16.mxu0 %v640
  %930 = vmatpush1.bf16.msra.mxu0 %v639
  %931 = vmatprep.subr.bf16.mxu0 %v644
  %932 = vmatpush1.bf16.msra.mxu0 %v643
  %933 = vmatprep.subr.bf16.mxu0 %v648
  %934 = vmatpush1.bf16.msra.mxu0 %v647
  %935 = vmatprep.subr.bf16.mxu0 %v652
  %936 = vmatpush1.bf16.msra.mxu0 %v651
  %937 = vmatprep.subr.bf16.mxu0 %v656
  %938 = vmatpush1.bf16.msra.mxu0 %v655
  %939 = vmatprep.subr.bf16.mxu0 %v660
  %940 = vmatpush1.bf16.msra.mxu0 %v659
  %941 = vmatprep.subr.bf16.mxu0 %v664
  %942 = vmatpush1.bf16.msra.mxu0 %v663
  %943 = vmatprep.subr.bf16.mxu0 %v668
  %944 = vmatpush1.bf16.msra.mxu0 %v667
  %945 = vmatprep.subr.bf16.mxu0 %v672
  %946 = vmatpush1.bf16.msra.mxu0 %v671
  %947 = vmatprep.subr.bf16.mxu0 %v676
  %948 = vmatpush1.bf16.msra.mxu0 %v675
  %949 = vmatprep.subr.bf16.mxu0 %v680
  %950 = vmatpush1.bf16.msra.mxu0 %v679
  %951 = vmatprep.subr.bf16.mxu0 %v684
  %952 = vmatpush1.bf16.msra.mxu0 %v683
  %953 = vmatprep.subr.bf16.mxu0 %v688
  %954 = vmatpush1.bf16.msra.mxu0 %v687
  %955 = vmatprep.subr.bf16.mxu0 %v692
  %956 = vmatpush1.bf16.msra.mxu0 %v691
  %957 = vmatprep.subr.bf16.mxu0 %v696
  %958 = vmatpush1.bf16.msra.mxu0 %v695
  %959 = vmatprep.mubr.bf16.mxu0 %v190
  %960 = vmatmul.mubr.bf16.gmra.mrb[0].mxu0 %v182
  %v961 = vpop.f32.mrb[0].mxu0
  %v962 = vadd.f32 %v171, %v961
  %v963 = vpop.f32.mrb[0].mxu0
  %v964 = vadd.f32 %v171, %v963
  %v965 = vpop.f32.mrb[0].mxu0
  %v966 = vpop.f32.mrb[0].mxu0
  %967 = vdwg.mxu0
  %968 = vmatprep.subr.bf16.mxu0 %v700
  %969 = vmatpush1.bf16.msra.mxu0 %v699
  %970 = vmatprep.subr.bf16.mxu0 %v704
  %971 = vmatpush1.bf16.msra.mxu0 %v703
  %972 = vmatprep.subr.bf16.mxu0 %v708
  %973 = vmatpush1.bf16.msra.mxu0 %v707
  %974 = vmatprep.subr.bf16.mxu0 %v712
  %975 = vmatpush1.bf16.msra.mxu0 %v711
  %976 = vmatprep.subr.bf16.mxu0 %v716
  %977 = vmatpush1.bf16.msra.mxu0 %v715
  %978 = vmatprep.subr.bf16.mxu0 %v720
  %979 = vmatpush1.bf16.msra.mxu0 %v719
  %980 = vmatprep.subr.bf16.mxu0 %v724
  %981 = vmatpush1.bf16.msra.mxu0 %v723
  %982 = vmatprep.subr.bf16.mxu0 %v728
  %983 = vmatpush1.bf16.msra.mxu0 %v727
  %984 = vmatprep.subr.bf16.mxu0 %v732
  %985 = vmatpush1.bf16.msra.mxu0 %v731
  %986 = vmatprep.subr.bf16.mxu0 %v736
  %987 = vmatpush1.bf16.msra.mxu0 %v735
  %988 = vmatprep.subr.bf16.mxu0 %v740
  %989 = vmatpush1.bf16.msra.mxu0 %v739
  %990 = vmatprep.subr.bf16.mxu0 %v744
  %991 = vmatpush1.bf16.msra.mxu0 %v743
  %992 = vmatprep.subr.bf16.mxu0 %v748
  %993 = vmatpush1.bf16.msra.mxu0 %v747
  %994 = vmatprep.subr.bf16.mxu0 %v752
  %995 = vmatpush1.bf16.msra.mxu0 %v751
  %996 = vmatprep.subr.bf16.mxu0 %v756
  %997 = vmatpush1.bf16.msra.mxu0 %v755
  %998 = vmatprep.subr.bf16.mxu0 %v760
  %999 = vmatpush1.bf16.msra.mxu0 %v759
  %1000 = vmatprep.mubr.bf16.mxu0 %v191
  %1001 = vmatmul.mubr.bf16.gmra.mrb[0].mxu0 %v189
  %v1002 = vpop.f32.mrb[0].mxu0
  %v1003 = vadd.f32 %v962, %v1002
  %v1004 = vpop.f32.mrb[0].mxu0
  %v1005 = vadd.f32 %v964, %v1004
  %v1006 = vpop.f32.mrb[0].mxu0
  %v1007 = vpop.f32.mrb[0].mxu0
  %1008 = vdwg.mxu0
  %1009 = vmatprep.subr.bf16.mxu0 %v764
  %1010 = vmatpush1.bf16.msra.mxu0 %v763
  %1011 = vmatprep.subr.bf16.mxu0 %v768
  %1012 = vmatpush1.bf16.msra.mxu0 %v767
  %1013 = vmatprep.subr.bf16.mxu0 %v772
  %1014 = vmatpush1.bf16.msra.mxu0 %v771
  %1015 = vmatprep.subr.bf16.mxu0 %v776
  %1016 = vmatpush1.bf16.msra.mxu0 %v775
  %1017 = vmatprep.subr.bf16.mxu0 0
  %1018 = vmatpush1.bf16.msra.mxu0 0
  %1019 = vmatprep.subr.bf16.mxu0 0
  %1020 = vmatpush1.bf16.msra.mxu0 0
  %1021 = vmatprep.subr.bf16.mxu0 0
  %1022 = vmatpush1.bf16.msra.mxu0 0
  %1023 = vmatprep.subr.bf16.mxu0 0
  %1024 = vmatpush1.bf16.msra.mxu0 0
  %1025 = vmatprep.subr.bf16.mxu0 0
  %1026 = vmatpush1.bf16.msra.mxu0 0
  %1027 = vmatprep.subr.bf16.mxu0 0
  %1028 = vmatpush1.bf16.msra.mxu0 0
  %1029 = vmatprep.subr.bf16.mxu0 0
  %1030 = vmatpush1.bf16.msra.mxu0 0
  %1031 = vmatprep.subr.bf16.mxu0 0
  %1032 = vmatpush1.bf16.msra.mxu0 0
  %1033 = vmatprep.subr.bf16.mxu0 0
  %1034 = vmatpush1.bf16.msra.mxu0 0
  %1035 = vmatprep.subr.bf16.mxu0 0
  %1036 = vmatpush1.bf16.msra.mxu0 0
  %1037 = vmatprep.subr.bf16.mxu0 0
  %1038 = vmatpush1.bf16.msra.mxu0 0
  %1039 = vmatprep.subr.bf16.mxu0 0
  %1040 = vmatpush1.bf16.msra.mxu0 0
  %1041 = vmatprep.mubr.bf16.mxu0 0
  %1042 = vmatmul.mubr.bf16.gmra.mrb[0].mxu0 %v925
  %v1043 = vpop.f32.mrb[0].mxu0
  %v1044 = vadd.f32 %v1003, %v1043
  %v1045 = vpop.f32.mrb[0].mxu0
  %v1046 = vadd.f32 %v1005, %v1045
  %v1047 = vpop.f32.mrb[0].mxu0
  %v1048 = vpop.f32.mrb[0].mxu0
  %1049 = vdwg.mxu0
  %1050 = vmatprep.subr.bf16.mxu0 %v638
  %1051 = vmatpush1.bf16.msra.mxu0 %v637
  %1052 = vmatprep.subr.bf16.mxu0 %v642
  %1053 = vmatpush1.bf16.msra.mxu0 %v641
  %1054 = vmatprep.subr.bf16.mxu0 %v646
  %1055 = vmatpush1.bf16.msra.mxu0 %v645
  %1056 = vmatprep.subr.bf16.mxu0 %v650
  %1057 = vmatpush1.bf16.msra.mxu0 %v649
  %1058 = vmatprep.subr.bf16.mxu0 %v654
  %1059 = vmatpush1.bf16.msra.mxu0 %v653
  %1060 = vmatprep.subr.bf16.mxu0 %v658
  %1061 = vmatpush1.bf16.msra.mxu0 %v657
  %1062 = vmatprep.subr.bf16.mxu0 %v662
  %1063 = vmatpush1.bf16.msra.mxu0 %v661
  %1064 = vmatprep.subr.bf16.mxu0 %v666
  %1065 = vmatpush1.bf16.msra.mxu0 %v665
  %1066 = vmatprep.subr.bf16.mxu0 %v670
  %1067 = vmatpush1.bf16.msra.mxu0 %v669
  %1068 = vmatprep.subr.bf16.mxu0 %v674
  %1069 = vmatpush1.bf16.msra.mxu0 %v673
  %1070 = vmatprep.subr.bf16.mxu0 %v678
  %1071 = vmatpush1.bf16.msra.mxu0 %v677
  %1072 = vmatprep.subr.bf16.mxu0 %v682
  %1073 = vmatpush1.bf16.msra.mxu0 %v681
  %1074 = vmatprep.subr.bf16.mxu0 %v686
  %1075 = vmatpush1.bf16.msra.mxu0 %v685
  %1076 = vmatprep.subr.bf16.mxu0 %v690
  %1077 = vmatpush1.bf16.msra.mxu0 %v689
  %1078 = vmatprep.subr.bf16.mxu0 %v694
  %1079 = vmatpush1.bf16.msra.mxu0 %v693
  %1080 = vmatprep.subr.bf16.mxu0 %v698
  %1081 = vmatpush1.bf16.msra.mxu0 %v697
  %1082 = vmatprep.mubr.bf16.mxu0 %v190
  %1083 = vmatmul.mubr.bf16.gmra.mrb[0].mxu0 %v182
  %v1084 = vpop.f32.mrb[0].mxu0
  %v1085 = vadd.f32 %v171, %v1084
  %v1086 = vpop.f32.mrb[0].mxu0
  %v1087 = vadd.f32 %v171, %v1086
  %v1088 = vpop.f32.mrb[0].mxu0
  %v1089 = vpop.f32.mrb[0].mxu0
  %1090 = vdwg.mxu0
  %1091 = vmatprep.subr.bf16.mxu0 %v702
  %1092 = vmatpush1.bf16.msra.mxu0 %v701
  %1093 = vmatprep.subr.bf16.mxu0 %v706
  %1094 = vmatpush1.bf16.msra.mxu0 %v705
  %1095 = vmatprep.subr.bf16.mxu0 %v710
  %1096 = vmatpush1.bf16.msra.mxu0 %v709
  %1097 = vmatprep.subr.bf16.mxu0 %v714
  %1098 = vmatpush1.bf16.msra.mxu0 %v713
  %1099 = vmatprep.subr.bf16.mxu0 %v718
  %1100 = vmatpush1.bf16.msra.mxu0 %v717
  %1101 = vmatprep.subr.bf16.mxu0 %v722
  %1102 = vmatpush1.bf16.msra.mxu0 %v721
  %1103 = vmatprep.subr.bf16.mxu0 %v726
  %1104 = vmatpush1.bf16.msra.mxu0 %v725
  %1105 = vmatprep.subr.bf16.mxu0 %v730
  %1106 = vmatpush1.bf16.msra.mxu0 %v729
  %1107 = vmatprep.subr.bf16.mxu0 %v734
  %1108 = vmatpush1.bf16.msra.mxu0 %v733
  %1109 = vmatprep.subr.bf16.mxu0 %v738
  %1110 = vmatpush1.bf16.msra.mxu0 %v737
  %1111 = vmatprep.subr.bf16.mxu0 %v742
  %1112 = vmatpush1.bf16.msra.mxu0 %v741
  %1113 = vmatprep.subr.bf16.mxu0 %v746
  %1114 = vmatpush1.bf16.msra.mxu0 %v745
  %1115 = vmatprep.subr.bf16.mxu0 %v750
  %1116 = vmatpush1.bf16.msra.mxu0 %v749
  %1117 = vmatprep.subr.bf16.mxu0 %v754
  %1118 = vmatpush1.bf16.msra.mxu0 %v753
  %1119 = vmatprep.subr.bf16.mxu0 %v758
  %1120 = vmatpush1.bf16.msra.mxu0 %v757
  %1121 = vmatprep.subr.bf16.mxu0 %v762
  %1122 = vmatpush1.bf16.msra.mxu0 %v761
  %1123 = vmatprep.mubr.bf16.mxu0 %v191
  %1124 = vmatmul.mubr.bf16.gmra.mrb[0].mxu0 %v189
  %v1125 = vpop.f32.mrb[0].mxu0
  %v1126 = vadd.f32 %v1085, %v1125
  %v1127 = vpop.f32.mrb[0].mxu0
  %v1128 = vadd.f32 %v1087, %v1127
  %v1129 = vpop.f32.mrb[0].mxu0
  %v1130 = vpop.f32.mrb[0].mxu0
  %1131 = vdwg.mxu0
  %1132 = vmatprep.subr.bf16.mxu0 %v766
  %1133 = vmatpush1.bf16.msra.mxu0 %v765
  %1134 = vmatprep.subr.bf16.mxu0 %v770
  %1135 = vmatpush1.bf16.msra.mxu0 %v769
  %1136 = vmatprep.subr.bf16.mxu0 %v774
  %1137 = vmatpush1.bf16.msra.mxu0 %v773
  %1138 = vmatprep.subr.bf16.mxu0 %v778
  %1139 = vmatpush1.bf16.msra.mxu0 %v777
  %1140 = vmatprep.subr.bf16.mxu0 0
  %1141 = vmatpush1.bf16.msra.mxu0 0
  %1142 = vmatprep.subr.bf16.mxu0 0
  %1143 = vmatpush1.bf16.msra.mxu0 0
  %1144 = vmatprep.subr.bf16.mxu0 0
  %1145 = vmatpush1.bf16.msra.mxu0 0
  %1146 = vmatprep.subr.bf16.mxu0 0
  %1147 = vmatpush1.bf16.msra.mxu0 0
  %1148 = vmatprep.subr.bf16.mxu0 0
  %1149 = vmatpush1.bf16.msra.mxu0 0
  %1150 = vmatprep.subr.bf16.mxu0 0
  %1151 = vmatpush1.bf16.msra.mxu0 0
  %1152 = vmatprep.subr.bf16.mxu0 0
  %1153 = vmatpush1.bf16.msra.mxu0 0
  %1154 = vmatprep.subr.bf16.mxu0 0
  %1155 = vmatpush1.bf16.msra.mxu0 0
  %1156 = vmatprep.subr.bf16.mxu0 0
  %1157 = vmatpush1.bf16.msra.mxu0 0
  %1158 = vmatprep.subr.bf16.mxu0 0
  %1159 = vmatpush1.bf16.msra.mxu0 0
  %1160 = vmatprep.subr.bf16.mxu0 0
  %1161 = vmatpush1.bf16.msra.mxu0 0
  %1162 = vmatprep.subr.bf16.mxu0 0
  %1163 = vmatpush1.bf16.msra.mxu0 0
  %1164 = vmatprep.mubr.bf16.mxu0 0
  %1165 = vmatmul.mubr.bf16.gmra.mrb[0].mxu0 %v925
  %v1166 = vpop.f32.mrb[0].mxu0
  %v1167 = vadd.f32 %v1126, %v1166
  %v1168 = vpop.f32.mrb[0].mxu0
  %v1169 = vadd.f32 %v1128, %v1168
  %v1170 = vpop.f32.mrb[0].mxu0
  %v1171 = vpop.f32.mrb[0].mxu0
  %1172 = vdwg.mxu0
  %v1173 = vsub.f32 0.0, %v1044
  %v1174 = vsub.f32 0.0, %v1046
  %v1175 = vsub.f32 0.0, %v1167
  %v1176 = vsub.f32 0.0, %v1169
  %v1177 = vmul.f32 %v1173, 1.442695
  %v1178 = vpow.pop %v1177
  %v1179 = vmul.f32 %v1174, 1.442695
  %v1180 = vpow.pop %v1179
  %v1181 = vmul.f32 %v1175, 1.442695
  %v1182 = vpow.pop %v1181
  %v1183 = vmul.f32 %v1176, 1.442695
  %v1184 = vpow.pop %v1183
  %v1185 = vadd.f32 %v1178, 1.0
  %v1186 = vadd.f32 %v1180, 1.0
  %v1187 = vadd.f32 %v1182, 1.0
  %v1188 = vadd.f32 %v1184, 1.0
  %v1189 = vrcp.pop %v1185
  %v1190 = vrcp.pop %v1186
  %v1191 = vrcp.pop %v1187
  %v1192 = vrcp.pop %v1188
  %v1193 = vmax.f32 %v1189, 0.0
  %v1194 = vmax.f32 %v1190, 0.0
  %v1195 = vmax.f32 %v1191, 0.0
  %v1196 = vmax.f32 %v1192, 0.0
  %v1197 = vmin.f32 %v1193, 1.0
  %v1198 = vmin.f32 %v1194, 1.0
  %v1199 = vmin.f32 %v1195, 1.0
  %v1200 = vmin.f32 %v1196, 1.0
  %v1205 = vcombine.low %v1197, %v1198
  %v1206 = vcombine.low %v1199, %v1200
  %1209 = vst [vmem:[%s3] sm:$0xff] %v1205
  %vm1210 = vcmask 1043456
  %vm1211 = vcmask 64516
  %vm1212 = vmor %vm1211, %vm1210
  %1213 = vst.msk [vmem:[%s3 + $0x8] sm:$0xff] %vm1212, %v1206
  // Predicated region
  $region14: #{generator_emnist_forward.5} parent=0 // pred_check
    _
  $region15: #{generator_emnist_forward.5} parent=0 // pred_check_branch
    %1215 = sbr.rel (0) target = $region17
  $region16: #{generator_emnist_forward.5} parent=0 // pred_region
    _
  $region17: #{generator_emnist_forward.5} parent=0 // pred_fallthru
    _
  // Predicated region
  $region18: #{generator_emnist_forward.5} parent=0 // pred_check
    _
  $region19: #{generator_emnist_forward.5} parent=0 // pred_check_branch
    %1217 = sbr.rel (0) target = $region21
  $region20: #{generator_emnist_forward.5} parent=0 // pred_region
    _
  $region21: #{generator_emnist_forward.5} parent=0 // pred_fallthru
    _

</llo_original>
